<compile_context>
chip_gen: v7x
topology: tpu7x:2x2x1
jax: 0.10.0
libtpu: 0.0.40
codegen_flags: <defaults>
</compile_context>

<pallas_src>
import jax
import jax.numpy as jnp
from jax import lax
from jax.experimental import pallas as pl
from jax.experimental.pallas import tpu as pltpu

HIDDEN = 384   # rnn1/rnn2/rnn3 hidden size (hard-coded in the PyTorch module)
FC1 = 64       # fc1 output size (before lane padding)
BLK = 16       # timestep block: full (16, 128) bf16 sublane tiles + static unroll


def _round_up(n, m):
    return (n + m - 1) // m * m


def _rnn_layer(inp, w_ih, w_hh, bias, h0, xw_ref, seq_ref):
    """One tanh-RNN layer.

    inp  : (L, K) bf16 value (caller already applied the previous layer's ReLU)
    w_ih : (K, H) bf16, w_hh: (H, H) bf16, bias: (1, H) f32 (= b_ih + b_hh)
    h0   : (1, H) bf16 initial hidden state
    Writes the bf16 output sequence into seq_ref, returns the final hidden (bf16).
    """
    L = inp.shape[0]

    # Input projection for ALL timesteps at once: one big MXU matmul
    # (bf16 operands, f32 accumulation + f32 bias).
    xw_ref[...] = jnp.dot(inp, w_ih, preferred_element_type=jnp.float32) + bias

    def step(xw_row, h):
        # xw_row: (1, H) f32, h: (1, H) bf16.  Recurrent matmul feeds bf16 weights to
        # the MXU with f32 accumulation; tanh runs on the EUP in f32, result stored
        # as bf16 (every downstream consumer is a bf16 MXU feed anyway).
        acc = xw_row + jnp.dot(h, w_hh, preferred_element_type=jnp.float32)
        return jnp.tanh(acc).astype(jnp.bfloat16)

    def run_block(base, n_rows, h):
        # Load a dense (n_rows, H) f32 block of the projection once, run the serial
        # recurrence over its rows in registers (statically unrolled), and write the
        # resulting bf16 hidden rows back as one dense block store.
        xw_blk = xw_ref[pl.ds(base, n_rows), :]
        rows = []
        for i in range(n_rows):
            h = step(xw_blk[i:i + 1, :], h)
            rows.append(h)
        seq_ref[pl.ds(base, n_rows), :] = jnp.concatenate(rows, axis=0)
        return h

    n_blocks = L // BLK
    rem = L % BLK

    h = h0
    if n_blocks > 0:
        def block_body(blk, h):
            base = pl.multiple_of(blk * BLK, BLK)
            return run_block(base, BLK, h)
        # Full unroll only when the block count is small; the recurrence is
        # latency-bound, so for large L the outer unroll is pure i-footprint.
        h = lax.fori_loop(0, n_blocks, block_body, h,
                          unroll=True if n_blocks <= 8 else False)
    if rem > 0:                       # static remainder (L not a multiple of BLK)
        h = run_block(n_blocks * BLK, rem, h)
    return h


def neuralnet_kernel(x_ref,
                     wih1_ref, whh1_ref, b1_ref,
                     wih2_hbm, whh2_hbm, b2_ref,
                     wih3_hbm, whh3_hbm, b3_ref,
                     wfc1_hbm, bfc1_ref,
                     wfc2_hbm, bfc2_ref,
                     out_ref,
                     xw_s, seq_a, seq_b,
                     wih2_v, whh2_v, wih3_v, whh3_v, wfc1_v, wfc2_v,
                     dma_sems):
    # Kick off DMA prefetch of every later-layer weight; they hide behind layer 1's
    # serial recurrence and are waited on immediately before their consumer.
    copies = [
        pltpu.make_async_copy(wih2_hbm, wih2_v, dma_sems.at[0]),
        pltpu.make_async_copy(whh2_hbm, whh2_v, dma_sems.at[1]),
        pltpu.make_async_copy(wih3_hbm, wih3_v, dma_sems.at[2]),
        pltpu.make_async_copy(whh3_hbm, whh3_v, dma_sems.at[3]),
        pltpu.make_async_copy(wfc1_hbm, wfc1_v, dma_sems.at[4]),
        pltpu.make_async_copy(wfc2_hbm, wfc2_v, dma_sems.at[5]),
    ]
    for cp in copies:
        cp.start()

    h0 = jnp.zeros((1, HIDDEN), jnp.bfloat16)

    # rnn1 (zero initial hidden): x (bf16, lane-padded) -> seq_a.
    hn0 = _rnn_layer(x_ref[...], wih1_ref[...], whh1_ref[...], b1_ref[...],
                     h0, xw_s, seq_a)

    # rnn2: input = relu(rnn1 sequence), initial hidden = rnn1's UN-relu'd final
    # hidden.  dropout1 == identity.  Writes into the other scratch (ping-pong).
    copies[0].wait()
    copies[1].wait()
    hn1 = _rnn_layer(jnp.maximum(seq_a[...], 0.0), wih2_v[...], whh2_v[...],
                     b2_ref[...], hn0, xw_s, seq_b)

    # rnn3, same pattern.  dropout2 == identity.
    copies[2].wait()
    copies[3].wait()
    _ = _rnn_layer(jnp.maximum(seq_b[...], 0.0), wih3_v[...], whh3_v[...],
                   b3_ref[...], hn1, xw_s, seq_a)

    # fc1 + relu (dropout3 == identity), then fc2.  FC dims are lane-padded to 128 so
    # both matmuls fill MXU columns and the final store is a lane-dense (L, 128) write.
    copies[4].wait()
    copies[5].wait()
    out3 = jnp.maximum(seq_a[...], 0.0)               # bf16
    h_fc1 = jnp.maximum(
        jnp.dot(out3, wfc1_v[...], preferred_element_type=jnp.float32)
        + bfc1_ref[...], 0.0)
    out_ref[...] = (
        jnp.dot(h_fc1.astype(jnp.bfloat16), wfc2_v[...],
                preferred_element_type=jnp.float32) + bfc2_ref[...])


def neuralnet_forward(x, params):
    """x: any shape (N, ...); flattened to (N, input_size) like x.view(N, -1)."""
    L = x.shape[0]
    x2 = x.reshape(L, -1).astype(jnp.float32)
    in_features = x2.shape[1]
    num_classes = params["wfc2"].shape[1]

    # Lane-pad contraction / output dims to multiples of 128 (zero padding is inert).
    k_pad = _round_up(max(in_features, 128), 128)
    fc1_pad = _round_up(max(FC1, 128), 128)
    nc_pad = _round_up(max(num_classes, 128), 128)

    bf16 = jnp.bfloat16
    # x is cast to bf16 here (it was cast inside the kernel before the MXU feed
    # anyway), halving its VMEM footprint.
    x2p = jnp.pad(x2, ((0, 0), (0, k_pad - in_features))).astype(bf16)
    wih1 = jnp.pad(params["wih1"], ((0, k_pad - in_features), (0, 0))).astype(bf16)
    whh1 = params["whh1"].astype(bf16)
    wih2 = params["wih2"].astype(bf16)
    whh2 = params["whh2"].astype(bf16)
    wih3 = params["wih3"].astype(bf16)
    whh3 = params["whh3"].astype(bf16)
    wfc1 = jnp.pad(params["wfc1"], ((0, 0), (0, fc1_pad - FC1))).astype(bf16)
    bfc1 = jnp.pad(params["bfc1"], ((0, 0), (0, fc1_pad - FC1)))
    wfc2 = jnp.pad(params["wfc2"],
                   ((0, fc1_pad - FC1), (0, nc_pad - num_classes))).astype(bf16)
    bfc2 = jnp.pad(params["bfc2"], ((0, 0), (0, nc_pad - num_classes)))

    args = (x2p,
            wih1, whh1, params["b1"],
            wih2, whh2, params["b2"],
            wih3, whh3, params["b3"],
            wfc1, bfc1, wfc2, bfc2)

    vmem = pl.BlockSpec(memory_space=pltpu.MemorySpace.VMEM)
    anyspace = pl.BlockSpec(memory_space=pl.ANY)
    in_specs = [
        vmem,                       # x
        vmem, vmem, vmem,           # wih1, whh1, b1 (needed immediately)
        anyspace, anyspace, vmem,   # wih2, whh2 (DMA-prefetched), b2
        anyspace, anyspace, vmem,   # wih3, whh3 (DMA-prefetched), b3
        anyspace, vmem,             # wfc1 (DMA-prefetched), bfc1
        anyspace, vmem,             # wfc2 (DMA-prefetched), bfc2
    ]

    scratch_shapes = [
        pltpu.VMEM((L, HIDDEN), jnp.float32),          # xw_s : per-layer projection
        pltpu.VMEM((L, HIDDEN), jnp.bfloat16),         # seq_a: ping-pong sequence buf
        pltpu.VMEM((L, HIDDEN), jnp.bfloat16),         # seq_b: ping-pong sequence buf
        pltpu.VMEM((HIDDEN, HIDDEN), jnp.bfloat16),    # wih2_v
        pltpu.VMEM((HIDDEN, HIDDEN), jnp.bfloat16),    # whh2_v
        pltpu.VMEM((HIDDEN, HIDDEN), jnp.bfloat16),    # wih3_v
        pltpu.VMEM((HIDDEN, HIDDEN), jnp.bfloat16),    # whh3_v
        pltpu.VMEM((HIDDEN, fc1_pad), jnp.bfloat16),   # wfc1_v
        pltpu.VMEM((fc1_pad, nc_pad), jnp.bfloat16),   # wfc2_v
        pltpu.SemaphoreType.DMA((6,)),                 # one sem per weight prefetch
    ]

    # Advisory cost estimate: projection + recurrent matmuls + FC head, tanh on EUP.
    flops = 2 * L * (k_pad * HIDDEN + 2 * HIDDEN * HIDDEN      # input projections
                     + 3 * HIDDEN * HIDDEN                      # recurrent matmuls
                     + HIDDEN * fc1_pad + fc1_pad * nc_pad)     # fc head
    bytes_accessed = (sum(int(a.size) * a.dtype.itemsize for a in args)
                      + L * nc_pad * 4)
    cost = pl.CostEstimate(flops=flops, transcendentals=3 * L * HIDDEN,
                           bytes_accessed=bytes_accessed)

    # VMEM budget scales with the actual working set (inputs + prefetched weights +
    # scratch + output), with 2x headroom, clamped to v7x's 64 MiB physical VMEM.
    # TODO(synk): for very large L, tile the grid over L (BlockSpec-tiled x/seq/out
    # with the recurrence carried in scratch) instead of keeping everything resident.
    scratch_bytes = (L * HIDDEN * 4 + 2 * L * HIDDEN * 2
                     + 4 * HIDDEN * HIDDEN * 2
                     + HIDDEN * fc1_pad * 2 + fc1_pad * nc_pad * 2)
    out_bytes = L * nc_pad * 4
    working_set = bytes_accessed + scratch_bytes + out_bytes
    vmem_limit = int(min(max(2 * working_set, 16 << 20), 64 << 20))

    out_padded = pl.pallas_call(
        neuralnet_kernel,
        out_shape=jax.ShapeDtypeStruct((L, nc_pad), jnp.float32),
        in_specs=in_specs,
        out_specs=vmem,
        scratch_shapes=scratch_shapes,
        cost_estimate=cost,
        compiler_params=pltpu.CompilerParams(vmem_limit_bytes=vmem_limit),
    )(*args)
    return out_padded[:, :num_classes]


def init_params(key, input_size, num_classes):
    """Deterministic PyTorch-style init: uniform(-1/sqrt(fan), 1/sqrt(fan)).
    Weights are stored pre-transposed as (in, out) so the kernel does x @ W."""
    ks = jax.random.split(key, 16)

    def u(k, shape, fan):
        b = 1.0 / jnp.sqrt(jnp.float32(fan))
        return jax.random.uniform(k, shape, jnp.float32, -b, b)

    H = HIDDEN
    return dict(
        wih1=u(ks[0], (input_size, H), H),
        whh1=u(ks[1], (H, H), H),
        b1=u(ks[2], (1, H), H) + u(ks[3], (1, H), H),      # b_ih + b_hh
        wih2=u(ks[4], (H, H), H),
        whh2=u(ks[5], (H, H), H),
        b2=u(ks[6], (1, H), H) + u(ks[7], (1, H), H),
        wih3=u(ks[8], (H, H), H),
        whh3=u(ks[9], (H, H), H),
        b3=u(ks[10], (1, H), H) + u(ks[11], (1, H), H),
        wfc1=u(ks[12], (H, FC1), H),
        bfc1=u(ks[13], (1, FC1), H),
        wfc2=u(ks[14], (FC1, num_classes), FC1),
        bfc2=u(ks[15], (1, num_classes), FC1),
    )


def reference_forward(x, p):
    """Pure-JAX f32 reference matching PyTorch nn.RNN (eval mode) semantics."""
    L = x.shape[0]
    xs = x.reshape(L, -1).astype(jnp.float32)

    def rnn(inp, wih, whh, b, h0):
        xw = inp @ wih + b          # (L, H)

        def step(h, xw_t):
            h_new = jnp.tanh(xw_t + h @ whh)
            return h_new, h_new

        h_fin, seq = lax.scan(step, h0, xw)
        return seq, h_fin

    zeros = jnp.zeros((HIDDEN,), jnp.float32)
    seq1, hn0 = rnn(xs, p["wih1"], p["whh1"], p["b1"][0], zeros)
    out1 = jnp.maximum(seq1, 0.0)
    seq2, hn1 = rnn(out1, p["wih2"], p["whh2"], p["b2"][0], hn0)
    out2 = jnp.maximum(seq2, 0.0)
    seq3, _ = rnn(out2, p["wih3"], p["whh3"], p["b3"][0], hn1)
    out3 = jnp.maximum(seq3, 0.0)
    h = jnp.maximum(out3 @ p["wfc1"] + p["bfc1"], 0.0)
    return h @ p["wfc2"] + p["bfc2"]


if __name__ == "__main__":
    # Small shapes: x is (8, 2, 4, 4) -> view -> (L=8, input_size=32) unbatched sequence.
    L, C, Hh, Ww = 8, 2, 4, 4
    input_size = C * Hh * Ww
    num_classes = 10

    key = jax.random.PRNGKey(0)
    kx, kp = jax.random.split(key)
    x = jax.random.normal(kx, (L, C, Hh, Ww), jnp.float32)
    params = init_params(kp, input_size, num_classes)

    out = neuralnet_forward(x, params)
    out = jax.block_until_ready(out)

    ref = reference_forward(x, params)
    assert out.shape == (L, num_classes), out.shape
    # Tolerance covers the bf16 MXU feed / bf16 hidden-state storage (f32 accumulation
    # everywhere); an all-f32 kernel would match to ~1e-5, bf16 lands within a few 1e-3.
    assert jnp.allclose(out, ref, atol=2e-2, rtol=2e-2), (
        float(jnp.max(jnp.abs(out - ref))))

    print("KERNEL_OK")
</pallas_src>

<mosaic_0001>
module attributes {stable_mosaic.version = 11 : i64} {
  func.func @neuralnet_kernel(%arg0: memref<8x128xbf16, #tpu.memory_space<vmem>>, %arg1: memref<128x384xbf16, #tpu.memory_space<vmem>>, %arg2: memref<384x384xbf16, #tpu.memory_space<vmem>>, %arg3: memref<1x384xf32, #tpu.memory_space<vmem>>, %arg4: memref<384x384xbf16, #tpu.memory_space<any>>, %arg5: memref<384x384xbf16, #tpu.memory_space<any>>, %arg6: memref<1x384xf32, #tpu.memory_space<vmem>>, %arg7: memref<384x384xbf16, #tpu.memory_space<any>>, %arg8: memref<384x384xbf16, #tpu.memory_space<any>>, %arg9: memref<1x384xf32, #tpu.memory_space<vmem>>, %arg10: memref<384x128xbf16, #tpu.memory_space<any>>, %arg11: memref<1x128xf32, #tpu.memory_space<vmem>>, %arg12: memref<128x128xbf16, #tpu.memory_space<any>>, %arg13: memref<1x128xf32, #tpu.memory_space<vmem>>, %arg14: memref<8x128xf32, #tpu.memory_space<vmem>>, %arg15: memref<8x384xf32, #tpu.memory_space<vmem>>, %arg16: memref<8x384xbf16, #tpu.memory_space<vmem>>, %arg17: memref<8x384xbf16, #tpu.memory_space<vmem>>, %arg18: memref<384x384xbf16, #tpu.memory_space<vmem>>, %arg19: memref<384x384xbf16, #tpu.memory_space<vmem>>, %arg20: memref<384x384xbf16, #tpu.memory_space<vmem>>, %arg21: memref<384x384xbf16, #tpu.memory_space<vmem>>, %arg22: memref<384x128xbf16, #tpu.memory_space<vmem>>, %arg23: memref<128x128xbf16, #tpu.memory_space<vmem>>, %arg24: memref<6x!tpu.dma_semaphore, #tpu.memory_space<semaphore_mem>>) attributes {dimension_semantics = [], scalar_prefetch = 0 : i64, scratch_operands = 10 : i64, tpu.core_type = #tpu.core_type<tc>} {
    %c0_i32 = arith.constant 0 : i32
    %0 = tpu.memref_slice %arg24[%c0_i32] : memref<6x!tpu.dma_semaphore, #tpu.memory_space<semaphore_mem>> -> memref<1x!tpu.dma_semaphore, #tpu.memory_space<semaphore_mem>>
    %1 = tpu.memref_squeeze %0 : memref<1x!tpu.dma_semaphore, #tpu.memory_space<semaphore_mem>> -> memref<!tpu.dma_semaphore, #tpu.memory_space<semaphore_mem>>
    tpu.enqueue_dma source(%arg4 : memref<384x384xbf16, #tpu.memory_space<any>>) target(%arg18 : memref<384x384xbf16, #tpu.memory_space<vmem>>) target_semaphore(%1 : memref<!tpu.dma_semaphore, #tpu.memory_space<semaphore_mem>>)
    %c1_i32 = arith.constant 1 : i32
    %2 = tpu.memref_slice %arg24[%c1_i32] : memref<6x!tpu.dma_semaphore, #tpu.memory_space<semaphore_mem>> -> memref<1x!tpu.dma_semaphore, #tpu.memory_space<semaphore_mem>>
    %3 = tpu.memref_squeeze %2 : memref<1x!tpu.dma_semaphore, #tpu.memory_space<semaphore_mem>> -> memref<!tpu.dma_semaphore, #tpu.memory_space<semaphore_mem>>
    tpu.enqueue_dma source(%arg5 : memref<384x384xbf16, #tpu.memory_space<any>>) target(%arg19 : memref<384x384xbf16, #tpu.memory_space<vmem>>) target_semaphore(%3 : memref<!tpu.dma_semaphore, #tpu.memory_space<semaphore_mem>>)
    %c2_i32 = arith.constant 2 : i32
    %4 = tpu.memref_slice %arg24[%c2_i32] : memref<6x!tpu.dma_semaphore, #tpu.memory_space<semaphore_mem>> -> memref<1x!tpu.dma_semaphore, #tpu.memory_space<semaphore_mem>>
    %5 = tpu.memref_squeeze %4 : memref<1x!tpu.dma_semaphore, #tpu.memory_space<semaphore_mem>> -> memref<!tpu.dma_semaphore, #tpu.memory_space<semaphore_mem>>
    tpu.enqueue_dma source(%arg7 : memref<384x384xbf16, #tpu.memory_space<any>>) target(%arg20 : memref<384x384xbf16, #tpu.memory_space<vmem>>) target_semaphore(%5 : memref<!tpu.dma_semaphore, #tpu.memory_space<semaphore_mem>>)
    %c3_i32 = arith.constant 3 : i32
    %6 = tpu.memref_slice %arg24[%c3_i32] : memref<6x!tpu.dma_semaphore, #tpu.memory_space<semaphore_mem>> -> memref<1x!tpu.dma_semaphore, #tpu.memory_space<semaphore_mem>>
    %7 = tpu.memref_squeeze %6 : memref<1x!tpu.dma_semaphore, #tpu.memory_space<semaphore_mem>> -> memref<!tpu.dma_semaphore, #tpu.memory_space<semaphore_mem>>
    tpu.enqueue_dma source(%arg8 : memref<384x384xbf16, #tpu.memory_space<any>>) target(%arg21 : memref<384x384xbf16, #tpu.memory_space<vmem>>) target_semaphore(%7 : memref<!tpu.dma_semaphore, #tpu.memory_space<semaphore_mem>>)
    %c4_i32 = arith.constant 4 : i32
    %8 = tpu.memref_slice %arg24[%c4_i32] : memref<6x!tpu.dma_semaphore, #tpu.memory_space<semaphore_mem>> -> memref<1x!tpu.dma_semaphore, #tpu.memory_space<semaphore_mem>>
    %9 = tpu.memref_squeeze %8 : memref<1x!tpu.dma_semaphore, #tpu.memory_space<semaphore_mem>> -> memref<!tpu.dma_semaphore, #tpu.memory_space<semaphore_mem>>
    tpu.enqueue_dma source(%arg10 : memref<384x128xbf16, #tpu.memory_space<any>>) target(%arg22 : memref<384x128xbf16, #tpu.memory_space<vmem>>) target_semaphore(%9 : memref<!tpu.dma_semaphore, #tpu.memory_space<semaphore_mem>>)
    %c5_i32 = arith.constant 5 : i32
    %10 = tpu.memref_slice %arg24[%c5_i32] : memref<6x!tpu.dma_semaphore, #tpu.memory_space<semaphore_mem>> -> memref<1x!tpu.dma_semaphore, #tpu.memory_space<semaphore_mem>>
    %11 = tpu.memref_squeeze %10 : memref<1x!tpu.dma_semaphore, #tpu.memory_space<semaphore_mem>> -> memref<!tpu.dma_semaphore, #tpu.memory_space<semaphore_mem>>
    tpu.enqueue_dma source(%arg12 : memref<128x128xbf16, #tpu.memory_space<any>>) target(%arg23 : memref<128x128xbf16, #tpu.memory_space<vmem>>) target_semaphore(%11 : memref<!tpu.dma_semaphore, #tpu.memory_space<semaphore_mem>>)
    %cst = arith.constant 0.000000e+00 : bf16
    %12 = vector.broadcast %cst : bf16 to vector<1x384xbf16>
    %c0 = arith.constant 0 : index
    %c0_0 = arith.constant 0 : index
    %13 = vector.load %arg0[%c0, %c0_0] : memref<8x128xbf16, #tpu.memory_space<vmem>>, vector<8x128xbf16>
    %c0_1 = arith.constant 0 : index
    %c0_2 = arith.constant 0 : index
    %14 = vector.load %arg1[%c0_1, %c0_2] : memref<128x384xbf16, #tpu.memory_space<vmem>>, vector<128x384xbf16>
    %c0_3 = arith.constant 0 : index
    %c0_4 = arith.constant 0 : index
    %15 = vector.load %arg2[%c0_3, %c0_4] : memref<384x384xbf16, #tpu.memory_space<vmem>>, vector<384x384xbf16>
    %c0_5 = arith.constant 0 : index
    %c0_6 = arith.constant 0 : index
    %16 = vector.load %arg3[%c0_5, %c0_6] : memref<1x384xf32, #tpu.memory_space<vmem>>, vector<1x384xf32>
    %cst_7 = arith.constant dense<0.000000e+00> : vector<8x384xf32>
    %17 = tpu.matmul %13, %14, %cst_7 {dimension_numbers = #tpu.dot_dimension_numbers<[1], [0], [0], [1], [0, 0, 1, 1], [], []>} : vector<8x128xbf16>, vector<128x384xbf16>, vector<8x384xf32> -> vector<8x384xf32>
    %18 = vector.broadcast %16 : vector<1x384xf32> to vector<8x384xf32>
    %19 = arith.addf %17, %18 : vector<8x384xf32>
    %c0_8 = arith.constant 0 : index
    %c0_9 = arith.constant 0 : index
    %20 = vector.load %arg15[%c0_8, %c0_9] : memref<8x384xf32, #tpu.memory_space<vmem>>, vector<8x384xf32>
    tpu.vector_store %arg15[%c0_8, %c0_9], %19 {strides = array<i32>} : memref<8x384xf32, #tpu.memory_space<vmem>>, vector<8x384xf32>,
    %c0_10 = arith.constant 0 : index
    %c0_11 = arith.constant 0 : index
    %21 = vector.load %arg15[%c0_10, %c0_11] : memref<8x384xf32, #tpu.memory_space<vmem>>, vector<8x384xf32>
    %22 = vector.extract_strided_slice %21 {offsets = [0, 0], sizes = [1, 384], strides = [1, 1]} : vector<8x384xf32> to vector<1x384xf32>
    %cst_12 = arith.constant dense<0.000000e+00> : vector<1x384xf32>
    %23 = tpu.matmul %12, %15, %cst_12 {dimension_numbers = #tpu.dot_dimension_numbers<[1], [0], [0], [1], [0, 0, 1, 1], [], []>} : vector<1x384xbf16>, vector<384x384xbf16>, vector<1x384xf32> -> vector<1x384xf32>
    %24 = arith.addf %22, %23 : vector<1x384xf32>
    %25 = math.tanh %24 : vector<1x384xf32>
    %26 = arith.truncf %25 : vector<1x384xf32> to vector<1x384xbf16>
    %27 = vector.extract_strided_slice %21 {offsets = [1, 0], sizes = [1, 384], strides = [1, 1]} : vector<8x384xf32> to vector<1x384xf32>
    %cst_13 = arith.constant dense<0.000000e+00> : vector<1x384xf32>
    %28 = tpu.matmul %26, %15, %cst_13 {dimension_numbers = #tpu.dot_dimension_numbers<[1], [0], [0], [1], [0, 0, 1, 1], [], []>} : vector<1x384xbf16>, vector<384x384xbf16>, vector<1x384xf32> -> vector<1x384xf32>
    %29 = arith.addf %27, %28 : vector<1x384xf32>
    %30 = math.tanh %29 : vector<1x384xf32>
    %31 = arith.truncf %30 : vector<1x384xf32> to vector<1x384xbf16>
    %32 = vector.extract_strided_slice %21 {offsets = [2, 0], sizes = [1, 384], strides = [1, 1]} : vector<8x384xf32> to vector<1x384xf32>
    %cst_14 = arith.constant dense<0.000000e+00> : vector<1x384xf32>
    %33 = tpu.matmul %31, %15, %cst_14 {dimension_numbers = #tpu.dot_dimension_numbers<[1], [0], [0], [1], [0, 0, 1, 1], [], []>} : vector<1x384xbf16>, vector<384x384xbf16>, vector<1x384xf32> -> vector<1x384xf32>
    %34 = arith.addf %32, %33 : vector<1x384xf32>
    %35 = math.tanh %34 : vector<1x384xf32>
    %36 = arith.truncf %35 : vector<1x384xf32> to vector<1x384xbf16>
    %37 = vector.extract_strided_slice %21 {offsets = [3, 0], sizes = [1, 384], strides = [1, 1]} : vector<8x384xf32> to vector<1x384xf32>
    %cst_15 = arith.constant dense<0.000000e+00> : vector<1x384xf32>
    %38 = tpu.matmul %36, %15, %cst_15 {dimension_numbers = #tpu.dot_dimension_numbers<[1], [0], [0], [1], [0, 0, 1, 1], [], []>} : vector<1x384xbf16>, vector<384x384xbf16>, vector<1x384xf32> -> vector<1x384xf32>
    %39 = arith.addf %37, %38 : vector<1x384xf32>
    %40 = math.tanh %39 : vector<1x384xf32>
    %41 = arith.truncf %40 : vector<1x384xf32> to vector<1x384xbf16>
    %42 = vector.extract_strided_slice %21 {offsets = [4, 0], sizes = [1, 384], strides = [1, 1]} : vector<8x384xf32> to vector<1x384xf32>
    %cst_16 = arith.constant dense<0.000000e+00> : vector<1x384xf32>
    %43 = tpu.matmul %41, %15, %cst_16 {dimension_numbers = #tpu.dot_dimension_numbers<[1], [0], [0], [1], [0, 0, 1, 1], [], []>} : vector<1x384xbf16>, vector<384x384xbf16>, vector<1x384xf32> -> vector<1x384xf32>
    %44 = arith.addf %42, %43 : vector<1x384xf32>
    %45 = math.tanh %44 : vector<1x384xf32>
    %46 = arith.truncf %45 : vector<1x384xf32> to vector<1x384xbf16>
    %47 = vector.extract_strided_slice %21 {offsets = [5, 0], sizes = [1, 384], strides = [1, 1]} : vector<8x384xf32> to vector<1x384xf32>
    %cst_17 = arith.constant dense<0.000000e+00> : vector<1x384xf32>
    %48 = tpu.matmul %46, %15, %cst_17 {dimension_numbers = #tpu.dot_dimension_numbers<[1], [0], [0], [1], [0, 0, 1, 1], [], []>} : vector<1x384xbf16>, vector<384x384xbf16>, vector<1x384xf32> -> vector<1x384xf32>
    %49 = arith.addf %47, %48 : vector<1x384xf32>
    %50 = math.tanh %49 : vector<1x384xf32>
    %51 = arith.truncf %50 : vector<1x384xf32> to vector<1x384xbf16>
    %52 = vector.extract_strided_slice %21 {offsets = [6, 0], sizes = [1, 384], strides = [1, 1]} : vector<8x384xf32> to vector<1x384xf32>
    %cst_18 = arith.constant dense<0.000000e+00> : vector<1x384xf32>
    %53 = tpu.matmul %51, %15, %cst_18 {dimension_numbers = #tpu.dot_dimension_numbers<[1], [0], [0], [1], [0, 0, 1, 1], [], []>} : vector<1x384xbf16>, vector<384x384xbf16>, vector<1x384xf32> -> vector<1x384xf32>
    %54 = arith.addf %52, %53 : vector<1x384xf32>
    %55 = math.tanh %54 : vector<1x384xf32>
    %56 = arith.truncf %55 : vector<1x384xf32> to vector<1x384xbf16>
    %57 = vector.extract_strided_slice %21 {offsets = [7, 0], sizes = [1, 384], strides = [1, 1]} : vector<8x384xf32> to vector<1x384xf32>
    %cst_19 = arith.constant dense<0.000000e+00> : vector<1x384xf32>
    %58 = tpu.matmul %56, %15, %cst_19 {dimension_numbers = #tpu.dot_dimension_numbers<[1], [0], [0], [1], [0, 0, 1, 1], [], []>} : vector<1x384xbf16>, vector<384x384xbf16>, vector<1x384xf32> -> vector<1x384xf32>
    %59 = arith.addf %57, %58 : vector<1x384xf32>
    %60 = math.tanh %59 : vector<1x384xf32>
    %61 = arith.truncf %60 : vector<1x384xf32> to vector<1x384xbf16>
    %62 = tpu.concatenate %26, %31, %36, %41, %46, %51, %56, %61 in 0 : vector<1x384xbf16>, vector<1x384xbf16>, vector<1x384xbf16>, vector<1x384xbf16>, vector<1x384xbf16>, vector<1x384xbf16>, vector<1x384xbf16>, vector<1x384xbf16> -> vector<8x384xbf16>
    %c0_20 = arith.constant 0 : index
    %c0_21 = arith.constant 0 : index
    %63 = vector.load %arg16[%c0_20, %c0_21] : memref<8x384xbf16, #tpu.memory_space<vmem>>, vector<8x384xbf16>
    tpu.vector_store %arg16[%c0_20, %c0_21], %62 {strides = array<i32>} : memref<8x384xbf16, #tpu.memory_space<vmem>>, vector<8x384xbf16>,
    %c0_i32_22 = arith.constant 0 : i32
    %64 = tpu.memref_slice %arg24[%c0_i32_22] : memref<6x!tpu.dma_semaphore, #tpu.memory_space<semaphore_mem>> -> memref<1x!tpu.dma_semaphore, #tpu.memory_space<semaphore_mem>>
    %65 = tpu.memref_squeeze %64 : memref<1x!tpu.dma_semaphore, #tpu.memory_space<semaphore_mem>> -> memref<!tpu.dma_semaphore, #tpu.memory_space<semaphore_mem>>
    tpu.wait_dma2 semaphore(%65 : memref<!tpu.dma_semaphore, #tpu.memory_space<semaphore_mem>>) src(%arg4 : memref<384x384xbf16, #tpu.memory_space<any>>) dst(%arg18 : memref<384x384xbf16, #tpu.memory_space<vmem>>)
    %c1_i32_23 = arith.constant 1 : i32
    %66 = tpu.memref_slice %arg24[%c1_i32_23] : memref<6x!tpu.dma_semaphore, #tpu.memory_space<semaphore_mem>> -> memref<1x!tpu.dma_semaphore, #tpu.memory_space<semaphore_mem>>
    %67 = tpu.memref_squeeze %66 : memref<1x!tpu.dma_semaphore, #tpu.memory_space<semaphore_mem>> -> memref<!tpu.dma_semaphore, #tpu.memory_space<semaphore_mem>>
    tpu.wait_dma2 semaphore(%67 : memref<!tpu.dma_semaphore, #tpu.memory_space<semaphore_mem>>) src(%arg5 : memref<384x384xbf16, #tpu.memory_space<any>>) dst(%arg19 : memref<384x384xbf16, #tpu.memory_space<vmem>>)
    %c0_24 = arith.constant 0 : index
    %c0_25 = arith.constant 0 : index
    %68 = vector.load %arg16[%c0_24, %c0_25] : memref<8x384xbf16, #tpu.memory_space<vmem>>, vector<8x384xbf16>
    %cst_26 = arith.constant 0.000000e+00 : bf16
    %69 = vector.broadcast %cst_26 : bf16 to vector<8x384xbf16>
    %70 = arith.maximumf %68, %69 : vector<8x384xbf16>
    %c0_27 = arith.constant 0 : index
    %c0_28 = arith.constant 0 : index
    %71 = vector.load %arg18[%c0_27, %c0_28] : memref<384x384xbf16, #tpu.memory_space<vmem>>, vector<384x384xbf16>
    %c0_29 = arith.constant 0 : index
    %c0_30 = arith.constant 0 : index
    %72 = vector.load %arg19[%c0_29, %c0_30] : memref<384x384xbf16, #tpu.memory_space<vmem>>, vector<384x384xbf16>
    %c0_31 = arith.constant 0 : index
    %c0_32 = arith.constant 0 : index
    %73 = vector.load %arg6[%c0_31, %c0_32] : memref<1x384xf32, #tpu.memory_space<vmem>>, vector<1x384xf32>
    %cst_33 = arith.constant dense<0.000000e+00> : vector<8x384xf32>
    %74 = tpu.matmul %70, %71, %cst_33 {dimension_numbers = #tpu.dot_dimension_numbers<[1], [0], [0], [1], [0, 0, 1, 1], [], []>} : vector<8x384xbf16>, vector<384x384xbf16>, vector<8x384xf32> -> vector<8x384xf32>
    %75 = vector.broadcast %73 : vector<1x384xf32> to vector<8x384xf32>
    %76 = arith.addf %74, %75 : vector<8x384xf32>
    %c0_34 = arith.constant 0 : index
    %c0_35 = arith.constant 0 : index
    %77 = vector.load %arg15[%c0_34, %c0_35] : memref<8x384xf32, #tpu.memory_space<vmem>>, vector<8x384xf32>
    tpu.vector_store %arg15[%c0_34, %c0_35], %76 {strides = array<i32>} : memref<8x384xf32, #tpu.memory_space<vmem>>, vector<8x384xf32>,
    %c0_36 = arith.constant 0 : index
    %c0_37 = arith.constant 0 : index
    %78 = vector.load %arg15[%c0_36, %c0_37] : memref<8x384xf32, #tpu.memory_space<vmem>>, vector<8x384xf32>
    %79 = vector.extract_strided_slice %78 {offsets = [0, 0], sizes = [1, 384], strides = [1, 1]} : vector<8x384xf32> to vector<1x384xf32>
    %cst_38 = arith.constant dense<0.000000e+00> : vector<1x384xf32>
    %80 = tpu.matmul %61, %72, %cst_38 {dimension_numbers = #tpu.dot_dimension_numbers<[1], [0], [0], [1], [0, 0, 1, 1], [], []>} : vector<1x384xbf16>, vector<384x384xbf16>, vector<1x384xf32> -> vector<1x384xf32>
    %81 = arith.addf %79, %80 : vector<1x384xf32>
    %82 = math.tanh %81 : vector<1x384xf32>
    %83 = arith.truncf %82 : vector<1x384xf32> to vector<1x384xbf16>
    %84 = vector.extract_strided_slice %78 {offsets = [1, 0], sizes = [1, 384], strides = [1, 1]} : vector<8x384xf32> to vector<1x384xf32>
    %cst_39 = arith.constant dense<0.000000e+00> : vector<1x384xf32>
    %85 = tpu.matmul %83, %72, %cst_39 {dimension_numbers = #tpu.dot_dimension_numbers<[1], [0], [0], [1], [0, 0, 1, 1], [], []>} : vector<1x384xbf16>, vector<384x384xbf16>, vector<1x384xf32> -> vector<1x384xf32>
    %86 = arith.addf %84, %85 : vector<1x384xf32>
    %87 = math.tanh %86 : vector<1x384xf32>
    %88 = arith.truncf %87 : vector<1x384xf32> to vector<1x384xbf16>
    %89 = vector.extract_strided_slice %78 {offsets = [2, 0], sizes = [1, 384], strides = [1, 1]} : vector<8x384xf32> to vector<1x384xf32>
    %cst_40 = arith.constant dense<0.000000e+00> : vector<1x384xf32>
    %90 = tpu.matmul %88, %72, %cst_40 {dimension_numbers = #tpu.dot_dimension_numbers<[1], [0], [0], [1], [0, 0, 1, 1], [], []>} : vector<1x384xbf16>, vector<384x384xbf16>, vector<1x384xf32> -> vector<1x384xf32>
    %91 = arith.addf %89, %90 : vector<1x384xf32>
    %92 = math.tanh %91 : vector<1x384xf32>
    %93 = arith.truncf %92 : vector<1x384xf32> to vector<1x384xbf16>
    %94 = vector.extract_strided_slice %78 {offsets = [3, 0], sizes = [1, 384], strides = [1, 1]} : vector<8x384xf32> to vector<1x384xf32>
    %cst_41 = arith.constant dense<0.000000e+00> : vector<1x384xf32>
    %95 = tpu.matmul %93, %72, %cst_41 {dimension_numbers = #tpu.dot_dimension_numbers<[1], [0], [0], [1], [0, 0, 1, 1], [], []>} : vector<1x384xbf16>, vector<384x384xbf16>, vector<1x384xf32> -> vector<1x384xf32>
    %96 = arith.addf %94, %95 : vector<1x384xf32>
    %97 = math.tanh %96 : vector<1x384xf32>
    %98 = arith.truncf %97 : vector<1x384xf32> to vector<1x384xbf16>
    %99 = vector.extract_strided_slice %78 {offsets = [4, 0], sizes = [1, 384], strides = [1, 1]} : vector<8x384xf32> to vector<1x384xf32>
    %cst_42 = arith.constant dense<0.000000e+00> : vector<1x384xf32>
    %100 = tpu.matmul %98, %72, %cst_42 {dimension_numbers = #tpu.dot_dimension_numbers<[1], [0], [0], [1], [0, 0, 1, 1], [], []>} : vector<1x384xbf16>, vector<384x384xbf16>, vector<1x384xf32> -> vector<1x384xf32>
    %101 = arith.addf %99, %100 : vector<1x384xf32>
    %102 = math.tanh %101 : vector<1x384xf32>
    %103 = arith.truncf %102 : vector<1x384xf32> to vector<1x384xbf16>
    %104 = vector.extract_strided_slice %78 {offsets = [5, 0], sizes = [1, 384], strides = [1, 1]} : vector<8x384xf32> to vector<1x384xf32>
    %cst_43 = arith.constant dense<0.000000e+00> : vector<1x384xf32>
    %105 = tpu.matmul %103, %72, %cst_43 {dimension_numbers = #tpu.dot_dimension_numbers<[1], [0], [0], [1], [0, 0, 1, 1], [], []>} : vector<1x384xbf16>, vector<384x384xbf16>, vector<1x384xf32> -> vector<1x384xf32>
    %106 = arith.addf %104, %105 : vector<1x384xf32>
    %107 = math.tanh %106 : vector<1x384xf32>
    %108 = arith.truncf %107 : vector<1x384xf32> to vector<1x384xbf16>
    %109 = vector.extract_strided_slice %78 {offsets = [6, 0], sizes = [1, 384], strides = [1, 1]} : vector<8x384xf32> to vector<1x384xf32>
    %cst_44 = arith.constant dense<0.000000e+00> : vector<1x384xf32>
    %110 = tpu.matmul %108, %72, %cst_44 {dimension_numbers = #tpu.dot_dimension_numbers<[1], [0], [0], [1], [0, 0, 1, 1], [], []>} : vector<1x384xbf16>, vector<384x384xbf16>, vector<1x384xf32> -> vector<1x384xf32>
    %111 = arith.addf %109, %110 : vector<1x384xf32>
    %112 = math.tanh %111 : vector<1x384xf32>
    %113 = arith.truncf %112 : vector<1x384xf32> to vector<1x384xbf16>
    %114 = vector.extract_strided_slice %78 {offsets = [7, 0], sizes = [1, 384], strides = [1, 1]} : vector<8x384xf32> to vector<1x384xf32>
    %cst_45 = arith.constant dense<0.000000e+00> : vector<1x384xf32>
    %115 = tpu.matmul %113, %72, %cst_45 {dimension_numbers = #tpu.dot_dimension_numbers<[1], [0], [0], [1], [0, 0, 1, 1], [], []>} : vector<1x384xbf16>, vector<384x384xbf16>, vector<1x384xf32> -> vector<1x384xf32>
    %116 = arith.addf %114, %115 : vector<1x384xf32>
    %117 = math.tanh %116 : vector<1x384xf32>
    %118 = arith.truncf %117 : vector<1x384xf32> to vector<1x384xbf16>
    %119 = tpu.concatenate %83, %88, %93, %98, %103, %108, %113, %118 in 0 : vector<1x384xbf16>, vector<1x384xbf16>, vector<1x384xbf16>, vector<1x384xbf16>, vector<1x384xbf16>, vector<1x384xbf16>, vector<1x384xbf16>, vector<1x384xbf16> -> vector<8x384xbf16>
    %c0_46 = arith.constant 0 : index
    %c0_47 = arith.constant 0 : index
    %120 = vector.load %arg17[%c0_46, %c0_47] : memref<8x384xbf16, #tpu.memory_space<vmem>>, vector<8x384xbf16>
    tpu.vector_store %arg17[%c0_46, %c0_47], %119 {strides = array<i32>} : memref<8x384xbf16, #tpu.memory_space<vmem>>, vector<8x384xbf16>,
    %c2_i32_48 = arith.constant 2 : i32
    %121 = tpu.memref_slice %arg24[%c2_i32_48] : memref<6x!tpu.dma_semaphore, #tpu.memory_space<semaphore_mem>> -> memref<1x!tpu.dma_semaphore, #tpu.memory_space<semaphore_mem>>
    %122 = tpu.memref_squeeze %121 : memref<1x!tpu.dma_semaphore, #tpu.memory_space<semaphore_mem>> -> memref<!tpu.dma_semaphore, #tpu.memory_space<semaphore_mem>>
    tpu.wait_dma2 semaphore(%122 : memref<!tpu.dma_semaphore, #tpu.memory_space<semaphore_mem>>) src(%arg7 : memref<384x384xbf16, #tpu.memory_space<any>>) dst(%arg20 : memref<384x384xbf16, #tpu.memory_space<vmem>>)
    %c3_i32_49 = arith.constant 3 : i32
    %123 = tpu.memref_slice %arg24[%c3_i32_49] : memref<6x!tpu.dma_semaphore, #tpu.memory_space<semaphore_mem>> -> memref<1x!tpu.dma_semaphore, #tpu.memory_space<semaphore_mem>>
    %124 = tpu.memref_squeeze %123 : memref<1x!tpu.dma_semaphore, #tpu.memory_space<semaphore_mem>> -> memref<!tpu.dma_semaphore, #tpu.memory_space<semaphore_mem>>
    tpu.wait_dma2 semaphore(%124 : memref<!tpu.dma_semaphore, #tpu.memory_space<semaphore_mem>>) src(%arg8 : memref<384x384xbf16, #tpu.memory_space<any>>) dst(%arg21 : memref<384x384xbf16, #tpu.memory_space<vmem>>)
    %c0_50 = arith.constant 0 : index
    %c0_51 = arith.constant 0 : index
    %125 = vector.load %arg17[%c0_50, %c0_51] : memref<8x384xbf16, #tpu.memory_space<vmem>>, vector<8x384xbf16>
    %cst_52 = arith.constant 0.000000e+00 : bf16
    %126 = vector.broadcast %cst_52 : bf16 to vector<8x384xbf16>
    %127 = arith.maximumf %125, %126 : vector<8x384xbf16>
    %c0_53 = arith.constant 0 : index
    %c0_54 = arith.constant 0 : index
    %128 = vector.load %arg20[%c0_53, %c0_54] : memref<384x384xbf16, #tpu.memory_space<vmem>>, vector<384x384xbf16>
    %c0_55 = arith.constant 0 : index
    %c0_56 = arith.constant 0 : index
    %129 = vector.load %arg21[%c0_55, %c0_56] : memref<384x384xbf16, #tpu.memory_space<vmem>>, vector<384x384xbf16>
    %c0_57 = arith.constant 0 : index
    %c0_58 = arith.constant 0 : index
    %130 = vector.load %arg9[%c0_57, %c0_58] : memref<1x384xf32, #tpu.memory_space<vmem>>, vector<1x384xf32>
    %cst_59 = arith.constant dense<0.000000e+00> : vector<8x384xf32>
    %131 = tpu.matmul %127, %128, %cst_59 {dimension_numbers = #tpu.dot_dimension_numbers<[1], [0], [0], [1], [0, 0, 1, 1], [], []>} : vector<8x384xbf16>, vector<384x384xbf16>, vector<8x384xf32> -> vector<8x384xf32>
    %132 = vector.broadcast %130 : vector<1x384xf32> to vector<8x384xf32>
    %133 = arith.addf %131, %132 : vector<8x384xf32>
    %c0_60 = arith.constant 0 : index
    %c0_61 = arith.constant 0 : index
    %134 = vector.load %arg15[%c0_60, %c0_61] : memref<8x384xf32, #tpu.memory_space<vmem>>, vector<8x384xf32>
    tpu.vector_store %arg15[%c0_60, %c0_61], %133 {strides = array<i32>} : memref<8x384xf32, #tpu.memory_space<vmem>>, vector<8x384xf32>,
    %c0_62 = arith.constant 0 : index
    %c0_63 = arith.constant 0 : index
    %135 = vector.load %arg15[%c0_62, %c0_63] : memref<8x384xf32, #tpu.memory_space<vmem>>, vector<8x384xf32>
    %136 = vector.extract_strided_slice %135 {offsets = [0, 0], sizes = [1, 384], strides = [1, 1]} : vector<8x384xf32> to vector<1x384xf32>
    %cst_64 = arith.constant dense<0.000000e+00> : vector<1x384xf32>
    %137 = tpu.matmul %118, %129, %cst_64 {dimension_numbers = #tpu.dot_dimension_numbers<[1], [0], [0], [1], [0, 0, 1, 1], [], []>} : vector<1x384xbf16>, vector<384x384xbf16>, vector<1x384xf32> -> vector<1x384xf32>
    %138 = arith.addf %136, %137 : vector<1x384xf32>
    %139 = math.tanh %138 : vector<1x384xf32>
    %140 = arith.truncf %139 : vector<1x384xf32> to vector<1x384xbf16>
    %141 = vector.extract_strided_slice %135 {offsets = [1, 0], sizes = [1, 384], strides = [1, 1]} : vector<8x384xf32> to vector<1x384xf32>
    %cst_65 = arith.constant dense<0.000000e+00> : vector<1x384xf32>
    %142 = tpu.matmul %140, %129, %cst_65 {dimension_numbers = #tpu.dot_dimension_numbers<[1], [0], [0], [1], [0, 0, 1, 1], [], []>} : vector<1x384xbf16>, vector<384x384xbf16>, vector<1x384xf32> -> vector<1x384xf32>
    %143 = arith.addf %141, %142 : vector<1x384xf32>
    %144 = math.tanh %143 : vector<1x384xf32>
    %145 = arith.truncf %144 : vector<1x384xf32> to vector<1x384xbf16>
    %146 = vector.extract_strided_slice %135 {offsets = [2, 0], sizes = [1, 384], strides = [1, 1]} : vector<8x384xf32> to vector<1x384xf32>
    %cst_66 = arith.constant dense<0.000000e+00> : vector<1x384xf32>
    %147 = tpu.matmul %145, %129, %cst_66 {dimension_numbers = #tpu.dot_dimension_numbers<[1], [0], [0], [1], [0, 0, 1, 1], [], []>} : vector<1x384xbf16>, vector<384x384xbf16>, vector<1x384xf32> -> vector<1x384xf32>
    %148 = arith.addf %146, %147 : vector<1x384xf32>
    %149 = math.tanh %148 : vector<1x384xf32>
    %150 = arith.truncf %149 : vector<1x384xf32> to vector<1x384xbf16>
    %151 = vector.extract_strided_slice %135 {offsets = [3, 0], sizes = [1, 384], strides = [1, 1]} : vector<8x384xf32> to vector<1x384xf32>
    %cst_67 = arith.constant dense<0.000000e+00> : vector<1x384xf32>
    %152 = tpu.matmul %150, %129, %cst_67 {dimension_numbers = #tpu.dot_dimension_numbers<[1], [0], [0], [1], [0, 0, 1, 1], [], []>} : vector<1x384xbf16>, vector<384x384xbf16>, vector<1x384xf32> -> vector<1x384xf32>
    %153 = arith.addf %151, %152 : vector<1x384xf32>
    %154 = math.tanh %153 : vector<1x384xf32>
    %155 = arith.truncf %154 : vector<1x384xf32> to vector<1x384xbf16>
    %156 = vector.extract_strided_slice %135 {offsets = [4, 0], sizes = [1, 384], strides = [1, 1]} : vector<8x384xf32> to vector<1x384xf32>
    %cst_68 = arith.constant dense<0.000000e+00> : vector<1x384xf32>
    %157 = tpu.matmul %155, %129, %cst_68 {dimension_numbers = #tpu.dot_dimension_numbers<[1], [0], [0], [1], [0, 0, 1, 1], [], []>} : vector<1x384xbf16>, vector<384x384xbf16>, vector<1x384xf32> -> vector<1x384xf32>
    %158 = arith.addf %156, %157 : vector<1x384xf32>
    %159 = math.tanh %158 : vector<1x384xf32>
    %160 = arith.truncf %159 : vector<1x384xf32> to vector<1x384xbf16>
    %161 = vector.extract_strided_slice %135 {offsets = [5, 0], sizes = [1, 384], strides = [1, 1]} : vector<8x384xf32> to vector<1x384xf32>
    %cst_69 = arith.constant dense<0.000000e+00> : vector<1x384xf32>
    %162 = tpu.matmul %160, %129, %cst_69 {dimension_numbers = #tpu.dot_dimension_numbers<[1], [0], [0], [1], [0, 0, 1, 1], [], []>} : vector<1x384xbf16>, vector<384x384xbf16>, vector<1x384xf32> -> vector<1x384xf32>
    %163 = arith.addf %161, %162 : vector<1x384xf32>
    %164 = math.tanh %163 : vector<1x384xf32>
    %165 = arith.truncf %164 : vector<1x384xf32> to vector<1x384xbf16>
    %166 = vector.extract_strided_slice %135 {offsets = [6, 0], sizes = [1, 384], strides = [1, 1]} : vector<8x384xf32> to vector<1x384xf32>
    %cst_70 = arith.constant dense<0.000000e+00> : vector<1x384xf32>
    %167 = tpu.matmul %165, %129, %cst_70 {dimension_numbers = #tpu.dot_dimension_numbers<[1], [0], [0], [1], [0, 0, 1, 1], [], []>} : vector<1x384xbf16>, vector<384x384xbf16>, vector<1x384xf32> -> vector<1x384xf32>
    %168 = arith.addf %166, %167 : vector<1x384xf32>
    %169 = math.tanh %168 : vector<1x384xf32>
    %170 = arith.truncf %169 : vector<1x384xf32> to vector<1x384xbf16>
    %171 = vector.extract_strided_slice %135 {offsets = [7, 0], sizes = [1, 384], strides = [1, 1]} : vector<8x384xf32> to vector<1x384xf32>
    %cst_71 = arith.constant dense<0.000000e+00> : vector<1x384xf32>
    %172 = tpu.matmul %170, %129, %cst_71 {dimension_numbers = #tpu.dot_dimension_numbers<[1], [0], [0], [1], [0, 0, 1, 1], [], []>} : vector<1x384xbf16>, vector<384x384xbf16>, vector<1x384xf32> -> vector<1x384xf32>
    %173 = arith.addf %171, %172 : vector<1x384xf32>
    %174 = math.tanh %173 : vector<1x384xf32>
    %175 = arith.truncf %174 : vector<1x384xf32> to vector<1x384xbf16>
    %176 = tpu.concatenate %140, %145, %150, %155, %160, %165, %170, %175 in 0 : vector<1x384xbf16>, vector<1x384xbf16>, vector<1x384xbf16>, vector<1x384xbf16>, vector<1x384xbf16>, vector<1x384xbf16>, vector<1x384xbf16>, vector<1x384xbf16> -> vector<8x384xbf16>
    %c0_72 = arith.constant 0 : index
    %c0_73 = arith.constant 0 : index
    %177 = vector.load %arg16[%c0_72, %c0_73] : memref<8x384xbf16, #tpu.memory_space<vmem>>, vector<8x384xbf16>
    tpu.vector_store %arg16[%c0_72, %c0_73], %176 {strides = array<i32>} : memref<8x384xbf16, #tpu.memory_space<vmem>>, vector<8x384xbf16>,
    %c4_i32_74 = arith.constant 4 : i32
    %178 = tpu.memref_slice %arg24[%c4_i32_74] : memref<6x!tpu.dma_semaphore, #tpu.memory_space<semaphore_mem>> -> memref<1x!tpu.dma_semaphore, #tpu.memory_space<semaphore_mem>>
    %179 = tpu.memref_squeeze %178 : memref<1x!tpu.dma_semaphore, #tpu.memory_space<semaphore_mem>> -> memref<!tpu.dma_semaphore, #tpu.memory_space<semaphore_mem>>
    tpu.wait_dma2 semaphore(%179 : memref<!tpu.dma_semaphore, #tpu.memory_space<semaphore_mem>>) src(%arg10 : memref<384x128xbf16, #tpu.memory_space<any>>) dst(%arg22 : memref<384x128xbf16, #tpu.memory_space<vmem>>)
    %c5_i32_75 = arith.constant 5 : i32
    %180 = tpu.memref_slice %arg24[%c5_i32_75] : memref<6x!tpu.dma_semaphore, #tpu.memory_space<semaphore_mem>> -> memref<1x!tpu.dma_semaphore, #tpu.memory_space<semaphore_mem>>
    %181 = tpu.memref_squeeze %180 : memref<1x!tpu.dma_semaphore, #tpu.memory_space<semaphore_mem>> -> memref<!tpu.dma_semaphore, #tpu.memory_space<semaphore_mem>>
    tpu.wait_dma2 semaphore(%181 : memref<!tpu.dma_semaphore, #tpu.memory_space<semaphore_mem>>) src(%arg12 : memref<128x128xbf16, #tpu.memory_space<any>>) dst(%arg23 : memref<128x128xbf16, #tpu.memory_space<vmem>>)
    %c0_76 = arith.constant 0 : index
    %c0_77 = arith.constant 0 : index
    %182 = vector.load %arg16[%c0_76, %c0_77] : memref<8x384xbf16, #tpu.memory_space<vmem>>, vector<8x384xbf16>
    %cst_78 = arith.constant 0.000000e+00 : bf16
    %183 = vector.broadcast %cst_78 : bf16 to vector<8x384xbf16>
    %184 = arith.maximumf %182, %183 : vector<8x384xbf16>
    %c0_79 = arith.constant 0 : index
    %c0_80 = arith.constant 0 : index
    %185 = vector.load %arg22[%c0_79, %c0_80] : memref<384x128xbf16, #tpu.memory_space<vmem>>, vector<384x128xbf16>
    %cst_81 = arith.constant dense<0.000000e+00> : vector<8x128xf32>
    %186 = tpu.matmul %184, %185, %cst_81 {dimension_numbers = #tpu.dot_dimension_numbers<[1], [0], [0], [1], [0, 0, 1, 1], [], []>} : vector<8x384xbf16>, vector<384x128xbf16>, vector<8x128xf32> -> vector<8x128xf32>
    %c0_82 = arith.constant 0 : index
    %c0_83 = arith.constant 0 : index
    %187 = vector.load %arg11[%c0_82, %c0_83] : memref<1x128xf32, #tpu.memory_space<vmem>>, vector<1x128xf32>
    %188 = vector.broadcast %187 : vector<1x128xf32> to vector<8x128xf32>
    %189 = arith.addf %186, %188 : vector<8x128xf32>
    %cst_84 = arith.constant 0.000000e+00 : f32
    %190 = vector.broadcast %cst_84 : f32 to vector<8x128xf32>
    %191 = arith.maximumf %189, %190 : vector<8x128xf32>
    %192 = arith.truncf %191 : vector<8x128xf32> to vector<8x128xbf16>
    %c0_85 = arith.constant 0 : index
    %c0_86 = arith.constant 0 : index
    %193 = vector.load %arg23[%c0_85, %c0_86] : memref<128x128xbf16, #tpu.memory_space<vmem>>, vector<128x128xbf16>
    %cst_87 = arith.constant dense<0.000000e+00> : vector<8x128xf32>
    %194 = tpu.matmul %192, %193, %cst_87 {dimension_numbers = #tpu.dot_dimension_numbers<[1], [0], [0], [1], [0, 0, 1, 1], [], []>} : vector<8x128xbf16>, vector<128x128xbf16>, vector<8x128xf32> -> vector<8x128xf32>
    %c0_88 = arith.constant 0 : index
    %c0_89 = arith.constant 0 : index
    %195 = vector.load %arg13[%c0_88, %c0_89] : memref<1x128xf32, #tpu.memory_space<vmem>>, vector<1x128xf32>
    %196 = vector.broadcast %195 : vector<1x128xf32> to vector<8x128xf32>
    %197 = arith.addf %194, %196 : vector<8x128xf32>
    %c0_90 = arith.constant 0 : index
    %c0_91 = arith.constant 0 : index
    %198 = vector.load %arg14[%c0_90, %c0_91] : memref<8x128xf32, #tpu.memory_space<vmem>>, vector<8x128xf32>
    tpu.vector_store %arg14[%c0_90, %c0_91], %197 {strides = array<i32>} : memref<8x128xf32, #tpu.memory_space<vmem>>, vector<8x128xf32>,
    return
  }
}

</mosaic_0001>

<llo_original>
// kernel: tpu_custom_call.1
$region0: #{tpu_custom_call.1}
  #allocation0 [shape = 'u32[]', space=smem, size = 0x4, offset = 0x4, fixed_abs, tag = 'smem constant byte address 0x4 - core index']
  #allocation1 [shape = 'u32[144,128]{1,0:T(1,128)}', space=vmem, size = 0x12000, scoped, tag = 'internal scratch']
  #allocation2 [shape = 'f32[8,384]{1,0:T(8,128)}', space=vmem, size = 0x3000, scoped, tag = 'scratch operand']
  #allocation3 [shape = 'bf16[8,384]{1,0:T(8,128)(2,1)}', space=vmem, size = 0x1800, scoped, tag = 'scratch operand']
  #allocation4 [shape = 'bf16[8,384]{1,0:T(8,128)(2,1)}', space=vmem, size = 0x1800, scoped, tag = 'scratch operand']
  #allocation5 [shape = 'bf16[384,384]{1,0:T(16,128)(2,1)}', space=vmem, size = 0x48000, scoped, tag = 'scratch operand']
  #allocation6 [shape = 'bf16[384,384]{1,0:T(16,128)(2,1)}', space=vmem, size = 0x48000, scoped, tag = 'scratch operand']
  #allocation7 [shape = 'bf16[384,384]{1,0:T(16,128)(2,1)}', space=vmem, size = 0x48000, scoped, tag = 'scratch operand']
  #allocation8 [shape = 'bf16[384,384]{1,0:T(16,128)(2,1)}', space=vmem, size = 0x48000, scoped, tag = 'scratch operand']
  #allocation9 [shape = 'bf16[384,128]{1,0:T(16,128)(2,1)}', space=vmem, size = 0x18000, scoped, tag = 'scratch operand']
  #allocation10 [shape = 'bf16[128,128]{1,0:T(16,128)(2,1)}', space=vmem, size = 0x8000, scoped, tag = 'scratch operand']
  #allocation11 [shape = 's32[6]{0}', space=sflag, size = 0x18, scoped, tag = 'scratch operand']
  #allocation19 [shape = 's32[]', space=sflag, size = 0x4, offset = 0, fixed_abs, tag = 'sflag constant byte address 0x0 - dummy sync flag']
  #allocation21 [shape = 's32[]', space=sflag, size = 0x4, offset = 0, fixed_abs, tag = 'sflag constant byte address 0x0 - dummy sync flag']
  #allocation23 [shape = 's32[]', space=sflag, size = 0x4, offset = 0, fixed_abs, tag = 'sflag constant byte address 0x0 - dummy sync flag']
  #allocation25 [shape = 's32[]', space=sflag, size = 0x4, offset = 0, fixed_abs, tag = 'sflag constant byte address 0x0 - dummy sync flag']
  #allocation27 [shape = 's32[]', space=sflag, size = 0x4, offset = 0, fixed_abs, tag = 'sflag constant byte address 0x0 - dummy sync flag']
  #allocation28 [shape = 's32[]', space=sflag, size = 0x4, offset = 0, fixed_abs, tag = 'sflag constant byte address 0x0 - dummy sync flag']
  #allocation29 [shape = 'u32[]', space=smem, size = 0x4, offset = 0x44, fixed_abs, tag = 'smem constant byte address 0x44 - assertion arg 0']
  #allocation30 [shape = 'u32[]', space=smem, size = 0x4, offset = 0x48, fixed_abs, tag = 'smem constant byte address 0x48 - assertion arg 1']
  #allocation31 [shape = 's32[]', space=sflag, size = 0x4, offset = 0, fixed_abs, tag = 'sflag constant byte address 0x0 - dummy sync flag']
  #allocation32 [shape = 's32[]', space=sflag, size = 0x4, offset = 0, fixed_abs, tag = 'sflag constant byte address 0x0 - dummy sync flag']
  %s0 = inlined_call_operand.hbm [shape: bf16[8,128], index: 0, kind: input, shape index: {}]
  %s1 = inlined_call_operand.hbm [shape: bf16[128,384], index: 1, kind: input, shape index: {}]
  %s2 = inlined_call_operand.hbm [shape: bf16[384,384], index: 2, kind: input, shape index: {}]
  %s3 = inlined_call_operand.vmem [shape: f32[1,384], index: 3, kind: input, shape index: {}]
  %s4 = inlined_call_operand.hbm [shape: bf16[384,384], index: 4, kind: input, shape index: {}]
  %s5 = inlined_call_operand.hbm [shape: bf16[384,384], index: 5, kind: input, shape index: {}]
  %s6 = inlined_call_operand.vmem [shape: f32[1,384], index: 6, kind: input, shape index: {}]
  %s7 = inlined_call_operand.hbm [shape: bf16[384,384], index: 7, kind: input, shape index: {}]
  %s8 = inlined_call_operand.hbm [shape: bf16[384,384], index: 8, kind: input, shape index: {}]
  %s9 = inlined_call_operand.vmem [shape: f32[1,384], index: 9, kind: input, shape index: {}]
  %s10 = inlined_call_operand.hbm [shape: bf16[384,128], index: 10, kind: input, shape index: {}]
  %s11 = inlined_call_operand.vmem [shape: f32[1,128], index: 11, kind: input, shape index: {}]
  %s12 = inlined_call_operand.hbm [shape: bf16[128,128], index: 12, kind: input, shape index: {}]
  %s13 = inlined_call_operand.vmem [shape: f32[1,128], index: 13, kind: input, shape index: {}]
  %s14 = inlined_call_operand.hbm [shape: f32[8,128], index: 14, kind: output, shape index: {}]
  %s15 = sld [smem:[#allocation0]]
  $region62: #{tpu_custom_call.1} parent=0
    _
  %s17 = ssub.s32 1, %s15
  %s18 = scalar_select 0, %s17, %s15
  $region1: #{tpu_custom_call.1} parent=0
    #allocation12 [shape = 'u8[2048]{0}', space=vmem, size = 0x800, scoped, tag = 'input window, operand 0, single buffered']
    #allocation13 [shape = 's32[1]{0}', space=sflag, size = 0x4, scoped, tag = 'scoped memory for tpu_custom_call.1']
    #allocation14 [shape = 's32[1]{0}', space=sflag, size = 0x4, scoped, tag = 'scoped memory for tpu_custom_call.1']
    #allocation15 [shape = 'u8[98304]{0}', space=vmem, size = 0x18000, scoped, tag = 'input window, operand 1, single buffered']
    #allocation16 [shape = 's32[1]{0}', space=sflag, size = 0x4, scoped, tag = 'scoped memory for tpu_custom_call.1']
    #allocation17 [shape = 'u8[294912]{0}', space=vmem, size = 0x48000, scoped, tag = 'input window, operand 2, single buffered']
    #allocation18 [shape = 'u8[4096]{0}', space=vmem, size = 0x1000, scoped, tag = 'output window, operand 0, single buffered']
    #allocation20 [shape = 'u32[9]{0}', space=smem, size = 0x24, scoped, tag = 'DMA stride descriptor']
    #allocation22 [shape = 'u32[9]{0}', space=smem, size = 0x24, scoped, tag = 'DMA stride descriptor']
    #allocation24 [shape = 'u32[9]{0}', space=smem, size = 0x24, scoped, tag = 'DMA stride descriptor']
    #allocation26 [shape = 'u32[9]{0}', space=smem, size = 0x24, scoped, tag = 'DMA stride descriptor']
    %19 = vsyncpa [#allocation13], 0
    %20 = vsyncpa [#allocation16], 0
    %21 = vsyncpa [#allocation14], 0
    // Predicated region
    $region2: #{tpu_custom_call.1} parent=1 // pred_check
      _
    $region3: #{tpu_custom_call.1} parent=1 // pred_check_branch
      %23 = sbr.rel (0) target = $region5
    $region4: #{tpu_custom_call.1} parent=1 // pred_region
      %s25 = ssub.s32 64, 64
      %26 = vsyncadd [#allocation13], %s25
      %s28 = sshll.u32 [#allocation12], 4
      %s29 = int_to_ptr.vmem [resolvable:$true] %s28
      %31 = dma.hbm_to_vmem [thread:$0]  %s0, 64, %s29, [#allocation13]
    $region5: #{tpu_custom_call.1} parent=1 // pred_fallthru
      _
    // Predicated region
    $region6: #{tpu_custom_call.1} parent=1 // pred_check
      _
    $region7: #{tpu_custom_call.1} parent=1 // pred_check_branch
      %33 = sbr.rel (0) target = $region9
    $region8: #{tpu_custom_call.1} parent=1 // pred_region
      %s35 = ssub.s32 3072, 3072
      %36 = vsyncadd [#allocation16], %s35
      %s37 = sshll.u32 [#allocation15], 4
      %s38 = int_to_ptr.vmem [resolvable:$true] %s37
      %43 = dma.hbm_to_vmem [thread:$0]  %s1, 3072, %s38, [#allocation16], 192, 192, 12
    $region9: #{tpu_custom_call.1} parent=1 // pred_fallthru
      _
    // Predicated region
    $region10: #{tpu_custom_call.1} parent=1 // pred_check
      _
    $region11: #{tpu_custom_call.1} parent=1 // pred_check_branch
      %45 = sbr.rel (0) target = $region13
    $region12: #{tpu_custom_call.1} parent=1 // pred_region
      %s47 = ssub.s32 9216, 9216
      %48 = vsyncadd [#allocation16], %s47
      %s49 = sshll.u32 [#allocation17], 4
      %s50 = int_to_ptr.vmem [resolvable:$true] %s49
      %55 = dma.hbm_to_vmem [thread:$0]  %s2, 9216, %s50, [#allocation16], 192, 192, 12
    $region13: #{tpu_custom_call.1} parent=1 // pred_fallthru
      _
    // Predicated region
    $region14: #{tpu_custom_call.1} parent=1 // pred_check
      _
    $region15: #{tpu_custom_call.1} parent=1 // pred_check_branch
      %57 = sbr.rel (0) target = $region17
    $region16: #{tpu_custom_call.1} parent=1 // pred_region
      _
    $region17: #{tpu_custom_call.1} parent=1 // pred_fallthru
      _
    // Predicated region
    $region18: #{tpu_custom_call.1} parent=1 // pred_check
      _
    $region19: #{tpu_custom_call.1} parent=1 // pred_check_branch
      %59 = sbr.rel (0) target = $region21
    $region20: #{tpu_custom_call.1} parent=1 // pred_region
      _
    $region21: #{tpu_custom_call.1} parent=1 // pred_fallthru
      _
    // Predicated region
    $region22: #{tpu_custom_call.1} parent=1 // pred_check
      _
    $region23: #{tpu_custom_call.1} parent=1 // pred_check_branch
      %61 = sbr.rel (0) target = $region25
    $region24: #{tpu_custom_call.1} parent=1 // pred_region
      _
    $region25: #{tpu_custom_call.1} parent=1 // pred_fallthru
      _
    // Predicated region
    $region26: #{tpu_custom_call.1} parent=1 // pred_check
      _
    $region27: #{tpu_custom_call.1} parent=1 // pred_check_branch
      %63 = sbr.rel (0) target = $region29
    $region28: #{tpu_custom_call.1} parent=1 // pred_region
      _
    $region29: #{tpu_custom_call.1} parent=1 // pred_fallthru
      _
    // Predicated region
    $region30: #{tpu_custom_call.1} parent=1 // pred_check
      _
    $region31: #{tpu_custom_call.1} parent=1 // pred_check_branch
      %65 = sbr.rel (0) target = $region33
    $region32: #{tpu_custom_call.1} parent=1 // pred_region
      _
    $region33: #{tpu_custom_call.1} parent=1 // pred_fallthru
      _
    // Predicated region
    $region34: #{tpu_custom_call.1} parent=1 // pred_check
      _
    $region35: #{tpu_custom_call.1} parent=1 // pred_check_branch
      %67 = sbr.rel (0) target = $region37
    $region36: #{tpu_custom_call.1} parent=1 // pred_region
      %68 = dma.done [#allocation13], 64
    $region37: #{tpu_custom_call.1} parent=1 // pred_fallthru
      _
    // Predicated region
    $region38: #{tpu_custom_call.1} parent=1 // pred_check
      _
    $region39: #{tpu_custom_call.1} parent=1 // pred_check_branch
      %70 = sbr.rel (0) target = $region41
    $region40: #{tpu_custom_call.1} parent=1 // pred_region
      %71 = dma.done [#allocation16], 3072
    $region41: #{tpu_custom_call.1} parent=1 // pred_fallthru
      _
    // Predicated region
    $region42: #{tpu_custom_call.1} parent=1 // pred_check
      _
    $region43: #{tpu_custom_call.1} parent=1 // pred_check_branch
      %73 = sbr.rel (0) target = $region45
    $region44: #{tpu_custom_call.1} parent=1 // pred_region
      %74 = dma.done [#allocation16], 9216
    $region45: #{tpu_custom_call.1} parent=1 // pred_fallthru
      _
    %s77 = sshll.u32 1, 14
    %s78 = sxor.u32 4294967295, %s77
    %s80 = sld [smem:[#allocation0]]
    %s81 = sadd.s32 2, %s80
    %s83 = sshll.u32 7, 26
    %s84 = sxor.u32 4294967295, %s83
    %s85 = sand.u32 0, %s84
    %s86 = sshll.u32 %s81, 26
    %s87 = sor.u32 %s85, %s86
    %s88 = sshll.u32 [#allocation5], 4
    %s89 = int_to_ptr.vmem [resolvable:$true] %s88
    %92 = sst [smem:[#allocation20]] 384
    %s93 = scalar_lea.smem [#allocation20], 1
    %94 = sst [smem:[%s93]] 384
    %s95 = scalar_lea.smem [#allocation20], 2
    %96 = sst [smem:[%s95]] 3
    %s97 = scalar_lea.smem [#allocation20], 3
    %98 = sst [smem:[%s97]] 64
    %s99 = scalar_lea.smem [#allocation20], 4
    %100 = sst [smem:[%s99]] 128
    %s101 = scalar_lea.smem [#allocation20], 5
    %102 = sst [smem:[%s101]] 2
    %s103 = scalar_lea.smem [#allocation20], 6
    %104 = sst [smem:[%s103]] 192
    %s105 = scalar_lea.smem [#allocation20], 7
    %106 = sst [smem:[%s105]] 64
    %s107 = scalar_lea.smem [#allocation20], 8
    %108 = sst [smem:[%s107]] 4
    %110 = dma.general %s4, 9216, %s89, [#allocation11], [#allocation19], [#allocation20], %s87, 0
    %s111 = scalar_lea.sflag [#allocation11], 1
    %s113 = sshll.u32 1, 14
    %s114 = sxor.u32 4294967295, %s113
    %s116 = sadd.s32 2, %s80
    %s118 = sshll.u32 7, 26
    %s119 = sxor.u32 4294967295, %s118
    %s120 = sand.u32 0, %s119
    %s121 = sshll.u32 %s116, 26
    %s122 = sor.u32 %s120, %s121
    %s123 = sshll.u32 [#allocation6], 4
    %s124 = int_to_ptr.vmem [resolvable:$true] %s123
    %127 = sst [smem:[#allocation22]] 384
    %s128 = scalar_lea.smem [#allocation22], 1
    %129 = sst [smem:[%s128]] 384
    %s130 = scalar_lea.smem [#allocation22], 2
    %131 = sst [smem:[%s130]] 3
    %s132 = scalar_lea.smem [#allocation22], 3
    %133 = sst [smem:[%s132]] 64
    %s134 = scalar_lea.smem [#allocation22], 4
    %135 = sst [smem:[%s134]] 128
    %s136 = scalar_lea.smem [#allocation22], 5
    %137 = sst [smem:[%s136]] 2
    %s138 = scalar_lea.smem [#allocation22], 6
    %139 = sst [smem:[%s138]] 192
    %s140 = scalar_lea.smem [#allocation22], 7
    %141 = sst [smem:[%s140]] 64
    %s142 = scalar_lea.smem [#allocation22], 8
    %143 = sst [smem:[%s142]] 4
    %145 = dma.general %s5, 9216, %s124, %s111, [#allocation21], [#allocation22], %s122, 0
    %s146 = scalar_lea.sflag [#allocation11], 2
    %s148 = sshll.u32 1, 14
    %s149 = sxor.u32 4294967295, %s148
    %s151 = sadd.s32 2, %s80
    %s153 = sshll.u32 7, 26
    %s154 = sxor.u32 4294967295, %s153
    %s155 = sand.u32 0, %s154
    %s156 = sshll.u32 %s151, 26
    %s157 = sor.u32 %s155, %s156
    %s158 = sshll.u32 [#allocation7], 4
    %s159 = int_to_ptr.vmem [resolvable:$true] %s158
    %162 = sst [smem:[#allocation24]] 384
    %s163 = scalar_lea.smem [#allocation24], 1
    %164 = sst [smem:[%s163]] 384
    %s165 = scalar_lea.smem [#allocation24], 2
    %166 = sst [smem:[%s165]] 3
    %s167 = scalar_lea.smem [#allocation24], 3
    %168 = sst [smem:[%s167]] 64
    %s169 = scalar_lea.smem [#allocation24], 4
    %170 = sst [smem:[%s169]] 128
    %s171 = scalar_lea.smem [#allocation24], 5
    %172 = sst [smem:[%s171]] 2
    %s173 = scalar_lea.smem [#allocation24], 6
    %174 = sst [smem:[%s173]] 192
    %s175 = scalar_lea.smem [#allocation24], 7
    %176 = sst [smem:[%s175]] 64
    %s177 = scalar_lea.smem [#allocation24], 8
    %178 = sst [smem:[%s177]] 4
    %180 = dma.general %s7, 9216, %s159, %s146, [#allocation23], [#allocation24], %s157, 0
    %s181 = scalar_lea.sflag [#allocation11], 3
    %s183 = sshll.u32 1, 14
    %s184 = sxor.u32 4294967295, %s183
    %s186 = sadd.s32 2, %s80
    %s188 = sshll.u32 7, 26
    %s189 = sxor.u32 4294967295, %s188
    %s190 = sand.u32 0, %s189
    %s191 = sshll.u32 %s186, 26
    %s192 = sor.u32 %s190, %s191
    %s193 = sshll.u32 [#allocation8], 4
    %s194 = int_to_ptr.vmem [resolvable:$true] %s193
    %197 = sst [smem:[#allocation26]] 384
    %s198 = scalar_lea.smem [#allocation26], 1
    %199 = sst [smem:[%s198]] 384
    %s200 = scalar_lea.smem [#allocation26], 2
    %201 = sst [smem:[%s200]] 3
    %s202 = scalar_lea.smem [#allocation26], 3
    %203 = sst [smem:[%s202]] 64
    %s204 = scalar_lea.smem [#allocation26], 4
    %205 = sst [smem:[%s204]] 128
    %s206 = scalar_lea.smem [#allocation26], 5
    %207 = sst [smem:[%s206]] 2
    %s208 = scalar_lea.smem [#allocation26], 6
    %209 = sst [smem:[%s208]] 192
    %s210 = scalar_lea.smem [#allocation26], 7
    %211 = sst [smem:[%s210]] 64
    %s212 = scalar_lea.smem [#allocation26], 8
    %213 = sst [smem:[%s212]] 4
    %215 = dma.general %s8, 9216, %s194, %s181, [#allocation25], [#allocation26], %s192, 0
    %s216 = scalar_lea.sflag [#allocation11], 4
    // Predicated region
    $region46: #{tpu_custom_call.1} parent=1 // pred_check
      _
    $region47: #{tpu_custom_call.1} parent=1 // pred_check_branch
      %218 = sbr.rel target = $region49
    $region48: #{tpu_custom_call.1} parent=1 // pred_region
      %219 = sst [smem:[#allocation29]] [#allocation28]
      %220 = sst [smem:[#allocation30]] [#allocation27]
    $region49: #{tpu_custom_call.1} parent=1 // pred_fallthru
      _
    %222 = shalt.err (0)
    %s224 = sshll.u32 [#allocation9], 4
    %s225 = int_to_ptr.vmem [resolvable:$true] %s224
    %227 = dma.hbm_to_vmem [thread:$0]  %s10, 3072, %s225, %s216
    %s228 = scalar_lea.sflag [#allocation11], 5
    // Predicated region
    $region50: #{tpu_custom_call.1} parent=1 // pred_check
      _
    $region51: #{tpu_custom_call.1} parent=1 // pred_check_branch
      %230 = sbr.rel target = $region53
    $region52: #{tpu_custom_call.1} parent=1 // pred_region
      %231 = sst [smem:[#allocation29]] [#allocation32]
      %232 = sst [smem:[#allocation30]] [#allocation31]
    $region53: #{tpu_custom_call.1} parent=1 // pred_fallthru
      _
    %234 = shalt.err (0)
    %s236 = sshll.u32 [#allocation10], 4
    %s237 = int_to_ptr.vmem [resolvable:$true] %s236
    %239 = dma.hbm_to_vmem [thread:$0]  %s12, 1024, %s237, %s228
    %v240 = vld [vmem:[#allocation12] sm:$0xf]
    %v241 = vld [vmem:[#allocation15] sm:$0xff]
    %v242 = vld [vmem:[#allocation15 + $0x8] sm:$0xf]
    %v243 = vld [vmem:[#allocation15 + $0xc] sm:$0xff]
    %v244 = vld [vmem:[#allocation15 + $0x14] sm:$0xf]
    %v245 = vld [vmem:[#allocation15 + $0x18] sm:$0xff]
    %v246 = vld [vmem:[#allocation15 + $0x20] sm:$0xf]
    %v247 = vld [vmem:[#allocation15 + $0x24] sm:$0xff]
    %v248 = vld [vmem:[#allocation15 + $0x2c] sm:$0xf]
    %v249 = vld [vmem:[#allocation15 + $0x30] sm:$0xff]
    %v250 = vld [vmem:[#allocation15 + $0x38] sm:$0xf]
    %v251 = vld [vmem:[#allocation15 + $0x3c] sm:$0xff]
    %v252 = vld [vmem:[#allocation15 + $0x44] sm:$0xf]
    %v253 = vld [vmem:[#allocation15 + $0x48] sm:$0xff]
    %v254 = vld [vmem:[#allocation15 + $0x50] sm:$0xf]
    %v255 = vld [vmem:[#allocation15 + $0x54] sm:$0xff]
    %v256 = vld [vmem:[#allocation15 + $0x5c] sm:$0xf]
    %v257 = vld [vmem:[#allocation15 + $0x60] sm:$0xff]
    %v258 = vld [vmem:[#allocation15 + $0x68] sm:$0xf]
    %v259 = vld [vmem:[#allocation15 + $0x6c] sm:$0xff]
    %v260 = vld [vmem:[#allocation15 + $0x74] sm:$0xf]
    %v261 = vld [vmem:[#allocation15 + $0x78] sm:$0xff]
    %v262 = vld [vmem:[#allocation15 + $0x80] sm:$0xf]
    %v263 = vld [vmem:[#allocation15 + $0x84] sm:$0xff]
    %v264 = vld [vmem:[#allocation15 + $0x8c] sm:$0xf]
    %v265 = vld [vmem:[#allocation15 + $0x90] sm:$0xff]
    %v266 = vld [vmem:[#allocation15 + $0x98] sm:$0xf]
    %v267 = vld [vmem:[#allocation15 + $0x9c] sm:$0xff]
    %v268 = vld [vmem:[#allocation15 + $0xa4] sm:$0xf]
    %v269 = vld [vmem:[#allocation15 + $0xa8] sm:$0xff]
    %v270 = vld [vmem:[#allocation15 + $0xb0] sm:$0xf]
    %v271 = vld [vmem:[#allocation15 + $0xb4] sm:$0xff]
    %v272 = vld [vmem:[#allocation15 + $0xbc] sm:$0xf]
    %v273 = vld [vmem:[#allocation17] sm:$0xff]
    %v274 = vld [vmem:[#allocation17 + $0x8] sm:$0xf]
    %v275 = vld [vmem:[#allocation17 + $0xc] sm:$0xff]
    %v276 = vld [vmem:[#allocation17 + $0x14] sm:$0xf]
    %v277 = vld [vmem:[#allocation17 + $0x18] sm:$0xff]
    %v278 = vld [vmem:[#allocation17 + $0x20] sm:$0xf]
    %v279 = vld [vmem:[#allocation17 + $0x24] sm:$0xff]
    %v280 = vld [vmem:[#allocation17 + $0x2c] sm:$0xf]
    %v281 = vld [vmem:[#allocation17 + $0x30] sm:$0xff]
    %v282 = vld [vmem:[#allocation17 + $0x38] sm:$0xf]
    %v283 = vld [vmem:[#allocation17 + $0x3c] sm:$0xff]
    %v284 = vld [vmem:[#allocation17 + $0x44] sm:$0xf]
    %v285 = vld [vmem:[#allocation17 + $0x48] sm:$0xff]
    %v286 = vld [vmem:[#allocation17 + $0x50] sm:$0xf]
    %v287 = vld [vmem:[#allocation17 + $0x54] sm:$0xff]
    %v288 = vld [vmem:[#allocation17 + $0x5c] sm:$0xf]
    %v289 = vld [vmem:[#allocation17 + $0x60] sm:$0xff]
    %v290 = vld [vmem:[#allocation17 + $0x68] sm:$0xf]
    %v291 = vld [vmem:[#allocation17 + $0x6c] sm:$0xff]
    %v292 = vld [vmem:[#allocation17 + $0x74] sm:$0xf]
    %v293 = vld [vmem:[#allocation17 + $0x78] sm:$0xff]
    %v294 = vld [vmem:[#allocation17 + $0x80] sm:$0xf]
    %v295 = vld [vmem:[#allocation17 + $0x84] sm:$0xff]
    %v296 = vld [vmem:[#allocation17 + $0x8c] sm:$0xf]
    %v297 = vld [vmem:[#allocation17 + $0x90] sm:$0xff]
    %v298 = vld [vmem:[#allocation17 + $0x98] sm:$0xf]
    %v299 = vld [vmem:[#allocation17 + $0x9c] sm:$0xff]
    %v300 = vld [vmem:[#allocation17 + $0xa4] sm:$0xf]
    %v301 = vld [vmem:[#allocation17 + $0xa8] sm:$0xff]
    %v302 = vld [vmem:[#allocation17 + $0xb0] sm:$0xf]
    %v303 = vld [vmem:[#allocation17 + $0xb4] sm:$0xff]
    %v304 = vld [vmem:[#allocation17 + $0xbc] sm:$0xf]
    %v305 = vld [vmem:[#allocation17 + $0xc0] sm:$0xff]
    %v306 = vld [vmem:[#allocation17 + $0xc8] sm:$0xf]
    %v307 = vld [vmem:[#allocation17 + $0xcc] sm:$0xff]
    %v308 = vld [vmem:[#allocation17 + $0xd4] sm:$0xf]
    %v309 = vld [vmem:[#allocation17 + $0xd8] sm:$0xff]
    %v310 = vld [vmem:[#allocation17 + $0xe0] sm:$0xf]
    %v311 = vld [vmem:[#allocation17 + $0xe4] sm:$0xff]
    %v312 = vld [vmem:[#allocation17 + $0xec] sm:$0xf]
    %v313 = vld [vmem:[#allocation17 + $0xf0] sm:$0xff]
    %v314 = vld [vmem:[#allocation17 + $0xf8] sm:$0xf]
    %v315 = vld [vmem:[#allocation17 + $0xfc] sm:$0xff]
    %v316 = vld [vmem:[#allocation17 + $0x104] sm:$0xf]
    %v317 = vld [vmem:[#allocation17 + $0x108] sm:$0xff]
    %v318 = vld [vmem:[#allocation17 + $0x110] sm:$0xf]
    %v319 = vld [vmem:[#allocation17 + $0x114] sm:$0xff]
    %v320 = vld [vmem:[#allocation17 + $0x11c] sm:$0xf]
    %v321 = vld [vmem:[#allocation17 + $0x120] sm:$0xff]
    %v322 = vld [vmem:[#allocation17 + $0x128] sm:$0xf]
    %v323 = vld [vmem:[#allocation17 + $0x12c] sm:$0xff]
    %v324 = vld [vmem:[#allocation17 + $0x134] sm:$0xf]
    %v325 = vld [vmem:[#allocation17 + $0x138] sm:$0xff]
    %v326 = vld [vmem:[#allocation17 + $0x140] sm:$0xf]
    %v327 = vld [vmem:[#allocation17 + $0x144] sm:$0xff]
    %v328 = vld [vmem:[#allocation17 + $0x14c] sm:$0xf]
    %v329 = vld [vmem:[#allocation17 + $0x150] sm:$0xff]
    %v330 = vld [vmem:[#allocation17 + $0x158] sm:$0xf]
    %v331 = vld [vmem:[#allocation17 + $0x15c] sm:$0xff]
    %v332 = vld [vmem:[#allocation17 + $0x164] sm:$0xf]
    %v333 = vld [vmem:[#allocation17 + $0x168] sm:$0xff]
    %v334 = vld [vmem:[#allocation17 + $0x170] sm:$0xf]
    %v335 = vld [vmem:[#allocation17 + $0x174] sm:$0xff]
    %v336 = vld [vmem:[#allocation17 + $0x17c] sm:$0xf]
    %v337 = vld [vmem:[#allocation17 + $0x180] sm:$0xff]
    %v338 = vld [vmem:[#allocation17 + $0x188] sm:$0xf]
    %v339 = vld [vmem:[#allocation17 + $0x18c] sm:$0xff]
    %v340 = vld [vmem:[#allocation17 + $0x194] sm:$0xf]
    %v341 = vld [vmem:[#allocation17 + $0x198] sm:$0xff]
    %v342 = vld [vmem:[#allocation17 + $0x1a0] sm:$0xf]
    %v343 = vld [vmem:[#allocation17 + $0x1a4] sm:$0xff]
    %v344 = vld [vmem:[#allocation17 + $0x1ac] sm:$0xf]
    %v345 = vld [vmem:[#allocation17 + $0x1b0] sm:$0xff]
    %v346 = vld [vmem:[#allocation17 + $0x1b8] sm:$0xf]
    %v347 = vld [vmem:[#allocation17 + $0x1bc] sm:$0xff]
    %v348 = vld [vmem:[#allocation17 + $0x1c4] sm:$0xf]
    %v349 = vld [vmem:[#allocation17 + $0x1c8] sm:$0xff]
    %v350 = vld [vmem:[#allocation17 + $0x1d0] sm:$0xf]
    %v351 = vld [vmem:[#allocation17 + $0x1d4] sm:$0xff]
    %v352 = vld [vmem:[#allocation17 + $0x1dc] sm:$0xf]
    %v353 = vld [vmem:[#allocation17 + $0x1e0] sm:$0xff]
    %v354 = vld [vmem:[#allocation17 + $0x1e8] sm:$0xf]
    %v355 = vld [vmem:[#allocation17 + $0x1ec] sm:$0xff]
    %v356 = vld [vmem:[#allocation17 + $0x1f4] sm:$0xf]
    %v357 = vld [vmem:[#allocation17 + $0x1f8] sm:$0xff]
    %v358 = vld [vmem:[#allocation17 + $0x200] sm:$0xf]
    %v359 = vld [vmem:[#allocation17 + $0x204] sm:$0xff]
    %v360 = vld [vmem:[#allocation17 + $0x20c] sm:$0xf]
    %v361 = vld [vmem:[#allocation17 + $0x210] sm:$0xff]
    %v362 = vld [vmem:[#allocation17 + $0x218] sm:$0xf]
    %v363 = vld [vmem:[#allocation17 + $0x21c] sm:$0xff]
    %v364 = vld [vmem:[#allocation17 + $0x224] sm:$0xf]
    %v365 = vld [vmem:[#allocation17 + $0x228] sm:$0xff]
    %v366 = vld [vmem:[#allocation17 + $0x230] sm:$0xf]
    %v367 = vld [vmem:[#allocation17 + $0x234] sm:$0xff]
    %v368 = vld [vmem:[#allocation17 + $0x23c] sm:$0xf]
    %v369 = vld [vmem:[%s3] sm:$0x7]
    %v371 = vlaneseq
    %v372 = vshrl.u32 %v371, 7
    %v373 = vsub.s32 0, %v372
    %v374 = vrot.slane %v369, %v373
    %v375 = vlaneseq
    %v376 = vshrl.u32 %v375, 7
    %v377 = vsub.s32 1, %v376
    %v378 = vrot.slane %v369, %v377
    %v379 = vlaneseq
    %v380 = vshrl.u32 %v379, 7
    %v381 = vsub.s32 2, %v380
    %v382 = vrot.slane %v369, %v381
    %v418 = vunpack.c.l.b16 %v241
    %v419 = vunpack.c.h.b16 %v241
    %v420 = vunpack.c.l.b16 %v242
    %v421 = vunpack.c.l.b16 %v243
    %v422 = vunpack.c.h.b16 %v243
    %v423 = vunpack.c.l.b16 %v244
    %v424 = vunpack.c.l.b16 %v245
    %v425 = vunpack.c.h.b16 %v245
    %v426 = vunpack.c.l.b16 %v246
    %v427 = vunpack.c.l.b16 %v247
    %v428 = vunpack.c.h.b16 %v247
    %v429 = vunpack.c.l.b16 %v248
    %v430 = vunpack.c.l.b16 %v249
    %v431 = vunpack.c.h.b16 %v249
    %v432 = vunpack.c.l.b16 %v250
    %v433 = vunpack.c.l.b16 %v251
    %v434 = vunpack.c.h.b16 %v251
    %v435 = vunpack.c.l.b16 %v252
    %v436 = vunpack.c.l.b16 %v253
    %v437 = vunpack.c.h.b16 %v253
    %v438 = vunpack.c.l.b16 %v254
    %v439 = vunpack.c.l.b16 %v255
    %v440 = vunpack.c.h.b16 %v255
    %v441 = vunpack.c.l.b16 %v256
    %v442 = vunpack.c.l.b16 %v257
    %v443 = vunpack.c.h.b16 %v257
    %v444 = vunpack.c.l.b16 %v258
    %v445 = vunpack.c.l.b16 %v259
    %v446 = vunpack.c.h.b16 %v259
    %v447 = vunpack.c.l.b16 %v260
    %v448 = vunpack.c.l.b16 %v261
    %v449 = vunpack.c.h.b16 %v261
    %v450 = vunpack.c.l.b16 %v262
    %v451 = vunpack.c.l.b16 %v263
    %v452 = vunpack.c.h.b16 %v263
    %v453 = vunpack.c.l.b16 %v264
    %v454 = vunpack.c.l.b16 %v265
    %v455 = vunpack.c.h.b16 %v265
    %v456 = vunpack.c.l.b16 %v266
    %v457 = vunpack.c.l.b16 %v267
    %v458 = vunpack.c.h.b16 %v267
    %v459 = vunpack.c.l.b16 %v268
    %v460 = vunpack.c.l.b16 %v269
    %v461 = vunpack.c.h.b16 %v269
    %v462 = vunpack.c.l.b16 %v270
    %v463 = vunpack.c.l.b16 %v271
    %v464 = vunpack.c.h.b16 %v271
    %v465 = vunpack.c.l.b16 %v272
    %v466 = vpack.c.b16 %v421, %v418
    %v467 = vpack.c.b16 %v422, %v419
    %v468 = vpack.c.b16 %v423, %v420
    %v469 = vpack.c.b16 %v427, %v424
    %v470 = vpack.c.b16 %v428, %v425
    %v471 = vpack.c.b16 %v429, %v426
    %v472 = vpack.c.b16 %v433, %v430
    %v473 = vpack.c.b16 %v434, %v431
    %v474 = vpack.c.b16 %v435, %v432
    %v475 = vpack.c.b16 %v439, %v436
    %v476 = vpack.c.b16 %v440, %v437
    %v477 = vpack.c.b16 %v441, %v438
    %v478 = vpack.c.b16 %v445, %v442
    %v479 = vpack.c.b16 %v446, %v443
    %v480 = vpack.c.b16 %v447, %v444
    %v481 = vpack.c.b16 %v451, %v448
    %v482 = vpack.c.b16 %v452, %v449
    %v483 = vpack.c.b16 %v453, %v450
    %v484 = vpack.c.b16 %v457, %v454
    %v485 = vpack.c.b16 %v458, %v455
    %v486 = vpack.c.b16 %v459, %v456
    %v487 = vpack.c.b16 %v463, %v460
    %v488 = vpack.c.b16 %v464, %v461
    %v489 = vpack.c.b16 %v465, %v462
    %514 = vmatprep.subr.bf16.mxu0 %v467
    %515 = vmatpush1.bf16.msra.mxu0 %v466
    %516 = vmatprep.subr.bf16.mxu0 %v470
    %517 = vmatpush1.bf16.msra.mxu0 %v469
    %518 = vmatprep.subr.bf16.mxu0 %v473
    %519 = vmatpush1.bf16.msra.mxu0 %v472
    %520 = vmatprep.subr.bf16.mxu0 %v476
    %521 = vmatpush1.bf16.msra.mxu0 %v475
    %522 = vmatprep.subr.bf16.mxu0 %v479
    %523 = vmatpush1.bf16.msra.mxu0 %v478
    %524 = vmatprep.subr.bf16.mxu0 %v482
    %525 = vmatpush1.bf16.msra.mxu0 %v481
    %526 = vmatprep.subr.bf16.mxu0 %v485
    %527 = vmatpush1.bf16.msra.mxu0 %v484
    %528 = vmatprep.subr.bf16.mxu0 %v488
    %529 = vmatpush1.bf16.msra.mxu0 %v487
    %530 = vmatprep.subr.bf16.mxu0 0
    %531 = vmatpush1.bf16.msra.mxu0 0
    %532 = vmatprep.subr.bf16.mxu0 0
    %533 = vmatpush1.bf16.msra.mxu0 0
    %534 = vmatprep.subr.bf16.mxu0 0
    %535 = vmatpush1.bf16.msra.mxu0 0
    %536 = vmatprep.subr.bf16.mxu0 0
    %537 = vmatpush1.bf16.msra.mxu0 0
    %538 = vmatprep.subr.bf16.mxu0 0
    %539 = vmatpush1.bf16.msra.mxu0 0
    %540 = vmatprep.subr.bf16.mxu0 0
    %541 = vmatpush1.bf16.msra.mxu0 0
    %542 = vmatprep.subr.bf16.mxu0 0
    %543 = vmatpush1.bf16.msra.mxu0 0
    %544 = vmatprep.subr.bf16.mxu0 0
    %545 = vmatpush1.bf16.msra.mxu0 0
    %546 = vmatprep.mubr.bf16.mxu0 0
    %547 = vmatmul.mubr.bf16.gmra.mrb[0].mxu0 %v240
    %v548 = vpop.f32.mrb[0].mxu0
    %v549 = vadd.f32 %v374, %v548
    %v550 = vpop.f32.mrb[0].mxu0
    %v551 = vadd.f32 %v378, %v550
    %v552 = vpop.f32.mrb[0].mxu0
    %v553 = vpop.f32.mrb[0].mxu0
    %554 = vdwg.mxu0
    %555 = vmatprep.subr.bf16.mxu0 0
    %556 = vmatpush1.bf16.msra.mxu0 %v468
    %557 = vmatprep.subr.bf16.mxu0 0
    %558 = vmatpush1.bf16.msra.mxu0 %v471
    %559 = vmatprep.subr.bf16.mxu0 0
    %560 = vmatpush1.bf16.msra.mxu0 %v474
    %561 = vmatprep.subr.bf16.mxu0 0
    %562 = vmatpush1.bf16.msra.mxu0 %v477
    %563 = vmatprep.subr.bf16.mxu0 0
    %564 = vmatpush1.bf16.msra.mxu0 %v480
    %565 = vmatprep.subr.bf16.mxu0 0
    %566 = vmatpush1.bf16.msra.mxu0 %v483
    %567 = vmatprep.subr.bf16.mxu0 0
    %568 = vmatpush1.bf16.msra.mxu0 %v486
    %569 = vmatprep.subr.bf16.mxu0 0
    %570 = vmatpush1.bf16.msra.mxu0 %v489
    %571 = vmatprep.subr.bf16.mxu0 0
    %572 = vmatpush1.bf16.msra.mxu0 0
    %573 = vmatprep.subr.bf16.mxu0 0
    %574 = vmatpush1.bf16.msra.mxu0 0
    %575 = vmatprep.subr.bf16.mxu0 0
    %576 = vmatpush1.bf16.msra.mxu0 0
    %577 = vmatprep.subr.bf16.mxu0 0
    %578 = vmatpush1.bf16.msra.mxu0 0
    %579 = vmatprep.subr.bf16.mxu0 0
    %580 = vmatpush1.bf16.msra.mxu0 0
    %581 = vmatprep.subr.bf16.mxu0 0
    %582 = vmatpush1.bf16.msra.mxu0 0
    %583 = vmatprep.subr.bf16.mxu0 0
    %584 = vmatpush1.bf16.msra.mxu0 0
    %585 = vmatprep.subr.bf16.mxu0 0
    %586 = vmatpush1.bf16.msra.mxu0 0
    %587 = vmatprep.mubr.bf16.mxu0 0
    %588 = vmatmul.mubr.bf16.gmra.mrb[0].mxu0 %v240
    %v589 = vpop.f32.mrb[0].mxu0
    %v590 = vadd.f32 %v382, %v589
    %v591 = vpop.f32.mrb[0].mxu0
    %v592 = vpop.f32.mrb[0].mxu0
    %v593 = vpop.f32.mrb[0].mxu0
    %594 = vdwg.mxu0
    %595 = vst [vmem:[#allocation2] sm:$0xff] %v549
    %596 = vst [vmem:[#allocation2 + $0x8] sm:$0xff] %v551
    %597 = vst [vmem:[#allocation2 + $0x10] sm:$0xff] %v590
    %v598 = vld [vmem:[#allocation2] sm:$0xff]
    %v599 = vld [vmem:[#allocation2 + $0x8] sm:$0xff]
    %v600 = vld [vmem:[#allocation2 + $0x10] sm:$0xff]
    %v697 = vunpack.c.l.b16 %v273
    %v698 = vunpack.c.h.b16 %v273
    %v699 = vunpack.c.l.b16 %v274
    %v700 = vunpack.c.l.b16 %v275
    %v701 = vunpack.c.h.b16 %v275
    %v702 = vunpack.c.l.b16 %v276
    %v703 = vunpack.c.l.b16 %v277
    %v704 = vunpack.c.h.b16 %v277
    %v705 = vunpack.c.l.b16 %v278
    %v706 = vunpack.c.l.b16 %v279
    %v707 = vunpack.c.h.b16 %v279
    %v708 = vunpack.c.l.b16 %v280
    %v709 = vunpack.c.l.b16 %v281
    %v710 = vunpack.c.h.b16 %v281
    %v711 = vunpack.c.l.b16 %v282
    %v712 = vunpack.c.l.b16 %v283
    %v713 = vunpack.c.h.b16 %v283
    %v714 = vunpack.c.l.b16 %v284
    %v715 = vunpack.c.l.b16 %v285
    %v716 = vunpack.c.h.b16 %v285
    %v717 = vunpack.c.l.b16 %v286
    %v718 = vunpack.c.l.b16 %v287
    %v719 = vunpack.c.h.b16 %v287
    %v720 = vunpack.c.l.b16 %v288
    %v721 = vunpack.c.l.b16 %v289
    %v722 = vunpack.c.h.b16 %v289
    %v723 = vunpack.c.l.b16 %v290
    %v724 = vunpack.c.l.b16 %v291
    %v725 = vunpack.c.h.b16 %v291
    %v726 = vunpack.c.l.b16 %v292
    %v727 = vunpack.c.l.b16 %v293
    %v728 = vunpack.c.h.b16 %v293
    %v729 = vunpack.c.l.b16 %v294
    %v730 = vunpack.c.l.b16 %v295
    %v731 = vunpack.c.h.b16 %v295
    %v732 = vunpack.c.l.b16 %v296
    %v733 = vunpack.c.l.b16 %v297
    %v734 = vunpack.c.h.b16 %v297
    %v735 = vunpack.c.l.b16 %v298
    %v736 = vunpack.c.l.b16 %v299
    %v737 = vunpack.c.h.b16 %v299
    %v738 = vunpack.c.l.b16 %v300
    %v739 = vunpack.c.l.b16 %v301
    %v740 = vunpack.c.h.b16 %v301
    %v741 = vunpack.c.l.b16 %v302
    %v742 = vunpack.c.l.b16 %v303
    %v743 = vunpack.c.h.b16 %v303
    %v744 = vunpack.c.l.b16 %v304
    %v745 = vunpack.c.l.b16 %v305
    %v746 = vunpack.c.h.b16 %v305
    %v747 = vunpack.c.l.b16 %v306
    %v748 = vunpack.c.l.b16 %v307
    %v749 = vunpack.c.h.b16 %v307
    %v750 = vunpack.c.l.b16 %v308
    %v751 = vunpack.c.l.b16 %v309
    %v752 = vunpack.c.h.b16 %v309
    %v753 = vunpack.c.l.b16 %v310
    %v754 = vunpack.c.l.b16 %v311
    %v755 = vunpack.c.h.b16 %v311
    %v756 = vunpack.c.l.b16 %v312
    %v757 = vunpack.c.l.b16 %v313
    %v758 = vunpack.c.h.b16 %v313
    %v759 = vunpack.c.l.b16 %v314
    %v760 = vunpack.c.l.b16 %v315
    %v761 = vunpack.c.h.b16 %v315
    %v762 = vunpack.c.l.b16 %v316
    %v763 = vunpack.c.l.b16 %v317
    %v764 = vunpack.c.h.b16 %v317
    %v765 = vunpack.c.l.b16 %v318
    %v766 = vunpack.c.l.b16 %v319
    %v767 = vunpack.c.h.b16 %v319
    %v768 = vunpack.c.l.b16 %v320
    %v769 = vunpack.c.l.b16 %v321
    %v770 = vunpack.c.h.b16 %v321
    %v771 = vunpack.c.l.b16 %v322
    %v772 = vunpack.c.l.b16 %v323
    %v773 = vunpack.c.h.b16 %v323
    %v774 = vunpack.c.l.b16 %v324
    %v775 = vunpack.c.l.b16 %v325
    %v776 = vunpack.c.h.b16 %v325
    %v777 = vunpack.c.l.b16 %v326
    %v778 = vunpack.c.l.b16 %v327
    %v779 = vunpack.c.h.b16 %v327
    %v780 = vunpack.c.l.b16 %v328
    %v781 = vunpack.c.l.b16 %v329
    %v782 = vunpack.c.h.b16 %v329
    %v783 = vunpack.c.l.b16 %v330
    %v784 = vunpack.c.l.b16 %v331
    %v785 = vunpack.c.h.b16 %v331
    %v786 = vunpack.c.l.b16 %v332
    %v787 = vunpack.c.l.b16 %v333
    %v788 = vunpack.c.h.b16 %v333
    %v789 = vunpack.c.l.b16 %v334
    %v790 = vunpack.c.l.b16 %v335
    %v791 = vunpack.c.h.b16 %v335
    %v792 = vunpack.c.l.b16 %v336
    %v793 = vunpack.c.l.b16 %v337
    %v794 = vunpack.c.h.b16 %v337
    %v795 = vunpack.c.l.b16 %v338
    %v796 = vunpack.c.l.b16 %v339
    %v797 = vunpack.c.h.b16 %v339
    %v798 = vunpack.c.l.b16 %v340
    %v799 = vunpack.c.l.b16 %v341
    %v800 = vunpack.c.h.b16 %v341
    %v801 = vunpack.c.l.b16 %v342
    %v802 = vunpack.c.l.b16 %v343
    %v803 = vunpack.c.h.b16 %v343
    %v804 = vunpack.c.l.b16 %v344
    %v805 = vunpack.c.l.b16 %v345
    %v806 = vunpack.c.h.b16 %v345
    %v807 = vunpack.c.l.b16 %v346
    %v808 = vunpack.c.l.b16 %v347
    %v809 = vunpack.c.h.b16 %v347
    %v810 = vunpack.c.l.b16 %v348
    %v811 = vunpack.c.l.b16 %v349
    %v812 = vunpack.c.h.b16 %v349
    %v813 = vunpack.c.l.b16 %v350
    %v814 = vunpack.c.l.b16 %v351
    %v815 = vunpack.c.h.b16 %v351
    %v816 = vunpack.c.l.b16 %v352
    %v817 = vunpack.c.l.b16 %v353
    %v818 = vunpack.c.h.b16 %v353
    %v819 = vunpack.c.l.b16 %v354
    %v820 = vunpack.c.l.b16 %v355
    %v821 = vunpack.c.h.b16 %v355
    %v822 = vunpack.c.l.b16 %v356
    %v823 = vunpack.c.l.b16 %v357
    %v824 = vunpack.c.h.b16 %v357
    %v825 = vunpack.c.l.b16 %v358
    %v826 = vunpack.c.l.b16 %v359
    %v827 = vunpack.c.h.b16 %v359
    %v828 = vunpack.c.l.b16 %v360
    %v829 = vunpack.c.l.b16 %v361
    %v830 = vunpack.c.h.b16 %v361
    %v831 = vunpack.c.l.b16 %v362
    %v832 = vunpack.c.l.b16 %v363
    %v833 = vunpack.c.h.b16 %v363
    %v834 = vunpack.c.l.b16 %v364
    %v835 = vunpack.c.l.b16 %v365
    %v836 = vunpack.c.h.b16 %v365
    %v837 = vunpack.c.l.b16 %v366
    %v838 = vunpack.c.l.b16 %v367
    %v839 = vunpack.c.h.b16 %v367
    %v840 = vunpack.c.l.b16 %v368
    %v841 = vpack.c.b16 %v700, %v697
    %v842 = vpack.c.b16 %v701, %v698
    %v843 = vpack.c.b16 %v702, %v699
    %v844 = vpack.c.b16 %v706, %v703
    %v845 = vpack.c.b16 %v707, %v704
    %v846 = vpack.c.b16 %v708, %v705
    %v847 = vpack.c.b16 %v712, %v709
    %v848 = vpack.c.b16 %v713, %v710
    %v849 = vpack.c.b16 %v714, %v711
    %v850 = vpack.c.b16 %v718, %v715
    %v851 = vpack.c.b16 %v719, %v716
    %v852 = vpack.c.b16 %v720, %v717
    %v853 = vpack.c.b16 %v724, %v721
    %v854 = vpack.c.b16 %v725, %v722
    %v855 = vpack.c.b16 %v726, %v723
    %v856 = vpack.c.b16 %v730, %v727
    %v857 = vpack.c.b16 %v731, %v728
    %v858 = vpack.c.b16 %v732, %v729
    %v859 = vpack.c.b16 %v736, %v733
    %v860 = vpack.c.b16 %v737, %v734
    %v861 = vpack.c.b16 %v738, %v735
    %v862 = vpack.c.b16 %v742, %v739
    %v863 = vpack.c.b16 %v743, %v740
    %v864 = vpack.c.b16 %v744, %v741
    %v865 = vpack.c.b16 %v748, %v745
    %v866 = vpack.c.b16 %v749, %v746
    %v867 = vpack.c.b16 %v750, %v747
    %v868 = vpack.c.b16 %v754, %v751
    %v869 = vpack.c.b16 %v755, %v752
    %v870 = vpack.c.b16 %v756, %v753
    %v871 = vpack.c.b16 %v760, %v757
    %v872 = vpack.c.b16 %v761, %v758
    %v873 = vpack.c.b16 %v762, %v759
    %v874 = vpack.c.b16 %v766, %v763
    %v875 = vpack.c.b16 %v767, %v764
    %v876 = vpack.c.b16 %v768, %v765
    %v877 = vpack.c.b16 %v772, %v769
    %v878 = vpack.c.b16 %v773, %v770
    %v879 = vpack.c.b16 %v774, %v771
    %v880 = vpack.c.b16 %v778, %v775
    %v881 = vpack.c.b16 %v779, %v776
    %v882 = vpack.c.b16 %v780, %v777
    %v883 = vpack.c.b16 %v784, %v781
    %v884 = vpack.c.b16 %v785, %v782
    %v885 = vpack.c.b16 %v786, %v783
    %v886 = vpack.c.b16 %v790, %v787
    %v887 = vpack.c.b16 %v791, %v788
    %v888 = vpack.c.b16 %v792, %v789
    %v889 = vpack.c.b16 %v796, %v793
    %v890 = vpack.c.b16 %v797, %v794
    %v891 = vpack.c.b16 %v798, %v795
    %v892 = vpack.c.b16 %v802, %v799
    %v893 = vpack.c.b16 %v803, %v800
    %v894 = vpack.c.b16 %v804, %v801
    %v895 = vpack.c.b16 %v808, %v805
    %v896 = vpack.c.b16 %v809, %v806
    %v897 = vpack.c.b16 %v810, %v807
    %v898 = vpack.c.b16 %v814, %v811
    %v899 = vpack.c.b16 %v815, %v812
    %v900 = vpack.c.b16 %v816, %v813
    %v901 = vpack.c.b16 %v820, %v817
    %v902 = vpack.c.b16 %v821, %v818
    %v903 = vpack.c.b16 %v822, %v819
    %v904 = vpack.c.b16 %v826, %v823
    %v905 = vpack.c.b16 %v827, %v824
    %v906 = vpack.c.b16 %v828, %v825
    %v907 = vpack.c.b16 %v832, %v829
    %v908 = vpack.c.b16 %v833, %v830
    %v909 = vpack.c.b16 %v834, %v831
    %v910 = vpack.c.b16 %v838, %v835
    %v911 = vpack.c.b16 %v839, %v836
    %v912 = vpack.c.b16 %v840, %v837
    %985 = vmatprep.subr.bf16.mxu0 %v842
    %986 = vmatpush1.bf16.msra.mxu0 %v841
    %987 = vmatprep.subr.bf16.mxu0 %v845
    %988 = vmatpush1.bf16.msra.mxu0 %v844
    %989 = vmatprep.subr.bf16.mxu0 %v848
    %990 = vmatpush1.bf16.msra.mxu0 %v847
    %991 = vmatprep.subr.bf16.mxu0 %v851
    %992 = vmatpush1.bf16.msra.mxu0 %v850
    %993 = vmatprep.subr.bf16.mxu0 %v854
    %994 = vmatpush1.bf16.msra.mxu0 %v853
    %995 = vmatprep.subr.bf16.mxu0 %v857
    %996 = vmatpush1.bf16.msra.mxu0 %v856
    %997 = vmatprep.subr.bf16.mxu0 %v860
    %998 = vmatpush1.bf16.msra.mxu0 %v859
    %999 = vmatprep.subr.bf16.mxu0 %v863
    %1000 = vmatpush1.bf16.msra.mxu0 %v862
    %1001 = vmatprep.subr.bf16.mxu0 %v866
    %1002 = vmatpush1.bf16.msra.mxu0 %v865
    %1003 = vmatprep.subr.bf16.mxu0 %v869
    %1004 = vmatpush1.bf16.msra.mxu0 %v868
    %1005 = vmatprep.subr.bf16.mxu0 %v872
    %1006 = vmatpush1.bf16.msra.mxu0 %v871
    %1007 = vmatprep.subr.bf16.mxu0 %v875
    %1008 = vmatpush1.bf16.msra.mxu0 %v874
    %1009 = vmatprep.subr.bf16.mxu0 %v878
    %1010 = vmatpush1.bf16.msra.mxu0 %v877
    %1011 = vmatprep.subr.bf16.mxu0 %v881
    %1012 = vmatpush1.bf16.msra.mxu0 %v880
    %1013 = vmatprep.subr.bf16.mxu0 %v884
    %1014 = vmatpush1.bf16.msra.mxu0 %v883
    %1015 = vmatprep.subr.bf16.mxu0 %v887
    %1016 = vmatpush1.bf16.msra.mxu0 %v886
    %1017 = vmatprep.mubr.bf16.mxu0 0
    %1018 = vmatmul.mubr.bf16.gmra.mrb[0].mxu0 0
    %v1019 = vpop.f32.mrb[0].mxu0
    %v1020 = vadd.f32 0.0, %v1019
    %v1021 = vpop.f32.mrb[0].mxu0
    %v1022 = vadd.f32 0.0, %v1021
    %v1023 = vpop.f32.mrb[0].mxu0
    %v1024 = vpop.f32.mrb[0].mxu0
    %1025 = vdwg.mxu0
    %1026 = vmatprep.subr.bf16.mxu0 %v890
    %1027 = vmatpush1.bf16.msra.mxu0 %v889
    %1028 = vmatprep.subr.bf16.mxu0 %v893
    %1029 = vmatpush1.bf16.msra.mxu0 %v892
    %1030 = vmatprep.subr.bf16.mxu0 %v896
    %1031 = vmatpush1.bf16.msra.mxu0 %v895
    %1032 = vmatprep.subr.bf16.mxu0 %v899
    %1033 = vmatpush1.bf16.msra.mxu0 %v898
    %1034 = vmatprep.subr.bf16.mxu0 %v902
    %1035 = vmatpush1.bf16.msra.mxu0 %v901
    %1036 = vmatprep.subr.bf16.mxu0 %v905
    %1037 = vmatpush1.bf16.msra.mxu0 %v904
    %1038 = vmatprep.subr.bf16.mxu0 %v908
    %1039 = vmatpush1.bf16.msra.mxu0 %v907
    %1040 = vmatprep.subr.bf16.mxu0 %v911
    %1041 = vmatpush1.bf16.msra.mxu0 %v910
    %1042 = vmatprep.subr.bf16.mxu0 0
    %1043 = vmatpush1.bf16.msra.mxu0 0
    %1044 = vmatprep.subr.bf16.mxu0 0
    %1045 = vmatpush1.bf16.msra.mxu0 0
    %1046 = vmatprep.subr.bf16.mxu0 0
    %1047 = vmatpush1.bf16.msra.mxu0 0
    %1048 = vmatprep.subr.bf16.mxu0 0
    %1049 = vmatpush1.bf16.msra.mxu0 0
    %1050 = vmatprep.subr.bf16.mxu0 0
    %1051 = vmatpush1.bf16.msra.mxu0 0
    %1052 = vmatprep.subr.bf16.mxu0 0
    %1053 = vmatpush1.bf16.msra.mxu0 0
    %1054 = vmatprep.subr.bf16.mxu0 0
    %1055 = vmatpush1.bf16.msra.mxu0 0
    %1056 = vmatprep.subr.bf16.mxu0 0
    %1057 = vmatpush1.bf16.msra.mxu0 0
    %1058 = vmatprep.mubr.bf16.mxu0 0
    %1059 = vmatmul.mubr.bf16.gmra.mrb[0].mxu0 0
    %v1060 = vpop.f32.mrb[0].mxu0
    %v1061 = vadd.f32 %v1020, %v1060
    %v1062 = vpop.f32.mrb[0].mxu0
    %v1063 = vadd.f32 %v1022, %v1062
    %v1064 = vpop.f32.mrb[0].mxu0
    %v1065 = vpop.f32.mrb[0].mxu0
    %1066 = vdwg.mxu0
    %1067 = vmatprep.subr.bf16.mxu0 0
    %1068 = vmatpush1.bf16.msra.mxu0 %v843
    %1069 = vmatprep.subr.bf16.mxu0 0
    %1070 = vmatpush1.bf16.msra.mxu0 %v846
    %1071 = vmatprep.subr.bf16.mxu0 0
    %1072 = vmatpush1.bf16.msra.mxu0 %v849
    %1073 = vmatprep.subr.bf16.mxu0 0
    %1074 = vmatpush1.bf16.msra.mxu0 %v852
    %1075 = vmatprep.subr.bf16.mxu0 0
    %1076 = vmatpush1.bf16.msra.mxu0 %v855
    %1077 = vmatprep.subr.bf16.mxu0 0
    %1078 = vmatpush1.bf16.msra.mxu0 %v858
    %1079 = vmatprep.subr.bf16.mxu0 0
    %1080 = vmatpush1.bf16.msra.mxu0 %v861
    %1081 = vmatprep.subr.bf16.mxu0 0
    %1082 = vmatpush1.bf16.msra.mxu0 %v864
    %1083 = vmatprep.subr.bf16.mxu0 0
    %1084 = vmatpush1.bf16.msra.mxu0 %v867
    %1085 = vmatprep.subr.bf16.mxu0 0
    %1086 = vmatpush1.bf16.msra.mxu0 %v870
    %1087 = vmatprep.subr.bf16.mxu0 0
    %1088 = vmatpush1.bf16.msra.mxu0 %v873
    %1089 = vmatprep.subr.bf16.mxu0 0
    %1090 = vmatpush1.bf16.msra.mxu0 %v876
    %1091 = vmatprep.subr.bf16.mxu0 0
    %1092 = vmatpush1.bf16.msra.mxu0 %v879
    %1093 = vmatprep.subr.bf16.mxu0 0
    %1094 = vmatpush1.bf16.msra.mxu0 %v882
    %1095 = vmatprep.subr.bf16.mxu0 0
    %1096 = vmatpush1.bf16.msra.mxu0 %v885
    %1097 = vmatprep.subr.bf16.mxu0 0
    %1098 = vmatpush1.bf16.msra.mxu0 %v888
    %1099 = vmatprep.mubr.bf16.mxu0 0
    %1100 = vmatmul.mubr.bf16.gmra.mrb[0].mxu0 0
    %v1101 = vpop.f32.mrb[0].mxu0
    %v1102 = vadd.f32 0.0, %v1101
    %v1103 = vpop.f32.mrb[0].mxu0
    %v1104 = vpop.f32.mrb[0].mxu0
    %v1105 = vpop.f32.mrb[0].mxu0
    %1106 = vdwg.mxu0
    %1107 = vmatprep.subr.bf16.mxu0 0
    %1108 = vmatpush1.bf16.msra.mxu0 %v891
    %1109 = vmatprep.subr.bf16.mxu0 0
    %1110 = vmatpush1.bf16.msra.mxu0 %v894
    %1111 = vmatprep.subr.bf16.mxu0 0
    %1112 = vmatpush1.bf16.msra.mxu0 %v897
    %1113 = vmatprep.subr.bf16.mxu0 0
    %1114 = vmatpush1.bf16.msra.mxu0 %v900
    %1115 = vmatprep.subr.bf16.mxu0 0
    %1116 = vmatpush1.bf16.msra.mxu0 %v903
    %1117 = vmatprep.subr.bf16.mxu0 0
    %1118 = vmatpush1.bf16.msra.mxu0 %v906
    %1119 = vmatprep.subr.bf16.mxu0 0
    %1120 = vmatpush1.bf16.msra.mxu0 %v909
    %1121 = vmatprep.subr.bf16.mxu0 0
    %1122 = vmatpush1.bf16.msra.mxu0 %v912
    %1123 = vmatprep.subr.bf16.mxu0 0
    %1124 = vmatpush1.bf16.msra.mxu0 0
    %1125 = vmatprep.subr.bf16.mxu0 0
    %1126 = vmatpush1.bf16.msra.mxu0 0
    %1127 = vmatprep.subr.bf16.mxu0 0
    %1128 = vmatpush1.bf16.msra.mxu0 0
    %1129 = vmatprep.subr.bf16.mxu0 0
    %1130 = vmatpush1.bf16.msra.mxu0 0
    %1131 = vmatprep.subr.bf16.mxu0 0
    %1132 = vmatpush1.bf16.msra.mxu0 0
    %1133 = vmatprep.subr.bf16.mxu0 0
    %1134 = vmatpush1.bf16.msra.mxu0 0
    %1135 = vmatprep.subr.bf16.mxu0 0
    %1136 = vmatpush1.bf16.msra.mxu0 0
    %1137 = vmatprep.subr.bf16.mxu0 0
    %1138 = vmatpush1.bf16.msra.mxu0 0
    %1139 = vmatprep.mubr.bf16.mxu0 0
    %1140 = vmatmul.mubr.bf16.gmra.mrb[0].mxu0 0
    %v1141 = vpop.f32.mrb[0].mxu0
    %v1142 = vadd.f32 %v1102, %v1141
    %v1143 = vpop.f32.mrb[0].mxu0
    %v1144 = vpop.f32.mrb[0].mxu0
    %v1145 = vpop.f32.mrb[0].mxu0
    %1146 = vdwg.mxu0
    %v1147 = vadd.f32 %v598, %v1061
    %v1148 = vadd.f32 %v599, %v1063
    %v1149 = vadd.f32 %v600, %v1142
    %v1150 = vtanh.pop %v1147
    %v1151 = vtanh.pop %v1148
    %v1152 = vtanh.pop %v1149
    %v1153 = vpack.c.bf16 %v1150, %v1150
    %v1154 = vpack.c.bf16 %v1151, %v1151
    %v1155 = vpack.c.bf16 %v1152, %v1152
    %1156 = vmatprep.subr.bf16.mxu0 %v842
    %1157 = vmatpush1.bf16.msra.mxu0 %v841
    %1158 = vmatprep.subr.bf16.mxu0 %v845
    %1159 = vmatpush1.bf16.msra.mxu0 %v844
    %1160 = vmatprep.subr.bf16.mxu0 %v848
    %1161 = vmatpush1.bf16.msra.mxu0 %v847
    %1162 = vmatprep.subr.bf16.mxu0 %v851
    %1163 = vmatpush1.bf16.msra.mxu0 %v850
    %1164 = vmatprep.subr.bf16.mxu0 %v854
    %1165 = vmatpush1.bf16.msra.mxu0 %v853
    %1166 = vmatprep.subr.bf16.mxu0 %v857
    %1167 = vmatpush1.bf16.msra.mxu0 %v856
    %1168 = vmatprep.subr.bf16.mxu0 %v860
    %1169 = vmatpush1.bf16.msra.mxu0 %v859
    %1170 = vmatprep.subr.bf16.mxu0 %v863
    %1171 = vmatpush1.bf16.msra.mxu0 %v862
    %1172 = vmatprep.subr.bf16.mxu0 %v866
    %1173 = vmatpush1.bf16.msra.mxu0 %v865
    %1174 = vmatprep.subr.bf16.mxu0 %v869
    %1175 = vmatpush1.bf16.msra.mxu0 %v868
    %1176 = vmatprep.subr.bf16.mxu0 %v872
    %1177 = vmatpush1.bf16.msra.mxu0 %v871
    %1178 = vmatprep.subr.bf16.mxu0 %v875
    %1179 = vmatpush1.bf16.msra.mxu0 %v874
    %1180 = vmatprep.subr.bf16.mxu0 %v878
    %1181 = vmatpush1.bf16.msra.mxu0 %v877
    %1182 = vmatprep.subr.bf16.mxu0 %v881
    %1183 = vmatpush1.bf16.msra.mxu0 %v880
    %1184 = vmatprep.subr.bf16.mxu0 %v884
    %1185 = vmatpush1.bf16.msra.mxu0 %v883
    %1186 = vmatprep.subr.bf16.mxu0 %v887
    %1187 = vmatpush1.bf16.msra.mxu0 %v886
    %1188 = vmatprep.mubr.bf16.mxu0 %v1154
    %1189 = vmatmul.mubr.bf16.gmra.mrb[0].mxu0 %v1153
    %v1190 = vpop.f32.mrb[0].mxu0
    %v1191 = vadd.f32 0.0, %v1190
    %v1192 = vpop.f32.mrb[0].mxu0
    %v1193 = vadd.f32 0.0, %v1192
    %v1194 = vpop.f32.mrb[0].mxu0
    %v1195 = vpop.f32.mrb[0].mxu0
    %1196 = vdwg.mxu0
    %1197 = vmatprep.subr.bf16.mxu0 %v890
    %1198 = vmatpush1.bf16.msra.mxu0 %v889
    %1199 = vmatprep.subr.bf16.mxu0 %v893
    %1200 = vmatpush1.bf16.msra.mxu0 %v892
    %1201 = vmatprep.subr.bf16.mxu0 %v896
    %1202 = vmatpush1.bf16.msra.mxu0 %v895
    %1203 = vmatprep.subr.bf16.mxu0 %v899
    %1204 = vmatpush1.bf16.msra.mxu0 %v898
    %1205 = vmatprep.subr.bf16.mxu0 %v902
    %1206 = vmatpush1.bf16.msra.mxu0 %v901
    %1207 = vmatprep.subr.bf16.mxu0 %v905
    %1208 = vmatpush1.bf16.msra.mxu0 %v904
    %1209 = vmatprep.subr.bf16.mxu0 %v908
    %1210 = vmatpush1.bf16.msra.mxu0 %v907
    %1211 = vmatprep.subr.bf16.mxu0 %v911
    %1212 = vmatpush1.bf16.msra.mxu0 %v910
    %1213 = vmatprep.subr.bf16.mxu0 0
    %1214 = vmatpush1.bf16.msra.mxu0 0
    %1215 = vmatprep.subr.bf16.mxu0 0
    %1216 = vmatpush1.bf16.msra.mxu0 0
    %1217 = vmatprep.subr.bf16.mxu0 0
    %1218 = vmatpush1.bf16.msra.mxu0 0
    %1219 = vmatprep.subr.bf16.mxu0 0
    %1220 = vmatpush1.bf16.msra.mxu0 0
    %1221 = vmatprep.subr.bf16.mxu0 0
    %1222 = vmatpush1.bf16.msra.mxu0 0
    %1223 = vmatprep.subr.bf16.mxu0 0
    %1224 = vmatpush1.bf16.msra.mxu0 0
    %1225 = vmatprep.subr.bf16.mxu0 0
    %1226 = vmatpush1.bf16.msra.mxu0 0
    %1227 = vmatprep.subr.bf16.mxu0 0
    %1228 = vmatpush1.bf16.msra.mxu0 0
    %1229 = vmatprep.mubr.bf16.mxu0 0
    %1230 = vmatmul.mubr.bf16.gmra.mrb[0].mxu0 %v1155
    %v1231 = vpop.f32.mrb[0].mxu0
    %v1232 = vadd.f32 %v1191, %v1231
    %v1233 = vpop.f32.mrb[0].mxu0
    %v1234 = vadd.f32 %v1193, %v1233
    %v1235 = vpop.f32.mrb[0].mxu0
    %v1236 = vpop.f32.mrb[0].mxu0
    %1237 = vdwg.mxu0
    %1238 = vmatprep.subr.bf16.mxu0 0
    %1239 = vmatpush1.bf16.msra.mxu0 %v843
    %1240 = vmatprep.subr.bf16.mxu0 0
    %1241 = vmatpush1.bf16.msra.mxu0 %v846
    %1242 = vmatprep.subr.bf16.mxu0 0
    %1243 = vmatpush1.bf16.msra.mxu0 %v849
    %1244 = vmatprep.subr.bf16.mxu0 0
    %1245 = vmatpush1.bf16.msra.mxu0 %v852
    %1246 = vmatprep.subr.bf16.mxu0 0
    %1247 = vmatpush1.bf16.msra.mxu0 %v855
    %1248 = vmatprep.subr.bf16.mxu0 0
    %1249 = vmatpush1.bf16.msra.mxu0 %v858
    %1250 = vmatprep.subr.bf16.mxu0 0
    %1251 = vmatpush1.bf16.msra.mxu0 %v861
    %1252 = vmatprep.subr.bf16.mxu0 0
    %1253 = vmatpush1.bf16.msra.mxu0 %v864
    %1254 = vmatprep.subr.bf16.mxu0 0
    %1255 = vmatpush1.bf16.msra.mxu0 %v867
    %1256 = vmatprep.subr.bf16.mxu0 0
    %1257 = vmatpush1.bf16.msra.mxu0 %v870
    %1258 = vmatprep.subr.bf16.mxu0 0
    %1259 = vmatpush1.bf16.msra.mxu0 %v873
    %1260 = vmatprep.subr.bf16.mxu0 0
    %1261 = vmatpush1.bf16.msra.mxu0 %v876
    %1262 = vmatprep.subr.bf16.mxu0 0
    %1263 = vmatpush1.bf16.msra.mxu0 %v879
    %1264 = vmatprep.subr.bf16.mxu0 0
    %1265 = vmatpush1.bf16.msra.mxu0 %v882
    %1266 = vmatprep.subr.bf16.mxu0 0
    %1267 = vmatpush1.bf16.msra.mxu0 %v885
    %1268 = vmatprep.subr.bf16.mxu0 0
    %1269 = vmatpush1.bf16.msra.mxu0 %v888
    %1270 = vmatprep.mubr.bf16.mxu0 %v1154
    %1271 = vmatmul.mubr.bf16.gmra.mrb[0].mxu0 %v1153
    %v1272 = vpop.f32.mrb[0].mxu0
    %v1273 = vadd.f32 0.0, %v1272
    %v1274 = vpop.f32.mrb[0].mxu0
    %v1275 = vpop.f32.mrb[0].mxu0
    %v1276 = vpop.f32.mrb[0].mxu0
    %1277 = vdwg.mxu0
    %1278 = vmatprep.subr.bf16.mxu0 0
    %1279 = vmatpush1.bf16.msra.mxu0 %v891
    %1280 = vmatprep.subr.bf16.mxu0 0
    %1281 = vmatpush1.bf16.msra.mxu0 %v894
    %1282 = vmatprep.subr.bf16.mxu0 0
    %1283 = vmatpush1.bf16.msra.mxu0 %v897
    %1284 = vmatprep.subr.bf16.mxu0 0
    %1285 = vmatpush1.bf16.msra.mxu0 %v900
    %1286 = vmatprep.subr.bf16.mxu0 0
    %1287 = vmatpush1.bf16.msra.mxu0 %v903
    %1288 = vmatprep.subr.bf16.mxu0 0
    %1289 = vmatpush1.bf16.msra.mxu0 %v906
    %1290 = vmatprep.subr.bf16.mxu0 0
    %1291 = vmatpush1.bf16.msra.mxu0 %v909
    %1292 = vmatprep.subr.bf16.mxu0 0
    %1293 = vmatpush1.bf16.msra.mxu0 %v912
    %1294 = vmatprep.subr.bf16.mxu0 0
    %1295 = vmatpush1.bf16.msra.mxu0 0
    %1296 = vmatprep.subr.bf16.mxu0 0
    %1297 = vmatpush1.bf16.msra.mxu0 0
    %1298 = vmatprep.subr.bf16.mxu0 0
    %1299 = vmatpush1.bf16.msra.mxu0 0
    %1300 = vmatprep.subr.bf16.mxu0 0
    %1301 = vmatpush1.bf16.msra.mxu0 0
    %1302 = vmatprep.subr.bf16.mxu0 0
    %1303 = vmatpush1.bf16.msra.mxu0 0
    %1304 = vmatprep.subr.bf16.mxu0 0
    %1305 = vmatpush1.bf16.msra.mxu0 0
    %1306 = vmatprep.subr.bf16.mxu0 0
    %1307 = vmatpush1.bf16.msra.mxu0 0
    %1308 = vmatprep.subr.bf16.mxu0 0
    %1309 = vmatpush1.bf16.msra.mxu0 0
    %1310 = vmatprep.mubr.bf16.mxu0 0
    %1311 = vmatmul.mubr.bf16.gmra.mrb[0].mxu0 %v1155
    %v1312 = vpop.f32.mrb[0].mxu0
    %v1313 = vadd.f32 %v1273, %v1312
    %v1314 = vpop.f32.mrb[0].mxu0
    %v1315 = vpop.f32.mrb[0].mxu0
    %v1316 = vpop.f32.mrb[0].mxu0
    %1317 = vdwg.mxu0
    %v1321 = vrot.slane %v1232, 7
    %v1322 = vrot.slane %v1234, 7
    %v1323 = vrot.slane %v1313, 7
    %v1327 = vadd.f32 %v598, %v1321
    %v1328 = vadd.f32 %v599, %v1322
    %v1329 = vadd.f32 %v600, %v1323
    %v1330 = vtanh.pop %v1327
    %v1331 = vtanh.pop %v1328
    %v1332 = vtanh.pop %v1329
    %v1333 = vpack.c.bf16 %v1330, %v1330
    %v1334 = vpack.c.bf16 %v1331, %v1331
    %v1335 = vpack.c.bf16 %v1332, %v1332
    %v1337 = vshrl.u32 %v1333, 16
    %v1340 = vshrl.u32 %v1334, 16
    %v1343 = vshrl.u32 %v1335, 16
    %1348 = vmatprep.subr.bf16.mxu0 %v842
    %1349 = vmatpush1.bf16.msra.mxu0 %v841
    %1350 = vmatprep.subr.bf16.mxu0 %v845
    %1351 = vmatpush1.bf16.msra.mxu0 %v844
    %1352 = vmatprep.subr.bf16.mxu0 %v848
    %1353 = vmatpush1.bf16.msra.mxu0 %v847
    %1354 = vmatprep.subr.bf16.mxu0 %v851
    %1355 = vmatpush1.bf16.msra.mxu0 %v850
    %1356 = vmatprep.subr.bf16.mxu0 %v854
    %1357 = vmatpush1.bf16.msra.mxu0 %v853
    %1358 = vmatprep.subr.bf16.mxu0 %v857
    %1359 = vmatpush1.bf16.msra.mxu0 %v856
    %1360 = vmatprep.subr.bf16.mxu0 %v860
    %1361 = vmatpush1.bf16.msra.mxu0 %v859
    %1362 = vmatprep.subr.bf16.mxu0 %v863
    %1363 = vmatpush1.bf16.msra.mxu0 %v862
    %1364 = vmatprep.subr.bf16.mxu0 %v866
    %1365 = vmatpush1.bf16.msra.mxu0 %v865
    %1366 = vmatprep.subr.bf16.mxu0 %v869
    %1367 = vmatpush1.bf16.msra.mxu0 %v868
    %1368 = vmatprep.subr.bf16.mxu0 %v872
    %1369 = vmatpush1.bf16.msra.mxu0 %v871
    %1370 = vmatprep.subr.bf16.mxu0 %v875
    %1371 = vmatpush1.bf16.msra.mxu0 %v874
    %1372 = vmatprep.subr.bf16.mxu0 %v878
    %1373 = vmatpush1.bf16.msra.mxu0 %v877
    %1374 = vmatprep.subr.bf16.mxu0 %v881
    %1375 = vmatpush1.bf16.msra.mxu0 %v880
    %1376 = vmatprep.subr.bf16.mxu0 %v884
    %1377 = vmatpush1.bf16.msra.mxu0 %v883
    %1378 = vmatprep.subr.bf16.mxu0 %v887
    %1379 = vmatpush1.bf16.msra.mxu0 %v886
    %1380 = vmatprep.mubr.bf16.mxu0 %v1340
    %1381 = vmatmul.mubr.bf16.gmra.mrb[0].mxu0 %v1337
    %v1382 = vpop.f32.mrb[0].mxu0
    %v1383 = vadd.f32 0.0, %v1382
    %v1384 = vpop.f32.mrb[0].mxu0
    %v1385 = vadd.f32 0.0, %v1384
    %v1386 = vpop.f32.mrb[0].mxu0
    %v1387 = vpop.f32.mrb[0].mxu0
    %1388 = vdwg.mxu0
    %1389 = vmatprep.subr.bf16.mxu0 %v890
    %1390 = vmatpush1.bf16.msra.mxu0 %v889
    %1391 = vmatprep.subr.bf16.mxu0 %v893
    %1392 = vmatpush1.bf16.msra.mxu0 %v892
    %1393 = vmatprep.subr.bf16.mxu0 %v896
    %1394 = vmatpush1.bf16.msra.mxu0 %v895
    %1395 = vmatprep.subr.bf16.mxu0 %v899
    %1396 = vmatpush1.bf16.msra.mxu0 %v898
    %1397 = vmatprep.subr.bf16.mxu0 %v902
    %1398 = vmatpush1.bf16.msra.mxu0 %v901
    %1399 = vmatprep.subr.bf16.mxu0 %v905
    %1400 = vmatpush1.bf16.msra.mxu0 %v904
    %1401 = vmatprep.subr.bf16.mxu0 %v908
    %1402 = vmatpush1.bf16.msra.mxu0 %v907
    %1403 = vmatprep.subr.bf16.mxu0 %v911
    %1404 = vmatpush1.bf16.msra.mxu0 %v910
    %1405 = vmatprep.subr.bf16.mxu0 0
    %1406 = vmatpush1.bf16.msra.mxu0 0
    %1407 = vmatprep.subr.bf16.mxu0 0
    %1408 = vmatpush1.bf16.msra.mxu0 0
    %1409 = vmatprep.subr.bf16.mxu0 0
    %1410 = vmatpush1.bf16.msra.mxu0 0
    %1411 = vmatprep.subr.bf16.mxu0 0
    %1412 = vmatpush1.bf16.msra.mxu0 0
    %1413 = vmatprep.subr.bf16.mxu0 0
    %1414 = vmatpush1.bf16.msra.mxu0 0
    %1415 = vmatprep.subr.bf16.mxu0 0
    %1416 = vmatpush1.bf16.msra.mxu0 0
    %1417 = vmatprep.subr.bf16.mxu0 0
    %1418 = vmatpush1.bf16.msra.mxu0 0
    %1419 = vmatprep.subr.bf16.mxu0 0
    %1420 = vmatpush1.bf16.msra.mxu0 0
    %1421 = vmatprep.mubr.bf16.mxu0 0
    %1422 = vmatmul.mubr.bf16.gmra.mrb[0].mxu0 %v1343
    %v1423 = vpop.f32.mrb[0].mxu0
    %v1424 = vadd.f32 %v1383, %v1423
    %v1425 = vpop.f32.mrb[0].mxu0
    %v1426 = vadd.f32 %v1385, %v1425
    %v1427 = vpop.f32.mrb[0].mxu0
    %v1428 = vpop.f32.mrb[0].mxu0
    %1429 = vdwg.mxu0
    %1430 = vmatprep.subr.bf16.mxu0 0
    %1431 = vmatpush1.bf16.msra.mxu0 %v843
    %1432 = vmatprep.subr.bf16.mxu0 0
    %1433 = vmatpush1.bf16.msra.mxu0 %v846
    %1434 = vmatprep.subr.bf16.mxu0 0
    %1435 = vmatpush1.bf16.msra.mxu0 %v849
    %1436 = vmatprep.subr.bf16.mxu0 0
    %1437 = vmatpush1.bf16.msra.mxu0 %v852
    %1438 = vmatprep.subr.bf16.mxu0 0
    %1439 = vmatpush1.bf16.msra.mxu0 %v855
    %1440 = vmatprep.subr.bf16.mxu0 0
    %1441 = vmatpush1.bf16.msra.mxu0 %v858
    %1442 = vmatprep.subr.bf16.mxu0 0
    %1443 = vmatpush1.bf16.msra.mxu0 %v861
    %1444 = vmatprep.subr.bf16.mxu0 0
    %1445 = vmatpush1.bf16.msra.mxu0 %v864
    %1446 = vmatprep.subr.bf16.mxu0 0
    %1447 = vmatpush1.bf16.msra.mxu0 %v867
    %1448 = vmatprep.subr.bf16.mxu0 0
    %1449 = vmatpush1.bf16.msra.mxu0 %v870
    %1450 = vmatprep.subr.bf16.mxu0 0
    %1451 = vmatpush1.bf16.msra.mxu0 %v873
    %1452 = vmatprep.subr.bf16.mxu0 0
    %1453 = vmatpush1.bf16.msra.mxu0 %v876
    %1454 = vmatprep.subr.bf16.mxu0 0
    %1455 = vmatpush1.bf16.msra.mxu0 %v879
    %1456 = vmatprep.subr.bf16.mxu0 0
    %1457 = vmatpush1.bf16.msra.mxu0 %v882
    %1458 = vmatprep.subr.bf16.mxu0 0
    %1459 = vmatpush1.bf16.msra.mxu0 %v885
    %1460 = vmatprep.subr.bf16.mxu0 0
    %1461 = vmatpush1.bf16.msra.mxu0 %v888
    %1462 = vmatprep.mubr.bf16.mxu0 %v1340
    %1463 = vmatmul.mubr.bf16.gmra.mrb[0].mxu0 %v1337
    %v1464 = vpop.f32.mrb[0].mxu0
    %v1465 = vadd.f32 0.0, %v1464
    %v1466 = vpop.f32.mrb[0].mxu0
    %v1467 = vpop.f32.mrb[0].mxu0
    %v1468 = vpop.f32.mrb[0].mxu0
    %1469 = vdwg.mxu0
    %1470 = vmatprep.subr.bf16.mxu0 0
    %1471 = vmatpush1.bf16.msra.mxu0 %v891
    %1472 = vmatprep.subr.bf16.mxu0 0
    %1473 = vmatpush1.bf16.msra.mxu0 %v894
    %1474 = vmatprep.subr.bf16.mxu0 0
    %1475 = vmatpush1.bf16.msra.mxu0 %v897
    %1476 = vmatprep.subr.bf16.mxu0 0
    %1477 = vmatpush1.bf16.msra.mxu0 %v900
    %1478 = vmatprep.subr.bf16.mxu0 0
    %1479 = vmatpush1.bf16.msra.mxu0 %v903
    %1480 = vmatprep.subr.bf16.mxu0 0
    %1481 = vmatpush1.bf16.msra.mxu0 %v906
    %1482 = vmatprep.subr.bf16.mxu0 0
    %1483 = vmatpush1.bf16.msra.mxu0 %v909
    %1484 = vmatprep.subr.bf16.mxu0 0
    %1485 = vmatpush1.bf16.msra.mxu0 %v912
    %1486 = vmatprep.subr.bf16.mxu0 0
    %1487 = vmatpush1.bf16.msra.mxu0 0
    %1488 = vmatprep.subr.bf16.mxu0 0
    %1489 = vmatpush1.bf16.msra.mxu0 0
    %1490 = vmatprep.subr.bf16.mxu0 0
    %1491 = vmatpush1.bf16.msra.mxu0 0
    %1492 = vmatprep.subr.bf16.mxu0 0
    %1493 = vmatpush1.bf16.msra.mxu0 0
    %1494 = vmatprep.subr.bf16.mxu0 0
    %1495 = vmatpush1.bf16.msra.mxu0 0
    %1496 = vmatprep.subr.bf16.mxu0 0
    %1497 = vmatpush1.bf16.msra.mxu0 0
    %1498 = vmatprep.subr.bf16.mxu0 0
    %1499 = vmatpush1.bf16.msra.mxu0 0
    %1500 = vmatprep.subr.bf16.mxu0 0
    %1501 = vmatpush1.bf16.msra.mxu0 0
    %1502 = vmatprep.mubr.bf16.mxu0 0
    %1503 = vmatmul.mubr.bf16.gmra.mrb[0].mxu0 %v1343
    %v1504 = vpop.f32.mrb[0].mxu0
    %v1505 = vadd.f32 %v1465, %v1504
    %v1506 = vpop.f32.mrb[0].mxu0
    %v1507 = vpop.f32.mrb[0].mxu0
    %v1508 = vpop.f32.mrb[0].mxu0
    %1509 = vdwg.mxu0
    %v1513 = vrot.slane %v1424, 6
    %v1514 = vrot.slane %v1426, 6
    %v1515 = vrot.slane %v1505, 6
    %v1519 = vadd.f32 %v598, %v1513
    %v1520 = vadd.f32 %v599, %v1514
    %v1521 = vadd.f32 %v600, %v1515
    %v1522 = vtanh.pop %v1519
    %v1523 = vtanh.pop %v1520
    %v1524 = vtanh.pop %v1521
    %v1525 = vpack.c.bf16 %v1522, %v1522
    %v1526 = vpack.c.bf16 %v1523, %v1523
    %v1527 = vpack.c.bf16 %v1524, %v1524
    %v1531 = vrot.slane %v1525, 1
    %v1532 = vrot.slane %v1526, 1
    %v1533 = vrot.slane %v1527, 1
    %1537 = vmatprep.subr.bf16.mxu0 %v842
    %1538 = vmatpush1.bf16.msra.mxu0 %v841
    %1539 = vmatprep.subr.bf16.mxu0 %v845
    %1540 = vmatpush1.bf16.msra.mxu0 %v844
    %1541 = vmatprep.subr.bf16.mxu0 %v848
    %1542 = vmatpush1.bf16.msra.mxu0 %v847
    %1543 = vmatprep.subr.bf16.mxu0 %v851
    %1544 = vmatpush1.bf16.msra.mxu0 %v850
    %1545 = vmatprep.subr.bf16.mxu0 %v854
    %1546 = vmatpush1.bf16.msra.mxu0 %v853
    %1547 = vmatprep.subr.bf16.mxu0 %v857
    %1548 = vmatpush1.bf16.msra.mxu0 %v856
    %1549 = vmatprep.subr.bf16.mxu0 %v860
    %1550 = vmatpush1.bf16.msra.mxu0 %v859
    %1551 = vmatprep.subr.bf16.mxu0 %v863
    %1552 = vmatpush1.bf16.msra.mxu0 %v862
    %1553 = vmatprep.subr.bf16.mxu0 %v866
    %1554 = vmatpush1.bf16.msra.mxu0 %v865
    %1555 = vmatprep.subr.bf16.mxu0 %v869
    %1556 = vmatpush1.bf16.msra.mxu0 %v868
    %1557 = vmatprep.subr.bf16.mxu0 %v872
    %1558 = vmatpush1.bf16.msra.mxu0 %v871
    %1559 = vmatprep.subr.bf16.mxu0 %v875
    %1560 = vmatpush1.bf16.msra.mxu0 %v874
    %1561 = vmatprep.subr.bf16.mxu0 %v878
    %1562 = vmatpush1.bf16.msra.mxu0 %v877
    %1563 = vmatprep.subr.bf16.mxu0 %v881
    %1564 = vmatpush1.bf16.msra.mxu0 %v880
    %1565 = vmatprep.subr.bf16.mxu0 %v884
    %1566 = vmatpush1.bf16.msra.mxu0 %v883
    %1567 = vmatprep.subr.bf16.mxu0 %v887
    %1568 = vmatpush1.bf16.msra.mxu0 %v886
    %1569 = vmatprep.mubr.bf16.mxu0 %v1532
    %1570 = vmatmul.mubr.bf16.gmra.mrb[0].mxu0 %v1531
    %v1571 = vpop.f32.mrb[0].mxu0
    %v1572 = vadd.f32 0.0, %v1571
    %v1573 = vpop.f32.mrb[0].mxu0
    %v1574 = vadd.f32 0.0, %v1573
    %v1575 = vpop.f32.mrb[0].mxu0
    %v1576 = vpop.f32.mrb[0].mxu0
    %1577 = vdwg.mxu0
    %1578 = vmatprep.subr.bf16.mxu0 %v890
    %1579 = vmatpush1.bf16.msra.mxu0 %v889
    %1580 = vmatprep.subr.bf16.mxu0 %v893
    %1581 = vmatpush1.bf16.msra.mxu0 %v892
    %1582 = vmatprep.subr.bf16.mxu0 %v896
    %1583 = vmatpush1.bf16.msra.mxu0 %v895
    %1584 = vmatprep.subr.bf16.mxu0 %v899
    %1585 = vmatpush1.bf16.msra.mxu0 %v898
    %1586 = vmatprep.subr.bf16.mxu0 %v902
    %1587 = vmatpush1.bf16.msra.mxu0 %v901
    %1588 = vmatprep.subr.bf16.mxu0 %v905
    %1589 = vmatpush1.bf16.msra.mxu0 %v904
    %1590 = vmatprep.subr.bf16.mxu0 %v908
    %1591 = vmatpush1.bf16.msra.mxu0 %v907
    %1592 = vmatprep.subr.bf16.mxu0 %v911
    %1593 = vmatpush1.bf16.msra.mxu0 %v910
    %1594 = vmatprep.subr.bf16.mxu0 0
    %1595 = vmatpush1.bf16.msra.mxu0 0
    %1596 = vmatprep.subr.bf16.mxu0 0
    %1597 = vmatpush1.bf16.msra.mxu0 0
    %1598 = vmatprep.subr.bf16.mxu0 0
    %1599 = vmatpush1.bf16.msra.mxu0 0
    %1600 = vmatprep.subr.bf16.mxu0 0
    %1601 = vmatpush1.bf16.msra.mxu0 0
    %1602 = vmatprep.subr.bf16.mxu0 0
    %1603 = vmatpush1.bf16.msra.mxu0 0
    %1604 = vmatprep.subr.bf16.mxu0 0
    %1605 = vmatpush1.bf16.msra.mxu0 0
    %1606 = vmatprep.subr.bf16.mxu0 0
    %1607 = vmatpush1.bf16.msra.mxu0 0
    %1608 = vmatprep.subr.bf16.mxu0 0
    %1609 = vmatpush1.bf16.msra.mxu0 0
    %1610 = vmatprep.mubr.bf16.mxu0 0
    %1611 = vmatmul.mubr.bf16.gmra.mrb[0].mxu0 %v1533
    %v1612 = vpop.f32.mrb[0].mxu0
    %v1613 = vadd.f32 %v1572, %v1612
    %v1614 = vpop.f32.mrb[0].mxu0
    %v1615 = vadd.f32 %v1574, %v1614
    %v1616 = vpop.f32.mrb[0].mxu0
    %v1617 = vpop.f32.mrb[0].mxu0
    %1618 = vdwg.mxu0
    %1619 = vmatprep.subr.bf16.mxu0 0
    %1620 = vmatpush1.bf16.msra.mxu0 %v843
    %1621 = vmatprep.subr.bf16.mxu0 0
    %1622 = vmatpush1.bf16.msra.mxu0 %v846
    %1623 = vmatprep.subr.bf16.mxu0 0
    %1624 = vmatpush1.bf16.msra.mxu0 %v849
    %1625 = vmatprep.subr.bf16.mxu0 0
    %1626 = vmatpush1.bf16.msra.mxu0 %v852
    %1627 = vmatprep.subr.bf16.mxu0 0
    %1628 = vmatpush1.bf16.msra.mxu0 %v855
    %1629 = vmatprep.subr.bf16.mxu0 0
    %1630 = vmatpush1.bf16.msra.mxu0 %v858
    %1631 = vmatprep.subr.bf16.mxu0 0
    %1632 = vmatpush1.bf16.msra.mxu0 %v861
    %1633 = vmatprep.subr.bf16.mxu0 0
    %1634 = vmatpush1.bf16.msra.mxu0 %v864
    %1635 = vmatprep.subr.bf16.mxu0 0
    %1636 = vmatpush1.bf16.msra.mxu0 %v867
    %1637 = vmatprep.subr.bf16.mxu0 0
    %1638 = vmatpush1.bf16.msra.mxu0 %v870
    %1639 = vmatprep.subr.bf16.mxu0 0
    %1640 = vmatpush1.bf16.msra.mxu0 %v873
    %1641 = vmatprep.subr.bf16.mxu0 0
    %1642 = vmatpush1.bf16.msra.mxu0 %v876
    %1643 = vmatprep.subr.bf16.mxu0 0
    %1644 = vmatpush1.bf16.msra.mxu0 %v879
    %1645 = vmatprep.subr.bf16.mxu0 0
    %1646 = vmatpush1.bf16.msra.mxu0 %v882
    %1647 = vmatprep.subr.bf16.mxu0 0
    %1648 = vmatpush1.bf16.msra.mxu0 %v885
    %1649 = vmatprep.subr.bf16.mxu0 0
    %1650 = vmatpush1.bf16.msra.mxu0 %v888
    %1651 = vmatprep.mubr.bf16.mxu0 %v1532
    %1652 = vmatmul.mubr.bf16.gmra.mrb[0].mxu0 %v1531
    %v1653 = vpop.f32.mrb[0].mxu0
    %v1654 = vadd.f32 0.0, %v1653
    %v1655 = vpop.f32.mrb[0].mxu0
    %v1656 = vpop.f32.mrb[0].mxu0
    %v1657 = vpop.f32.mrb[0].mxu0
    %1658 = vdwg.mxu0
    %1659 = vmatprep.subr.bf16.mxu0 0
    %1660 = vmatpush1.bf16.msra.mxu0 %v891
    %1661 = vmatprep.subr.bf16.mxu0 0
    %1662 = vmatpush1.bf16.msra.mxu0 %v894
    %1663 = vmatprep.subr.bf16.mxu0 0
    %1664 = vmatpush1.bf16.msra.mxu0 %v897
    %1665 = vmatprep.subr.bf16.mxu0 0
    %1666 = vmatpush1.bf16.msra.mxu0 %v900
    %1667 = vmatprep.subr.bf16.mxu0 0
    %1668 = vmatpush1.bf16.msra.mxu0 %v903
    %1669 = vmatprep.subr.bf16.mxu0 0
    %1670 = vmatpush1.bf16.msra.mxu0 %v906
    %1671 = vmatprep.subr.bf16.mxu0 0
    %1672 = vmatpush1.bf16.msra.mxu0 %v909
    %1673 = vmatprep.subr.bf16.mxu0 0
    %1674 = vmatpush1.bf16.msra.mxu0 %v912
    %1675 = vmatprep.subr.bf16.mxu0 0
    %1676 = vmatpush1.bf16.msra.mxu0 0
    %1677 = vmatprep.subr.bf16.mxu0 0
    %1678 = vmatpush1.bf16.msra.mxu0 0
    %1679 = vmatprep.subr.bf16.mxu0 0
    %1680 = vmatpush1.bf16.msra.mxu0 0
    %1681 = vmatprep.subr.bf16.mxu0 0
    %1682 = vmatpush1.bf16.msra.mxu0 0
    %1683 = vmatprep.subr.bf16.mxu0 0
    %1684 = vmatpush1.bf16.msra.mxu0 0
    %1685 = vmatprep.subr.bf16.mxu0 0
    %1686 = vmatpush1.bf16.msra.mxu0 0
    %1687 = vmatprep.subr.bf16.mxu0 0
    %1688 = vmatpush1.bf16.msra.mxu0 0
    %1689 = vmatprep.subr.bf16.mxu0 0
    %1690 = vmatpush1.bf16.msra.mxu0 0
    %1691 = vmatprep.mubr.bf16.mxu0 0
    %1692 = vmatmul.mubr.bf16.gmra.mrb[0].mxu0 %v1533
    %v1693 = vpop.f32.mrb[0].mxu0
    %v1694 = vadd.f32 %v1654, %v1693
    %v1695 = vpop.f32.mrb[0].mxu0
    %v1696 = vpop.f32.mrb[0].mxu0
    %v1697 = vpop.f32.mrb[0].mxu0
    %1698 = vdwg.mxu0
    %v1702 = vrot.slane %v1613, 5
    %v1703 = vrot.slane %v1615, 5
    %v1704 = vrot.slane %v1694, 5
    %v1708 = vadd.f32 %v598, %v1702
    %v1709 = vadd.f32 %v599, %v1703
    %v1710 = vadd.f32 %v600, %v1704
    %v1711 = vtanh.pop %v1708
    %v1712 = vtanh.pop %v1709
    %v1713 = vtanh.pop %v1710
    %v1714 = vpack.c.bf16 %v1711, %v1711
    %v1715 = vpack.c.bf16 %v1712, %v1712
    %v1716 = vpack.c.bf16 %v1713, %v1713
    %v1718 = vshrl.u32 %v1714, 16
    %v1720 = vrot.slane %v1718, 1
    %v1722 = vshrl.u32 %v1715, 16
    %v1724 = vrot.slane %v1722, 1
    %v1726 = vshrl.u32 %v1716, 16
    %v1728 = vrot.slane %v1726, 1
    %1732 = vmatprep.subr.bf16.mxu0 %v842
    %1733 = vmatpush1.bf16.msra.mxu0 %v841
    %1734 = vmatprep.subr.bf16.mxu0 %v845
    %1735 = vmatpush1.bf16.msra.mxu0 %v844
    %1736 = vmatprep.subr.bf16.mxu0 %v848
    %1737 = vmatpush1.bf16.msra.mxu0 %v847
    %1738 = vmatprep.subr.bf16.mxu0 %v851
    %1739 = vmatpush1.bf16.msra.mxu0 %v850
    %1740 = vmatprep.subr.bf16.mxu0 %v854
    %1741 = vmatpush1.bf16.msra.mxu0 %v853
    %1742 = vmatprep.subr.bf16.mxu0 %v857
    %1743 = vmatpush1.bf16.msra.mxu0 %v856
    %1744 = vmatprep.subr.bf16.mxu0 %v860
    %1745 = vmatpush1.bf16.msra.mxu0 %v859
    %1746 = vmatprep.subr.bf16.mxu0 %v863
    %1747 = vmatpush1.bf16.msra.mxu0 %v862
    %1748 = vmatprep.subr.bf16.mxu0 %v866
    %1749 = vmatpush1.bf16.msra.mxu0 %v865
    %1750 = vmatprep.subr.bf16.mxu0 %v869
    %1751 = vmatpush1.bf16.msra.mxu0 %v868
    %1752 = vmatprep.subr.bf16.mxu0 %v872
    %1753 = vmatpush1.bf16.msra.mxu0 %v871
    %1754 = vmatprep.subr.bf16.mxu0 %v875
    %1755 = vmatpush1.bf16.msra.mxu0 %v874
    %1756 = vmatprep.subr.bf16.mxu0 %v878
    %1757 = vmatpush1.bf16.msra.mxu0 %v877
    %1758 = vmatprep.subr.bf16.mxu0 %v881
    %1759 = vmatpush1.bf16.msra.mxu0 %v880
    %1760 = vmatprep.subr.bf16.mxu0 %v884
    %1761 = vmatpush1.bf16.msra.mxu0 %v883
    %1762 = vmatprep.subr.bf16.mxu0 %v887
    %1763 = vmatpush1.bf16.msra.mxu0 %v886
    %1764 = vmatprep.mubr.bf16.mxu0 %v1724
    %1765 = vmatmul.mubr.bf16.gmra.mrb[0].mxu0 %v1720
    %v1766 = vpop.f32.mrb[0].mxu0
    %v1767 = vadd.f32 0.0, %v1766
    %v1768 = vpop.f32.mrb[0].mxu0
    %v1769 = vadd.f32 0.0, %v1768
    %v1770 = vpop.f32.mrb[0].mxu0
    %v1771 = vpop.f32.mrb[0].mxu0
    %1772 = vdwg.mxu0
    %1773 = vmatprep.subr.bf16.mxu0 %v890
    %1774 = vmatpush1.bf16.msra.mxu0 %v889
    %1775 = vmatprep.subr.bf16.mxu0 %v893
    %1776 = vmatpush1.bf16.msra.mxu0 %v892
    %1777 = vmatprep.subr.bf16.mxu0 %v896
    %1778 = vmatpush1.bf16.msra.mxu0 %v895
    %1779 = vmatprep.subr.bf16.mxu0 %v899
    %1780 = vmatpush1.bf16.msra.mxu0 %v898
    %1781 = vmatprep.subr.bf16.mxu0 %v902
    %1782 = vmatpush1.bf16.msra.mxu0 %v901
    %1783 = vmatprep.subr.bf16.mxu0 %v905
    %1784 = vmatpush1.bf16.msra.mxu0 %v904
    %1785 = vmatprep.subr.bf16.mxu0 %v908
    %1786 = vmatpush1.bf16.msra.mxu0 %v907
    %1787 = vmatprep.subr.bf16.mxu0 %v911
    %1788 = vmatpush1.bf16.msra.mxu0 %v910
    %1789 = vmatprep.subr.bf16.mxu0 0
    %1790 = vmatpush1.bf16.msra.mxu0 0
    %1791 = vmatprep.subr.bf16.mxu0 0
    %1792 = vmatpush1.bf16.msra.mxu0 0
    %1793 = vmatprep.subr.bf16.mxu0 0
    %1794 = vmatpush1.bf16.msra.mxu0 0
    %1795 = vmatprep.subr.bf16.mxu0 0
    %1796 = vmatpush1.bf16.msra.mxu0 0
    %1797 = vmatprep.subr.bf16.mxu0 0
    %1798 = vmatpush1.bf16.msra.mxu0 0
    %1799 = vmatprep.subr.bf16.mxu0 0
    %1800 = vmatpush1.bf16.msra.mxu0 0
    %1801 = vmatprep.subr.bf16.mxu0 0
    %1802 = vmatpush1.bf16.msra.mxu0 0
    %1803 = vmatprep.subr.bf16.mxu0 0
    %1804 = vmatpush1.bf16.msra.mxu0 0
    %1805 = vmatprep.mubr.bf16.mxu0 0
    %1806 = vmatmul.mubr.bf16.gmra.mrb[0].mxu0 %v1728
    %v1807 = vpop.f32.mrb[0].mxu0
    %v1808 = vadd.f32 %v1767, %v1807
    %v1809 = vpop.f32.mrb[0].mxu0
    %v1810 = vadd.f32 %v1769, %v1809
    %v1811 = vpop.f32.mrb[0].mxu0
    %v1812 = vpop.f32.mrb[0].mxu0
    %1813 = vdwg.mxu0
    %1814 = vmatprep.subr.bf16.mxu0 0
    %1815 = vmatpush1.bf16.msra.mxu0 %v843
    %1816 = vmatprep.subr.bf16.mxu0 0
    %1817 = vmatpush1.bf16.msra.mxu0 %v846
    %1818 = vmatprep.subr.bf16.mxu0 0
    %1819 = vmatpush1.bf16.msra.mxu0 %v849
    %1820 = vmatprep.subr.bf16.mxu0 0
    %1821 = vmatpush1.bf16.msra.mxu0 %v852
    %1822 = vmatprep.subr.bf16.mxu0 0
    %1823 = vmatpush1.bf16.msra.mxu0 %v855
    %1824 = vmatprep.subr.bf16.mxu0 0
    %1825 = vmatpush1.bf16.msra.mxu0 %v858
    %1826 = vmatprep.subr.bf16.mxu0 0
    %1827 = vmatpush1.bf16.msra.mxu0 %v861
    %1828 = vmatprep.subr.bf16.mxu0 0
    %1829 = vmatpush1.bf16.msra.mxu0 %v864
    %1830 = vmatprep.subr.bf16.mxu0 0
    %1831 = vmatpush1.bf16.msra.mxu0 %v867
    %1832 = vmatprep.subr.bf16.mxu0 0
    %1833 = vmatpush1.bf16.msra.mxu0 %v870
    %1834 = vmatprep.subr.bf16.mxu0 0
    %1835 = vmatpush1.bf16.msra.mxu0 %v873
    %1836 = vmatprep.subr.bf16.mxu0 0
    %1837 = vmatpush1.bf16.msra.mxu0 %v876
    %1838 = vmatprep.subr.bf16.mxu0 0
    %1839 = vmatpush1.bf16.msra.mxu0 %v879
    %1840 = vmatprep.subr.bf16.mxu0 0
    %1841 = vmatpush1.bf16.msra.mxu0 %v882
    %1842 = vmatprep.subr.bf16.mxu0 0
    %1843 = vmatpush1.bf16.msra.mxu0 %v885
    %1844 = vmatprep.subr.bf16.mxu0 0
    %1845 = vmatpush1.bf16.msra.mxu0 %v888
    %1846 = vmatprep.mubr.bf16.mxu0 %v1724
    %1847 = vmatmul.mubr.bf16.gmra.mrb[0].mxu0 %v1720
    %v1848 = vpop.f32.mrb[0].mxu0
    %v1849 = vadd.f32 0.0, %v1848
    %v1850 = vpop.f32.mrb[0].mxu0
    %v1851 = vpop.f32.mrb[0].mxu0
    %v1852 = vpop.f32.mrb[0].mxu0
    %1853 = vdwg.mxu0
    %1854 = vmatprep.subr.bf16.mxu0 0
    %1855 = vmatpush1.bf16.msra.mxu0 %v891
    %1856 = vmatprep.subr.bf16.mxu0 0
    %1857 = vmatpush1.bf16.msra.mxu0 %v894
    %1858 = vmatprep.subr.bf16.mxu0 0
    %1859 = vmatpush1.bf16.msra.mxu0 %v897
    %1860 = vmatprep.subr.bf16.mxu0 0
    %1861 = vmatpush1.bf16.msra.mxu0 %v900
    %1862 = vmatprep.subr.bf16.mxu0 0
    %1863 = vmatpush1.bf16.msra.mxu0 %v903
    %1864 = vmatprep.subr.bf16.mxu0 0
    %1865 = vmatpush1.bf16.msra.mxu0 %v906
    %1866 = vmatprep.subr.bf16.mxu0 0
    %1867 = vmatpush1.bf16.msra.mxu0 %v909
    %1868 = vmatprep.subr.bf16.mxu0 0
    %1869 = vmatpush1.bf16.msra.mxu0 %v912
    %1870 = vmatprep.subr.bf16.mxu0 0
    %1871 = vmatpush1.bf16.msra.mxu0 0
    %1872 = vmatprep.subr.bf16.mxu0 0
    %1873 = vmatpush1.bf16.msra.mxu0 0
    %1874 = vmatprep.subr.bf16.mxu0 0
    %1875 = vmatpush1.bf16.msra.mxu0 0
    %1876 = vmatprep.subr.bf16.mxu0 0
    %1877 = vmatpush1.bf16.msra.mxu0 0
    %1878 = vmatprep.subr.bf16.mxu0 0
    %1879 = vmatpush1.bf16.msra.mxu0 0
    %1880 = vmatprep.subr.bf16.mxu0 0
    %1881 = vmatpush1.bf16.msra.mxu0 0
    %1882 = vmatprep.subr.bf16.mxu0 0
    %1883 = vmatpush1.bf16.msra.mxu0 0
    %1884 = vmatprep.subr.bf16.mxu0 0
    %1885 = vmatpush1.bf16.msra.mxu0 0
    %1886 = vmatprep.mubr.bf16.mxu0 0
    %1887 = vmatmul.mubr.bf16.gmra.mrb[0].mxu0 %v1728
    %v1888 = vpop.f32.mrb[0].mxu0
    %v1889 = vadd.f32 %v1849, %v1888
    %v1890 = vpop.f32.mrb[0].mxu0
    %v1891 = vpop.f32.mrb[0].mxu0
    %v1892 = vpop.f32.mrb[0].mxu0
    %1893 = vdwg.mxu0
    %v1897 = vrot.slane %v1808, 4
    %v1898 = vrot.slane %v1810, 4
    %v1899 = vrot.slane %v1889, 4
    %v1903 = vadd.f32 %v598, %v1897
    %v1904 = vadd.f32 %v599, %v1898
    %v1905 = vadd.f32 %v600, %v1899
    %v1906 = vtanh.pop %v1903
    %v1907 = vtanh.pop %v1904
    %v1908 = vtanh.pop %v1905
    %v1909 = vpack.c.bf16 %v1906, %v1906
    %v1910 = vpack.c.bf16 %v1907, %v1907
    %v1911 = vpack.c.bf16 %v1908, %v1908
    %v1915 = vrot.slane %v1909, 2
    %v1916 = vrot.slane %v1910, 2
    %v1917 = vrot.slane %v1911, 2
    %1921 = vmatprep.subr.bf16.mxu0 %v842
    %1922 = vmatpush1.bf16.msra.mxu0 %v841
    %1923 = vmatprep.subr.bf16.mxu0 %v845
    %1924 = vmatpush1.bf16.msra.mxu0 %v844
    %1925 = vmatprep.subr.bf16.mxu0 %v848
    %1926 = vmatpush1.bf16.msra.mxu0 %v847
    %1927 = vmatprep.subr.bf16.mxu0 %v851
    %1928 = vmatpush1.bf16.msra.mxu0 %v850
    %1929 = vmatprep.subr.bf16.mxu0 %v854
    %1930 = vmatpush1.bf16.msra.mxu0 %v853
    %1931 = vmatprep.subr.bf16.mxu0 %v857
    %1932 = vmatpush1.bf16.msra.mxu0 %v856
    %1933 = vmatprep.subr.bf16.mxu0 %v860
    %1934 = vmatpush1.bf16.msra.mxu0 %v859
    %1935 = vmatprep.subr.bf16.mxu0 %v863
    %1936 = vmatpush1.bf16.msra.mxu0 %v862
    %1937 = vmatprep.subr.bf16.mxu0 %v866
    %1938 = vmatpush1.bf16.msra.mxu0 %v865
    %1939 = vmatprep.subr.bf16.mxu0 %v869
    %1940 = vmatpush1.bf16.msra.mxu0 %v868
    %1941 = vmatprep.subr.bf16.mxu0 %v872
    %1942 = vmatpush1.bf16.msra.mxu0 %v871
    %1943 = vmatprep.subr.bf16.mxu0 %v875
    %1944 = vmatpush1.bf16.msra.mxu0 %v874
    %1945 = vmatprep.subr.bf16.mxu0 %v878
    %1946 = vmatpush1.bf16.msra.mxu0 %v877
    %1947 = vmatprep.subr.bf16.mxu0 %v881
    %1948 = vmatpush1.bf16.msra.mxu0 %v880
    %1949 = vmatprep.subr.bf16.mxu0 %v884
    %1950 = vmatpush1.bf16.msra.mxu0 %v883
    %1951 = vmatprep.subr.bf16.mxu0 %v887
    %1952 = vmatpush1.bf16.msra.mxu0 %v886
    %1953 = vmatprep.mubr.bf16.mxu0 %v1916
    %1954 = vmatmul.mubr.bf16.gmra.mrb[0].mxu0 %v1915
    %v1955 = vpop.f32.mrb[0].mxu0
    %v1956 = vadd.f32 0.0, %v1955
    %v1957 = vpop.f32.mrb[0].mxu0
    %v1958 = vadd.f32 0.0, %v1957
    %v1959 = vpop.f32.mrb[0].mxu0
    %v1960 = vpop.f32.mrb[0].mxu0
    %1961 = vdwg.mxu0
    %1962 = vmatprep.subr.bf16.mxu0 %v890
    %1963 = vmatpush1.bf16.msra.mxu0 %v889
    %1964 = vmatprep.subr.bf16.mxu0 %v893
    %1965 = vmatpush1.bf16.msra.mxu0 %v892
    %1966 = vmatprep.subr.bf16.mxu0 %v896
    %1967 = vmatpush1.bf16.msra.mxu0 %v895
    %1968 = vmatprep.subr.bf16.mxu0 %v899
    %1969 = vmatpush1.bf16.msra.mxu0 %v898
    %1970 = vmatprep.subr.bf16.mxu0 %v902
    %1971 = vmatpush1.bf16.msra.mxu0 %v901
    %1972 = vmatprep.subr.bf16.mxu0 %v905
    %1973 = vmatpush1.bf16.msra.mxu0 %v904
    %1974 = vmatprep.subr.bf16.mxu0 %v908
    %1975 = vmatpush1.bf16.msra.mxu0 %v907
    %1976 = vmatprep.subr.bf16.mxu0 %v911
    %1977 = vmatpush1.bf16.msra.mxu0 %v910
    %1978 = vmatprep.subr.bf16.mxu0 0
    %1979 = vmatpush1.bf16.msra.mxu0 0
    %1980 = vmatprep.subr.bf16.mxu0 0
    %1981 = vmatpush1.bf16.msra.mxu0 0
    %1982 = vmatprep.subr.bf16.mxu0 0
    %1983 = vmatpush1.bf16.msra.mxu0 0
    %1984 = vmatprep.subr.bf16.mxu0 0
    %1985 = vmatpush1.bf16.msra.mxu0 0
    %1986 = vmatprep.subr.bf16.mxu0 0
    %1987 = vmatpush1.bf16.msra.mxu0 0
    %1988 = vmatprep.subr.bf16.mxu0 0
    %1989 = vmatpush1.bf16.msra.mxu0 0
    %1990 = vmatprep.subr.bf16.mxu0 0
    %1991 = vmatpush1.bf16.msra.mxu0 0
    %1992 = vmatprep.subr.bf16.mxu0 0
    %1993 = vmatpush1.bf16.msra.mxu0 0
    %1994 = vmatprep.mubr.bf16.mxu0 0
    %1995 = vmatmul.mubr.bf16.gmra.mrb[0].mxu0 %v1917
    %v1996 = vpop.f32.mrb[0].mxu0
    %v1997 = vadd.f32 %v1956, %v1996
    %v1998 = vpop.f32.mrb[0].mxu0
    %v1999 = vadd.f32 %v1958, %v1998
    %v2000 = vpop.f32.mrb[0].mxu0
    %v2001 = vpop.f32.mrb[0].mxu0
    %2002 = vdwg.mxu0
    %2003 = vmatprep.subr.bf16.mxu0 0
    %2004 = vmatpush1.bf16.msra.mxu0 %v843
    %2005 = vmatprep.subr.bf16.mxu0 0
    %2006 = vmatpush1.bf16.msra.mxu0 %v846
    %2007 = vmatprep.subr.bf16.mxu0 0
    %2008 = vmatpush1.bf16.msra.mxu0 %v849
    %2009 = vmatprep.subr.bf16.mxu0 0
    %2010 = vmatpush1.bf16.msra.mxu0 %v852
    %2011 = vmatprep.subr.bf16.mxu0 0
    %2012 = vmatpush1.bf16.msra.mxu0 %v855
    %2013 = vmatprep.subr.bf16.mxu0 0
    %2014 = vmatpush1.bf16.msra.mxu0 %v858
    %2015 = vmatprep.subr.bf16.mxu0 0
    %2016 = vmatpush1.bf16.msra.mxu0 %v861
    %2017 = vmatprep.subr.bf16.mxu0 0
    %2018 = vmatpush1.bf16.msra.mxu0 %v864
    %2019 = vmatprep.subr.bf16.mxu0 0
    %2020 = vmatpush1.bf16.msra.mxu0 %v867
    %2021 = vmatprep.subr.bf16.mxu0 0
    %2022 = vmatpush1.bf16.msra.mxu0 %v870
    %2023 = vmatprep.subr.bf16.mxu0 0
    %2024 = vmatpush1.bf16.msra.mxu0 %v873
    %2025 = vmatprep.subr.bf16.mxu0 0
    %2026 = vmatpush1.bf16.msra.mxu0 %v876
    %2027 = vmatprep.subr.bf16.mxu0 0
    %2028 = vmatpush1.bf16.msra.mxu0 %v879
    %2029 = vmatprep.subr.bf16.mxu0 0
    %2030 = vmatpush1.bf16.msra.mxu0 %v882
    %2031 = vmatprep.subr.bf16.mxu0 0
    %2032 = vmatpush1.bf16.msra.mxu0 %v885
    %2033 = vmatprep.subr.bf16.mxu0 0
    %2034 = vmatpush1.bf16.msra.mxu0 %v888
    %2035 = vmatprep.mubr.bf16.mxu0 %v1916
    %2036 = vmatmul.mubr.bf16.gmra.mrb[0].mxu0 %v1915
    %v2037 = vpop.f32.mrb[0].mxu0
    %v2038 = vadd.f32 0.0, %v2037
    %v2039 = vpop.f32.mrb[0].mxu0
    %v2040 = vpop.f32.mrb[0].mxu0
    %v2041 = vpop.f32.mrb[0].mxu0
    %2042 = vdwg.mxu0
    %2043 = vmatprep.subr.bf16.mxu0 0
    %2044 = vmatpush1.bf16.msra.mxu0 %v891
    %2045 = vmatprep.subr.bf16.mxu0 0
    %2046 = vmatpush1.bf16.msra.mxu0 %v894
    %2047 = vmatprep.subr.bf16.mxu0 0
    %2048 = vmatpush1.bf16.msra.mxu0 %v897
    %2049 = vmatprep.subr.bf16.mxu0 0
    %2050 = vmatpush1.bf16.msra.mxu0 %v900
    %2051 = vmatprep.subr.bf16.mxu0 0
    %2052 = vmatpush1.bf16.msra.mxu0 %v903
    %2053 = vmatprep.subr.bf16.mxu0 0
    %2054 = vmatpush1.bf16.msra.mxu0 %v906
    %2055 = vmatprep.subr.bf16.mxu0 0
    %2056 = vmatpush1.bf16.msra.mxu0 %v909
    %2057 = vmatprep.subr.bf16.mxu0 0
    %2058 = vmatpush1.bf16.msra.mxu0 %v912
    %2059 = vmatprep.subr.bf16.mxu0 0
    %2060 = vmatpush1.bf16.msra.mxu0 0
    %2061 = vmatprep.subr.bf16.mxu0 0
    %2062 = vmatpush1.bf16.msra.mxu0 0
    %2063 = vmatprep.subr.bf16.mxu0 0
    %2064 = vmatpush1.bf16.msra.mxu0 0
    %2065 = vmatprep.subr.bf16.mxu0 0
    %2066 = vmatpush1.bf16.msra.mxu0 0
    %2067 = vmatprep.subr.bf16.mxu0 0
    %2068 = vmatpush1.bf16.msra.mxu0 0
    %2069 = vmatprep.subr.bf16.mxu0 0
    %2070 = vmatpush1.bf16.msra.mxu0 0
    %2071 = vmatprep.subr.bf16.mxu0 0
    %2072 = vmatpush1.bf16.msra.mxu0 0
    %2073 = vmatprep.subr.bf16.mxu0 0
    %2074 = vmatpush1.bf16.msra.mxu0 0
    %2075 = vmatprep.mubr.bf16.mxu0 0
    %2076 = vmatmul.mubr.bf16.gmra.mrb[0].mxu0 %v1917
    %v2077 = vpop.f32.mrb[0].mxu0
    %v2078 = vadd.f32 %v2038, %v2077
    %v2079 = vpop.f32.mrb[0].mxu0
    %v2080 = vpop.f32.mrb[0].mxu0
    %v2081 = vpop.f32.mrb[0].mxu0
    %2082 = vdwg.mxu0
    %v2086 = vrot.slane %v1997, 3
    %v2087 = vrot.slane %v1999, 3
    %v2088 = vrot.slane %v2078, 3
    %v2092 = vadd.f32 %v598, %v2086
    %v2093 = vadd.f32 %v599, %v2087
    %v2094 = vadd.f32 %v600, %v2088
    %v2095 = vtanh.pop %v2092
    %v2096 = vtanh.pop %v2093
    %v2097 = vtanh.pop %v2094
    %v2098 = vpack.c.bf16 %v2095, %v2095
    %v2099 = vpack.c.bf16 %v2096, %v2096
    %v2100 = vpack.c.bf16 %v2097, %v2097
    %v2102 = vshrl.u32 %v2098, 16
    %v2104 = vrot.slane %v2102, 2
    %v2106 = vshrl.u32 %v2099, 16
    %v2108 = vrot.slane %v2106, 2
    %v2110 = vshrl.u32 %v2100, 16
    %v2112 = vrot.slane %v2110, 2
    %2116 = vmatprep.subr.bf16.mxu0 %v842
    %2117 = vmatpush1.bf16.msra.mxu0 %v841
    %2118 = vmatprep.subr.bf16.mxu0 %v845
    %2119 = vmatpush1.bf16.msra.mxu0 %v844
    %2120 = vmatprep.subr.bf16.mxu0 %v848
    %2121 = vmatpush1.bf16.msra.mxu0 %v847
    %2122 = vmatprep.subr.bf16.mxu0 %v851
    %2123 = vmatpush1.bf16.msra.mxu0 %v850
    %2124 = vmatprep.subr.bf16.mxu0 %v854
    %2125 = vmatpush1.bf16.msra.mxu0 %v853
    %2126 = vmatprep.subr.bf16.mxu0 %v857
    %2127 = vmatpush1.bf16.msra.mxu0 %v856
    %2128 = vmatprep.subr.bf16.mxu0 %v860
    %2129 = vmatpush1.bf16.msra.mxu0 %v859
    %2130 = vmatprep.subr.bf16.mxu0 %v863
    %2131 = vmatpush1.bf16.msra.mxu0 %v862
    %2132 = vmatprep.subr.bf16.mxu0 %v866
    %2133 = vmatpush1.bf16.msra.mxu0 %v865
    %2134 = vmatprep.subr.bf16.mxu0 %v869
    %2135 = vmatpush1.bf16.msra.mxu0 %v868
    %2136 = vmatprep.subr.bf16.mxu0 %v872
    %2137 = vmatpush1.bf16.msra.mxu0 %v871
    %2138 = vmatprep.subr.bf16.mxu0 %v875
    %2139 = vmatpush1.bf16.msra.mxu0 %v874
    %2140 = vmatprep.subr.bf16.mxu0 %v878
    %2141 = vmatpush1.bf16.msra.mxu0 %v877
    %2142 = vmatprep.subr.bf16.mxu0 %v881
    %2143 = vmatpush1.bf16.msra.mxu0 %v880
    %2144 = vmatprep.subr.bf16.mxu0 %v884
    %2145 = vmatpush1.bf16.msra.mxu0 %v883
    %2146 = vmatprep.subr.bf16.mxu0 %v887
    %2147 = vmatpush1.bf16.msra.mxu0 %v886
    %2148 = vmatprep.mubr.bf16.mxu0 %v2108
    %2149 = vmatmul.mubr.bf16.gmra.mrb[0].mxu0 %v2104
    %v2150 = vpop.f32.mrb[0].mxu0
    %v2151 = vadd.f32 0.0, %v2150
    %v2152 = vpop.f32.mrb[0].mxu0
    %v2153 = vadd.f32 0.0, %v2152
    %v2154 = vpop.f32.mrb[0].mxu0
    %v2155 = vpop.f32.mrb[0].mxu0
    %2156 = vdwg.mxu0
    %2157 = vmatprep.subr.bf16.mxu0 %v890
    %2158 = vmatpush1.bf16.msra.mxu0 %v889
    %2159 = vmatprep.subr.bf16.mxu0 %v893
    %2160 = vmatpush1.bf16.msra.mxu0 %v892
    %2161 = vmatprep.subr.bf16.mxu0 %v896
    %2162 = vmatpush1.bf16.msra.mxu0 %v895
    %2163 = vmatprep.subr.bf16.mxu0 %v899
    %2164 = vmatpush1.bf16.msra.mxu0 %v898
    %2165 = vmatprep.subr.bf16.mxu0 %v902
    %2166 = vmatpush1.bf16.msra.mxu0 %v901
    %2167 = vmatprep.subr.bf16.mxu0 %v905
    %2168 = vmatpush1.bf16.msra.mxu0 %v904
    %2169 = vmatprep.subr.bf16.mxu0 %v908
    %2170 = vmatpush1.bf16.msra.mxu0 %v907
    %2171 = vmatprep.subr.bf16.mxu0 %v911
    %2172 = vmatpush1.bf16.msra.mxu0 %v910
    %2173 = vmatprep.subr.bf16.mxu0 0
    %2174 = vmatpush1.bf16.msra.mxu0 0
    %2175 = vmatprep.subr.bf16.mxu0 0
    %2176 = vmatpush1.bf16.msra.mxu0 0
    %2177 = vmatprep.subr.bf16.mxu0 0
    %2178 = vmatpush1.bf16.msra.mxu0 0
    %2179 = vmatprep.subr.bf16.mxu0 0
    %2180 = vmatpush1.bf16.msra.mxu0 0
    %2181 = vmatprep.subr.bf16.mxu0 0
    %2182 = vmatpush1.bf16.msra.mxu0 0
    %2183 = vmatprep.subr.bf16.mxu0 0
    %2184 = vmatpush1.bf16.msra.mxu0 0
    %2185 = vmatprep.subr.bf16.mxu0 0
    %2186 = vmatpush1.bf16.msra.mxu0 0
    %2187 = vmatprep.subr.bf16.mxu0 0
    %2188 = vmatpush1.bf16.msra.mxu0 0
    %2189 = vmatprep.mubr.bf16.mxu0 0
    %2190 = vmatmul.mubr.bf16.gmra.mrb[0].mxu0 %v2112
    %v2191 = vpop.f32.mrb[0].mxu0
    %v2192 = vadd.f32 %v2151, %v2191
    %v2193 = vpop.f32.mrb[0].mxu0
    %v2194 = vadd.f32 %v2153, %v2193
    %v2195 = vpop.f32.mrb[0].mxu0
    %v2196 = vpop.f32.mrb[0].mxu0
    %2197 = vdwg.mxu0
    %2198 = vmatprep.subr.bf16.mxu0 0
    %2199 = vmatpush1.bf16.msra.mxu0 %v843
    %2200 = vmatprep.subr.bf16.mxu0 0
    %2201 = vmatpush1.bf16.msra.mxu0 %v846
    %2202 = vmatprep.subr.bf16.mxu0 0
    %2203 = vmatpush1.bf16.msra.mxu0 %v849
    %2204 = vmatprep.subr.bf16.mxu0 0
    %2205 = vmatpush1.bf16.msra.mxu0 %v852
    %2206 = vmatprep.subr.bf16.mxu0 0
    %2207 = vmatpush1.bf16.msra.mxu0 %v855
    %2208 = vmatprep.subr.bf16.mxu0 0
    %2209 = vmatpush1.bf16.msra.mxu0 %v858
    %2210 = vmatprep.subr.bf16.mxu0 0
    %2211 = vmatpush1.bf16.msra.mxu0 %v861
    %2212 = vmatprep.subr.bf16.mxu0 0
    %2213 = vmatpush1.bf16.msra.mxu0 %v864
    %2214 = vmatprep.subr.bf16.mxu0 0
    %2215 = vmatpush1.bf16.msra.mxu0 %v867
    %2216 = vmatprep.subr.bf16.mxu0 0
    %2217 = vmatpush1.bf16.msra.mxu0 %v870
    %2218 = vmatprep.subr.bf16.mxu0 0
    %2219 = vmatpush1.bf16.msra.mxu0 %v873
    %2220 = vmatprep.subr.bf16.mxu0 0
    %2221 = vmatpush1.bf16.msra.mxu0 %v876
    %2222 = vmatprep.subr.bf16.mxu0 0
    %2223 = vmatpush1.bf16.msra.mxu0 %v879
    %2224 = vmatprep.subr.bf16.mxu0 0
    %2225 = vmatpush1.bf16.msra.mxu0 %v882
    %2226 = vmatprep.subr.bf16.mxu0 0
    %2227 = vmatpush1.bf16.msra.mxu0 %v885
    %2228 = vmatprep.subr.bf16.mxu0 0
    %2229 = vmatpush1.bf16.msra.mxu0 %v888
    %2230 = vmatprep.mubr.bf16.mxu0 %v2108
    %2231 = vmatmul.mubr.bf16.gmra.mrb[0].mxu0 %v2104
    %v2232 = vpop.f32.mrb[0].mxu0
    %v2233 = vadd.f32 0.0, %v2232
    %v2234 = vpop.f32.mrb[0].mxu0
    %v2235 = vpop.f32.mrb[0].mxu0
    %v2236 = vpop.f32.mrb[0].mxu0
    %2237 = vdwg.mxu0
    %2238 = vmatprep.subr.bf16.mxu0 0
    %2239 = vmatpush1.bf16.msra.mxu0 %v891
    %2240 = vmatprep.subr.bf16.mxu0 0
    %2241 = vmatpush1.bf16.msra.mxu0 %v894
    %2242 = vmatprep.subr.bf16.mxu0 0
    %2243 = vmatpush1.bf16.msra.mxu0 %v897
    %2244 = vmatprep.subr.bf16.mxu0 0
    %2245 = vmatpush1.bf16.msra.mxu0 %v900
    %2246 = vmatprep.subr.bf16.mxu0 0
    %2247 = vmatpush1.bf16.msra.mxu0 %v903
    %2248 = vmatprep.subr.bf16.mxu0 0
    %2249 = vmatpush1.bf16.msra.mxu0 %v906
    %2250 = vmatprep.subr.bf16.mxu0 0
    %2251 = vmatpush1.bf16.msra.mxu0 %v909
    %2252 = vmatprep.subr.bf16.mxu0 0
    %2253 = vmatpush1.bf16.msra.mxu0 %v912
    %2254 = vmatprep.subr.bf16.mxu0 0
    %2255 = vmatpush1.bf16.msra.mxu0 0
    %2256 = vmatprep.subr.bf16.mxu0 0
    %2257 = vmatpush1.bf16.msra.mxu0 0
    %2258 = vmatprep.subr.bf16.mxu0 0
    %2259 = vmatpush1.bf16.msra.mxu0 0
    %2260 = vmatprep.subr.bf16.mxu0 0
    %2261 = vmatpush1.bf16.msra.mxu0 0
    %2262 = vmatprep.subr.bf16.mxu0 0
    %2263 = vmatpush1.bf16.msra.mxu0 0
    %2264 = vmatprep.subr.bf16.mxu0 0
    %2265 = vmatpush1.bf16.msra.mxu0 0
    %2266 = vmatprep.subr.bf16.mxu0 0
    %2267 = vmatpush1.bf16.msra.mxu0 0
    %2268 = vmatprep.subr.bf16.mxu0 0
    %2269 = vmatpush1.bf16.msra.mxu0 0
    %2270 = vmatprep.mubr.bf16.mxu0 0
    %2271 = vmatmul.mubr.bf16.gmra.mrb[0].mxu0 %v2112
    %v2272 = vpop.f32.mrb[0].mxu0
    %v2273 = vadd.f32 %v2233, %v2272
    %v2274 = vpop.f32.mrb[0].mxu0
    %v2275 = vpop.f32.mrb[0].mxu0
    %v2276 = vpop.f32.mrb[0].mxu0
    %2277 = vdwg.mxu0
    %v2281 = vrot.slane %v2192, 2
    %v2282 = vrot.slane %v2194, 2
    %v2283 = vrot.slane %v2273, 2
    %v2287 = vadd.f32 %v598, %v2281
    %v2288 = vadd.f32 %v599, %v2282
    %v2289 = vadd.f32 %v600, %v2283
    %v2290 = vtanh.pop %v2287
    %v2291 = vtanh.pop %v2288
    %v2292 = vtanh.pop %v2289
    %v2293 = vpack.c.bf16 %v2290, %v2290
    %v2294 = vpack.c.bf16 %v2291, %v2291
    %v2295 = vpack.c.bf16 %v2292, %v2292
    %v2299 = vrot.slane %v2293, 3
    %v2300 = vrot.slane %v2294, 3
    %v2301 = vrot.slane %v2295, 3
    %2305 = vmatprep.subr.bf16.mxu0 %v842
    %2306 = vmatpush1.bf16.msra.mxu0 %v841
    %2307 = vmatprep.subr.bf16.mxu0 %v845
    %2308 = vmatpush1.bf16.msra.mxu0 %v844
    %2309 = vmatprep.subr.bf16.mxu0 %v848
    %2310 = vmatpush1.bf16.msra.mxu0 %v847
    %2311 = vmatprep.subr.bf16.mxu0 %v851
    %2312 = vmatpush1.bf16.msra.mxu0 %v850
    %2313 = vmatprep.subr.bf16.mxu0 %v854
    %2314 = vmatpush1.bf16.msra.mxu0 %v853
    %2315 = vmatprep.subr.bf16.mxu0 %v857
    %2316 = vmatpush1.bf16.msra.mxu0 %v856
    %2317 = vmatprep.subr.bf16.mxu0 %v860
    %2318 = vmatpush1.bf16.msra.mxu0 %v859
    %2319 = vmatprep.subr.bf16.mxu0 %v863
    %2320 = vmatpush1.bf16.msra.mxu0 %v862
    %2321 = vmatprep.subr.bf16.mxu0 %v866
    %2322 = vmatpush1.bf16.msra.mxu0 %v865
    %2323 = vmatprep.subr.bf16.mxu0 %v869
    %2324 = vmatpush1.bf16.msra.mxu0 %v868
    %2325 = vmatprep.subr.bf16.mxu0 %v872
    %2326 = vmatpush1.bf16.msra.mxu0 %v871
    %2327 = vmatprep.subr.bf16.mxu0 %v875
    %2328 = vmatpush1.bf16.msra.mxu0 %v874
    %2329 = vmatprep.subr.bf16.mxu0 %v878
    %2330 = vmatpush1.bf16.msra.mxu0 %v877
    %2331 = vmatprep.subr.bf16.mxu0 %v881
    %2332 = vmatpush1.bf16.msra.mxu0 %v880
    %2333 = vmatprep.subr.bf16.mxu0 %v884
    %2334 = vmatpush1.bf16.msra.mxu0 %v883
    %2335 = vmatprep.subr.bf16.mxu0 %v887
    %2336 = vmatpush1.bf16.msra.mxu0 %v886
    %2337 = vmatprep.mubr.bf16.mxu0 %v2300
    %2338 = vmatmul.mubr.bf16.gmra.mrb[0].mxu0 %v2299
    %v2339 = vpop.f32.mrb[0].mxu0
    %v2340 = vadd.f32 0.0, %v2339
    %v2341 = vpop.f32.mrb[0].mxu0
    %v2342 = vadd.f32 0.0, %v2341
    %v2343 = vpop.f32.mrb[0].mxu0
    %v2344 = vpop.f32.mrb[0].mxu0
    %2345 = vdwg.mxu0
    %2346 = vmatprep.subr.bf16.mxu0 %v890
    %2347 = vmatpush1.bf16.msra.mxu0 %v889
    %2348 = vmatprep.subr.bf16.mxu0 %v893
    %2349 = vmatpush1.bf16.msra.mxu0 %v892
    %2350 = vmatprep.subr.bf16.mxu0 %v896
    %2351 = vmatpush1.bf16.msra.mxu0 %v895
    %2352 = vmatprep.subr.bf16.mxu0 %v899
    %2353 = vmatpush1.bf16.msra.mxu0 %v898
    %2354 = vmatprep.subr.bf16.mxu0 %v902
    %2355 = vmatpush1.bf16.msra.mxu0 %v901
    %2356 = vmatprep.subr.bf16.mxu0 %v905
    %2357 = vmatpush1.bf16.msra.mxu0 %v904
    %2358 = vmatprep.subr.bf16.mxu0 %v908
    %2359 = vmatpush1.bf16.msra.mxu0 %v907
    %2360 = vmatprep.subr.bf16.mxu0 %v911
    %2361 = vmatpush1.bf16.msra.mxu0 %v910
    %2362 = vmatprep.subr.bf16.mxu0 0
    %2363 = vmatpush1.bf16.msra.mxu0 0
    %2364 = vmatprep.subr.bf16.mxu0 0
    %2365 = vmatpush1.bf16.msra.mxu0 0
    %2366 = vmatprep.subr.bf16.mxu0 0
    %2367 = vmatpush1.bf16.msra.mxu0 0
    %2368 = vmatprep.subr.bf16.mxu0 0
    %2369 = vmatpush1.bf16.msra.mxu0 0
    %2370 = vmatprep.subr.bf16.mxu0 0
    %2371 = vmatpush1.bf16.msra.mxu0 0
    %2372 = vmatprep.subr.bf16.mxu0 0
    %2373 = vmatpush1.bf16.msra.mxu0 0
    %2374 = vmatprep.subr.bf16.mxu0 0
    %2375 = vmatpush1.bf16.msra.mxu0 0
    %2376 = vmatprep.subr.bf16.mxu0 0
    %2377 = vmatpush1.bf16.msra.mxu0 0
    %2378 = vmatprep.mubr.bf16.mxu0 0
    %2379 = vmatmul.mubr.bf16.gmra.mrb[0].mxu0 %v2301
    %v2380 = vpop.f32.mrb[0].mxu0
    %v2381 = vadd.f32 %v2340, %v2380
    %v2382 = vpop.f32.mrb[0].mxu0
    %v2383 = vadd.f32 %v2342, %v2382
    %v2384 = vpop.f32.mrb[0].mxu0
    %v2385 = vpop.f32.mrb[0].mxu0
    %2386 = vdwg.mxu0
    %2387 = vmatprep.subr.bf16.mxu0 0
    %2388 = vmatpush1.bf16.msra.mxu0 %v843
    %2389 = vmatprep.subr.bf16.mxu0 0
    %2390 = vmatpush1.bf16.msra.mxu0 %v846
    %2391 = vmatprep.subr.bf16.mxu0 0
    %2392 = vmatpush1.bf16.msra.mxu0 %v849
    %2393 = vmatprep.subr.bf16.mxu0 0
    %2394 = vmatpush1.bf16.msra.mxu0 %v852
    %2395 = vmatprep.subr.bf16.mxu0 0
    %2396 = vmatpush1.bf16.msra.mxu0 %v855
    %2397 = vmatprep.subr.bf16.mxu0 0
    %2398 = vmatpush1.bf16.msra.mxu0 %v858
    %2399 = vmatprep.subr.bf16.mxu0 0
    %2400 = vmatpush1.bf16.msra.mxu0 %v861
    %2401 = vmatprep.subr.bf16.mxu0 0
    %2402 = vmatpush1.bf16.msra.mxu0 %v864
    %2403 = vmatprep.subr.bf16.mxu0 0
    %2404 = vmatpush1.bf16.msra.mxu0 %v867
    %2405 = vmatprep.subr.bf16.mxu0 0
    %2406 = vmatpush1.bf16.msra.mxu0 %v870
    %2407 = vmatprep.subr.bf16.mxu0 0
    %2408 = vmatpush1.bf16.msra.mxu0 %v873
    %2409 = vmatprep.subr.bf16.mxu0 0
    %2410 = vmatpush1.bf16.msra.mxu0 %v876
    %2411 = vmatprep.subr.bf16.mxu0 0
    %2412 = vmatpush1.bf16.msra.mxu0 %v879
    %2413 = vmatprep.subr.bf16.mxu0 0
    %2414 = vmatpush1.bf16.msra.mxu0 %v882
    %2415 = vmatprep.subr.bf16.mxu0 0
    %2416 = vmatpush1.bf16.msra.mxu0 %v885
    %2417 = vmatprep.subr.bf16.mxu0 0
    %2418 = vmatpush1.bf16.msra.mxu0 %v888
    %2419 = vmatprep.mubr.bf16.mxu0 %v2300
    %2420 = vmatmul.mubr.bf16.gmra.mrb[0].mxu0 %v2299
    %v2421 = vpop.f32.mrb[0].mxu0
    %v2422 = vadd.f32 0.0, %v2421
    %v2423 = vpop.f32.mrb[0].mxu0
    %v2424 = vpop.f32.mrb[0].mxu0
    %v2425 = vpop.f32.mrb[0].mxu0
    %2426 = vdwg.mxu0
    %2427 = vmatprep.subr.bf16.mxu0 0
    %2428 = vmatpush1.bf16.msra.mxu0 %v891
    %2429 = vmatprep.subr.bf16.mxu0 0
    %2430 = vmatpush1.bf16.msra.mxu0 %v894
    %2431 = vmatprep.subr.bf16.mxu0 0
    %2432 = vmatpush1.bf16.msra.mxu0 %v897
    %2433 = vmatprep.subr.bf16.mxu0 0
    %2434 = vmatpush1.bf16.msra.mxu0 %v900
    %2435 = vmatprep.subr.bf16.mxu0 0
    %2436 = vmatpush1.bf16.msra.mxu0 %v903
    %2437 = vmatprep.subr.bf16.mxu0 0
    %2438 = vmatpush1.bf16.msra.mxu0 %v906
    %2439 = vmatprep.subr.bf16.mxu0 0
    %2440 = vmatpush1.bf16.msra.mxu0 %v909
    %2441 = vmatprep.subr.bf16.mxu0 0
    %2442 = vmatpush1.bf16.msra.mxu0 %v912
    %2443 = vmatprep.subr.bf16.mxu0 0
    %2444 = vmatpush1.bf16.msra.mxu0 0
    %2445 = vmatprep.subr.bf16.mxu0 0
    %2446 = vmatpush1.bf16.msra.mxu0 0
    %2447 = vmatprep.subr.bf16.mxu0 0
    %2448 = vmatpush1.bf16.msra.mxu0 0
    %2449 = vmatprep.subr.bf16.mxu0 0
    %2450 = vmatpush1.bf16.msra.mxu0 0
    %2451 = vmatprep.subr.bf16.mxu0 0
    %2452 = vmatpush1.bf16.msra.mxu0 0
    %2453 = vmatprep.subr.bf16.mxu0 0
    %2454 = vmatpush1.bf16.msra.mxu0 0
    %2455 = vmatprep.subr.bf16.mxu0 0
    %2456 = vmatpush1.bf16.msra.mxu0 0
    %2457 = vmatprep.subr.bf16.mxu0 0
    %2458 = vmatpush1.bf16.msra.mxu0 0
    %2459 = vmatprep.mubr.bf16.mxu0 0
    %2460 = vmatmul.mubr.bf16.gmra.mrb[0].mxu0 %v2301
    %v2461 = vpop.f32.mrb[0].mxu0
    %v2462 = vadd.f32 %v2422, %v2461
    %v2463 = vpop.f32.mrb[0].mxu0
    %v2464 = vpop.f32.mrb[0].mxu0
    %v2465 = vpop.f32.mrb[0].mxu0
    %2466 = vdwg.mxu0
    %v2470 = vrot.slane %v2381, 1
    %v2471 = vrot.slane %v2383, 1
    %v2472 = vrot.slane %v2462, 1
    %v2476 = vadd.f32 %v598, %v2470
    %v2477 = vadd.f32 %v599, %v2471
    %v2478 = vadd.f32 %v600, %v2472
    %v2479 = vtanh.pop %v2476
    %v2480 = vtanh.pop %v2477
    %v2481 = vtanh.pop %v2478
    %v2482 = vpack.c.bf16 %v2479, %v2479
    %v2483 = vpack.c.bf16 %v2480, %v2480
    %v2484 = vpack.c.bf16 %v2481, %v2481
    %vm2485 = vcmask 1040384
    %vm2486 = vsmask.f32 256
    %vm2487 = vmand %vm2485, %vm2486
    %v2488 = vsel %vm2487, %v1153, %v1333
    %v2489 = vsel %vm2487, %v1154, %v1334
    %v2490 = vsel %vm2487, %v1155, %v1335
    %vm2491 = vcmask 1040384
    %v2494 = vsel %vm2491, %v2488, %v1525
    %v2498 = vsel %vm2491, %v2489, %v1526
    %v2502 = vsel %vm2491, %v2490, %v1527
    %vm2504 = vcmask 1041408
    %vm2505 = vsmask.f32 1280
    %vm2506 = vmand %vm2504, %vm2505
    %v2507 = vsel %vm2506, %v2494, %v1714
    %v2508 = vsel %vm2506, %v2498, %v1715
    %v2509 = vsel %vm2506, %v2502, %v1716
    %vm2510 = vcmask 1041408
    %v2513 = vsel %vm2510, %v2507, %v1909
    %v2517 = vsel %vm2510, %v2508, %v1910
    %v2521 = vsel %vm2510, %v2509, %v1911
    %vm2523 = vcmask 1042432
    %vm2524 = vsmask.f32 2304
    %vm2525 = vmand %vm2523, %vm2524
    %v2526 = vsel %vm2525, %v2513, %v2098
    %v2527 = vsel %vm2525, %v2517, %v2099
    %v2528 = vsel %vm2525, %v2521, %v2100
    %vm2529 = vcmask 1042432
    %v2532 = vsel %vm2529, %v2526, %v2293
    %v2536 = vsel %vm2529, %v2527, %v2294
    %v2540 = vsel %vm2529, %v2528, %v2295
    %vm2542 = vcmask 1043456
    %vm2543 = vsmask.f32 3328
    %vm2544 = vmand %vm2542, %vm2543
    %v2545 = vsel %vm2544, %v2532, %v2482
    %v2546 = vsel %vm2544, %v2536, %v2483
    %v2547 = vsel %vm2544, %v2540, %v2484
    %v2551 = vunpack.c.l.b16 %v2545
    %v2552 = vunpack.c.l.b16 %v2546
    %v2553 = vunpack.c.l.b16 %v2547
    %v2554 = vpack.c.b16 %v2552, %v2551
    %v2555 = vpack.c.b16 %v2553, %v2553
    %2558 = vst [vmem:[#allocation3] sm:$0xff] %v2554
    %2559 = vst [vmem:[#allocation3 + $0x8] sm:$0xf] %v2555
    %s2560 = smul.u32 4, 48
    %s2561 = smul.u32 %s2560, 3
    %s2562 = sshll.u32 %s2561, 4
    %2563 = dma.done [#allocation11], %s2562
    %s2564 = sshll.u32 %s2561, 4
    %2565 = dma.done %s111, %s2564
    %v2566 = vld [vmem:[#allocation3] sm:$0xff]
    %v2567 = vld [vmem:[#allocation3 + $0x8] sm:$0xf]
    %v2568 = vmax.bf16 %v2566, 0
    %v2569 = vmax.bf16 %v2567, 0
    %v2570 = vld [vmem:[#allocation5] sm:$0xff]
    %v2571 = vld [vmem:[#allocation5 + $0x8] sm:$0xff]
    %v2572 = vld [vmem:[#allocation5 + $0x10] sm:$0xff]
    %v2573 = vld [vmem:[#allocation5 + $0x18] sm:$0xff]
    %v2574 = vld [vmem:[#allocation5 + $0x20] sm:$0xff]
    %v2575 = vld [vmem:[#allocation5 + $0x28] sm:$0xff]
    %v2576 = vld [vmem:[#allocation5 + $0x30] sm:$0xff]
    %v2577 = vld [vmem:[#allocation5 + $0x38] sm:$0xff]
    %v2578 = vld [vmem:[#allocation5 + $0x40] sm:$0xff]
    %v2579 = vld [vmem:[#allocation5 + $0x48] sm:$0xff]
    %v2580 = vld [vmem:[#allocation5 + $0x50] sm:$0xff]
    %v2581 = vld [vmem:[#allocation5 + $0x58] sm:$0xff]
    %v2582 = vld [vmem:[#allocation5 + $0x60] sm:$0xff]
    %v2583 = vld [vmem:[#allocation5 + $0x68] sm:$0xff]
    %v2584 = vld [vmem:[#allocation5 + $0x70] sm:$0xff]
    %v2585 = vld [vmem:[#allocation5 + $0x78] sm:$0xff]
    %v2586 = vld [vmem:[#allocation5 + $0x80] sm:$0xff]
    %v2587 = vld [vmem:[#allocation5 + $0x88] sm:$0xff]
    %v2588 = vld [vmem:[#allocation5 + $0x90] sm:$0xff]
    %v2589 = vld [vmem:[#allocation5 + $0x98] sm:$0xff]
    %v2590 = vld [vmem:[#allocation5 + $0xa0] sm:$0xff]
    %v2591 = vld [vmem:[#allocation5 + $0xa8] sm:$0xff]
    %v2592 = vld [vmem:[#allocation5 + $0xb0] sm:$0xff]
    %v2593 = vld [vmem:[#allocation5 + $0xb8] sm:$0xff]
    %v2594 = vld [vmem:[#allocation5 + $0xc0] sm:$0xff]
    %v2595 = vld [vmem:[#allocation5 + $0xc8] sm:$0xff]
    %v2596 = vld [vmem:[#allocation5 + $0xd0] sm:$0xff]
    %v2597 = vld [vmem:[#allocation5 + $0xd8] sm:$0xff]
    %v2598 = vld [vmem:[#allocation5 + $0xe0] sm:$0xff]
    %v2599 = vld [vmem:[#allocation5 + $0xe8] sm:$0xff]
    %v2600 = vld [vmem:[#allocation5 + $0xf0] sm:$0xff]
    %v2601 = vld [vmem:[#allocation5 + $0xf8] sm:$0xff]
    %v2602 = vld [vmem:[#allocation5 + $0x100] sm:$0xff]
    %v2603 = vld [vmem:[#allocation5 + $0x108] sm:$0xff]
    %v2604 = vld [vmem:[#allocation5 + $0x110] sm:$0xff]
    %v2605 = vld [vmem:[#allocation5 + $0x118] sm:$0xff]
    %v2606 = vld [vmem:[#allocation5 + $0x120] sm:$0xff]
    %v2607 = vld [vmem:[#allocation5 + $0x128] sm:$0xff]
    %v2608 = vld [vmem:[#allocation5 + $0x130] sm:$0xff]
    %v2609 = vld [vmem:[#allocation5 + $0x138] sm:$0xff]
    %v2610 = vld [vmem:[#allocation5 + $0x140] sm:$0xff]
    %v2611 = vld [vmem:[#allocation5 + $0x148] sm:$0xff]
    %v2612 = vld [vmem:[#allocation5 + $0x150] sm:$0xff]
    %v2613 = vld [vmem:[#allocation5 + $0x158] sm:$0xff]
    %v2614 = vld [vmem:[#allocation5 + $0x160] sm:$0xff]
    %v2615 = vld [vmem:[#allocation5 + $0x168] sm:$0xff]
    %v2616 = vld [vmem:[#allocation5 + $0x170] sm:$0xff]
    %v2617 = vld [vmem:[#allocation5 + $0x178] sm:$0xff]
    %v2618 = vld [vmem:[#allocation5 + $0x180] sm:$0xff]
    %v2619 = vld [vmem:[#allocation5 + $0x188] sm:$0xff]
    %v2620 = vld [vmem:[#allocation5 + $0x190] sm:$0xff]
    %v2621 = vld [vmem:[#allocation5 + $0x198] sm:$0xff]
    %v2622 = vld [vmem:[#allocation5 + $0x1a0] sm:$0xff]
    %v2623 = vld [vmem:[#allocation5 + $0x1a8] sm:$0xff]
    %v2624 = vld [vmem:[#allocation5 + $0x1b0] sm:$0xff]
    %v2625 = vld [vmem:[#allocation5 + $0x1b8] sm:$0xff]
    %v2626 = vld [vmem:[#allocation5 + $0x1c0] sm:$0xff]
    %v2627 = vld [vmem:[#allocation5 + $0x1c8] sm:$0xff]
    %v2628 = vld [vmem:[#allocation5 + $0x1d0] sm:$0xff]
    %v2629 = vld [vmem:[#allocation5 + $0x1d8] sm:$0xff]
    %v2630 = vld [vmem:[#allocation5 + $0x1e0] sm:$0xff]
    %v2631 = vld [vmem:[#allocation5 + $0x1e8] sm:$0xff]
    %v2632 = vld [vmem:[#allocation5 + $0x1f0] sm:$0xff]
    %v2633 = vld [vmem:[#allocation5 + $0x1f8] sm:$0xff]
    %v2634 = vld [vmem:[#allocation5 + $0x200] sm:$0xff]
    %v2635 = vld [vmem:[#allocation5 + $0x208] sm:$0xff]
    %v2636 = vld [vmem:[#allocation5 + $0x210] sm:$0xff]
    %v2637 = vld [vmem:[#allocation5 + $0x218] sm:$0xff]
    %v2638 = vld [vmem:[#allocation5 + $0x220] sm:$0xff]
    %v2639 = vld [vmem:[#allocation5 + $0x228] sm:$0xff]
    %v2640 = vld [vmem:[#allocation5 + $0x230] sm:$0xff]
    %v2641 = vld [vmem:[#allocation5 + $0x238] sm:$0xff]
    %v2642 = vld [vmem:[#allocation6] sm:$0xff]
    %v2643 = vld [vmem:[#allocation6 + $0x8] sm:$0xff]
    %v2644 = vld [vmem:[#allocation6 + $0x10] sm:$0xff]
    %v2645 = vld [vmem:[#allocation6 + $0x18] sm:$0xff]
    %v2646 = vld [vmem:[#allocation6 + $0x20] sm:$0xff]
    %v2647 = vld [vmem:[#allocation6 + $0x28] sm:$0xff]
    %v2648 = vld [vmem:[#allocation6 + $0x30] sm:$0xff]
    %v2649 = vld [vmem:[#allocation6 + $0x38] sm:$0xff]
    %v2650 = vld [vmem:[#allocation6 + $0x40] sm:$0xff]
    %v2651 = vld [vmem:[#allocation6 + $0x48] sm:$0xff]
    %v2652 = vld [vmem:[#allocation6 + $0x50] sm:$0xff]
    %v2653 = vld [vmem:[#allocation6 + $0x58] sm:$0xff]
    %v2654 = vld [vmem:[#allocation6 + $0x60] sm:$0xff]
    %v2655 = vld [vmem:[#allocation6 + $0x68] sm:$0xff]
    %v2656 = vld [vmem:[#allocation6 + $0x70] sm:$0xff]
    %v2657 = vld [vmem:[#allocation6 + $0x78] sm:$0xff]
    %v2658 = vld [vmem:[#allocation6 + $0x80] sm:$0xff]
    %v2659 = vld [vmem:[#allocation6 + $0x88] sm:$0xff]
    %v2660 = vld [vmem:[#allocation6 + $0x90] sm:$0xff]
    %v2661 = vld [vmem:[#allocation6 + $0x98] sm:$0xff]
    %v2662 = vld [vmem:[#allocation6 + $0xa0] sm:$0xff]
    %v2663 = vld [vmem:[#allocation6 + $0xa8] sm:$0xff]
    %v2664 = vld [vmem:[#allocation6 + $0xb0] sm:$0xff]
    %v2665 = vld [vmem:[#allocation6 + $0xb8] sm:$0xff]
    %v2666 = vld [vmem:[#allocation6 + $0xc0] sm:$0xff]
    %v2667 = vld [vmem:[#allocation6 + $0xc8] sm:$0xff]
    %v2668 = vld [vmem:[#allocation6 + $0xd0] sm:$0xff]
    %v2669 = vld [vmem:[#allocation6 + $0xd8] sm:$0xff]
    %v2670 = vld [vmem:[#allocation6 + $0xe0] sm:$0xff]
    %v2671 = vld [vmem:[#allocation6 + $0xe8] sm:$0xff]
    %v2672 = vld [vmem:[#allocation6 + $0xf0] sm:$0xff]
    %v2673 = vld [vmem:[#allocation6 + $0xf8] sm:$0xff]
    %v2674 = vld [vmem:[#allocation6 + $0x100] sm:$0xff]
    %v2675 = vld [vmem:[#allocation6 + $0x108] sm:$0xff]
    %v2676 = vld [vmem:[#allocation6 + $0x110] sm:$0xff]
    %v2677 = vld [vmem:[#allocation6 + $0x118] sm:$0xff]
    %v2678 = vld [vmem:[#allocation6 + $0x120] sm:$0xff]
    %v2679 = vld [vmem:[#allocation6 + $0x128] sm:$0xff]
    %v2680 = vld [vmem:[#allocation6 + $0x130] sm:$0xff]
    %v2681 = vld [vmem:[#allocation6 + $0x138] sm:$0xff]
    %v2682 = vld [vmem:[#allocation6 + $0x140] sm:$0xff]
    %v2683 = vld [vmem:[#allocation6 + $0x148] sm:$0xff]
    %v2684 = vld [vmem:[#allocation6 + $0x150] sm:$0xff]
    %v2685 = vld [vmem:[#allocation6 + $0x158] sm:$0xff]
    %v2686 = vld [vmem:[#allocation6 + $0x160] sm:$0xff]
    %v2687 = vld [vmem:[#allocation6 + $0x168] sm:$0xff]
    %v2688 = vld [vmem:[#allocation6 + $0x170] sm:$0xff]
    %v2689 = vld [vmem:[#allocation6 + $0x178] sm:$0xff]
    %v2690 = vld [vmem:[#allocation6 + $0x180] sm:$0xff]
    %v2691 = vld [vmem:[#allocation6 + $0x188] sm:$0xff]
    %v2692 = vld [vmem:[#allocation6 + $0x190] sm:$0xff]
    %v2693 = vld [vmem:[#allocation6 + $0x198] sm:$0xff]
    %v2694 = vld [vmem:[#allocation6 + $0x1a0] sm:$0xff]
    %v2695 = vld [vmem:[#allocation6 + $0x1a8] sm:$0xff]
    %v2696 = vld [vmem:[#allocation6 + $0x1b0] sm:$0xff]
    %v2697 = vld [vmem:[#allocation6 + $0x1b8] sm:$0xff]
    %v2698 = vld [vmem:[#allocation6 + $0x1c0] sm:$0xff]
    %v2699 = vld [vmem:[#allocation6 + $0x1c8] sm:$0xff]
    %v2700 = vld [vmem:[#allocation6 + $0x1d0] sm:$0xff]
    %v2701 = vld [vmem:[#allocation6 + $0x1d8] sm:$0xff]
    %v2702 = vld [vmem:[#allocation6 + $0x1e0] sm:$0xff]
    %v2703 = vld [vmem:[#allocation6 + $0x1e8] sm:$0xff]
    %v2704 = vld [vmem:[#allocation6 + $0x1f0] sm:$0xff]
    %v2705 = vld [vmem:[#allocation6 + $0x1f8] sm:$0xff]
    %v2706 = vld [vmem:[#allocation6 + $0x200] sm:$0xff]
    %v2707 = vld [vmem:[#allocation6 + $0x208] sm:$0xff]
    %v2708 = vld [vmem:[#allocation6 + $0x210] sm:$0xff]
    %v2709 = vld [vmem:[#allocation6 + $0x218] sm:$0xff]
    %v2710 = vld [vmem:[#allocation6 + $0x220] sm:$0xff]
    %v2711 = vld [vmem:[#allocation6 + $0x228] sm:$0xff]
    %v2712 = vld [vmem:[#allocation6 + $0x230] sm:$0xff]
    %v2713 = vld [vmem:[#allocation6 + $0x238] sm:$0xff]
    %v2714 = vld [vmem:[%s6] sm:$0x7]
    %v2716 = vlaneseq
    %v2717 = vshrl.u32 %v2716, 7
    %v2718 = vsub.s32 0, %v2717
    %v2719 = vrot.slane %v2714, %v2718
    %v2720 = vlaneseq
    %v2721 = vshrl.u32 %v2720, 7
    %v2722 = vsub.s32 1, %v2721
    %v2723 = vrot.slane %v2714, %v2722
    %v2724 = vlaneseq
    %v2725 = vshrl.u32 %v2724, 7
    %v2726 = vsub.s32 2, %v2725
    %v2727 = vrot.slane %v2714, %v2726
    %v2733 = vunpack.c.l.b16 %v2568
    %v2734 = vunpack.c.h.b16 %v2568
    %v2735 = vunpack.c.l.b16 %v2569
    %v2736 = vpack.c.b16 %v2733, %v2733
    %v2737 = vpack.c.b16 %v2734, %v2734
    %v2738 = vpack.c.b16 %v2735, %v2735
    %2742 = vmatprep.subr.bf16.mxu0 %v2571
    %2743 = vmatpush1.bf16.msra.mxu0 %v2570
    %2744 = vmatprep.subr.bf16.mxu0 %v2574
    %2745 = vmatpush1.bf16.msra.mxu0 %v2573
    %2746 = vmatprep.subr.bf16.mxu0 %v2577
    %2747 = vmatpush1.bf16.msra.mxu0 %v2576
    %2748 = vmatprep.subr.bf16.mxu0 %v2580
    %2749 = vmatpush1.bf16.msra.mxu0 %v2579
    %2750 = vmatprep.subr.bf16.mxu0 %v2583
    %2751 = vmatpush1.bf16.msra.mxu0 %v2582
    %2752 = vmatprep.subr.bf16.mxu0 %v2586
    %2753 = vmatpush1.bf16.msra.mxu0 %v2585
    %2754 = vmatprep.subr.bf16.mxu0 %v2589
    %2755 = vmatpush1.bf16.msra.mxu0 %v2588
    %2756 = vmatprep.subr.bf16.mxu0 %v2592
    %2757 = vmatpush1.bf16.msra.mxu0 %v2591
    %2758 = vmatprep.subr.bf16.mxu0 %v2595
    %2759 = vmatpush1.bf16.msra.mxu0 %v2594
    %2760 = vmatprep.subr.bf16.mxu0 %v2598
    %2761 = vmatpush1.bf16.msra.mxu0 %v2597
    %2762 = vmatprep.subr.bf16.mxu0 %v2601
    %2763 = vmatpush1.bf16.msra.mxu0 %v2600
    %2764 = vmatprep.subr.bf16.mxu0 %v2604
    %2765 = vmatpush1.bf16.msra.mxu0 %v2603
    %2766 = vmatprep.subr.bf16.mxu0 %v2607
    %2767 = vmatpush1.bf16.msra.mxu0 %v2606
    %2768 = vmatprep.subr.bf16.mxu0 %v2610
    %2769 = vmatpush1.bf16.msra.mxu0 %v2609
    %2770 = vmatprep.subr.bf16.mxu0 %v2613
    %2771 = vmatpush1.bf16.msra.mxu0 %v2612
    %2772 = vmatprep.subr.bf16.mxu0 %v2616
    %2773 = vmatpush1.bf16.msra.mxu0 %v2615
    %2774 = vmatprep.mubr.bf16.mxu0 %v2737
    %2775 = vmatmul.mubr.bf16.gmra.mrb[0].mxu0 %v2736
    %v2776 = vpop.f32.mrb[0].mxu0
    %v2777 = vadd.f32 %v2719, %v2776
    %v2778 = vpop.f32.mrb[0].mxu0
    %v2779 = vadd.f32 %v2723, %v2778
    %v2780 = vpop.f32.mrb[0].mxu0
    %v2781 = vpop.f32.mrb[0].mxu0
    %2782 = vdwg.mxu0
    %2783 = vmatprep.subr.bf16.mxu0 %v2619
    %2784 = vmatpush1.bf16.msra.mxu0 %v2618
    %2785 = vmatprep.subr.bf16.mxu0 %v2622
    %2786 = vmatpush1.bf16.msra.mxu0 %v2621
    %2787 = vmatprep.subr.bf16.mxu0 %v2625
    %2788 = vmatpush1.bf16.msra.mxu0 %v2624
    %2789 = vmatprep.subr.bf16.mxu0 %v2628
    %2790 = vmatpush1.bf16.msra.mxu0 %v2627
    %2791 = vmatprep.subr.bf16.mxu0 %v2631
    %2792 = vmatpush1.bf16.msra.mxu0 %v2630
    %2793 = vmatprep.subr.bf16.mxu0 %v2634
    %2794 = vmatpush1.bf16.msra.mxu0 %v2633
    %2795 = vmatprep.subr.bf16.mxu0 %v2637
    %2796 = vmatpush1.bf16.msra.mxu0 %v2636
    %2797 = vmatprep.subr.bf16.mxu0 %v2640
    %2798 = vmatpush1.bf16.msra.mxu0 %v2639
    %2799 = vmatprep.subr.bf16.mxu0 0
    %2800 = vmatpush1.bf16.msra.mxu0 0
    %2801 = vmatprep.subr.bf16.mxu0 0
    %2802 = vmatpush1.bf16.msra.mxu0 0
    %2803 = vmatprep.subr.bf16.mxu0 0
    %2804 = vmatpush1.bf16.msra.mxu0 0
    %2805 = vmatprep.subr.bf16.mxu0 0
    %2806 = vmatpush1.bf16.msra.mxu0 0
    %2807 = vmatprep.subr.bf16.mxu0 0
    %2808 = vmatpush1.bf16.msra.mxu0 0
    %2809 = vmatprep.subr.bf16.mxu0 0
    %2810 = vmatpush1.bf16.msra.mxu0 0
    %2811 = vmatprep.subr.bf16.mxu0 0
    %2812 = vmatpush1.bf16.msra.mxu0 0
    %2813 = vmatprep.subr.bf16.mxu0 0
    %2814 = vmatpush1.bf16.msra.mxu0 0
    %2815 = vmatprep.mubr.bf16.mxu0 0
    %2816 = vmatmul.mubr.bf16.gmra.mrb[0].mxu0 %v2738
    %v2817 = vpop.f32.mrb[0].mxu0
    %v2818 = vadd.f32 %v2777, %v2817
    %v2819 = vpop.f32.mrb[0].mxu0
    %v2820 = vadd.f32 %v2779, %v2819
    %v2821 = vpop.f32.mrb[0].mxu0
    %v2822 = vpop.f32.mrb[0].mxu0
    %2823 = vdwg.mxu0
    %2824 = vmatprep.subr.bf16.mxu0 0
    %2825 = vmatpush1.bf16.msra.mxu0 %v2572
    %2826 = vmatprep.subr.bf16.mxu0 0
    %2827 = vmatpush1.bf16.msra.mxu0 %v2575
    %2828 = vmatprep.subr.bf16.mxu0 0
    %2829 = vmatpush1.bf16.msra.mxu0 %v2578
    %2830 = vmatprep.subr.bf16.mxu0 0
    %2831 = vmatpush1.bf16.msra.mxu0 %v2581
    %2832 = vmatprep.subr.bf16.mxu0 0
    %2833 = vmatpush1.bf16.msra.mxu0 %v2584
    %2834 = vmatprep.subr.bf16.mxu0 0
    %2835 = vmatpush1.bf16.msra.mxu0 %v2587
    %2836 = vmatprep.subr.bf16.mxu0 0
    %2837 = vmatpush1.bf16.msra.mxu0 %v2590
    %2838 = vmatprep.subr.bf16.mxu0 0
    %2839 = vmatpush1.bf16.msra.mxu0 %v2593
    %2840 = vmatprep.subr.bf16.mxu0 0
    %2841 = vmatpush1.bf16.msra.mxu0 %v2596
    %2842 = vmatprep.subr.bf16.mxu0 0
    %2843 = vmatpush1.bf16.msra.mxu0 %v2599
    %2844 = vmatprep.subr.bf16.mxu0 0
    %2845 = vmatpush1.bf16.msra.mxu0 %v2602
    %2846 = vmatprep.subr.bf16.mxu0 0
    %2847 = vmatpush1.bf16.msra.mxu0 %v2605
    %2848 = vmatprep.subr.bf16.mxu0 0
    %2849 = vmatpush1.bf16.msra.mxu0 %v2608
    %2850 = vmatprep.subr.bf16.mxu0 0
    %2851 = vmatpush1.bf16.msra.mxu0 %v2611
    %2852 = vmatprep.subr.bf16.mxu0 0
    %2853 = vmatpush1.bf16.msra.mxu0 %v2614
    %2854 = vmatprep.subr.bf16.mxu0 0
    %2855 = vmatpush1.bf16.msra.mxu0 %v2617
    %2856 = vmatprep.mubr.bf16.mxu0 %v2737
    %2857 = vmatmul.mubr.bf16.gmra.mrb[0].mxu0 %v2736
    %v2858 = vpop.f32.mrb[0].mxu0
    %v2859 = vadd.f32 %v2727, %v2858
    %v2860 = vpop.f32.mrb[0].mxu0
    %v2861 = vpop.f32.mrb[0].mxu0
    %v2862 = vpop.f32.mrb[0].mxu0
    %2863 = vdwg.mxu0
    %2864 = vmatprep.subr.bf16.mxu0 0
    %2865 = vmatpush1.bf16.msra.mxu0 %v2620
    %2866 = vmatprep.subr.bf16.mxu0 0
    %2867 = vmatpush1.bf16.msra.mxu0 %v2623
    %2868 = vmatprep.subr.bf16.mxu0 0
    %2869 = vmatpush1.bf16.msra.mxu0 %v2626
    %2870 = vmatprep.subr.bf16.mxu0 0
    %2871 = vmatpush1.bf16.msra.mxu0 %v2629
    %2872 = vmatprep.subr.bf16.mxu0 0
    %2873 = vmatpush1.bf16.msra.mxu0 %v2632
    %2874 = vmatprep.subr.bf16.mxu0 0
    %2875 = vmatpush1.bf16.msra.mxu0 %v2635
    %2876 = vmatprep.subr.bf16.mxu0 0
    %2877 = vmatpush1.bf16.msra.mxu0 %v2638
    %2878 = vmatprep.subr.bf16.mxu0 0
    %2879 = vmatpush1.bf16.msra.mxu0 %v2641
    %2880 = vmatprep.subr.bf16.mxu0 0
    %2881 = vmatpush1.bf16.msra.mxu0 0
    %2882 = vmatprep.subr.bf16.mxu0 0
    %2883 = vmatpush1.bf16.msra.mxu0 0
    %2884 = vmatprep.subr.bf16.mxu0 0
    %2885 = vmatpush1.bf16.msra.mxu0 0
    %2886 = vmatprep.subr.bf16.mxu0 0
    %2887 = vmatpush1.bf16.msra.mxu0 0
    %2888 = vmatprep.subr.bf16.mxu0 0
    %2889 = vmatpush1.bf16.msra.mxu0 0
    %2890 = vmatprep.subr.bf16.mxu0 0
    %2891 = vmatpush1.bf16.msra.mxu0 0
    %2892 = vmatprep.subr.bf16.mxu0 0
    %2893 = vmatpush1.bf16.msra.mxu0 0
    %2894 = vmatprep.subr.bf16.mxu0 0
    %2895 = vmatpush1.bf16.msra.mxu0 0
    %2896 = vmatprep.mubr.bf16.mxu0 0
    %2897 = vmatmul.mubr.bf16.gmra.mrb[0].mxu0 %v2738
    %v2898 = vpop.f32.mrb[0].mxu0
    %v2899 = vadd.f32 %v2859, %v2898
    %v2900 = vpop.f32.mrb[0].mxu0
    %v2901 = vpop.f32.mrb[0].mxu0
    %v2902 = vpop.f32.mrb[0].mxu0
    %2903 = vdwg.mxu0
    %2904 = vst [vmem:[#allocation2] sm:$0xff] %v2818
    %2905 = vst [vmem:[#allocation2 + $0x8] sm:$0xff] %v2820
    %2906 = vst [vmem:[#allocation2 + $0x10] sm:$0xff] %v2899
    %v2907 = vld [vmem:[#allocation2] sm:$0xff]
    %v2908 = vld [vmem:[#allocation2 + $0x8] sm:$0xff]
    %v2909 = vld [vmem:[#allocation2 + $0x10] sm:$0xff]
    %v2911 = vshrl.u32 %v2482, 16
    %v2913 = vrot.slane %v2911, 3
    %v2915 = vshrl.u32 %v2483, 16
    %v2917 = vrot.slane %v2915, 3
    %v2919 = vshrl.u32 %v2484, 16
    %v2921 = vrot.slane %v2919, 3
    %2925 = vmatprep.subr.bf16.mxu0 %v2643
    %2926 = vmatpush1.bf16.msra.mxu0 %v2642
    %2927 = vmatprep.subr.bf16.mxu0 %v2646
    %2928 = vmatpush1.bf16.msra.mxu0 %v2645
    %2929 = vmatprep.subr.bf16.mxu0 %v2649
    %2930 = vmatpush1.bf16.msra.mxu0 %v2648
    %2931 = vmatprep.subr.bf16.mxu0 %v2652
    %2932 = vmatpush1.bf16.msra.mxu0 %v2651
    %2933 = vmatprep.subr.bf16.mxu0 %v2655
    %2934 = vmatpush1.bf16.msra.mxu0 %v2654
    %2935 = vmatprep.subr.bf16.mxu0 %v2658
    %2936 = vmatpush1.bf16.msra.mxu0 %v2657
    %2937 = vmatprep.subr.bf16.mxu0 %v2661
    %2938 = vmatpush1.bf16.msra.mxu0 %v2660
    %2939 = vmatprep.subr.bf16.mxu0 %v2664
    %2940 = vmatpush1.bf16.msra.mxu0 %v2663
    %2941 = vmatprep.subr.bf16.mxu0 %v2667
    %2942 = vmatpush1.bf16.msra.mxu0 %v2666
    %2943 = vmatprep.subr.bf16.mxu0 %v2670
    %2944 = vmatpush1.bf16.msra.mxu0 %v2669
    %2945 = vmatprep.subr.bf16.mxu0 %v2673
    %2946 = vmatpush1.bf16.msra.mxu0 %v2672
    %2947 = vmatprep.subr.bf16.mxu0 %v2676
    %2948 = vmatpush1.bf16.msra.mxu0 %v2675
    %2949 = vmatprep.subr.bf16.mxu0 %v2679
    %2950 = vmatpush1.bf16.msra.mxu0 %v2678
    %2951 = vmatprep.subr.bf16.mxu0 %v2682
    %2952 = vmatpush1.bf16.msra.mxu0 %v2681
    %2953 = vmatprep.subr.bf16.mxu0 %v2685
    %2954 = vmatpush1.bf16.msra.mxu0 %v2684
    %2955 = vmatprep.subr.bf16.mxu0 %v2688
    %2956 = vmatpush1.bf16.msra.mxu0 %v2687
    %2957 = vmatprep.mubr.bf16.mxu0 %v2917
    %2958 = vmatmul.mubr.bf16.gmra.mrb[0].mxu0 %v2913
    %v2959 = vpop.f32.mrb[0].mxu0
    %v2960 = vadd.f32 0.0, %v2959
    %v2961 = vpop.f32.mrb[0].mxu0
    %v2962 = vadd.f32 0.0, %v2961
    %v2963 = vpop.f32.mrb[0].mxu0
    %v2964 = vpop.f32.mrb[0].mxu0
    %2965 = vdwg.mxu0
    %2966 = vmatprep.subr.bf16.mxu0 %v2691
    %2967 = vmatpush1.bf16.msra.mxu0 %v2690
    %2968 = vmatprep.subr.bf16.mxu0 %v2694
    %2969 = vmatpush1.bf16.msra.mxu0 %v2693
    %2970 = vmatprep.subr.bf16.mxu0 %v2697
    %2971 = vmatpush1.bf16.msra.mxu0 %v2696
    %2972 = vmatprep.subr.bf16.mxu0 %v2700
    %2973 = vmatpush1.bf16.msra.mxu0 %v2699
    %2974 = vmatprep.subr.bf16.mxu0 %v2703
    %2975 = vmatpush1.bf16.msra.mxu0 %v2702
    %2976 = vmatprep.subr.bf16.mxu0 %v2706
    %2977 = vmatpush1.bf16.msra.mxu0 %v2705
    %2978 = vmatprep.subr.bf16.mxu0 %v2709
    %2979 = vmatpush1.bf16.msra.mxu0 %v2708
    %2980 = vmatprep.subr.bf16.mxu0 %v2712
    %2981 = vmatpush1.bf16.msra.mxu0 %v2711
    %2982 = vmatprep.subr.bf16.mxu0 0
    %2983 = vmatpush1.bf16.msra.mxu0 0
    %2984 = vmatprep.subr.bf16.mxu0 0
    %2985 = vmatpush1.bf16.msra.mxu0 0
    %2986 = vmatprep.subr.bf16.mxu0 0
    %2987 = vmatpush1.bf16.msra.mxu0 0
    %2988 = vmatprep.subr.bf16.mxu0 0
    %2989 = vmatpush1.bf16.msra.mxu0 0
    %2990 = vmatprep.subr.bf16.mxu0 0
    %2991 = vmatpush1.bf16.msra.mxu0 0
    %2992 = vmatprep.subr.bf16.mxu0 0
    %2993 = vmatpush1.bf16.msra.mxu0 0
    %2994 = vmatprep.subr.bf16.mxu0 0
    %2995 = vmatpush1.bf16.msra.mxu0 0
    %2996 = vmatprep.subr.bf16.mxu0 0
    %2997 = vmatpush1.bf16.msra.mxu0 0
    %2998 = vmatprep.mubr.bf16.mxu0 0
    %2999 = vmatmul.mubr.bf16.gmra.mrb[0].mxu0 %v2921
    %v3000 = vpop.f32.mrb[0].mxu0
    %v3001 = vadd.f32 %v2960, %v3000
    %v3002 = vpop.f32.mrb[0].mxu0
    %v3003 = vadd.f32 %v2962, %v3002
    %v3004 = vpop.f32.mrb[0].mxu0
    %v3005 = vpop.f32.mrb[0].mxu0
    %3006 = vdwg.mxu0
    %3007 = vmatprep.subr.bf16.mxu0 0
    %3008 = vmatpush1.bf16.msra.mxu0 %v2644
    %3009 = vmatprep.subr.bf16.mxu0 0
    %3010 = vmatpush1.bf16.msra.mxu0 %v2647
    %3011 = vmatprep.subr.bf16.mxu0 0
    %3012 = vmatpush1.bf16.msra.mxu0 %v2650
    %3013 = vmatprep.subr.bf16.mxu0 0
    %3014 = vmatpush1.bf16.msra.mxu0 %v2653
    %3015 = vmatprep.subr.bf16.mxu0 0
    %3016 = vmatpush1.bf16.msra.mxu0 %v2656
    %3017 = vmatprep.subr.bf16.mxu0 0
    %3018 = vmatpush1.bf16.msra.mxu0 %v2659
    %3019 = vmatprep.subr.bf16.mxu0 0
    %3020 = vmatpush1.bf16.msra.mxu0 %v2662
    %3021 = vmatprep.subr.bf16.mxu0 0
    %3022 = vmatpush1.bf16.msra.mxu0 %v2665
    %3023 = vmatprep.subr.bf16.mxu0 0
    %3024 = vmatpush1.bf16.msra.mxu0 %v2668
    %3025 = vmatprep.subr.bf16.mxu0 0
    %3026 = vmatpush1.bf16.msra.mxu0 %v2671
    %3027 = vmatprep.subr.bf16.mxu0 0
    %3028 = vmatpush1.bf16.msra.mxu0 %v2674
    %3029 = vmatprep.subr.bf16.mxu0 0
    %3030 = vmatpush1.bf16.msra.mxu0 %v2677
    %3031 = vmatprep.subr.bf16.mxu0 0
    %3032 = vmatpush1.bf16.msra.mxu0 %v2680
    %3033 = vmatprep.subr.bf16.mxu0 0
    %3034 = vmatpush1.bf16.msra.mxu0 %v2683
    %3035 = vmatprep.subr.bf16.mxu0 0
    %3036 = vmatpush1.bf16.msra.mxu0 %v2686
    %3037 = vmatprep.subr.bf16.mxu0 0
    %3038 = vmatpush1.bf16.msra.mxu0 %v2689
    %3039 = vmatprep.mubr.bf16.mxu0 %v2917
    %3040 = vmatmul.mubr.bf16.gmra.mrb[0].mxu0 %v2913
    %v3041 = vpop.f32.mrb[0].mxu0
    %v3042 = vadd.f32 0.0, %v3041
    %v3043 = vpop.f32.mrb[0].mxu0
    %v3044 = vpop.f32.mrb[0].mxu0
    %v3045 = vpop.f32.mrb[0].mxu0
    %3046 = vdwg.mxu0
    %3047 = vmatprep.subr.bf16.mxu0 0
    %3048 = vmatpush1.bf16.msra.mxu0 %v2692
    %3049 = vmatprep.subr.bf16.mxu0 0
    %3050 = vmatpush1.bf16.msra.mxu0 %v2695
    %3051 = vmatprep.subr.bf16.mxu0 0
    %3052 = vmatpush1.bf16.msra.mxu0 %v2698
    %3053 = vmatprep.subr.bf16.mxu0 0
    %3054 = vmatpush1.bf16.msra.mxu0 %v2701
    %3055 = vmatprep.subr.bf16.mxu0 0
    %3056 = vmatpush1.bf16.msra.mxu0 %v2704
    %3057 = vmatprep.subr.bf16.mxu0 0
    %3058 = vmatpush1.bf16.msra.mxu0 %v2707
    %3059 = vmatprep.subr.bf16.mxu0 0
    %3060 = vmatpush1.bf16.msra.mxu0 %v2710
    %3061 = vmatprep.subr.bf16.mxu0 0
    %3062 = vmatpush1.bf16.msra.mxu0 %v2713
    %3063 = vmatprep.subr.bf16.mxu0 0
    %3064 = vmatpush1.bf16.msra.mxu0 0
    %3065 = vmatprep.subr.bf16.mxu0 0
    %3066 = vmatpush1.bf16.msra.mxu0 0
    %3067 = vmatprep.subr.bf16.mxu0 0
    %3068 = vmatpush1.bf16.msra.mxu0 0
    %3069 = vmatprep.subr.bf16.mxu0 0
    %3070 = vmatpush1.bf16.msra.mxu0 0
    %3071 = vmatprep.subr.bf16.mxu0 0
    %3072 = vmatpush1.bf16.msra.mxu0 0
    %3073 = vmatprep.subr.bf16.mxu0 0
    %3074 = vmatpush1.bf16.msra.mxu0 0
    %3075 = vmatprep.subr.bf16.mxu0 0
    %3076 = vmatpush1.bf16.msra.mxu0 0
    %3077 = vmatprep.subr.bf16.mxu0 0
    %3078 = vmatpush1.bf16.msra.mxu0 0
    %3079 = vmatprep.mubr.bf16.mxu0 0
    %3080 = vmatmul.mubr.bf16.gmra.mrb[0].mxu0 %v2921
    %v3081 = vpop.f32.mrb[0].mxu0
    %v3082 = vadd.f32 %v3042, %v3081
    %v3083 = vpop.f32.mrb[0].mxu0
    %v3084 = vpop.f32.mrb[0].mxu0
    %v3085 = vpop.f32.mrb[0].mxu0
    %3086 = vdwg.mxu0
    %v3087 = vadd.f32 %v2907, %v3001
    %v3088 = vadd.f32 %v2908, %v3003
    %v3089 = vadd.f32 %v2909, %v3082
    %v3090 = vtanh.pop %v3087
    %v3091 = vtanh.pop %v3088
    %v3092 = vtanh.pop %v3089
    %v3093 = vpack.c.bf16 %v3090, %v3090
    %v3094 = vpack.c.bf16 %v3091, %v3091
    %v3095 = vpack.c.bf16 %v3092, %v3092
    %3096 = vmatprep.subr.bf16.mxu0 %v2643
    %3097 = vmatpush1.bf16.msra.mxu0 %v2642
    %3098 = vmatprep.subr.bf16.mxu0 %v2646
    %3099 = vmatpush1.bf16.msra.mxu0 %v2645
    %3100 = vmatprep.subr.bf16.mxu0 %v2649
    %3101 = vmatpush1.bf16.msra.mxu0 %v2648
    %3102 = vmatprep.subr.bf16.mxu0 %v2652
    %3103 = vmatpush1.bf16.msra.mxu0 %v2651
    %3104 = vmatprep.subr.bf16.mxu0 %v2655
    %3105 = vmatpush1.bf16.msra.mxu0 %v2654
    %3106 = vmatprep.subr.bf16.mxu0 %v2658
    %3107 = vmatpush1.bf16.msra.mxu0 %v2657
    %3108 = vmatprep.subr.bf16.mxu0 %v2661
    %3109 = vmatpush1.bf16.msra.mxu0 %v2660
    %3110 = vmatprep.subr.bf16.mxu0 %v2664
    %3111 = vmatpush1.bf16.msra.mxu0 %v2663
    %3112 = vmatprep.subr.bf16.mxu0 %v2667
    %3113 = vmatpush1.bf16.msra.mxu0 %v2666
    %3114 = vmatprep.subr.bf16.mxu0 %v2670
    %3115 = vmatpush1.bf16.msra.mxu0 %v2669
    %3116 = vmatprep.subr.bf16.mxu0 %v2673
    %3117 = vmatpush1.bf16.msra.mxu0 %v2672
    %3118 = vmatprep.subr.bf16.mxu0 %v2676
    %3119 = vmatpush1.bf16.msra.mxu0 %v2675
    %3120 = vmatprep.subr.bf16.mxu0 %v2679
    %3121 = vmatpush1.bf16.msra.mxu0 %v2678
    %3122 = vmatprep.subr.bf16.mxu0 %v2682
    %3123 = vmatpush1.bf16.msra.mxu0 %v2681
    %3124 = vmatprep.subr.bf16.mxu0 %v2685
    %3125 = vmatpush1.bf16.msra.mxu0 %v2684
    %3126 = vmatprep.subr.bf16.mxu0 %v2688
    %3127 = vmatpush1.bf16.msra.mxu0 %v2687
    %3128 = vmatprep.mubr.bf16.mxu0 %v3094
    %3129 = vmatmul.mubr.bf16.gmra.mrb[0].mxu0 %v3093
    %v3130 = vpop.f32.mrb[0].mxu0
    %v3131 = vadd.f32 0.0, %v3130
    %v3132 = vpop.f32.mrb[0].mxu0
    %v3133 = vadd.f32 0.0, %v3132
    %v3134 = vpop.f32.mrb[0].mxu0
    %v3135 = vpop.f32.mrb[0].mxu0
    %3136 = vdwg.mxu0
    %3137 = vmatprep.subr.bf16.mxu0 %v2691
    %3138 = vmatpush1.bf16.msra.mxu0 %v2690
    %3139 = vmatprep.subr.bf16.mxu0 %v2694
    %3140 = vmatpush1.bf16.msra.mxu0 %v2693
    %3141 = vmatprep.subr.bf16.mxu0 %v2697
    %3142 = vmatpush1.bf16.msra.mxu0 %v2696
    %3143 = vmatprep.subr.bf16.mxu0 %v2700
    %3144 = vmatpush1.bf16.msra.mxu0 %v2699
    %3145 = vmatprep.subr.bf16.mxu0 %v2703
    %3146 = vmatpush1.bf16.msra.mxu0 %v2702
    %3147 = vmatprep.subr.bf16.mxu0 %v2706
    %3148 = vmatpush1.bf16.msra.mxu0 %v2705
    %3149 = vmatprep.subr.bf16.mxu0 %v2709
    %3150 = vmatpush1.bf16.msra.mxu0 %v2708
    %3151 = vmatprep.subr.bf16.mxu0 %v2712
    %3152 = vmatpush1.bf16.msra.mxu0 %v2711
    %3153 = vmatprep.subr.bf16.mxu0 0
    %3154 = vmatpush1.bf16.msra.mxu0 0
    %3155 = vmatprep.subr.bf16.mxu0 0
    %3156 = vmatpush1.bf16.msra.mxu0 0
    %3157 = vmatprep.subr.bf16.mxu0 0
    %3158 = vmatpush1.bf16.msra.mxu0 0
    %3159 = vmatprep.subr.bf16.mxu0 0
    %3160 = vmatpush1.bf16.msra.mxu0 0
    %3161 = vmatprep.subr.bf16.mxu0 0
    %3162 = vmatpush1.bf16.msra.mxu0 0
    %3163 = vmatprep.subr.bf16.mxu0 0
    %3164 = vmatpush1.bf16.msra.mxu0 0
    %3165 = vmatprep.subr.bf16.mxu0 0
    %3166 = vmatpush1.bf16.msra.mxu0 0
    %3167 = vmatprep.subr.bf16.mxu0 0
    %3168 = vmatpush1.bf16.msra.mxu0 0
    %3169 = vmatprep.mubr.bf16.mxu0 0
    %3170 = vmatmul.mubr.bf16.gmra.mrb[0].mxu0 %v3095
    %v3171 = vpop.f32.mrb[0].mxu0
    %v3172 = vadd.f32 %v3131, %v3171
    %v3173 = vpop.f32.mrb[0].mxu0
    %v3174 = vadd.f32 %v3133, %v3173
    %v3175 = vpop.f32.mrb[0].mxu0
    %v3176 = vpop.f32.mrb[0].mxu0
    %3177 = vdwg.mxu0
    %3178 = vmatprep.subr.bf16.mxu0 0
    %3179 = vmatpush1.bf16.msra.mxu0 %v2644
    %3180 = vmatprep.subr.bf16.mxu0 0
    %3181 = vmatpush1.bf16.msra.mxu0 %v2647
    %3182 = vmatprep.subr.bf16.mxu0 0
    %3183 = vmatpush1.bf16.msra.mxu0 %v2650
    %3184 = vmatprep.subr.bf16.mxu0 0
    %3185 = vmatpush1.bf16.msra.mxu0 %v2653
    %3186 = vmatprep.subr.bf16.mxu0 0
    %3187 = vmatpush1.bf16.msra.mxu0 %v2656
    %3188 = vmatprep.subr.bf16.mxu0 0
    %3189 = vmatpush1.bf16.msra.mxu0 %v2659
    %3190 = vmatprep.subr.bf16.mxu0 0
    %3191 = vmatpush1.bf16.msra.mxu0 %v2662
    %3192 = vmatprep.subr.bf16.mxu0 0
    %3193 = vmatpush1.bf16.msra.mxu0 %v2665
    %3194 = vmatprep.subr.bf16.mxu0 0
    %3195 = vmatpush1.bf16.msra.mxu0 %v2668
    %3196 = vmatprep.subr.bf16.mxu0 0
    %3197 = vmatpush1.bf16.msra.mxu0 %v2671
    %3198 = vmatprep.subr.bf16.mxu0 0
    %3199 = vmatpush1.bf16.msra.mxu0 %v2674
    %3200 = vmatprep.subr.bf16.mxu0 0
    %3201 = vmatpush1.bf16.msra.mxu0 %v2677
    %3202 = vmatprep.subr.bf16.mxu0 0
    %3203 = vmatpush1.bf16.msra.mxu0 %v2680
    %3204 = vmatprep.subr.bf16.mxu0 0
    %3205 = vmatpush1.bf16.msra.mxu0 %v2683
    %3206 = vmatprep.subr.bf16.mxu0 0
    %3207 = vmatpush1.bf16.msra.mxu0 %v2686
    %3208 = vmatprep.subr.bf16.mxu0 0
    %3209 = vmatpush1.bf16.msra.mxu0 %v2689
    %3210 = vmatprep.mubr.bf16.mxu0 %v3094
    %3211 = vmatmul.mubr.bf16.gmra.mrb[0].mxu0 %v3093
    %v3212 = vpop.f32.mrb[0].mxu0
    %v3213 = vadd.f32 0.0, %v3212
    %v3214 = vpop.f32.mrb[0].mxu0
    %v3215 = vpop.f32.mrb[0].mxu0
    %v3216 = vpop.f32.mrb[0].mxu0
    %3217 = vdwg.mxu0
    %3218 = vmatprep.subr.bf16.mxu0 0
    %3219 = vmatpush1.bf16.msra.mxu0 %v2692
    %3220 = vmatprep.subr.bf16.mxu0 0
    %3221 = vmatpush1.bf16.msra.mxu0 %v2695
    %3222 = vmatprep.subr.bf16.mxu0 0
    %3223 = vmatpush1.bf16.msra.mxu0 %v2698
    %3224 = vmatprep.subr.bf16.mxu0 0
    %3225 = vmatpush1.bf16.msra.mxu0 %v2701
    %3226 = vmatprep.subr.bf16.mxu0 0
    %3227 = vmatpush1.bf16.msra.mxu0 %v2704
    %3228 = vmatprep.subr.bf16.mxu0 0
    %3229 = vmatpush1.bf16.msra.mxu0 %v2707
    %3230 = vmatprep.subr.bf16.mxu0 0
    %3231 = vmatpush1.bf16.msra.mxu0 %v2710
    %3232 = vmatprep.subr.bf16.mxu0 0
    %3233 = vmatpush1.bf16.msra.mxu0 %v2713
    %3234 = vmatprep.subr.bf16.mxu0 0
    %3235 = vmatpush1.bf16.msra.mxu0 0
    %3236 = vmatprep.subr.bf16.mxu0 0
    %3237 = vmatpush1.bf16.msra.mxu0 0
    %3238 = vmatprep.subr.bf16.mxu0 0
    %3239 = vmatpush1.bf16.msra.mxu0 0
    %3240 = vmatprep.subr.bf16.mxu0 0
    %3241 = vmatpush1.bf16.msra.mxu0 0
    %3242 = vmatprep.subr.bf16.mxu0 0
    %3243 = vmatpush1.bf16.msra.mxu0 0
    %3244 = vmatprep.subr.bf16.mxu0 0
    %3245 = vmatpush1.bf16.msra.mxu0 0
    %3246 = vmatprep.subr.bf16.mxu0 0
    %3247 = vmatpush1.bf16.msra.mxu0 0
    %3248 = vmatprep.subr.bf16.mxu0 0
    %3249 = vmatpush1.bf16.msra.mxu0 0
    %3250 = vmatprep.mubr.bf16.mxu0 0
    %3251 = vmatmul.mubr.bf16.gmra.mrb[0].mxu0 %v3095
    %v3252 = vpop.f32.mrb[0].mxu0
    %v3253 = vadd.f32 %v3213, %v3252
    %v3254 = vpop.f32.mrb[0].mxu0
    %v3255 = vpop.f32.mrb[0].mxu0
    %v3256 = vpop.f32.mrb[0].mxu0
    %3257 = vdwg.mxu0
    %v3261 = vrot.slane %v3172, 7
    %v3262 = vrot.slane %v3174, 7
    %v3263 = vrot.slane %v3253, 7
    %v3267 = vadd.f32 %v2907, %v3261
    %v3268 = vadd.f32 %v2908, %v3262
    %v3269 = vadd.f32 %v2909, %v3263
    %v3270 = vtanh.pop %v3267
    %v3271 = vtanh.pop %v3268
    %v3272 = vtanh.pop %v3269
    %v3273 = vpack.c.bf16 %v3270, %v3270
    %v3274 = vpack.c.bf16 %v3271, %v3271
    %v3275 = vpack.c.bf16 %v3272, %v3272
    %v3277 = vshrl.u32 %v3273, 16
    %v3280 = vshrl.u32 %v3274, 16
    %v3283 = vshrl.u32 %v3275, 16
    %3288 = vmatprep.subr.bf16.mxu0 %v2643
    %3289 = vmatpush1.bf16.msra.mxu0 %v2642
    %3290 = vmatprep.subr.bf16.mxu0 %v2646
    %3291 = vmatpush1.bf16.msra.mxu0 %v2645
    %3292 = vmatprep.subr.bf16.mxu0 %v2649
    %3293 = vmatpush1.bf16.msra.mxu0 %v2648
    %3294 = vmatprep.subr.bf16.mxu0 %v2652
    %3295 = vmatpush1.bf16.msra.mxu0 %v2651
    %3296 = vmatprep.subr.bf16.mxu0 %v2655
    %3297 = vmatpush1.bf16.msra.mxu0 %v2654
    %3298 = vmatprep.subr.bf16.mxu0 %v2658
    %3299 = vmatpush1.bf16.msra.mxu0 %v2657
    %3300 = vmatprep.subr.bf16.mxu0 %v2661
    %3301 = vmatpush1.bf16.msra.mxu0 %v2660
    %3302 = vmatprep.subr.bf16.mxu0 %v2664
    %3303 = vmatpush1.bf16.msra.mxu0 %v2663
    %3304 = vmatprep.subr.bf16.mxu0 %v2667
    %3305 = vmatpush1.bf16.msra.mxu0 %v2666
    %3306 = vmatprep.subr.bf16.mxu0 %v2670
    %3307 = vmatpush1.bf16.msra.mxu0 %v2669
    %3308 = vmatprep.subr.bf16.mxu0 %v2673
    %3309 = vmatpush1.bf16.msra.mxu0 %v2672
    %3310 = vmatprep.subr.bf16.mxu0 %v2676
    %3311 = vmatpush1.bf16.msra.mxu0 %v2675
    %3312 = vmatprep.subr.bf16.mxu0 %v2679
    %3313 = vmatpush1.bf16.msra.mxu0 %v2678
    %3314 = vmatprep.subr.bf16.mxu0 %v2682
    %3315 = vmatpush1.bf16.msra.mxu0 %v2681
    %3316 = vmatprep.subr.bf16.mxu0 %v2685
    %3317 = vmatpush1.bf16.msra.mxu0 %v2684
    %3318 = vmatprep.subr.bf16.mxu0 %v2688
    %3319 = vmatpush1.bf16.msra.mxu0 %v2687
    %3320 = vmatprep.mubr.bf16.mxu0 %v3280
    %3321 = vmatmul.mubr.bf16.gmra.mrb[0].mxu0 %v3277
    %v3322 = vpop.f32.mrb[0].mxu0
    %v3323 = vadd.f32 0.0, %v3322
    %v3324 = vpop.f32.mrb[0].mxu0
    %v3325 = vadd.f32 0.0, %v3324
    %v3326 = vpop.f32.mrb[0].mxu0
    %v3327 = vpop.f32.mrb[0].mxu0
    %3328 = vdwg.mxu0
    %3329 = vmatprep.subr.bf16.mxu0 %v2691
    %3330 = vmatpush1.bf16.msra.mxu0 %v2690
    %3331 = vmatprep.subr.bf16.mxu0 %v2694
    %3332 = vmatpush1.bf16.msra.mxu0 %v2693
    %3333 = vmatprep.subr.bf16.mxu0 %v2697
    %3334 = vmatpush1.bf16.msra.mxu0 %v2696
    %3335 = vmatprep.subr.bf16.mxu0 %v2700
    %3336 = vmatpush1.bf16.msra.mxu0 %v2699
    %3337 = vmatprep.subr.bf16.mxu0 %v2703
    %3338 = vmatpush1.bf16.msra.mxu0 %v2702
    %3339 = vmatprep.subr.bf16.mxu0 %v2706
    %3340 = vmatpush1.bf16.msra.mxu0 %v2705
    %3341 = vmatprep.subr.bf16.mxu0 %v2709
    %3342 = vmatpush1.bf16.msra.mxu0 %v2708
    %3343 = vmatprep.subr.bf16.mxu0 %v2712
    %3344 = vmatpush1.bf16.msra.mxu0 %v2711
    %3345 = vmatprep.subr.bf16.mxu0 0
    %3346 = vmatpush1.bf16.msra.mxu0 0
    %3347 = vmatprep.subr.bf16.mxu0 0
    %3348 = vmatpush1.bf16.msra.mxu0 0
    %3349 = vmatprep.subr.bf16.mxu0 0
    %3350 = vmatpush1.bf16.msra.mxu0 0
    %3351 = vmatprep.subr.bf16.mxu0 0
    %3352 = vmatpush1.bf16.msra.mxu0 0
    %3353 = vmatprep.subr.bf16.mxu0 0
    %3354 = vmatpush1.bf16.msra.mxu0 0
    %3355 = vmatprep.subr.bf16.mxu0 0
    %3356 = vmatpush1.bf16.msra.mxu0 0
    %3357 = vmatprep.subr.bf16.mxu0 0
    %3358 = vmatpush1.bf16.msra.mxu0 0
    %3359 = vmatprep.subr.bf16.mxu0 0
    %3360 = vmatpush1.bf16.msra.mxu0 0
    %3361 = vmatprep.mubr.bf16.mxu0 0
    %3362 = vmatmul.mubr.bf16.gmra.mrb[0].mxu0 %v3283
    %v3363 = vpop.f32.mrb[0].mxu0
    %v3364 = vadd.f32 %v3323, %v3363
    %v3365 = vpop.f32.mrb[0].mxu0
    %v3366 = vadd.f32 %v3325, %v3365
    %v3367 = vpop.f32.mrb[0].mxu0
    %v3368 = vpop.f32.mrb[0].mxu0
    %3369 = vdwg.mxu0
    %3370 = vmatprep.subr.bf16.mxu0 0
    %3371 = vmatpush1.bf16.msra.mxu0 %v2644
    %3372 = vmatprep.subr.bf16.mxu0 0
    %3373 = vmatpush1.bf16.msra.mxu0 %v2647
    %3374 = vmatprep.subr.bf16.mxu0 0
    %3375 = vmatpush1.bf16.msra.mxu0 %v2650
    %3376 = vmatprep.subr.bf16.mxu0 0
    %3377 = vmatpush1.bf16.msra.mxu0 %v2653
    %3378 = vmatprep.subr.bf16.mxu0 0
    %3379 = vmatpush1.bf16.msra.mxu0 %v2656
    %3380 = vmatprep.subr.bf16.mxu0 0
    %3381 = vmatpush1.bf16.msra.mxu0 %v2659
    %3382 = vmatprep.subr.bf16.mxu0 0
    %3383 = vmatpush1.bf16.msra.mxu0 %v2662
    %3384 = vmatprep.subr.bf16.mxu0 0
    %3385 = vmatpush1.bf16.msra.mxu0 %v2665
    %3386 = vmatprep.subr.bf16.mxu0 0
    %3387 = vmatpush1.bf16.msra.mxu0 %v2668
    %3388 = vmatprep.subr.bf16.mxu0 0
    %3389 = vmatpush1.bf16.msra.mxu0 %v2671
    %3390 = vmatprep.subr.bf16.mxu0 0
    %3391 = vmatpush1.bf16.msra.mxu0 %v2674
    %3392 = vmatprep.subr.bf16.mxu0 0
    %3393 = vmatpush1.bf16.msra.mxu0 %v2677
    %3394 = vmatprep.subr.bf16.mxu0 0
    %3395 = vmatpush1.bf16.msra.mxu0 %v2680
    %3396 = vmatprep.subr.bf16.mxu0 0
    %3397 = vmatpush1.bf16.msra.mxu0 %v2683
    %3398 = vmatprep.subr.bf16.mxu0 0
    %3399 = vmatpush1.bf16.msra.mxu0 %v2686
    %3400 = vmatprep.subr.bf16.mxu0 0
    %3401 = vmatpush1.bf16.msra.mxu0 %v2689
    %3402 = vmatprep.mubr.bf16.mxu0 %v3280
    %3403 = vmatmul.mubr.bf16.gmra.mrb[0].mxu0 %v3277
    %v3404 = vpop.f32.mrb[0].mxu0
    %v3405 = vadd.f32 0.0, %v3404
    %v3406 = vpop.f32.mrb[0].mxu0
    %v3407 = vpop.f32.mrb[0].mxu0
    %v3408 = vpop.f32.mrb[0].mxu0
    %3409 = vdwg.mxu0
    %3410 = vmatprep.subr.bf16.mxu0 0
    %3411 = vmatpush1.bf16.msra.mxu0 %v2692
    %3412 = vmatprep.subr.bf16.mxu0 0
    %3413 = vmatpush1.bf16.msra.mxu0 %v2695
    %3414 = vmatprep.subr.bf16.mxu0 0
    %3415 = vmatpush1.bf16.msra.mxu0 %v2698
    %3416 = vmatprep.subr.bf16.mxu0 0
    %3417 = vmatpush1.bf16.msra.mxu0 %v2701
    %3418 = vmatprep.subr.bf16.mxu0 0
    %3419 = vmatpush1.bf16.msra.mxu0 %v2704
    %3420 = vmatprep.subr.bf16.mxu0 0
    %3421 = vmatpush1.bf16.msra.mxu0 %v2707
    %3422 = vmatprep.subr.bf16.mxu0 0
    %3423 = vmatpush1.bf16.msra.mxu0 %v2710
    %3424 = vmatprep.subr.bf16.mxu0 0
    %3425 = vmatpush1.bf16.msra.mxu0 %v2713
    %3426 = vmatprep.subr.bf16.mxu0 0
    %3427 = vmatpush1.bf16.msra.mxu0 0
    %3428 = vmatprep.subr.bf16.mxu0 0
    %3429 = vmatpush1.bf16.msra.mxu0 0
    %3430 = vmatprep.subr.bf16.mxu0 0
    %3431 = vmatpush1.bf16.msra.mxu0 0
    %3432 = vmatprep.subr.bf16.mxu0 0
    %3433 = vmatpush1.bf16.msra.mxu0 0
    %3434 = vmatprep.subr.bf16.mxu0 0
    %3435 = vmatpush1.bf16.msra.mxu0 0
    %3436 = vmatprep.subr.bf16.mxu0 0
    %3437 = vmatpush1.bf16.msra.mxu0 0
    %3438 = vmatprep.subr.bf16.mxu0 0
    %3439 = vmatpush1.bf16.msra.mxu0 0
    %3440 = vmatprep.subr.bf16.mxu0 0
    %3441 = vmatpush1.bf16.msra.mxu0 0
    %3442 = vmatprep.mubr.bf16.mxu0 0
    %3443 = vmatmul.mubr.bf16.gmra.mrb[0].mxu0 %v3283
    %v3444 = vpop.f32.mrb[0].mxu0
    %v3445 = vadd.f32 %v3405, %v3444
    %v3446 = vpop.f32.mrb[0].mxu0
    %v3447 = vpop.f32.mrb[0].mxu0
    %v3448 = vpop.f32.mrb[0].mxu0
    %3449 = vdwg.mxu0
    %v3453 = vrot.slane %v3364, 6
    %v3454 = vrot.slane %v3366, 6
    %v3455 = vrot.slane %v3445, 6
    %v3459 = vadd.f32 %v2907, %v3453
    %v3460 = vadd.f32 %v2908, %v3454
    %v3461 = vadd.f32 %v2909, %v3455
    %v3462 = vtanh.pop %v3459
    %v3463 = vtanh.pop %v3460
    %v3464 = vtanh.pop %v3461
    %v3465 = vpack.c.bf16 %v3462, %v3462
    %v3466 = vpack.c.bf16 %v3463, %v3463
    %v3467 = vpack.c.bf16 %v3464, %v3464
    %v3471 = vrot.slane %v3465, 1
    %v3472 = vrot.slane %v3466, 1
    %v3473 = vrot.slane %v3467, 1
    %3477 = vmatprep.subr.bf16.mxu0 %v2643
    %3478 = vmatpush1.bf16.msra.mxu0 %v2642
    %3479 = vmatprep.subr.bf16.mxu0 %v2646
    %3480 = vmatpush1.bf16.msra.mxu0 %v2645
    %3481 = vmatprep.subr.bf16.mxu0 %v2649
    %3482 = vmatpush1.bf16.msra.mxu0 %v2648
    %3483 = vmatprep.subr.bf16.mxu0 %v2652
    %3484 = vmatpush1.bf16.msra.mxu0 %v2651
    %3485 = vmatprep.subr.bf16.mxu0 %v2655
    %3486 = vmatpush1.bf16.msra.mxu0 %v2654
    %3487 = vmatprep.subr.bf16.mxu0 %v2658
    %3488 = vmatpush1.bf16.msra.mxu0 %v2657
    %3489 = vmatprep.subr.bf16.mxu0 %v2661
    %3490 = vmatpush1.bf16.msra.mxu0 %v2660
    %3491 = vmatprep.subr.bf16.mxu0 %v2664
    %3492 = vmatpush1.bf16.msra.mxu0 %v2663
    %3493 = vmatprep.subr.bf16.mxu0 %v2667
    %3494 = vmatpush1.bf16.msra.mxu0 %v2666
    %3495 = vmatprep.subr.bf16.mxu0 %v2670
    %3496 = vmatpush1.bf16.msra.mxu0 %v2669
    %3497 = vmatprep.subr.bf16.mxu0 %v2673
    %3498 = vmatpush1.bf16.msra.mxu0 %v2672
    %3499 = vmatprep.subr.bf16.mxu0 %v2676
    %3500 = vmatpush1.bf16.msra.mxu0 %v2675
    %3501 = vmatprep.subr.bf16.mxu0 %v2679
    %3502 = vmatpush1.bf16.msra.mxu0 %v2678
    %3503 = vmatprep.subr.bf16.mxu0 %v2682
    %3504 = vmatpush1.bf16.msra.mxu0 %v2681
    %3505 = vmatprep.subr.bf16.mxu0 %v2685
    %3506 = vmatpush1.bf16.msra.mxu0 %v2684
    %3507 = vmatprep.subr.bf16.mxu0 %v2688
    %3508 = vmatpush1.bf16.msra.mxu0 %v2687
    %3509 = vmatprep.mubr.bf16.mxu0 %v3472
    %3510 = vmatmul.mubr.bf16.gmra.mrb[0].mxu0 %v3471
    %v3511 = vpop.f32.mrb[0].mxu0
    %v3512 = vadd.f32 0.0, %v3511
    %v3513 = vpop.f32.mrb[0].mxu0
    %v3514 = vadd.f32 0.0, %v3513
    %v3515 = vpop.f32.mrb[0].mxu0
    %v3516 = vpop.f32.mrb[0].mxu0
    %3517 = vdwg.mxu0
    %3518 = vmatprep.subr.bf16.mxu0 %v2691
    %3519 = vmatpush1.bf16.msra.mxu0 %v2690
    %3520 = vmatprep.subr.bf16.mxu0 %v2694
    %3521 = vmatpush1.bf16.msra.mxu0 %v2693
    %3522 = vmatprep.subr.bf16.mxu0 %v2697
    %3523 = vmatpush1.bf16.msra.mxu0 %v2696
    %3524 = vmatprep.subr.bf16.mxu0 %v2700
    %3525 = vmatpush1.bf16.msra.mxu0 %v2699
    %3526 = vmatprep.subr.bf16.mxu0 %v2703
    %3527 = vmatpush1.bf16.msra.mxu0 %v2702
    %3528 = vmatprep.subr.bf16.mxu0 %v2706
    %3529 = vmatpush1.bf16.msra.mxu0 %v2705
    %3530 = vmatprep.subr.bf16.mxu0 %v2709
    %3531 = vmatpush1.bf16.msra.mxu0 %v2708
    %3532 = vmatprep.subr.bf16.mxu0 %v2712
    %3533 = vmatpush1.bf16.msra.mxu0 %v2711
    %3534 = vmatprep.subr.bf16.mxu0 0
    %3535 = vmatpush1.bf16.msra.mxu0 0
    %3536 = vmatprep.subr.bf16.mxu0 0
    %3537 = vmatpush1.bf16.msra.mxu0 0
    %3538 = vmatprep.subr.bf16.mxu0 0
    %3539 = vmatpush1.bf16.msra.mxu0 0
    %3540 = vmatprep.subr.bf16.mxu0 0
    %3541 = vmatpush1.bf16.msra.mxu0 0
    %3542 = vmatprep.subr.bf16.mxu0 0
    %3543 = vmatpush1.bf16.msra.mxu0 0
    %3544 = vmatprep.subr.bf16.mxu0 0
    %3545 = vmatpush1.bf16.msra.mxu0 0
    %3546 = vmatprep.subr.bf16.mxu0 0
    %3547 = vmatpush1.bf16.msra.mxu0 0
    %3548 = vmatprep.subr.bf16.mxu0 0
    %3549 = vmatpush1.bf16.msra.mxu0 0
    %3550 = vmatprep.mubr.bf16.mxu0 0
    %3551 = vmatmul.mubr.bf16.gmra.mrb[0].mxu0 %v3473
    %v3552 = vpop.f32.mrb[0].mxu0
    %v3553 = vadd.f32 %v3512, %v3552
    %v3554 = vpop.f32.mrb[0].mxu0
    %v3555 = vadd.f32 %v3514, %v3554
    %v3556 = vpop.f32.mrb[0].mxu0
    %v3557 = vpop.f32.mrb[0].mxu0
    %3558 = vdwg.mxu0
    %3559 = vmatprep.subr.bf16.mxu0 0
    %3560 = vmatpush1.bf16.msra.mxu0 %v2644
    %3561 = vmatprep.subr.bf16.mxu0 0
    %3562 = vmatpush1.bf16.msra.mxu0 %v2647
    %3563 = vmatprep.subr.bf16.mxu0 0
    %3564 = vmatpush1.bf16.msra.mxu0 %v2650
    %3565 = vmatprep.subr.bf16.mxu0 0
    %3566 = vmatpush1.bf16.msra.mxu0 %v2653
    %3567 = vmatprep.subr.bf16.mxu0 0
    %3568 = vmatpush1.bf16.msra.mxu0 %v2656
    %3569 = vmatprep.subr.bf16.mxu0 0
    %3570 = vmatpush1.bf16.msra.mxu0 %v2659
    %3571 = vmatprep.subr.bf16.mxu0 0
    %3572 = vmatpush1.bf16.msra.mxu0 %v2662
    %3573 = vmatprep.subr.bf16.mxu0 0
    %3574 = vmatpush1.bf16.msra.mxu0 %v2665
    %3575 = vmatprep.subr.bf16.mxu0 0
    %3576 = vmatpush1.bf16.msra.mxu0 %v2668
    %3577 = vmatprep.subr.bf16.mxu0 0
    %3578 = vmatpush1.bf16.msra.mxu0 %v2671
    %3579 = vmatprep.subr.bf16.mxu0 0
    %3580 = vmatpush1.bf16.msra.mxu0 %v2674
    %3581 = vmatprep.subr.bf16.mxu0 0
    %3582 = vmatpush1.bf16.msra.mxu0 %v2677
    %3583 = vmatprep.subr.bf16.mxu0 0
    %3584 = vmatpush1.bf16.msra.mxu0 %v2680
    %3585 = vmatprep.subr.bf16.mxu0 0
    %3586 = vmatpush1.bf16.msra.mxu0 %v2683
    %3587 = vmatprep.subr.bf16.mxu0 0
    %3588 = vmatpush1.bf16.msra.mxu0 %v2686
    %3589 = vmatprep.subr.bf16.mxu0 0
    %3590 = vmatpush1.bf16.msra.mxu0 %v2689
    %3591 = vmatprep.mubr.bf16.mxu0 %v3472
    %3592 = vmatmul.mubr.bf16.gmra.mrb[0].mxu0 %v3471
    %v3593 = vpop.f32.mrb[0].mxu0
    %v3594 = vadd.f32 0.0, %v3593
    %v3595 = vpop.f32.mrb[0].mxu0
    %v3596 = vpop.f32.mrb[0].mxu0
    %v3597 = vpop.f32.mrb[0].mxu0
    %3598 = vdwg.mxu0
    %3599 = vmatprep.subr.bf16.mxu0 0
    %3600 = vmatpush1.bf16.msra.mxu0 %v2692
    %3601 = vmatprep.subr.bf16.mxu0 0
    %3602 = vmatpush1.bf16.msra.mxu0 %v2695
    %3603 = vmatprep.subr.bf16.mxu0 0
    %3604 = vmatpush1.bf16.msra.mxu0 %v2698
    %3605 = vmatprep.subr.bf16.mxu0 0
    %3606 = vmatpush1.bf16.msra.mxu0 %v2701
    %3607 = vmatprep.subr.bf16.mxu0 0
    %3608 = vmatpush1.bf16.msra.mxu0 %v2704
    %3609 = vmatprep.subr.bf16.mxu0 0
    %3610 = vmatpush1.bf16.msra.mxu0 %v2707
    %3611 = vmatprep.subr.bf16.mxu0 0
    %3612 = vmatpush1.bf16.msra.mxu0 %v2710
    %3613 = vmatprep.subr.bf16.mxu0 0
    %3614 = vmatpush1.bf16.msra.mxu0 %v2713
    %3615 = vmatprep.subr.bf16.mxu0 0
    %3616 = vmatpush1.bf16.msra.mxu0 0
    %3617 = vmatprep.subr.bf16.mxu0 0
    %3618 = vmatpush1.bf16.msra.mxu0 0
    %3619 = vmatprep.subr.bf16.mxu0 0
    %3620 = vmatpush1.bf16.msra.mxu0 0
    %3621 = vmatprep.subr.bf16.mxu0 0
    %3622 = vmatpush1.bf16.msra.mxu0 0
    %3623 = vmatprep.subr.bf16.mxu0 0
    %3624 = vmatpush1.bf16.msra.mxu0 0
    %3625 = vmatprep.subr.bf16.mxu0 0
    %3626 = vmatpush1.bf16.msra.mxu0 0
    %3627 = vmatprep.subr.bf16.mxu0 0
    %3628 = vmatpush1.bf16.msra.mxu0 0
    %3629 = vmatprep.subr.bf16.mxu0 0
    %3630 = vmatpush1.bf16.msra.mxu0 0
    %3631 = vmatprep.mubr.bf16.mxu0 0
    %3632 = vmatmul.mubr.bf16.gmra.mrb[0].mxu0 %v3473
    %v3633 = vpop.f32.mrb[0].mxu0
    %v3634 = vadd.f32 %v3594, %v3633
    %v3635 = vpop.f32.mrb[0].mxu0
    %v3636 = vpop.f32.mrb[0].mxu0
    %v3637 = vpop.f32.mrb[0].mxu0
    %3638 = vdwg.mxu0
    %v3642 = vrot.slane %v3553, 5
    %v3643 = vrot.slane %v3555, 5
    %v3644 = vrot.slane %v3634, 5
    %v3648 = vadd.f32 %v2907, %v3642
    %v3649 = vadd.f32 %v2908, %v3643
    %v3650 = vadd.f32 %v2909, %v3644
    %v3651 = vtanh.pop %v3648
    %v3652 = vtanh.pop %v3649
    %v3653 = vtanh.pop %v3650
    %v3654 = vpack.c.bf16 %v3651, %v3651
    %v3655 = vpack.c.bf16 %v3652, %v3652
    %v3656 = vpack.c.bf16 %v3653, %v3653
    %v3658 = vshrl.u32 %v3654, 16
    %v3660 = vrot.slane %v3658, 1
    %v3662 = vshrl.u32 %v3655, 16
    %v3664 = vrot.slane %v3662, 1
    %v3666 = vshrl.u32 %v3656, 16
    %v3668 = vrot.slane %v3666, 1
    %3672 = vmatprep.subr.bf16.mxu0 %v2643
    %3673 = vmatpush1.bf16.msra.mxu0 %v2642
    %3674 = vmatprep.subr.bf16.mxu0 %v2646
    %3675 = vmatpush1.bf16.msra.mxu0 %v2645
    %3676 = vmatprep.subr.bf16.mxu0 %v2649
    %3677 = vmatpush1.bf16.msra.mxu0 %v2648
    %3678 = vmatprep.subr.bf16.mxu0 %v2652
    %3679 = vmatpush1.bf16.msra.mxu0 %v2651
    %3680 = vmatprep.subr.bf16.mxu0 %v2655
    %3681 = vmatpush1.bf16.msra.mxu0 %v2654
    %3682 = vmatprep.subr.bf16.mxu0 %v2658
    %3683 = vmatpush1.bf16.msra.mxu0 %v2657
    %3684 = vmatprep.subr.bf16.mxu0 %v2661
    %3685 = vmatpush1.bf16.msra.mxu0 %v2660
    %3686 = vmatprep.subr.bf16.mxu0 %v2664
    %3687 = vmatpush1.bf16.msra.mxu0 %v2663
    %3688 = vmatprep.subr.bf16.mxu0 %v2667
    %3689 = vmatpush1.bf16.msra.mxu0 %v2666
    %3690 = vmatprep.subr.bf16.mxu0 %v2670
    %3691 = vmatpush1.bf16.msra.mxu0 %v2669
    %3692 = vmatprep.subr.bf16.mxu0 %v2673
    %3693 = vmatpush1.bf16.msra.mxu0 %v2672
    %3694 = vmatprep.subr.bf16.mxu0 %v2676
    %3695 = vmatpush1.bf16.msra.mxu0 %v2675
    %3696 = vmatprep.subr.bf16.mxu0 %v2679
    %3697 = vmatpush1.bf16.msra.mxu0 %v2678
    %3698 = vmatprep.subr.bf16.mxu0 %v2682
    %3699 = vmatpush1.bf16.msra.mxu0 %v2681
    %3700 = vmatprep.subr.bf16.mxu0 %v2685
    %3701 = vmatpush1.bf16.msra.mxu0 %v2684
    %3702 = vmatprep.subr.bf16.mxu0 %v2688
    %3703 = vmatpush1.bf16.msra.mxu0 %v2687
    %3704 = vmatprep.mubr.bf16.mxu0 %v3664
    %3705 = vmatmul.mubr.bf16.gmra.mrb[0].mxu0 %v3660
    %v3706 = vpop.f32.mrb[0].mxu0
    %v3707 = vadd.f32 0.0, %v3706
    %v3708 = vpop.f32.mrb[0].mxu0
    %v3709 = vadd.f32 0.0, %v3708
    %v3710 = vpop.f32.mrb[0].mxu0
    %v3711 = vpop.f32.mrb[0].mxu0
    %3712 = vdwg.mxu0
    %3713 = vmatprep.subr.bf16.mxu0 %v2691
    %3714 = vmatpush1.bf16.msra.mxu0 %v2690
    %3715 = vmatprep.subr.bf16.mxu0 %v2694
    %3716 = vmatpush1.bf16.msra.mxu0 %v2693
    %3717 = vmatprep.subr.bf16.mxu0 %v2697
    %3718 = vmatpush1.bf16.msra.mxu0 %v2696
    %3719 = vmatprep.subr.bf16.mxu0 %v2700
    %3720 = vmatpush1.bf16.msra.mxu0 %v2699
    %3721 = vmatprep.subr.bf16.mxu0 %v2703
    %3722 = vmatpush1.bf16.msra.mxu0 %v2702
    %3723 = vmatprep.subr.bf16.mxu0 %v2706
    %3724 = vmatpush1.bf16.msra.mxu0 %v2705
    %3725 = vmatprep.subr.bf16.mxu0 %v2709
    %3726 = vmatpush1.bf16.msra.mxu0 %v2708
    %3727 = vmatprep.subr.bf16.mxu0 %v2712
    %3728 = vmatpush1.bf16.msra.mxu0 %v2711
    %3729 = vmatprep.subr.bf16.mxu0 0
    %3730 = vmatpush1.bf16.msra.mxu0 0
    %3731 = vmatprep.subr.bf16.mxu0 0
    %3732 = vmatpush1.bf16.msra.mxu0 0
    %3733 = vmatprep.subr.bf16.mxu0 0
    %3734 = vmatpush1.bf16.msra.mxu0 0
    %3735 = vmatprep.subr.bf16.mxu0 0
    %3736 = vmatpush1.bf16.msra.mxu0 0
    %3737 = vmatprep.subr.bf16.mxu0 0
    %3738 = vmatpush1.bf16.msra.mxu0 0
    %3739 = vmatprep.subr.bf16.mxu0 0
    %3740 = vmatpush1.bf16.msra.mxu0 0
    %3741 = vmatprep.subr.bf16.mxu0 0
    %3742 = vmatpush1.bf16.msra.mxu0 0
    %3743 = vmatprep.subr.bf16.mxu0 0
    %3744 = vmatpush1.bf16.msra.mxu0 0
    %3745 = vmatprep.mubr.bf16.mxu0 0
    %3746 = vmatmul.mubr.bf16.gmra.mrb[0].mxu0 %v3668
    %v3747 = vpop.f32.mrb[0].mxu0
    %v3748 = vadd.f32 %v3707, %v3747
    %v3749 = vpop.f32.mrb[0].mxu0
    %v3750 = vadd.f32 %v3709, %v3749
    %v3751 = vpop.f32.mrb[0].mxu0
    %v3752 = vpop.f32.mrb[0].mxu0
    %3753 = vdwg.mxu0
    %3754 = vmatprep.subr.bf16.mxu0 0
    %3755 = vmatpush1.bf16.msra.mxu0 %v2644
    %3756 = vmatprep.subr.bf16.mxu0 0
    %3757 = vmatpush1.bf16.msra.mxu0 %v2647
    %3758 = vmatprep.subr.bf16.mxu0 0
    %3759 = vmatpush1.bf16.msra.mxu0 %v2650
    %3760 = vmatprep.subr.bf16.mxu0 0
    %3761 = vmatpush1.bf16.msra.mxu0 %v2653
    %3762 = vmatprep.subr.bf16.mxu0 0
    %3763 = vmatpush1.bf16.msra.mxu0 %v2656
    %3764 = vmatprep.subr.bf16.mxu0 0
    %3765 = vmatpush1.bf16.msra.mxu0 %v2659
    %3766 = vmatprep.subr.bf16.mxu0 0
    %3767 = vmatpush1.bf16.msra.mxu0 %v2662
    %3768 = vmatprep.subr.bf16.mxu0 0
    %3769 = vmatpush1.bf16.msra.mxu0 %v2665
    %3770 = vmatprep.subr.bf16.mxu0 0
    %3771 = vmatpush1.bf16.msra.mxu0 %v2668
    %3772 = vmatprep.subr.bf16.mxu0 0
    %3773 = vmatpush1.bf16.msra.mxu0 %v2671
    %3774 = vmatprep.subr.bf16.mxu0 0
    %3775 = vmatpush1.bf16.msra.mxu0 %v2674
    %3776 = vmatprep.subr.bf16.mxu0 0
    %3777 = vmatpush1.bf16.msra.mxu0 %v2677
    %3778 = vmatprep.subr.bf16.mxu0 0
    %3779 = vmatpush1.bf16.msra.mxu0 %v2680
    %3780 = vmatprep.subr.bf16.mxu0 0
    %3781 = vmatpush1.bf16.msra.mxu0 %v2683
    %3782 = vmatprep.subr.bf16.mxu0 0
    %3783 = vmatpush1.bf16.msra.mxu0 %v2686
    %3784 = vmatprep.subr.bf16.mxu0 0
    %3785 = vmatpush1.bf16.msra.mxu0 %v2689
    %3786 = vmatprep.mubr.bf16.mxu0 %v3664
    %3787 = vmatmul.mubr.bf16.gmra.mrb[0].mxu0 %v3660
    %v3788 = vpop.f32.mrb[0].mxu0
    %v3789 = vadd.f32 0.0, %v3788
    %v3790 = vpop.f32.mrb[0].mxu0
    %v3791 = vpop.f32.mrb[0].mxu0
    %v3792 = vpop.f32.mrb[0].mxu0
    %3793 = vdwg.mxu0
    %3794 = vmatprep.subr.bf16.mxu0 0
    %3795 = vmatpush1.bf16.msra.mxu0 %v2692
    %3796 = vmatprep.subr.bf16.mxu0 0
    %3797 = vmatpush1.bf16.msra.mxu0 %v2695
    %3798 = vmatprep.subr.bf16.mxu0 0
    %3799 = vmatpush1.bf16.msra.mxu0 %v2698
    %3800 = vmatprep.subr.bf16.mxu0 0
    %3801 = vmatpush1.bf16.msra.mxu0 %v2701
    %3802 = vmatprep.subr.bf16.mxu0 0
    %3803 = vmatpush1.bf16.msra.mxu0 %v2704
    %3804 = vmatprep.subr.bf16.mxu0 0
    %3805 = vmatpush1.bf16.msra.mxu0 %v2707
    %3806 = vmatprep.subr.bf16.mxu0 0
    %3807 = vmatpush1.bf16.msra.mxu0 %v2710
    %3808 = vmatprep.subr.bf16.mxu0 0
    %3809 = vmatpush1.bf16.msra.mxu0 %v2713
    %3810 = vmatprep.subr.bf16.mxu0 0
    %3811 = vmatpush1.bf16.msra.mxu0 0
    %3812 = vmatprep.subr.bf16.mxu0 0
    %3813 = vmatpush1.bf16.msra.mxu0 0
    %3814 = vmatprep.subr.bf16.mxu0 0
    %3815 = vmatpush1.bf16.msra.mxu0 0
    %3816 = vmatprep.subr.bf16.mxu0 0
    %3817 = vmatpush1.bf16.msra.mxu0 0
    %3818 = vmatprep.subr.bf16.mxu0 0
    %3819 = vmatpush1.bf16.msra.mxu0 0
    %3820 = vmatprep.subr.bf16.mxu0 0
    %3821 = vmatpush1.bf16.msra.mxu0 0
    %3822 = vmatprep.subr.bf16.mxu0 0
    %3823 = vmatpush1.bf16.msra.mxu0 0
    %3824 = vmatprep.subr.bf16.mxu0 0
    %3825 = vmatpush1.bf16.msra.mxu0 0
    %3826 = vmatprep.mubr.bf16.mxu0 0
    %3827 = vmatmul.mubr.bf16.gmra.mrb[0].mxu0 %v3668
    %v3828 = vpop.f32.mrb[0].mxu0
    %v3829 = vadd.f32 %v3789, %v3828
    %v3830 = vpop.f32.mrb[0].mxu0
    %v3831 = vpop.f32.mrb[0].mxu0
    %v3832 = vpop.f32.mrb[0].mxu0
    %3833 = vdwg.mxu0
    %v3837 = vrot.slane %v3748, 4
    %v3838 = vrot.slane %v3750, 4
    %v3839 = vrot.slane %v3829, 4
    %v3843 = vadd.f32 %v2907, %v3837
    %v3844 = vadd.f32 %v2908, %v3838
    %v3845 = vadd.f32 %v2909, %v3839
    %v3846 = vtanh.pop %v3843
    %v3847 = vtanh.pop %v3844
    %v3848 = vtanh.pop %v3845
    %v3849 = vpack.c.bf16 %v3846, %v3846
    %v3850 = vpack.c.bf16 %v3847, %v3847
    %v3851 = vpack.c.bf16 %v3848, %v3848
    %v3855 = vrot.slane %v3849, 2
    %v3856 = vrot.slane %v3850, 2
    %v3857 = vrot.slane %v3851, 2
    %3861 = vmatprep.subr.bf16.mxu0 %v2643
    %3862 = vmatpush1.bf16.msra.mxu0 %v2642
    %3863 = vmatprep.subr.bf16.mxu0 %v2646
    %3864 = vmatpush1.bf16.msra.mxu0 %v2645
    %3865 = vmatprep.subr.bf16.mxu0 %v2649
    %3866 = vmatpush1.bf16.msra.mxu0 %v2648
    %3867 = vmatprep.subr.bf16.mxu0 %v2652
    %3868 = vmatpush1.bf16.msra.mxu0 %v2651
    %3869 = vmatprep.subr.bf16.mxu0 %v2655
    %3870 = vmatpush1.bf16.msra.mxu0 %v2654
    %3871 = vmatprep.subr.bf16.mxu0 %v2658
    %3872 = vmatpush1.bf16.msra.mxu0 %v2657
    %3873 = vmatprep.subr.bf16.mxu0 %v2661
    %3874 = vmatpush1.bf16.msra.mxu0 %v2660
    %3875 = vmatprep.subr.bf16.mxu0 %v2664
    %3876 = vmatpush1.bf16.msra.mxu0 %v2663
    %3877 = vmatprep.subr.bf16.mxu0 %v2667
    %3878 = vmatpush1.bf16.msra.mxu0 %v2666
    %3879 = vmatprep.subr.bf16.mxu0 %v2670
    %3880 = vmatpush1.bf16.msra.mxu0 %v2669
    %3881 = vmatprep.subr.bf16.mxu0 %v2673
    %3882 = vmatpush1.bf16.msra.mxu0 %v2672
    %3883 = vmatprep.subr.bf16.mxu0 %v2676
    %3884 = vmatpush1.bf16.msra.mxu0 %v2675
    %3885 = vmatprep.subr.bf16.mxu0 %v2679
    %3886 = vmatpush1.bf16.msra.mxu0 %v2678
    %3887 = vmatprep.subr.bf16.mxu0 %v2682
    %3888 = vmatpush1.bf16.msra.mxu0 %v2681
    %3889 = vmatprep.subr.bf16.mxu0 %v2685
    %3890 = vmatpush1.bf16.msra.mxu0 %v2684
    %3891 = vmatprep.subr.bf16.mxu0 %v2688
    %3892 = vmatpush1.bf16.msra.mxu0 %v2687
    %3893 = vmatprep.mubr.bf16.mxu0 %v3856
    %3894 = vmatmul.mubr.bf16.gmra.mrb[0].mxu0 %v3855
    %v3895 = vpop.f32.mrb[0].mxu0
    %v3896 = vadd.f32 0.0, %v3895
    %v3897 = vpop.f32.mrb[0].mxu0
    %v3898 = vadd.f32 0.0, %v3897
    %v3899 = vpop.f32.mrb[0].mxu0
    %v3900 = vpop.f32.mrb[0].mxu0
    %3901 = vdwg.mxu0
    %3902 = vmatprep.subr.bf16.mxu0 %v2691
    %3903 = vmatpush1.bf16.msra.mxu0 %v2690
    %3904 = vmatprep.subr.bf16.mxu0 %v2694
    %3905 = vmatpush1.bf16.msra.mxu0 %v2693
    %3906 = vmatprep.subr.bf16.mxu0 %v2697
    %3907 = vmatpush1.bf16.msra.mxu0 %v2696
    %3908 = vmatprep.subr.bf16.mxu0 %v2700
    %3909 = vmatpush1.bf16.msra.mxu0 %v2699
    %3910 = vmatprep.subr.bf16.mxu0 %v2703
    %3911 = vmatpush1.bf16.msra.mxu0 %v2702
    %3912 = vmatprep.subr.bf16.mxu0 %v2706
    %3913 = vmatpush1.bf16.msra.mxu0 %v2705
    %3914 = vmatprep.subr.bf16.mxu0 %v2709
    %3915 = vmatpush1.bf16.msra.mxu0 %v2708
    %3916 = vmatprep.subr.bf16.mxu0 %v2712
    %3917 = vmatpush1.bf16.msra.mxu0 %v2711
    %3918 = vmatprep.subr.bf16.mxu0 0
    %3919 = vmatpush1.bf16.msra.mxu0 0
    %3920 = vmatprep.subr.bf16.mxu0 0
    %3921 = vmatpush1.bf16.msra.mxu0 0
    %3922 = vmatprep.subr.bf16.mxu0 0
    %3923 = vmatpush1.bf16.msra.mxu0 0
    %3924 = vmatprep.subr.bf16.mxu0 0
    %3925 = vmatpush1.bf16.msra.mxu0 0
    %3926 = vmatprep.subr.bf16.mxu0 0
    %3927 = vmatpush1.bf16.msra.mxu0 0
    %3928 = vmatprep.subr.bf16.mxu0 0
    %3929 = vmatpush1.bf16.msra.mxu0 0
    %3930 = vmatprep.subr.bf16.mxu0 0
    %3931 = vmatpush1.bf16.msra.mxu0 0
    %3932 = vmatprep.subr.bf16.mxu0 0
    %3933 = vmatpush1.bf16.msra.mxu0 0
    %3934 = vmatprep.mubr.bf16.mxu0 0
    %3935 = vmatmul.mubr.bf16.gmra.mrb[0].mxu0 %v3857
    %v3936 = vpop.f32.mrb[0].mxu0
    %v3937 = vadd.f32 %v3896, %v3936
    %v3938 = vpop.f32.mrb[0].mxu0
    %v3939 = vadd.f32 %v3898, %v3938
    %v3940 = vpop.f32.mrb[0].mxu0
    %v3941 = vpop.f32.mrb[0].mxu0
    %3942 = vdwg.mxu0
    %3943 = vmatprep.subr.bf16.mxu0 0
    %3944 = vmatpush1.bf16.msra.mxu0 %v2644
    %3945 = vmatprep.subr.bf16.mxu0 0
    %3946 = vmatpush1.bf16.msra.mxu0 %v2647
    %3947 = vmatprep.subr.bf16.mxu0 0
    %3948 = vmatpush1.bf16.msra.mxu0 %v2650
    %3949 = vmatprep.subr.bf16.mxu0 0
    %3950 = vmatpush1.bf16.msra.mxu0 %v2653
    %3951 = vmatprep.subr.bf16.mxu0 0
    %3952 = vmatpush1.bf16.msra.mxu0 %v2656
    %3953 = vmatprep.subr.bf16.mxu0 0
    %3954 = vmatpush1.bf16.msra.mxu0 %v2659
    %3955 = vmatprep.subr.bf16.mxu0 0
    %3956 = vmatpush1.bf16.msra.mxu0 %v2662
    %3957 = vmatprep.subr.bf16.mxu0 0
    %3958 = vmatpush1.bf16.msra.mxu0 %v2665
    %3959 = vmatprep.subr.bf16.mxu0 0
    %3960 = vmatpush1.bf16.msra.mxu0 %v2668
    %3961 = vmatprep.subr.bf16.mxu0 0
    %3962 = vmatpush1.bf16.msra.mxu0 %v2671
    %3963 = vmatprep.subr.bf16.mxu0 0
    %3964 = vmatpush1.bf16.msra.mxu0 %v2674
    %3965 = vmatprep.subr.bf16.mxu0 0
    %3966 = vmatpush1.bf16.msra.mxu0 %v2677
    %3967 = vmatprep.subr.bf16.mxu0 0
    %3968 = vmatpush1.bf16.msra.mxu0 %v2680
    %3969 = vmatprep.subr.bf16.mxu0 0
    %3970 = vmatpush1.bf16.msra.mxu0 %v2683
    %3971 = vmatprep.subr.bf16.mxu0 0
    %3972 = vmatpush1.bf16.msra.mxu0 %v2686
    %3973 = vmatprep.subr.bf16.mxu0 0
    %3974 = vmatpush1.bf16.msra.mxu0 %v2689
    %3975 = vmatprep.mubr.bf16.mxu0 %v3856
    %3976 = vmatmul.mubr.bf16.gmra.mrb[0].mxu0 %v3855
    %v3977 = vpop.f32.mrb[0].mxu0
    %v3978 = vadd.f32 0.0, %v3977
    %v3979 = vpop.f32.mrb[0].mxu0
    %v3980 = vpop.f32.mrb[0].mxu0
    %v3981 = vpop.f32.mrb[0].mxu0
    %3982 = vdwg.mxu0
    %3983 = vmatprep.subr.bf16.mxu0 0
    %3984 = vmatpush1.bf16.msra.mxu0 %v2692
    %3985 = vmatprep.subr.bf16.mxu0 0
    %3986 = vmatpush1.bf16.msra.mxu0 %v2695
    %3987 = vmatprep.subr.bf16.mxu0 0
    %3988 = vmatpush1.bf16.msra.mxu0 %v2698
    %3989 = vmatprep.subr.bf16.mxu0 0
    %3990 = vmatpush1.bf16.msra.mxu0 %v2701
    %3991 = vmatprep.subr.bf16.mxu0 0
    %3992 = vmatpush1.bf16.msra.mxu0 %v2704
    %3993 = vmatprep.subr.bf16.mxu0 0
    %3994 = vmatpush1.bf16.msra.mxu0 %v2707
    %3995 = vmatprep.subr.bf16.mxu0 0
    %3996 = vmatpush1.bf16.msra.mxu0 %v2710
    %3997 = vmatprep.subr.bf16.mxu0 0
    %3998 = vmatpush1.bf16.msra.mxu0 %v2713
    %3999 = vmatprep.subr.bf16.mxu0 0
    %4000 = vmatpush1.bf16.msra.mxu0 0
    %4001 = vmatprep.subr.bf16.mxu0 0
    %4002 = vmatpush1.bf16.msra.mxu0 0
    %4003 = vmatprep.subr.bf16.mxu0 0
    %4004 = vmatpush1.bf16.msra.mxu0 0
    %4005 = vmatprep.subr.bf16.mxu0 0
    %4006 = vmatpush1.bf16.msra.mxu0 0
    %4007 = vmatprep.subr.bf16.mxu0 0
    %4008 = vmatpush1.bf16.msra.mxu0 0
    %4009 = vmatprep.subr.bf16.mxu0 0
    %4010 = vmatpush1.bf16.msra.mxu0 0
    %4011 = vmatprep.subr.bf16.mxu0 0
    %4012 = vmatpush1.bf16.msra.mxu0 0
    %4013 = vmatprep.subr.bf16.mxu0 0
    %4014 = vmatpush1.bf16.msra.mxu0 0
    %4015 = vmatprep.mubr.bf16.mxu0 0
    %4016 = vmatmul.mubr.bf16.gmra.mrb[0].mxu0 %v3857
    %v4017 = vpop.f32.mrb[0].mxu0
    %v4018 = vadd.f32 %v3978, %v4017
    %v4019 = vpop.f32.mrb[0].mxu0
    %v4020 = vpop.f32.mrb[0].mxu0
    %v4021 = vpop.f32.mrb[0].mxu0
    %4022 = vdwg.mxu0
    %v4026 = vrot.slane %v3937, 3
    %v4027 = vrot.slane %v3939, 3
    %v4028 = vrot.slane %v4018, 3
    %v4032 = vadd.f32 %v2907, %v4026
    %v4033 = vadd.f32 %v2908, %v4027
    %v4034 = vadd.f32 %v2909, %v4028
    %v4035 = vtanh.pop %v4032
    %v4036 = vtanh.pop %v4033
    %v4037 = vtanh.pop %v4034
    %v4038 = vpack.c.bf16 %v4035, %v4035
    %v4039 = vpack.c.bf16 %v4036, %v4036
    %v4040 = vpack.c.bf16 %v4037, %v4037
    %v4042 = vshrl.u32 %v4038, 16
    %v4044 = vrot.slane %v4042, 2
    %v4046 = vshrl.u32 %v4039, 16
    %v4048 = vrot.slane %v4046, 2
    %v4050 = vshrl.u32 %v4040, 16
    %v4052 = vrot.slane %v4050, 2
    %4056 = vmatprep.subr.bf16.mxu0 %v2643
    %4057 = vmatpush1.bf16.msra.mxu0 %v2642
    %4058 = vmatprep.subr.bf16.mxu0 %v2646
    %4059 = vmatpush1.bf16.msra.mxu0 %v2645
    %4060 = vmatprep.subr.bf16.mxu0 %v2649
    %4061 = vmatpush1.bf16.msra.mxu0 %v2648
    %4062 = vmatprep.subr.bf16.mxu0 %v2652
    %4063 = vmatpush1.bf16.msra.mxu0 %v2651
    %4064 = vmatprep.subr.bf16.mxu0 %v2655
    %4065 = vmatpush1.bf16.msra.mxu0 %v2654
    %4066 = vmatprep.subr.bf16.mxu0 %v2658
    %4067 = vmatpush1.bf16.msra.mxu0 %v2657
    %4068 = vmatprep.subr.bf16.mxu0 %v2661
    %4069 = vmatpush1.bf16.msra.mxu0 %v2660
    %4070 = vmatprep.subr.bf16.mxu0 %v2664
    %4071 = vmatpush1.bf16.msra.mxu0 %v2663
    %4072 = vmatprep.subr.bf16.mxu0 %v2667
    %4073 = vmatpush1.bf16.msra.mxu0 %v2666
    %4074 = vmatprep.subr.bf16.mxu0 %v2670
    %4075 = vmatpush1.bf16.msra.mxu0 %v2669
    %4076 = vmatprep.subr.bf16.mxu0 %v2673
    %4077 = vmatpush1.bf16.msra.mxu0 %v2672
    %4078 = vmatprep.subr.bf16.mxu0 %v2676
    %4079 = vmatpush1.bf16.msra.mxu0 %v2675
    %4080 = vmatprep.subr.bf16.mxu0 %v2679
    %4081 = vmatpush1.bf16.msra.mxu0 %v2678
    %4082 = vmatprep.subr.bf16.mxu0 %v2682
    %4083 = vmatpush1.bf16.msra.mxu0 %v2681
    %4084 = vmatprep.subr.bf16.mxu0 %v2685
    %4085 = vmatpush1.bf16.msra.mxu0 %v2684
    %4086 = vmatprep.subr.bf16.mxu0 %v2688
    %4087 = vmatpush1.bf16.msra.mxu0 %v2687
    %4088 = vmatprep.mubr.bf16.mxu0 %v4048
    %4089 = vmatmul.mubr.bf16.gmra.mrb[0].mxu0 %v4044
    %v4090 = vpop.f32.mrb[0].mxu0
    %v4091 = vadd.f32 0.0, %v4090
    %v4092 = vpop.f32.mrb[0].mxu0
    %v4093 = vadd.f32 0.0, %v4092
    %v4094 = vpop.f32.mrb[0].mxu0
    %v4095 = vpop.f32.mrb[0].mxu0
    %4096 = vdwg.mxu0
    %4097 = vmatprep.subr.bf16.mxu0 %v2691
    %4098 = vmatpush1.bf16.msra.mxu0 %v2690
    %4099 = vmatprep.subr.bf16.mxu0 %v2694
    %4100 = vmatpush1.bf16.msra.mxu0 %v2693
    %4101 = vmatprep.subr.bf16.mxu0 %v2697
    %4102 = vmatpush1.bf16.msra.mxu0 %v2696
    %4103 = vmatprep.subr.bf16.mxu0 %v2700
    %4104 = vmatpush1.bf16.msra.mxu0 %v2699
    %4105 = vmatprep.subr.bf16.mxu0 %v2703
    %4106 = vmatpush1.bf16.msra.mxu0 %v2702
    %4107 = vmatprep.subr.bf16.mxu0 %v2706
    %4108 = vmatpush1.bf16.msra.mxu0 %v2705
    %4109 = vmatprep.subr.bf16.mxu0 %v2709
    %4110 = vmatpush1.bf16.msra.mxu0 %v2708
    %4111 = vmatprep.subr.bf16.mxu0 %v2712
    %4112 = vmatpush1.bf16.msra.mxu0 %v2711
    %4113 = vmatprep.subr.bf16.mxu0 0
    %4114 = vmatpush1.bf16.msra.mxu0 0
    %4115 = vmatprep.subr.bf16.mxu0 0
    %4116 = vmatpush1.bf16.msra.mxu0 0
    %4117 = vmatprep.subr.bf16.mxu0 0
    %4118 = vmatpush1.bf16.msra.mxu0 0
    %4119 = vmatprep.subr.bf16.mxu0 0
    %4120 = vmatpush1.bf16.msra.mxu0 0
    %4121 = vmatprep.subr.bf16.mxu0 0
    %4122 = vmatpush1.bf16.msra.mxu0 0
    %4123 = vmatprep.subr.bf16.mxu0 0
    %4124 = vmatpush1.bf16.msra.mxu0 0
    %4125 = vmatprep.subr.bf16.mxu0 0
    %4126 = vmatpush1.bf16.msra.mxu0 0
    %4127 = vmatprep.subr.bf16.mxu0 0
    %4128 = vmatpush1.bf16.msra.mxu0 0
    %4129 = vmatprep.mubr.bf16.mxu0 0
    %4130 = vmatmul.mubr.bf16.gmra.mrb[0].mxu0 %v4052
    %v4131 = vpop.f32.mrb[0].mxu0
    %v4132 = vadd.f32 %v4091, %v4131
    %v4133 = vpop.f32.mrb[0].mxu0
    %v4134 = vadd.f32 %v4093, %v4133
    %v4135 = vpop.f32.mrb[0].mxu0
    %v4136 = vpop.f32.mrb[0].mxu0
    %4137 = vdwg.mxu0
    %4138 = vmatprep.subr.bf16.mxu0 0
    %4139 = vmatpush1.bf16.msra.mxu0 %v2644
    %4140 = vmatprep.subr.bf16.mxu0 0
    %4141 = vmatpush1.bf16.msra.mxu0 %v2647
    %4142 = vmatprep.subr.bf16.mxu0 0
    %4143 = vmatpush1.bf16.msra.mxu0 %v2650
    %4144 = vmatprep.subr.bf16.mxu0 0
    %4145 = vmatpush1.bf16.msra.mxu0 %v2653
    %4146 = vmatprep.subr.bf16.mxu0 0
    %4147 = vmatpush1.bf16.msra.mxu0 %v2656
    %4148 = vmatprep.subr.bf16.mxu0 0
    %4149 = vmatpush1.bf16.msra.mxu0 %v2659
    %4150 = vmatprep.subr.bf16.mxu0 0
    %4151 = vmatpush1.bf16.msra.mxu0 %v2662
    %4152 = vmatprep.subr.bf16.mxu0 0
    %4153 = vmatpush1.bf16.msra.mxu0 %v2665
    %4154 = vmatprep.subr.bf16.mxu0 0
    %4155 = vmatpush1.bf16.msra.mxu0 %v2668
    %4156 = vmatprep.subr.bf16.mxu0 0
    %4157 = vmatpush1.bf16.msra.mxu0 %v2671
    %4158 = vmatprep.subr.bf16.mxu0 0
    %4159 = vmatpush1.bf16.msra.mxu0 %v2674
    %4160 = vmatprep.subr.bf16.mxu0 0
    %4161 = vmatpush1.bf16.msra.mxu0 %v2677
    %4162 = vmatprep.subr.bf16.mxu0 0
    %4163 = vmatpush1.bf16.msra.mxu0 %v2680
    %4164 = vmatprep.subr.bf16.mxu0 0
    %4165 = vmatpush1.bf16.msra.mxu0 %v2683
    %4166 = vmatprep.subr.bf16.mxu0 0
    %4167 = vmatpush1.bf16.msra.mxu0 %v2686
    %4168 = vmatprep.subr.bf16.mxu0 0
    %4169 = vmatpush1.bf16.msra.mxu0 %v2689
    %4170 = vmatprep.mubr.bf16.mxu0 %v4048
    %4171 = vmatmul.mubr.bf16.gmra.mrb[0].mxu0 %v4044
    %v4172 = vpop.f32.mrb[0].mxu0
    %v4173 = vadd.f32 0.0, %v4172
    %v4174 = vpop.f32.mrb[0].mxu0
    %v4175 = vpop.f32.mrb[0].mxu0
    %v4176 = vpop.f32.mrb[0].mxu0
    %4177 = vdwg.mxu0
    %4178 = vmatprep.subr.bf16.mxu0 0
    %4179 = vmatpush1.bf16.msra.mxu0 %v2692
    %4180 = vmatprep.subr.bf16.mxu0 0
    %4181 = vmatpush1.bf16.msra.mxu0 %v2695
    %4182 = vmatprep.subr.bf16.mxu0 0
    %4183 = vmatpush1.bf16.msra.mxu0 %v2698
    %4184 = vmatprep.subr.bf16.mxu0 0
    %4185 = vmatpush1.bf16.msra.mxu0 %v2701
    %4186 = vmatprep.subr.bf16.mxu0 0
    %4187 = vmatpush1.bf16.msra.mxu0 %v2704
    %4188 = vmatprep.subr.bf16.mxu0 0
    %4189 = vmatpush1.bf16.msra.mxu0 %v2707
    %4190 = vmatprep.subr.bf16.mxu0 0
    %4191 = vmatpush1.bf16.msra.mxu0 %v2710
    %4192 = vmatprep.subr.bf16.mxu0 0
    %4193 = vmatpush1.bf16.msra.mxu0 %v2713
    %4194 = vmatprep.subr.bf16.mxu0 0
    %4195 = vmatpush1.bf16.msra.mxu0 0
    %4196 = vmatprep.subr.bf16.mxu0 0
    %4197 = vmatpush1.bf16.msra.mxu0 0
    %4198 = vmatprep.subr.bf16.mxu0 0
    %4199 = vmatpush1.bf16.msra.mxu0 0
    %4200 = vmatprep.subr.bf16.mxu0 0
    %4201 = vmatpush1.bf16.msra.mxu0 0
    %4202 = vmatprep.subr.bf16.mxu0 0
    %4203 = vmatpush1.bf16.msra.mxu0 0
    %4204 = vmatprep.subr.bf16.mxu0 0
    %4205 = vmatpush1.bf16.msra.mxu0 0
    %4206 = vmatprep.subr.bf16.mxu0 0
    %4207 = vmatpush1.bf16.msra.mxu0 0
    %4208 = vmatprep.subr.bf16.mxu0 0
    %4209 = vmatpush1.bf16.msra.mxu0 0
    %4210 = vmatprep.mubr.bf16.mxu0 0
    %4211 = vmatmul.mubr.bf16.gmra.mrb[0].mxu0 %v4052
    %v4212 = vpop.f32.mrb[0].mxu0
    %v4213 = vadd.f32 %v4173, %v4212
    %v4214 = vpop.f32.mrb[0].mxu0
    %v4215 = vpop.f32.mrb[0].mxu0
    %v4216 = vpop.f32.mrb[0].mxu0
    %4217 = vdwg.mxu0
    %v4221 = vrot.slane %v4132, 2
    %v4222 = vrot.slane %v4134, 2
    %v4223 = vrot.slane %v4213, 2
    %v4227 = vadd.f32 %v2907, %v4221
    %v4228 = vadd.f32 %v2908, %v4222
    %v4229 = vadd.f32 %v2909, %v4223
    %v4230 = vtanh.pop %v4227
    %v4231 = vtanh.pop %v4228
    %v4232 = vtanh.pop %v4229
    %v4233 = vpack.c.bf16 %v4230, %v4230
    %v4234 = vpack.c.bf16 %v4231, %v4231
    %v4235 = vpack.c.bf16 %v4232, %v4232
    %v4239 = vrot.slane %v4233, 3
    %v4240 = vrot.slane %v4234, 3
    %v4241 = vrot.slane %v4235, 3
    %4245 = vmatprep.subr.bf16.mxu0 %v2643
    %4246 = vmatpush1.bf16.msra.mxu0 %v2642
    %4247 = vmatprep.subr.bf16.mxu0 %v2646
    %4248 = vmatpush1.bf16.msra.mxu0 %v2645
    %4249 = vmatprep.subr.bf16.mxu0 %v2649
    %4250 = vmatpush1.bf16.msra.mxu0 %v2648
    %4251 = vmatprep.subr.bf16.mxu0 %v2652
    %4252 = vmatpush1.bf16.msra.mxu0 %v2651
    %4253 = vmatprep.subr.bf16.mxu0 %v2655
    %4254 = vmatpush1.bf16.msra.mxu0 %v2654
    %4255 = vmatprep.subr.bf16.mxu0 %v2658
    %4256 = vmatpush1.bf16.msra.mxu0 %v2657
    %4257 = vmatprep.subr.bf16.mxu0 %v2661
    %4258 = vmatpush1.bf16.msra.mxu0 %v2660
    %4259 = vmatprep.subr.bf16.mxu0 %v2664
    %4260 = vmatpush1.bf16.msra.mxu0 %v2663
    %4261 = vmatprep.subr.bf16.mxu0 %v2667
    %4262 = vmatpush1.bf16.msra.mxu0 %v2666
    %4263 = vmatprep.subr.bf16.mxu0 %v2670
    %4264 = vmatpush1.bf16.msra.mxu0 %v2669
    %4265 = vmatprep.subr.bf16.mxu0 %v2673
    %4266 = vmatpush1.bf16.msra.mxu0 %v2672
    %4267 = vmatprep.subr.bf16.mxu0 %v2676
    %4268 = vmatpush1.bf16.msra.mxu0 %v2675
    %4269 = vmatprep.subr.bf16.mxu0 %v2679
    %4270 = vmatpush1.bf16.msra.mxu0 %v2678
    %4271 = vmatprep.subr.bf16.mxu0 %v2682
    %4272 = vmatpush1.bf16.msra.mxu0 %v2681
    %4273 = vmatprep.subr.bf16.mxu0 %v2685
    %4274 = vmatpush1.bf16.msra.mxu0 %v2684
    %4275 = vmatprep.subr.bf16.mxu0 %v2688
    %4276 = vmatpush1.bf16.msra.mxu0 %v2687
    %4277 = vmatprep.mubr.bf16.mxu0 %v4240
    %4278 = vmatmul.mubr.bf16.gmra.mrb[0].mxu0 %v4239
    %v4279 = vpop.f32.mrb[0].mxu0
    %v4280 = vadd.f32 0.0, %v4279
    %v4281 = vpop.f32.mrb[0].mxu0
    %v4282 = vadd.f32 0.0, %v4281
    %v4283 = vpop.f32.mrb[0].mxu0
    %v4284 = vpop.f32.mrb[0].mxu0
    %4285 = vdwg.mxu0
    %4286 = vmatprep.subr.bf16.mxu0 %v2691
    %4287 = vmatpush1.bf16.msra.mxu0 %v2690
    %4288 = vmatprep.subr.bf16.mxu0 %v2694
    %4289 = vmatpush1.bf16.msra.mxu0 %v2693
    %4290 = vmatprep.subr.bf16.mxu0 %v2697
    %4291 = vmatpush1.bf16.msra.mxu0 %v2696
    %4292 = vmatprep.subr.bf16.mxu0 %v2700
    %4293 = vmatpush1.bf16.msra.mxu0 %v2699
    %4294 = vmatprep.subr.bf16.mxu0 %v2703
    %4295 = vmatpush1.bf16.msra.mxu0 %v2702
    %4296 = vmatprep.subr.bf16.mxu0 %v2706
    %4297 = vmatpush1.bf16.msra.mxu0 %v2705
    %4298 = vmatprep.subr.bf16.mxu0 %v2709
    %4299 = vmatpush1.bf16.msra.mxu0 %v2708
    %4300 = vmatprep.subr.bf16.mxu0 %v2712
    %4301 = vmatpush1.bf16.msra.mxu0 %v2711
    %4302 = vmatprep.subr.bf16.mxu0 0
    %4303 = vmatpush1.bf16.msra.mxu0 0
    %4304 = vmatprep.subr.bf16.mxu0 0
    %4305 = vmatpush1.bf16.msra.mxu0 0
    %4306 = vmatprep.subr.bf16.mxu0 0
    %4307 = vmatpush1.bf16.msra.mxu0 0
    %4308 = vmatprep.subr.bf16.mxu0 0
    %4309 = vmatpush1.bf16.msra.mxu0 0
    %4310 = vmatprep.subr.bf16.mxu0 0
    %4311 = vmatpush1.bf16.msra.mxu0 0
    %4312 = vmatprep.subr.bf16.mxu0 0
    %4313 = vmatpush1.bf16.msra.mxu0 0
    %4314 = vmatprep.subr.bf16.mxu0 0
    %4315 = vmatpush1.bf16.msra.mxu0 0
    %4316 = vmatprep.subr.bf16.mxu0 0
    %4317 = vmatpush1.bf16.msra.mxu0 0
    %4318 = vmatprep.mubr.bf16.mxu0 0
    %4319 = vmatmul.mubr.bf16.gmra.mrb[0].mxu0 %v4241
    %v4320 = vpop.f32.mrb[0].mxu0
    %v4321 = vadd.f32 %v4280, %v4320
    %v4322 = vpop.f32.mrb[0].mxu0
    %v4323 = vadd.f32 %v4282, %v4322
    %v4324 = vpop.f32.mrb[0].mxu0
    %v4325 = vpop.f32.mrb[0].mxu0
    %4326 = vdwg.mxu0
    %4327 = vmatprep.subr.bf16.mxu0 0
    %4328 = vmatpush1.bf16.msra.mxu0 %v2644
    %4329 = vmatprep.subr.bf16.mxu0 0
    %4330 = vmatpush1.bf16.msra.mxu0 %v2647
    %4331 = vmatprep.subr.bf16.mxu0 0
    %4332 = vmatpush1.bf16.msra.mxu0 %v2650
    %4333 = vmatprep.subr.bf16.mxu0 0
    %4334 = vmatpush1.bf16.msra.mxu0 %v2653
    %4335 = vmatprep.subr.bf16.mxu0 0
    %4336 = vmatpush1.bf16.msra.mxu0 %v2656
    %4337 = vmatprep.subr.bf16.mxu0 0
    %4338 = vmatpush1.bf16.msra.mxu0 %v2659
    %4339 = vmatprep.subr.bf16.mxu0 0
    %4340 = vmatpush1.bf16.msra.mxu0 %v2662
    %4341 = vmatprep.subr.bf16.mxu0 0
    %4342 = vmatpush1.bf16.msra.mxu0 %v2665
    %4343 = vmatprep.subr.bf16.mxu0 0
    %4344 = vmatpush1.bf16.msra.mxu0 %v2668
    %4345 = vmatprep.subr.bf16.mxu0 0
    %4346 = vmatpush1.bf16.msra.mxu0 %v2671
    %4347 = vmatprep.subr.bf16.mxu0 0
    %4348 = vmatpush1.bf16.msra.mxu0 %v2674
    %4349 = vmatprep.subr.bf16.mxu0 0
    %4350 = vmatpush1.bf16.msra.mxu0 %v2677
    %4351 = vmatprep.subr.bf16.mxu0 0
    %4352 = vmatpush1.bf16.msra.mxu0 %v2680
    %4353 = vmatprep.subr.bf16.mxu0 0
    %4354 = vmatpush1.bf16.msra.mxu0 %v2683
    %4355 = vmatprep.subr.bf16.mxu0 0
    %4356 = vmatpush1.bf16.msra.mxu0 %v2686
    %4357 = vmatprep.subr.bf16.mxu0 0
    %4358 = vmatpush1.bf16.msra.mxu0 %v2689
    %4359 = vmatprep.mubr.bf16.mxu0 %v4240
    %4360 = vmatmul.mubr.bf16.gmra.mrb[0].mxu0 %v4239
    %v4361 = vpop.f32.mrb[0].mxu0
    %v4362 = vadd.f32 0.0, %v4361
    %v4363 = vpop.f32.mrb[0].mxu0
    %v4364 = vpop.f32.mrb[0].mxu0
    %v4365 = vpop.f32.mrb[0].mxu0
    %4366 = vdwg.mxu0
    %4367 = vmatprep.subr.bf16.mxu0 0
    %4368 = vmatpush1.bf16.msra.mxu0 %v2692
    %4369 = vmatprep.subr.bf16.mxu0 0
    %4370 = vmatpush1.bf16.msra.mxu0 %v2695
    %4371 = vmatprep.subr.bf16.mxu0 0
    %4372 = vmatpush1.bf16.msra.mxu0 %v2698
    %4373 = vmatprep.subr.bf16.mxu0 0
    %4374 = vmatpush1.bf16.msra.mxu0 %v2701
    %4375 = vmatprep.subr.bf16.mxu0 0
    %4376 = vmatpush1.bf16.msra.mxu0 %v2704
    %4377 = vmatprep.subr.bf16.mxu0 0
    %4378 = vmatpush1.bf16.msra.mxu0 %v2707
    %4379 = vmatprep.subr.bf16.mxu0 0
    %4380 = vmatpush1.bf16.msra.mxu0 %v2710
    %4381 = vmatprep.subr.bf16.mxu0 0
    %4382 = vmatpush1.bf16.msra.mxu0 %v2713
    %4383 = vmatprep.subr.bf16.mxu0 0
    %4384 = vmatpush1.bf16.msra.mxu0 0
    %4385 = vmatprep.subr.bf16.mxu0 0
    %4386 = vmatpush1.bf16.msra.mxu0 0
    %4387 = vmatprep.subr.bf16.mxu0 0
    %4388 = vmatpush1.bf16.msra.mxu0 0
    %4389 = vmatprep.subr.bf16.mxu0 0
    %4390 = vmatpush1.bf16.msra.mxu0 0
    %4391 = vmatprep.subr.bf16.mxu0 0
    %4392 = vmatpush1.bf16.msra.mxu0 0
    %4393 = vmatprep.subr.bf16.mxu0 0
    %4394 = vmatpush1.bf16.msra.mxu0 0
    %4395 = vmatprep.subr.bf16.mxu0 0
    %4396 = vmatpush1.bf16.msra.mxu0 0
    %4397 = vmatprep.subr.bf16.mxu0 0
    %4398 = vmatpush1.bf16.msra.mxu0 0
    %4399 = vmatprep.mubr.bf16.mxu0 0
    %4400 = vmatmul.mubr.bf16.gmra.mrb[0].mxu0 %v4241
    %v4401 = vpop.f32.mrb[0].mxu0
    %v4402 = vadd.f32 %v4362, %v4401
    %v4403 = vpop.f32.mrb[0].mxu0
    %v4404 = vpop.f32.mrb[0].mxu0
    %v4405 = vpop.f32.mrb[0].mxu0
    %4406 = vdwg.mxu0
    %v4410 = vrot.slane %v4321, 1
    %v4411 = vrot.slane %v4323, 1
    %v4412 = vrot.slane %v4402, 1
    %v4416 = vadd.f32 %v2907, %v4410
    %v4417 = vadd.f32 %v2908, %v4411
    %v4418 = vadd.f32 %v2909, %v4412
    %v4419 = vtanh.pop %v4416
    %v4420 = vtanh.pop %v4417
    %v4421 = vtanh.pop %v4418
    %v4422 = vpack.c.bf16 %v4419, %v4419
    %v4423 = vpack.c.bf16 %v4420, %v4420
    %v4424 = vpack.c.bf16 %v4421, %v4421
    %v4425 = vsel %vm2487, %v3093, %v3273
    %v4426 = vsel %vm2487, %v3094, %v3274
    %v4427 = vsel %vm2487, %v3095, %v3275
    %v4430 = vsel %vm2491, %v4425, %v3465
    %v4434 = vsel %vm2491, %v4426, %v3466
    %v4438 = vsel %vm2491, %v4427, %v3467
    %v4440 = vsel %vm2506, %v4430, %v3654
    %v4441 = vsel %vm2506, %v4434, %v3655
    %v4442 = vsel %vm2506, %v4438, %v3656
    %v4445 = vsel %vm2510, %v4440, %v3849
    %v4449 = vsel %vm2510, %v4441, %v3850
    %v4453 = vsel %vm2510, %v4442, %v3851
    %v4455 = vsel %vm2525, %v4445, %v4038
    %v4456 = vsel %vm2525, %v4449, %v4039
    %v4457 = vsel %vm2525, %v4453, %v4040
    %v4460 = vsel %vm2529, %v4455, %v4233
    %v4464 = vsel %vm2529, %v4456, %v4234
    %v4468 = vsel %vm2529, %v4457, %v4235
    %v4470 = vsel %vm2544, %v4460, %v4422
    %v4471 = vsel %vm2544, %v4464, %v4423
    %v4472 = vsel %vm2544, %v4468, %v4424
    %v4476 = vunpack.c.l.b16 %v4470
    %v4477 = vunpack.c.l.b16 %v4471
    %v4478 = vunpack.c.l.b16 %v4472
    %v4479 = vpack.c.b16 %v4477, %v4476
    %v4480 = vpack.c.b16 %v4478, %v4478
    %4483 = vst [vmem:[#allocation4] sm:$0xff] %v4479
    %4484 = vst [vmem:[#allocation4 + $0x8] sm:$0xf] %v4480
    %s4485 = sshll.u32 %s2561, 4
    %4486 = dma.done %s146, %s4485
    %s4487 = sshll.u32 %s2561, 4
    %4488 = dma.done %s181, %s4487
    %v4489 = vld [vmem:[#allocation4] sm:$0xff]
    %v4490 = vld [vmem:[#allocation4 + $0x8] sm:$0xf]
    %v4491 = vmax.bf16 %v4489, 0
    %v4492 = vmax.bf16 %v4490, 0
    %v4493 = vld [vmem:[#allocation7] sm:$0xff]
    %v4494 = vld [vmem:[#allocation7 + $0x8] sm:$0xff]
    %v4495 = vld [vmem:[#allocation7 + $0x10] sm:$0xff]
    %v4496 = vld [vmem:[#allocation7 + $0x18] sm:$0xff]
    %v4497 = vld [vmem:[#allocation7 + $0x20] sm:$0xff]
    %v4498 = vld [vmem:[#allocation7 + $0x28] sm:$0xff]
    %v4499 = vld [vmem:[#allocation7 + $0x30] sm:$0xff]
    %v4500 = vld [vmem:[#allocation7 + $0x38] sm:$0xff]
    %v4501 = vld [vmem:[#allocation7 + $0x40] sm:$0xff]
    %v4502 = vld [vmem:[#allocation7 + $0x48] sm:$0xff]
    %v4503 = vld [vmem:[#allocation7 + $0x50] sm:$0xff]
    %v4504 = vld [vmem:[#allocation7 + $0x58] sm:$0xff]
    %v4505 = vld [vmem:[#allocation7 + $0x60] sm:$0xff]
    %v4506 = vld [vmem:[#allocation7 + $0x68] sm:$0xff]
    %v4507 = vld [vmem:[#allocation7 + $0x70] sm:$0xff]
    %v4508 = vld [vmem:[#allocation7 + $0x78] sm:$0xff]
    %v4509 = vld [vmem:[#allocation7 + $0x80] sm:$0xff]
    %v4510 = vld [vmem:[#allocation7 + $0x88] sm:$0xff]
    %v4511 = vld [vmem:[#allocation7 + $0x90] sm:$0xff]
    %v4512 = vld [vmem:[#allocation7 + $0x98] sm:$0xff]
    %v4513 = vld [vmem:[#allocation7 + $0xa0] sm:$0xff]
    %v4514 = vld [vmem:[#allocation7 + $0xa8] sm:$0xff]
    %v4515 = vld [vmem:[#allocation7 + $0xb0] sm:$0xff]
    %v4516 = vld [vmem:[#allocation7 + $0xb8] sm:$0xff]
    %v4517 = vld [vmem:[#allocation7 + $0xc0] sm:$0xff]
    %v4518 = vld [vmem:[#allocation7 + $0xc8] sm:$0xff]
    %v4519 = vld [vmem:[#allocation7 + $0xd0] sm:$0xff]
    %v4520 = vld [vmem:[#allocation7 + $0xd8] sm:$0xff]
    %v4521 = vld [vmem:[#allocation7 + $0xe0] sm:$0xff]
    %v4522 = vld [vmem:[#allocation7 + $0xe8] sm:$0xff]
    %v4523 = vld [vmem:[#allocation7 + $0xf0] sm:$0xff]
    %v4524 = vld [vmem:[#allocation7 + $0xf8] sm:$0xff]
    %v4525 = vld [vmem:[#allocation7 + $0x100] sm:$0xff]
    %v4526 = vld [vmem:[#allocation7 + $0x108] sm:$0xff]
    %v4527 = vld [vmem:[#allocation7 + $0x110] sm:$0xff]
    %v4528 = vld [vmem:[#allocation7 + $0x118] sm:$0xff]
    %v4529 = vld [vmem:[#allocation7 + $0x120] sm:$0xff]
    %v4530 = vld [vmem:[#allocation7 + $0x128] sm:$0xff]
    %v4531 = vld [vmem:[#allocation7 + $0x130] sm:$0xff]
    %v4532 = vld [vmem:[#allocation7 + $0x138] sm:$0xff]
    %v4533 = vld [vmem:[#allocation7 + $0x140] sm:$0xff]
    %v4534 = vld [vmem:[#allocation7 + $0x148] sm:$0xff]
    %v4535 = vld [vmem:[#allocation7 + $0x150] sm:$0xff]
    %v4536 = vld [vmem:[#allocation7 + $0x158] sm:$0xff]
    %v4537 = vld [vmem:[#allocation7 + $0x160] sm:$0xff]
    %v4538 = vld [vmem:[#allocation7 + $0x168] sm:$0xff]
    %v4539 = vld [vmem:[#allocation7 + $0x170] sm:$0xff]
    %v4540 = vld [vmem:[#allocation7 + $0x178] sm:$0xff]
    %v4541 = vld [vmem:[#allocation7 + $0x180] sm:$0xff]
    %v4542 = vld [vmem:[#allocation7 + $0x188] sm:$0xff]
    %v4543 = vld [vmem:[#allocation7 + $0x190] sm:$0xff]
    %v4544 = vld [vmem:[#allocation7 + $0x198] sm:$0xff]
    %v4545 = vld [vmem:[#allocation7 + $0x1a0] sm:$0xff]
    %v4546 = vld [vmem:[#allocation7 + $0x1a8] sm:$0xff]
    %v4547 = vld [vmem:[#allocation7 + $0x1b0] sm:$0xff]
    %v4548 = vld [vmem:[#allocation7 + $0x1b8] sm:$0xff]
    %v4549 = vld [vmem:[#allocation7 + $0x1c0] sm:$0xff]
    %v4550 = vld [vmem:[#allocation7 + $0x1c8] sm:$0xff]
    %v4551 = vld [vmem:[#allocation7 + $0x1d0] sm:$0xff]
    %v4552 = vld [vmem:[#allocation7 + $0x1d8] sm:$0xff]
    %v4553 = vld [vmem:[#allocation7 + $0x1e0] sm:$0xff]
    %v4554 = vld [vmem:[#allocation7 + $0x1e8] sm:$0xff]
    %v4555 = vld [vmem:[#allocation7 + $0x1f0] sm:$0xff]
    %v4556 = vld [vmem:[#allocation7 + $0x1f8] sm:$0xff]
    %v4557 = vld [vmem:[#allocation7 + $0x200] sm:$0xff]
    %v4558 = vld [vmem:[#allocation7 + $0x208] sm:$0xff]
    %v4559 = vld [vmem:[#allocation7 + $0x210] sm:$0xff]
    %v4560 = vld [vmem:[#allocation7 + $0x218] sm:$0xff]
    %v4561 = vld [vmem:[#allocation7 + $0x220] sm:$0xff]
    %v4562 = vld [vmem:[#allocation7 + $0x228] sm:$0xff]
    %v4563 = vld [vmem:[#allocation7 + $0x230] sm:$0xff]
    %v4564 = vld [vmem:[#allocation7 + $0x238] sm:$0xff]
    %v4565 = vld [vmem:[#allocation8] sm:$0xff]
    %v4566 = vld [vmem:[#allocation8 + $0x8] sm:$0xff]
    %v4567 = vld [vmem:[#allocation8 + $0x10] sm:$0xff]
    %v4568 = vld [vmem:[#allocation8 + $0x18] sm:$0xff]
    %v4569 = vld [vmem:[#allocation8 + $0x20] sm:$0xff]
    %v4570 = vld [vmem:[#allocation8 + $0x28] sm:$0xff]
    %v4571 = vld [vmem:[#allocation8 + $0x30] sm:$0xff]
    %v4572 = vld [vmem:[#allocation8 + $0x38] sm:$0xff]
    %v4573 = vld [vmem:[#allocation8 + $0x40] sm:$0xff]
    %v4574 = vld [vmem:[#allocation8 + $0x48] sm:$0xff]
    %v4575 = vld [vmem:[#allocation8 + $0x50] sm:$0xff]
    %v4576 = vld [vmem:[#allocation8 + $0x58] sm:$0xff]
    %v4577 = vld [vmem:[#allocation8 + $0x60] sm:$0xff]
    %v4578 = vld [vmem:[#allocation8 + $0x68] sm:$0xff]
    %v4579 = vld [vmem:[#allocation8 + $0x70] sm:$0xff]
    %v4580 = vld [vmem:[#allocation8 + $0x78] sm:$0xff]
    %v4581 = vld [vmem:[#allocation8 + $0x80] sm:$0xff]
    %v4582 = vld [vmem:[#allocation8 + $0x88] sm:$0xff]
    %v4583 = vld [vmem:[#allocation8 + $0x90] sm:$0xff]
    %v4584 = vld [vmem:[#allocation8 + $0x98] sm:$0xff]
    %v4585 = vld [vmem:[#allocation8 + $0xa0] sm:$0xff]
    %v4586 = vld [vmem:[#allocation8 + $0xa8] sm:$0xff]
    %v4587 = vld [vmem:[#allocation8 + $0xb0] sm:$0xff]
    %v4588 = vld [vmem:[#allocation8 + $0xb8] sm:$0xff]
    %v4589 = vld [vmem:[#allocation8 + $0xc0] sm:$0xff]
    %v4590 = vld [vmem:[#allocation8 + $0xc8] sm:$0xff]
    %v4591 = vld [vmem:[#allocation8 + $0xd0] sm:$0xff]
    %v4592 = vld [vmem:[#allocation8 + $0xd8] sm:$0xff]
    %v4593 = vld [vmem:[#allocation8 + $0xe0] sm:$0xff]
    %v4594 = vld [vmem:[#allocation8 + $0xe8] sm:$0xff]
    %v4595 = vld [vmem:[#allocation8 + $0xf0] sm:$0xff]
    %v4596 = vld [vmem:[#allocation8 + $0xf8] sm:$0xff]
    %v4597 = vld [vmem:[#allocation8 + $0x100] sm:$0xff]
    %v4598 = vld [vmem:[#allocation8 + $0x108] sm:$0xff]
    %v4599 = vld [vmem:[#allocation8 + $0x110] sm:$0xff]
    %v4600 = vld [vmem:[#allocation8 + $0x118] sm:$0xff]
    %v4601 = vld [vmem:[#allocation8 + $0x120] sm:$0xff]
    %v4602 = vld [vmem:[#allocation8 + $0x128] sm:$0xff]
    %v4603 = vld [vmem:[#allocation8 + $0x130] sm:$0xff]
    %v4604 = vld [vmem:[#allocation8 + $0x138] sm:$0xff]
    %v4605 = vld [vmem:[#allocation8 + $0x140] sm:$0xff]
    %v4606 = vld [vmem:[#allocation8 + $0x148] sm:$0xff]
    %v4607 = vld [vmem:[#allocation8 + $0x150] sm:$0xff]
    %v4608 = vld [vmem:[#allocation8 + $0x158] sm:$0xff]
    %v4609 = vld [vmem:[#allocation8 + $0x160] sm:$0xff]
    %v4610 = vld [vmem:[#allocation8 + $0x168] sm:$0xff]
    %v4611 = vld [vmem:[#allocation8 + $0x170] sm:$0xff]
    %v4612 = vld [vmem:[#allocation8 + $0x178] sm:$0xff]
    %v4613 = vld [vmem:[#allocation8 + $0x180] sm:$0xff]
    %v4614 = vld [vmem:[#allocation8 + $0x188] sm:$0xff]
    %v4615 = vld [vmem:[#allocation8 + $0x190] sm:$0xff]
    %v4616 = vld [vmem:[#allocation8 + $0x198] sm:$0xff]
    %v4617 = vld [vmem:[#allocation8 + $0x1a0] sm:$0xff]
    %v4618 = vld [vmem:[#allocation8 + $0x1a8] sm:$0xff]
    %v4619 = vld [vmem:[#allocation8 + $0x1b0] sm:$0xff]
    %v4620 = vld [vmem:[#allocation8 + $0x1b8] sm:$0xff]
    %v4621 = vld [vmem:[#allocation8 + $0x1c0] sm:$0xff]
    %v4622 = vld [vmem:[#allocation8 + $0x1c8] sm:$0xff]
    %v4623 = vld [vmem:[#allocation8 + $0x1d0] sm:$0xff]
    %v4624 = vld [vmem:[#allocation8 + $0x1d8] sm:$0xff]
    %v4625 = vld [vmem:[#allocation8 + $0x1e0] sm:$0xff]
    %v4626 = vld [vmem:[#allocation8 + $0x1e8] sm:$0xff]
    %v4627 = vld [vmem:[#allocation8 + $0x1f0] sm:$0xff]
    %v4628 = vld [vmem:[#allocation8 + $0x1f8] sm:$0xff]
    %v4629 = vld [vmem:[#allocation8 + $0x200] sm:$0xff]
    %v4630 = vld [vmem:[#allocation8 + $0x208] sm:$0xff]
    %v4631 = vld [vmem:[#allocation8 + $0x210] sm:$0xff]
    %v4632 = vld [vmem:[#allocation8 + $0x218] sm:$0xff]
    %v4633 = vld [vmem:[#allocation8 + $0x220] sm:$0xff]
    %v4634 = vld [vmem:[#allocation8 + $0x228] sm:$0xff]
    %v4635 = vld [vmem:[#allocation8 + $0x230] sm:$0xff]
    %v4636 = vld [vmem:[#allocation8 + $0x238] sm:$0xff]
    %v4637 = vld [vmem:[%s9] sm:$0x7]
    %v4639 = vlaneseq
    %v4640 = vshrl.u32 %v4639, 7
    %v4641 = vsub.s32 0, %v4640
    %v4642 = vrot.slane %v4637, %v4641
    %v4643 = vlaneseq
    %v4644 = vshrl.u32 %v4643, 7
    %v4645 = vsub.s32 1, %v4644
    %v4646 = vrot.slane %v4637, %v4645
    %v4647 = vlaneseq
    %v4648 = vshrl.u32 %v4647, 7
    %v4649 = vsub.s32 2, %v4648
    %v4650 = vrot.slane %v4637, %v4649
    %v4656 = vunpack.c.l.b16 %v4491
    %v4657 = vunpack.c.h.b16 %v4491
    %v4658 = vunpack.c.l.b16 %v4492
    %v4659 = vpack.c.b16 %v4656, %v4656
    %v4660 = vpack.c.b16 %v4657, %v4657
    %v4661 = vpack.c.b16 %v4658, %v4658
    %4665 = vmatprep.subr.bf16.mxu0 %v4494
    %4666 = vmatpush1.bf16.msra.mxu0 %v4493
    %4667 = vmatprep.subr.bf16.mxu0 %v4497
    %4668 = vmatpush1.bf16.msra.mxu0 %v4496
    %4669 = vmatprep.subr.bf16.mxu0 %v4500
    %4670 = vmatpush1.bf16.msra.mxu0 %v4499
    %4671 = vmatprep.subr.bf16.mxu0 %v4503
    %4672 = vmatpush1.bf16.msra.mxu0 %v4502
    %4673 = vmatprep.subr.bf16.mxu0 %v4506
    %4674 = vmatpush1.bf16.msra.mxu0 %v4505
    %4675 = vmatprep.subr.bf16.mxu0 %v4509
    %4676 = vmatpush1.bf16.msra.mxu0 %v4508
    %4677 = vmatprep.subr.bf16.mxu0 %v4512
    %4678 = vmatpush1.bf16.msra.mxu0 %v4511
    %4679 = vmatprep.subr.bf16.mxu0 %v4515
    %4680 = vmatpush1.bf16.msra.mxu0 %v4514
    %4681 = vmatprep.subr.bf16.mxu0 %v4518
    %4682 = vmatpush1.bf16.msra.mxu0 %v4517
    %4683 = vmatprep.subr.bf16.mxu0 %v4521
    %4684 = vmatpush1.bf16.msra.mxu0 %v4520
    %4685 = vmatprep.subr.bf16.mxu0 %v4524
    %4686 = vmatpush1.bf16.msra.mxu0 %v4523
    %4687 = vmatprep.subr.bf16.mxu0 %v4527
    %4688 = vmatpush1.bf16.msra.mxu0 %v4526
    %4689 = vmatprep.subr.bf16.mxu0 %v4530
    %4690 = vmatpush1.bf16.msra.mxu0 %v4529
    %4691 = vmatprep.subr.bf16.mxu0 %v4533
    %4692 = vmatpush1.bf16.msra.mxu0 %v4532
    %4693 = vmatprep.subr.bf16.mxu0 %v4536
    %4694 = vmatpush1.bf16.msra.mxu0 %v4535
    %4695 = vmatprep.subr.bf16.mxu0 %v4539
    %4696 = vmatpush1.bf16.msra.mxu0 %v4538
    %4697 = vmatprep.mubr.bf16.mxu0 %v4660
    %4698 = vmatmul.mubr.bf16.gmra.mrb[0].mxu0 %v4659
    %v4699 = vpop.f32.mrb[0].mxu0
    %v4700 = vadd.f32 %v4642, %v4699
    %v4701 = vpop.f32.mrb[0].mxu0
    %v4702 = vadd.f32 %v4646, %v4701
    %v4703 = vpop.f32.mrb[0].mxu0
    %v4704 = vpop.f32.mrb[0].mxu0
    %4705 = vdwg.mxu0
    %4706 = vmatprep.subr.bf16.mxu0 %v4542
    %4707 = vmatpush1.bf16.msra.mxu0 %v4541
    %4708 = vmatprep.subr.bf16.mxu0 %v4545
    %4709 = vmatpush1.bf16.msra.mxu0 %v4544
    %4710 = vmatprep.subr.bf16.mxu0 %v4548
    %4711 = vmatpush1.bf16.msra.mxu0 %v4547
    %4712 = vmatprep.subr.bf16.mxu0 %v4551
    %4713 = vmatpush1.bf16.msra.mxu0 %v4550
    %4714 = vmatprep.subr.bf16.mxu0 %v4554
    %4715 = vmatpush1.bf16.msra.mxu0 %v4553
    %4716 = vmatprep.subr.bf16.mxu0 %v4557
    %4717 = vmatpush1.bf16.msra.mxu0 %v4556
    %4718 = vmatprep.subr.bf16.mxu0 %v4560
    %4719 = vmatpush1.bf16.msra.mxu0 %v4559
    %4720 = vmatprep.subr.bf16.mxu0 %v4563
    %4721 = vmatpush1.bf16.msra.mxu0 %v4562
    %4722 = vmatprep.subr.bf16.mxu0 0
    %4723 = vmatpush1.bf16.msra.mxu0 0
    %4724 = vmatprep.subr.bf16.mxu0 0
    %4725 = vmatpush1.bf16.msra.mxu0 0
    %4726 = vmatprep.subr.bf16.mxu0 0
    %4727 = vmatpush1.bf16.msra.mxu0 0
    %4728 = vmatprep.subr.bf16.mxu0 0
    %4729 = vmatpush1.bf16.msra.mxu0 0
    %4730 = vmatprep.subr.bf16.mxu0 0
    %4731 = vmatpush1.bf16.msra.mxu0 0
    %4732 = vmatprep.subr.bf16.mxu0 0
    %4733 = vmatpush1.bf16.msra.mxu0 0
    %4734 = vmatprep.subr.bf16.mxu0 0
    %4735 = vmatpush1.bf16.msra.mxu0 0
    %4736 = vmatprep.subr.bf16.mxu0 0
    %4737 = vmatpush1.bf16.msra.mxu0 0
    %4738 = vmatprep.mubr.bf16.mxu0 0
    %4739 = vmatmul.mubr.bf16.gmra.mrb[0].mxu0 %v4661
    %v4740 = vpop.f32.mrb[0].mxu0
    %v4741 = vadd.f32 %v4700, %v4740
    %v4742 = vpop.f32.mrb[0].mxu0
    %v4743 = vadd.f32 %v4702, %v4742
    %v4744 = vpop.f32.mrb[0].mxu0
    %v4745 = vpop.f32.mrb[0].mxu0
    %4746 = vdwg.mxu0
    %4747 = vmatprep.subr.bf16.mxu0 0
    %4748 = vmatpush1.bf16.msra.mxu0 %v4495
    %4749 = vmatprep.subr.bf16.mxu0 0
    %4750 = vmatpush1.bf16.msra.mxu0 %v4498
    %4751 = vmatprep.subr.bf16.mxu0 0
    %4752 = vmatpush1.bf16.msra.mxu0 %v4501
    %4753 = vmatprep.subr.bf16.mxu0 0
    %4754 = vmatpush1.bf16.msra.mxu0 %v4504
    %4755 = vmatprep.subr.bf16.mxu0 0
    %4756 = vmatpush1.bf16.msra.mxu0 %v4507
    %4757 = vmatprep.subr.bf16.mxu0 0
    %4758 = vmatpush1.bf16.msra.mxu0 %v4510
    %4759 = vmatprep.subr.bf16.mxu0 0
    %4760 = vmatpush1.bf16.msra.mxu0 %v4513
    %4761 = vmatprep.subr.bf16.mxu0 0
    %4762 = vmatpush1.bf16.msra.mxu0 %v4516
    %4763 = vmatprep.subr.bf16.mxu0 0
    %4764 = vmatpush1.bf16.msra.mxu0 %v4519
    %4765 = vmatprep.subr.bf16.mxu0 0
    %4766 = vmatpush1.bf16.msra.mxu0 %v4522
    %4767 = vmatprep.subr.bf16.mxu0 0
    %4768 = vmatpush1.bf16.msra.mxu0 %v4525
    %4769 = vmatprep.subr.bf16.mxu0 0
    %4770 = vmatpush1.bf16.msra.mxu0 %v4528
    %4771 = vmatprep.subr.bf16.mxu0 0
    %4772 = vmatpush1.bf16.msra.mxu0 %v4531
    %4773 = vmatprep.subr.bf16.mxu0 0
    %4774 = vmatpush1.bf16.msra.mxu0 %v4534
    %4775 = vmatprep.subr.bf16.mxu0 0
    %4776 = vmatpush1.bf16.msra.mxu0 %v4537
    %4777 = vmatprep.subr.bf16.mxu0 0
    %4778 = vmatpush1.bf16.msra.mxu0 %v4540
    %4779 = vmatprep.mubr.bf16.mxu0 %v4660
    %4780 = vmatmul.mubr.bf16.gmra.mrb[0].mxu0 %v4659
    %v4781 = vpop.f32.mrb[0].mxu0
    %v4782 = vadd.f32 %v4650, %v4781
    %v4783 = vpop.f32.mrb[0].mxu0
    %v4784 = vpop.f32.mrb[0].mxu0
    %v4785 = vpop.f32.mrb[0].mxu0
    %4786 = vdwg.mxu0
    %4787 = vmatprep.subr.bf16.mxu0 0
    %4788 = vmatpush1.bf16.msra.mxu0 %v4543
    %4789 = vmatprep.subr.bf16.mxu0 0
    %4790 = vmatpush1.bf16.msra.mxu0 %v4546
    %4791 = vmatprep.subr.bf16.mxu0 0
    %4792 = vmatpush1.bf16.msra.mxu0 %v4549
    %4793 = vmatprep.subr.bf16.mxu0 0
    %4794 = vmatpush1.bf16.msra.mxu0 %v4552
    %4795 = vmatprep.subr.bf16.mxu0 0
    %4796 = vmatpush1.bf16.msra.mxu0 %v4555
    %4797 = vmatprep.subr.bf16.mxu0 0
    %4798 = vmatpush1.bf16.msra.mxu0 %v4558
    %4799 = vmatprep.subr.bf16.mxu0 0
    %4800 = vmatpush1.bf16.msra.mxu0 %v4561
    %4801 = vmatprep.subr.bf16.mxu0 0
    %4802 = vmatpush1.bf16.msra.mxu0 %v4564
    %4803 = vmatprep.subr.bf16.mxu0 0
    %4804 = vmatpush1.bf16.msra.mxu0 0
    %4805 = vmatprep.subr.bf16.mxu0 0
    %4806 = vmatpush1.bf16.msra.mxu0 0
    %4807 = vmatprep.subr.bf16.mxu0 0
    %4808 = vmatpush1.bf16.msra.mxu0 0
    %4809 = vmatprep.subr.bf16.mxu0 0
    %4810 = vmatpush1.bf16.msra.mxu0 0
    %4811 = vmatprep.subr.bf16.mxu0 0
    %4812 = vmatpush1.bf16.msra.mxu0 0
    %4813 = vmatprep.subr.bf16.mxu0 0
    %4814 = vmatpush1.bf16.msra.mxu0 0
    %4815 = vmatprep.subr.bf16.mxu0 0
    %4816 = vmatpush1.bf16.msra.mxu0 0
    %4817 = vmatprep.subr.bf16.mxu0 0
    %4818 = vmatpush1.bf16.msra.mxu0 0
    %4819 = vmatprep.mubr.bf16.mxu0 0
    %4820 = vmatmul.mubr.bf16.gmra.mrb[0].mxu0 %v4661
    %v4821 = vpop.f32.mrb[0].mxu0
    %v4822 = vadd.f32 %v4782, %v4821
    %v4823 = vpop.f32.mrb[0].mxu0
    %v4824 = vpop.f32.mrb[0].mxu0
    %v4825 = vpop.f32.mrb[0].mxu0
    %4826 = vdwg.mxu0
    %4827 = vst [vmem:[#allocation2] sm:$0xff] %v4741
    %4828 = vst [vmem:[#allocation2 + $0x8] sm:$0xff] %v4743
    %4829 = vst [vmem:[#allocation2 + $0x10] sm:$0xff] %v4822
    %v4830 = vld [vmem:[#allocation2] sm:$0xff]
    %v4831 = vld [vmem:[#allocation2 + $0x8] sm:$0xff]
    %v4832 = vld [vmem:[#allocation2 + $0x10] sm:$0xff]
    %v4834 = vshrl.u32 %v4422, 16
    %v4836 = vrot.slane %v4834, 3
    %v4838 = vshrl.u32 %v4423, 16
    %v4840 = vrot.slane %v4838, 3
    %v4842 = vshrl.u32 %v4424, 16
    %v4844 = vrot.slane %v4842, 3
    %4848 = vmatprep.subr.bf16.mxu0 %v4566
    %4849 = vmatpush1.bf16.msra.mxu0 %v4565
    %4850 = vmatprep.subr.bf16.mxu0 %v4569
    %4851 = vmatpush1.bf16.msra.mxu0 %v4568
    %4852 = vmatprep.subr.bf16.mxu0 %v4572
    %4853 = vmatpush1.bf16.msra.mxu0 %v4571
    %4854 = vmatprep.subr.bf16.mxu0 %v4575
    %4855 = vmatpush1.bf16.msra.mxu0 %v4574
    %4856 = vmatprep.subr.bf16.mxu0 %v4578
    %4857 = vmatpush1.bf16.msra.mxu0 %v4577
    %4858 = vmatprep.subr.bf16.mxu0 %v4581
    %4859 = vmatpush1.bf16.msra.mxu0 %v4580
    %4860 = vmatprep.subr.bf16.mxu0 %v4584
    %4861 = vmatpush1.bf16.msra.mxu0 %v4583
    %4862 = vmatprep.subr.bf16.mxu0 %v4587
    %4863 = vmatpush1.bf16.msra.mxu0 %v4586
    %4864 = vmatprep.subr.bf16.mxu0 %v4590
    %4865 = vmatpush1.bf16.msra.mxu0 %v4589
    %4866 = vmatprep.subr.bf16.mxu0 %v4593
    %4867 = vmatpush1.bf16.msra.mxu0 %v4592
    %4868 = vmatprep.subr.bf16.mxu0 %v4596
    %4869 = vmatpush1.bf16.msra.mxu0 %v4595
    %4870 = vmatprep.subr.bf16.mxu0 %v4599
    %4871 = vmatpush1.bf16.msra.mxu0 %v4598
    %4872 = vmatprep.subr.bf16.mxu0 %v4602
    %4873 = vmatpush1.bf16.msra.mxu0 %v4601
    %4874 = vmatprep.subr.bf16.mxu0 %v4605
    %4875 = vmatpush1.bf16.msra.mxu0 %v4604
    %4876 = vmatprep.subr.bf16.mxu0 %v4608
    %4877 = vmatpush1.bf16.msra.mxu0 %v4607
    %4878 = vmatprep.subr.bf16.mxu0 %v4611
    %4879 = vmatpush1.bf16.msra.mxu0 %v4610
    %4880 = vmatprep.mubr.bf16.mxu0 %v4840
    %4881 = vmatmul.mubr.bf16.gmra.mrb[0].mxu0 %v4836
    %v4882 = vpop.f32.mrb[0].mxu0
    %v4883 = vadd.f32 0.0, %v4882
    %v4884 = vpop.f32.mrb[0].mxu0
    %v4885 = vadd.f32 0.0, %v4884
    %v4886 = vpop.f32.mrb[0].mxu0
    %v4887 = vpop.f32.mrb[0].mxu0
    %4888 = vdwg.mxu0
    %4889 = vmatprep.subr.bf16.mxu0 %v4614
    %4890 = vmatpush1.bf16.msra.mxu0 %v4613
    %4891 = vmatprep.subr.bf16.mxu0 %v4617
    %4892 = vmatpush1.bf16.msra.mxu0 %v4616
    %4893 = vmatprep.subr.bf16.mxu0 %v4620
    %4894 = vmatpush1.bf16.msra.mxu0 %v4619
    %4895 = vmatprep.subr.bf16.mxu0 %v4623
    %4896 = vmatpush1.bf16.msra.mxu0 %v4622
    %4897 = vmatprep.subr.bf16.mxu0 %v4626
    %4898 = vmatpush1.bf16.msra.mxu0 %v4625
    %4899 = vmatprep.subr.bf16.mxu0 %v4629
    %4900 = vmatpush1.bf16.msra.mxu0 %v4628
    %4901 = vmatprep.subr.bf16.mxu0 %v4632
    %4902 = vmatpush1.bf16.msra.mxu0 %v4631
    %4903 = vmatprep.subr.bf16.mxu0 %v4635
    %4904 = vmatpush1.bf16.msra.mxu0 %v4634
    %4905 = vmatprep.subr.bf16.mxu0 0
    %4906 = vmatpush1.bf16.msra.mxu0 0
    %4907 = vmatprep.subr.bf16.mxu0 0
    %4908 = vmatpush1.bf16.msra.mxu0 0
    %4909 = vmatprep.subr.bf16.mxu0 0
    %4910 = vmatpush1.bf16.msra.mxu0 0
    %4911 = vmatprep.subr.bf16.mxu0 0
    %4912 = vmatpush1.bf16.msra.mxu0 0
    %4913 = vmatprep.subr.bf16.mxu0 0
    %4914 = vmatpush1.bf16.msra.mxu0 0
    %4915 = vmatprep.subr.bf16.mxu0 0
    %4916 = vmatpush1.bf16.msra.mxu0 0
    %4917 = vmatprep.subr.bf16.mxu0 0
    %4918 = vmatpush1.bf16.msra.mxu0 0
    %4919 = vmatprep.subr.bf16.mxu0 0
    %4920 = vmatpush1.bf16.msra.mxu0 0
    %4921 = vmatprep.mubr.bf16.mxu0 0
    %4922 = vmatmul.mubr.bf16.gmra.mrb[0].mxu0 %v4844
    %v4923 = vpop.f32.mrb[0].mxu0
    %v4924 = vadd.f32 %v4883, %v4923
    %v4925 = vpop.f32.mrb[0].mxu0
    %v4926 = vadd.f32 %v4885, %v4925
    %v4927 = vpop.f32.mrb[0].mxu0
    %v4928 = vpop.f32.mrb[0].mxu0
    %4929 = vdwg.mxu0
    %4930 = vmatprep.subr.bf16.mxu0 0
    %4931 = vmatpush1.bf16.msra.mxu0 %v4567
    %4932 = vmatprep.subr.bf16.mxu0 0
    %4933 = vmatpush1.bf16.msra.mxu0 %v4570
    %4934 = vmatprep.subr.bf16.mxu0 0
    %4935 = vmatpush1.bf16.msra.mxu0 %v4573
    %4936 = vmatprep.subr.bf16.mxu0 0
    %4937 = vmatpush1.bf16.msra.mxu0 %v4576
    %4938 = vmatprep.subr.bf16.mxu0 0
    %4939 = vmatpush1.bf16.msra.mxu0 %v4579
    %4940 = vmatprep.subr.bf16.mxu0 0
    %4941 = vmatpush1.bf16.msra.mxu0 %v4582
    %4942 = vmatprep.subr.bf16.mxu0 0
    %4943 = vmatpush1.bf16.msra.mxu0 %v4585
    %4944 = vmatprep.subr.bf16.mxu0 0
    %4945 = vmatpush1.bf16.msra.mxu0 %v4588
    %4946 = vmatprep.subr.bf16.mxu0 0
    %4947 = vmatpush1.bf16.msra.mxu0 %v4591
    %4948 = vmatprep.subr.bf16.mxu0 0
    %4949 = vmatpush1.bf16.msra.mxu0 %v4594
    %4950 = vmatprep.subr.bf16.mxu0 0
    %4951 = vmatpush1.bf16.msra.mxu0 %v4597
    %4952 = vmatprep.subr.bf16.mxu0 0
    %4953 = vmatpush1.bf16.msra.mxu0 %v4600
    %4954 = vmatprep.subr.bf16.mxu0 0
    %4955 = vmatpush1.bf16.msra.mxu0 %v4603
    %4956 = vmatprep.subr.bf16.mxu0 0
    %4957 = vmatpush1.bf16.msra.mxu0 %v4606
    %4958 = vmatprep.subr.bf16.mxu0 0
    %4959 = vmatpush1.bf16.msra.mxu0 %v4609
    %4960 = vmatprep.subr.bf16.mxu0 0
    %4961 = vmatpush1.bf16.msra.mxu0 %v4612
    %4962 = vmatprep.mubr.bf16.mxu0 %v4840
    %4963 = vmatmul.mubr.bf16.gmra.mrb[0].mxu0 %v4836
    %v4964 = vpop.f32.mrb[0].mxu0
    %v4965 = vadd.f32 0.0, %v4964
    %v4966 = vpop.f32.mrb[0].mxu0
    %v4967 = vpop.f32.mrb[0].mxu0
    %v4968 = vpop.f32.mrb[0].mxu0
    %4969 = vdwg.mxu0
    %4970 = vmatprep.subr.bf16.mxu0 0
    %4971 = vmatpush1.bf16.msra.mxu0 %v4615
    %4972 = vmatprep.subr.bf16.mxu0 0
    %4973 = vmatpush1.bf16.msra.mxu0 %v4618
    %4974 = vmatprep.subr.bf16.mxu0 0
    %4975 = vmatpush1.bf16.msra.mxu0 %v4621
    %4976 = vmatprep.subr.bf16.mxu0 0
    %4977 = vmatpush1.bf16.msra.mxu0 %v4624
    %4978 = vmatprep.subr.bf16.mxu0 0
    %4979 = vmatpush1.bf16.msra.mxu0 %v4627
    %4980 = vmatprep.subr.bf16.mxu0 0
    %4981 = vmatpush1.bf16.msra.mxu0 %v4630
    %4982 = vmatprep.subr.bf16.mxu0 0
    %4983 = vmatpush1.bf16.msra.mxu0 %v4633
    %4984 = vmatprep.subr.bf16.mxu0 0
    %4985 = vmatpush1.bf16.msra.mxu0 %v4636
    %4986 = vmatprep.subr.bf16.mxu0 0
    %4987 = vmatpush1.bf16.msra.mxu0 0
    %4988 = vmatprep.subr.bf16.mxu0 0
    %4989 = vmatpush1.bf16.msra.mxu0 0
    %4990 = vmatprep.subr.bf16.mxu0 0
    %4991 = vmatpush1.bf16.msra.mxu0 0
    %4992 = vmatprep.subr.bf16.mxu0 0
    %4993 = vmatpush1.bf16.msra.mxu0 0
    %4994 = vmatprep.subr.bf16.mxu0 0
    %4995 = vmatpush1.bf16.msra.mxu0 0
    %4996 = vmatprep.subr.bf16.mxu0 0
    %4997 = vmatpush1.bf16.msra.mxu0 0
    %4998 = vmatprep.subr.bf16.mxu0 0
    %4999 = vmatpush1.bf16.msra.mxu0 0
    %5000 = vmatprep.subr.bf16.mxu0 0
    %5001 = vmatpush1.bf16.msra.mxu0 0
    %5002 = vmatprep.mubr.bf16.mxu0 0
    %5003 = vmatmul.mubr.bf16.gmra.mrb[0].mxu0 %v4844
    %v5004 = vpop.f32.mrb[0].mxu0
    %v5005 = vadd.f32 %v4965, %v5004
    %v5006 = vpop.f32.mrb[0].mxu0
    %v5007 = vpop.f32.mrb[0].mxu0
    %v5008 = vpop.f32.mrb[0].mxu0
    %5009 = vdwg.mxu0
    %v5010 = vadd.f32 %v4830, %v4924
    %v5011 = vadd.f32 %v4831, %v4926
    %v5012 = vadd.f32 %v4832, %v5005
    %v5013 = vtanh.pop %v5010
    %v5014 = vtanh.pop %v5011
    %v5015 = vtanh.pop %v5012
    %v5016 = vpack.c.bf16 %v5013, %v5013
    %v5017 = vpack.c.bf16 %v5014, %v5014
    %v5018 = vpack.c.bf16 %v5015, %v5015
    %5019 = vmatprep.subr.bf16.mxu0 %v4566
    %5020 = vmatpush1.bf16.msra.mxu0 %v4565
    %5021 = vmatprep.subr.bf16.mxu0 %v4569
    %5022 = vmatpush1.bf16.msra.mxu0 %v4568
    %5023 = vmatprep.subr.bf16.mxu0 %v4572
    %5024 = vmatpush1.bf16.msra.mxu0 %v4571
    %5025 = vmatprep.subr.bf16.mxu0 %v4575
    %5026 = vmatpush1.bf16.msra.mxu0 %v4574
    %5027 = vmatprep.subr.bf16.mxu0 %v4578
    %5028 = vmatpush1.bf16.msra.mxu0 %v4577
    %5029 = vmatprep.subr.bf16.mxu0 %v4581
    %5030 = vmatpush1.bf16.msra.mxu0 %v4580
    %5031 = vmatprep.subr.bf16.mxu0 %v4584
    %5032 = vmatpush1.bf16.msra.mxu0 %v4583
    %5033 = vmatprep.subr.bf16.mxu0 %v4587
    %5034 = vmatpush1.bf16.msra.mxu0 %v4586
    %5035 = vmatprep.subr.bf16.mxu0 %v4590
    %5036 = vmatpush1.bf16.msra.mxu0 %v4589
    %5037 = vmatprep.subr.bf16.mxu0 %v4593
    %5038 = vmatpush1.bf16.msra.mxu0 %v4592
    %5039 = vmatprep.subr.bf16.mxu0 %v4596
    %5040 = vmatpush1.bf16.msra.mxu0 %v4595
    %5041 = vmatprep.subr.bf16.mxu0 %v4599
    %5042 = vmatpush1.bf16.msra.mxu0 %v4598
    %5043 = vmatprep.subr.bf16.mxu0 %v4602
    %5044 = vmatpush1.bf16.msra.mxu0 %v4601
    %5045 = vmatprep.subr.bf16.mxu0 %v4605
    %5046 = vmatpush1.bf16.msra.mxu0 %v4604
    %5047 = vmatprep.subr.bf16.mxu0 %v4608
    %5048 = vmatpush1.bf16.msra.mxu0 %v4607
    %5049 = vmatprep.subr.bf16.mxu0 %v4611
    %5050 = vmatpush1.bf16.msra.mxu0 %v4610
    %5051 = vmatprep.mubr.bf16.mxu0 %v5017
    %5052 = vmatmul.mubr.bf16.gmra.mrb[0].mxu0 %v5016
    %v5053 = vpop.f32.mrb[0].mxu0
    %v5054 = vadd.f32 0.0, %v5053
    %v5055 = vpop.f32.mrb[0].mxu0
    %v5056 = vadd.f32 0.0, %v5055
    %v5057 = vpop.f32.mrb[0].mxu0
    %v5058 = vpop.f32.mrb[0].mxu0
    %5059 = vdwg.mxu0
    %5060 = vmatprep.subr.bf16.mxu0 %v4614
    %5061 = vmatpush1.bf16.msra.mxu0 %v4613
    %5062 = vmatprep.subr.bf16.mxu0 %v4617
    %5063 = vmatpush1.bf16.msra.mxu0 %v4616
    %5064 = vmatprep.subr.bf16.mxu0 %v4620
    %5065 = vmatpush1.bf16.msra.mxu0 %v4619
    %5066 = vmatprep.subr.bf16.mxu0 %v4623
    %5067 = vmatpush1.bf16.msra.mxu0 %v4622
    %5068 = vmatprep.subr.bf16.mxu0 %v4626
    %5069 = vmatpush1.bf16.msra.mxu0 %v4625
    %5070 = vmatprep.subr.bf16.mxu0 %v4629
    %5071 = vmatpush1.bf16.msra.mxu0 %v4628
    %5072 = vmatprep.subr.bf16.mxu0 %v4632
    %5073 = vmatpush1.bf16.msra.mxu0 %v4631
    %5074 = vmatprep.subr.bf16.mxu0 %v4635
    %5075 = vmatpush1.bf16.msra.mxu0 %v4634
    %5076 = vmatprep.subr.bf16.mxu0 0
    %5077 = vmatpush1.bf16.msra.mxu0 0
    %5078 = vmatprep.subr.bf16.mxu0 0
    %5079 = vmatpush1.bf16.msra.mxu0 0
    %5080 = vmatprep.subr.bf16.mxu0 0
    %5081 = vmatpush1.bf16.msra.mxu0 0
    %5082 = vmatprep.subr.bf16.mxu0 0
    %5083 = vmatpush1.bf16.msra.mxu0 0
    %5084 = vmatprep.subr.bf16.mxu0 0
    %5085 = vmatpush1.bf16.msra.mxu0 0
    %5086 = vmatprep.subr.bf16.mxu0 0
    %5087 = vmatpush1.bf16.msra.mxu0 0
    %5088 = vmatprep.subr.bf16.mxu0 0
    %5089 = vmatpush1.bf16.msra.mxu0 0
    %5090 = vmatprep.subr.bf16.mxu0 0
    %5091 = vmatpush1.bf16.msra.mxu0 0
    %5092 = vmatprep.mubr.bf16.mxu0 0
    %5093 = vmatmul.mubr.bf16.gmra.mrb[0].mxu0 %v5018
    %v5094 = vpop.f32.mrb[0].mxu0
    %v5095 = vadd.f32 %v5054, %v5094
    %v5096 = vpop.f32.mrb[0].mxu0
    %v5097 = vadd.f32 %v5056, %v5096
    %v5098 = vpop.f32.mrb[0].mxu0
    %v5099 = vpop.f32.mrb[0].mxu0
    %5100 = vdwg.mxu0
    %5101 = vmatprep.subr.bf16.mxu0 0
    %5102 = vmatpush1.bf16.msra.mxu0 %v4567
    %5103 = vmatprep.subr.bf16.mxu0 0
    %5104 = vmatpush1.bf16.msra.mxu0 %v4570
    %5105 = vmatprep.subr.bf16.mxu0 0
    %5106 = vmatpush1.bf16.msra.mxu0 %v4573
    %5107 = vmatprep.subr.bf16.mxu0 0
    %5108 = vmatpush1.bf16.msra.mxu0 %v4576
    %5109 = vmatprep.subr.bf16.mxu0 0
    %5110 = vmatpush1.bf16.msra.mxu0 %v4579
    %5111 = vmatprep.subr.bf16.mxu0 0
    %5112 = vmatpush1.bf16.msra.mxu0 %v4582
    %5113 = vmatprep.subr.bf16.mxu0 0
    %5114 = vmatpush1.bf16.msra.mxu0 %v4585
    %5115 = vmatprep.subr.bf16.mxu0 0
    %5116 = vmatpush1.bf16.msra.mxu0 %v4588
    %5117 = vmatprep.subr.bf16.mxu0 0
    %5118 = vmatpush1.bf16.msra.mxu0 %v4591
    %5119 = vmatprep.subr.bf16.mxu0 0
    %5120 = vmatpush1.bf16.msra.mxu0 %v4594
    %5121 = vmatprep.subr.bf16.mxu0 0
    %5122 = vmatpush1.bf16.msra.mxu0 %v4597
    %5123 = vmatprep.subr.bf16.mxu0 0
    %5124 = vmatpush1.bf16.msra.mxu0 %v4600
    %5125 = vmatprep.subr.bf16.mxu0 0
    %5126 = vmatpush1.bf16.msra.mxu0 %v4603
    %5127 = vmatprep.subr.bf16.mxu0 0
    %5128 = vmatpush1.bf16.msra.mxu0 %v4606
    %5129 = vmatprep.subr.bf16.mxu0 0
    %5130 = vmatpush1.bf16.msra.mxu0 %v4609
    %5131 = vmatprep.subr.bf16.mxu0 0
    %5132 = vmatpush1.bf16.msra.mxu0 %v4612
    %5133 = vmatprep.mubr.bf16.mxu0 %v5017
    %5134 = vmatmul.mubr.bf16.gmra.mrb[0].mxu0 %v5016
    %v5135 = vpop.f32.mrb[0].mxu0
    %v5136 = vadd.f32 0.0, %v5135
    %v5137 = vpop.f32.mrb[0].mxu0
    %v5138 = vpop.f32.mrb[0].mxu0
    %v5139 = vpop.f32.mrb[0].mxu0
    %5140 = vdwg.mxu0
    %5141 = vmatprep.subr.bf16.mxu0 0
    %5142 = vmatpush1.bf16.msra.mxu0 %v4615
    %5143 = vmatprep.subr.bf16.mxu0 0
    %5144 = vmatpush1.bf16.msra.mxu0 %v4618
    %5145 = vmatprep.subr.bf16.mxu0 0
    %5146 = vmatpush1.bf16.msra.mxu0 %v4621
    %5147 = vmatprep.subr.bf16.mxu0 0
    %5148 = vmatpush1.bf16.msra.mxu0 %v4624
    %5149 = vmatprep.subr.bf16.mxu0 0
    %5150 = vmatpush1.bf16.msra.mxu0 %v4627
    %5151 = vmatprep.subr.bf16.mxu0 0
    %5152 = vmatpush1.bf16.msra.mxu0 %v4630
    %5153 = vmatprep.subr.bf16.mxu0 0
    %5154 = vmatpush1.bf16.msra.mxu0 %v4633
    %5155 = vmatprep.subr.bf16.mxu0 0
    %5156 = vmatpush1.bf16.msra.mxu0 %v4636
    %5157 = vmatprep.subr.bf16.mxu0 0
    %5158 = vmatpush1.bf16.msra.mxu0 0
    %5159 = vmatprep.subr.bf16.mxu0 0
    %5160 = vmatpush1.bf16.msra.mxu0 0
    %5161 = vmatprep.subr.bf16.mxu0 0
    %5162 = vmatpush1.bf16.msra.mxu0 0
    %5163 = vmatprep.subr.bf16.mxu0 0
    %5164 = vmatpush1.bf16.msra.mxu0 0
    %5165 = vmatprep.subr.bf16.mxu0 0
    %5166 = vmatpush1.bf16.msra.mxu0 0
    %5167 = vmatprep.subr.bf16.mxu0 0
    %5168 = vmatpush1.bf16.msra.mxu0 0
    %5169 = vmatprep.subr.bf16.mxu0 0
    %5170 = vmatpush1.bf16.msra.mxu0 0
    %5171 = vmatprep.subr.bf16.mxu0 0
    %5172 = vmatpush1.bf16.msra.mxu0 0
    %5173 = vmatprep.mubr.bf16.mxu0 0
    %5174 = vmatmul.mubr.bf16.gmra.mrb[0].mxu0 %v5018
    %v5175 = vpop.f32.mrb[0].mxu0
    %v5176 = vadd.f32 %v5136, %v5175
    %v5177 = vpop.f32.mrb[0].mxu0
    %v5178 = vpop.f32.mrb[0].mxu0
    %v5179 = vpop.f32.mrb[0].mxu0
    %5180 = vdwg.mxu0
    %v5184 = vrot.slane %v5095, 7
    %v5185 = vrot.slane %v5097, 7
    %v5186 = vrot.slane %v5176, 7
    %v5190 = vadd.f32 %v4830, %v5184
    %v5191 = vadd.f32 %v4831, %v5185
    %v5192 = vadd.f32 %v4832, %v5186
    %v5193 = vtanh.pop %v5190
    %v5194 = vtanh.pop %v5191
    %v5195 = vtanh.pop %v5192
    %v5196 = vpack.c.bf16 %v5193, %v5193
    %v5197 = vpack.c.bf16 %v5194, %v5194
    %v5198 = vpack.c.bf16 %v5195, %v5195
    %v5200 = vshrl.u32 %v5196, 16
    %v5203 = vshrl.u32 %v5197, 16
    %v5206 = vshrl.u32 %v5198, 16
    %5211 = vmatprep.subr.bf16.mxu0 %v4566
    %5212 = vmatpush1.bf16.msra.mxu0 %v4565
    %5213 = vmatprep.subr.bf16.mxu0 %v4569
    %5214 = vmatpush1.bf16.msra.mxu0 %v4568
    %5215 = vmatprep.subr.bf16.mxu0 %v4572
    %5216 = vmatpush1.bf16.msra.mxu0 %v4571
    %5217 = vmatprep.subr.bf16.mxu0 %v4575
    %5218 = vmatpush1.bf16.msra.mxu0 %v4574
    %5219 = vmatprep.subr.bf16.mxu0 %v4578
    %5220 = vmatpush1.bf16.msra.mxu0 %v4577
    %5221 = vmatprep.subr.bf16.mxu0 %v4581
    %5222 = vmatpush1.bf16.msra.mxu0 %v4580
    %5223 = vmatprep.subr.bf16.mxu0 %v4584
    %5224 = vmatpush1.bf16.msra.mxu0 %v4583
    %5225 = vmatprep.subr.bf16.mxu0 %v4587
    %5226 = vmatpush1.bf16.msra.mxu0 %v4586
    %5227 = vmatprep.subr.bf16.mxu0 %v4590
    %5228 = vmatpush1.bf16.msra.mxu0 %v4589
    %5229 = vmatprep.subr.bf16.mxu0 %v4593
    %5230 = vmatpush1.bf16.msra.mxu0 %v4592
    %5231 = vmatprep.subr.bf16.mxu0 %v4596
    %5232 = vmatpush1.bf16.msra.mxu0 %v4595
    %5233 = vmatprep.subr.bf16.mxu0 %v4599
    %5234 = vmatpush1.bf16.msra.mxu0 %v4598
    %5235 = vmatprep.subr.bf16.mxu0 %v4602
    %5236 = vmatpush1.bf16.msra.mxu0 %v4601
    %5237 = vmatprep.subr.bf16.mxu0 %v4605
    %5238 = vmatpush1.bf16.msra.mxu0 %v4604
    %5239 = vmatprep.subr.bf16.mxu0 %v4608
    %5240 = vmatpush1.bf16.msra.mxu0 %v4607
    %5241 = vmatprep.subr.bf16.mxu0 %v4611
    %5242 = vmatpush1.bf16.msra.mxu0 %v4610
    %5243 = vmatprep.mubr.bf16.mxu0 %v5203
    %5244 = vmatmul.mubr.bf16.gmra.mrb[0].mxu0 %v5200
    %v5245 = vpop.f32.mrb[0].mxu0
    %v5246 = vadd.f32 0.0, %v5245
    %v5247 = vpop.f32.mrb[0].mxu0
    %v5248 = vadd.f32 0.0, %v5247
    %v5249 = vpop.f32.mrb[0].mxu0
    %v5250 = vpop.f32.mrb[0].mxu0
    %5251 = vdwg.mxu0
    %5252 = vmatprep.subr.bf16.mxu0 %v4614
    %5253 = vmatpush1.bf16.msra.mxu0 %v4613
    %5254 = vmatprep.subr.bf16.mxu0 %v4617
    %5255 = vmatpush1.bf16.msra.mxu0 %v4616
    %5256 = vmatprep.subr.bf16.mxu0 %v4620
    %5257 = vmatpush1.bf16.msra.mxu0 %v4619
    %5258 = vmatprep.subr.bf16.mxu0 %v4623
    %5259 = vmatpush1.bf16.msra.mxu0 %v4622
    %5260 = vmatprep.subr.bf16.mxu0 %v4626
    %5261 = vmatpush1.bf16.msra.mxu0 %v4625
    %5262 = vmatprep.subr.bf16.mxu0 %v4629
    %5263 = vmatpush1.bf16.msra.mxu0 %v4628
    %5264 = vmatprep.subr.bf16.mxu0 %v4632
    %5265 = vmatpush1.bf16.msra.mxu0 %v4631
    %5266 = vmatprep.subr.bf16.mxu0 %v4635
    %5267 = vmatpush1.bf16.msra.mxu0 %v4634
    %5268 = vmatprep.subr.bf16.mxu0 0
    %5269 = vmatpush1.bf16.msra.mxu0 0
    %5270 = vmatprep.subr.bf16.mxu0 0
    %5271 = vmatpush1.bf16.msra.mxu0 0
    %5272 = vmatprep.subr.bf16.mxu0 0
    %5273 = vmatpush1.bf16.msra.mxu0 0
    %5274 = vmatprep.subr.bf16.mxu0 0
    %5275 = vmatpush1.bf16.msra.mxu0 0
    %5276 = vmatprep.subr.bf16.mxu0 0
    %5277 = vmatpush1.bf16.msra.mxu0 0
    %5278 = vmatprep.subr.bf16.mxu0 0
    %5279 = vmatpush1.bf16.msra.mxu0 0
    %5280 = vmatprep.subr.bf16.mxu0 0
    %5281 = vmatpush1.bf16.msra.mxu0 0
    %5282 = vmatprep.subr.bf16.mxu0 0
    %5283 = vmatpush1.bf16.msra.mxu0 0
    %5284 = vmatprep.mubr.bf16.mxu0 0
    %5285 = vmatmul.mubr.bf16.gmra.mrb[0].mxu0 %v5206
    %v5286 = vpop.f32.mrb[0].mxu0
    %v5287 = vadd.f32 %v5246, %v5286
    %v5288 = vpop.f32.mrb[0].mxu0
    %v5289 = vadd.f32 %v5248, %v5288
    %v5290 = vpop.f32.mrb[0].mxu0
    %v5291 = vpop.f32.mrb[0].mxu0
    %5292 = vdwg.mxu0
    %5293 = vmatprep.subr.bf16.mxu0 0
    %5294 = vmatpush1.bf16.msra.mxu0 %v4567
    %5295 = vmatprep.subr.bf16.mxu0 0
    %5296 = vmatpush1.bf16.msra.mxu0 %v4570
    %5297 = vmatprep.subr.bf16.mxu0 0
    %5298 = vmatpush1.bf16.msra.mxu0 %v4573
    %5299 = vmatprep.subr.bf16.mxu0 0
    %5300 = vmatpush1.bf16.msra.mxu0 %v4576
    %5301 = vmatprep.subr.bf16.mxu0 0
    %5302 = vmatpush1.bf16.msra.mxu0 %v4579
    %5303 = vmatprep.subr.bf16.mxu0 0
    %5304 = vmatpush1.bf16.msra.mxu0 %v4582
    %5305 = vmatprep.subr.bf16.mxu0 0
    %5306 = vmatpush1.bf16.msra.mxu0 %v4585
    %5307 = vmatprep.subr.bf16.mxu0 0
    %5308 = vmatpush1.bf16.msra.mxu0 %v4588
    %5309 = vmatprep.subr.bf16.mxu0 0
    %5310 = vmatpush1.bf16.msra.mxu0 %v4591
    %5311 = vmatprep.subr.bf16.mxu0 0
    %5312 = vmatpush1.bf16.msra.mxu0 %v4594
    %5313 = vmatprep.subr.bf16.mxu0 0
    %5314 = vmatpush1.bf16.msra.mxu0 %v4597
    %5315 = vmatprep.subr.bf16.mxu0 0
    %5316 = vmatpush1.bf16.msra.mxu0 %v4600
    %5317 = vmatprep.subr.bf16.mxu0 0
    %5318 = vmatpush1.bf16.msra.mxu0 %v4603
    %5319 = vmatprep.subr.bf16.mxu0 0
    %5320 = vmatpush1.bf16.msra.mxu0 %v4606
    %5321 = vmatprep.subr.bf16.mxu0 0
    %5322 = vmatpush1.bf16.msra.mxu0 %v4609
    %5323 = vmatprep.subr.bf16.mxu0 0
    %5324 = vmatpush1.bf16.msra.mxu0 %v4612
    %5325 = vmatprep.mubr.bf16.mxu0 %v5203
    %5326 = vmatmul.mubr.bf16.gmra.mrb[0].mxu0 %v5200
    %v5327 = vpop.f32.mrb[0].mxu0
    %v5328 = vadd.f32 0.0, %v5327
    %v5329 = vpop.f32.mrb[0].mxu0
    %v5330 = vpop.f32.mrb[0].mxu0
    %v5331 = vpop.f32.mrb[0].mxu0
    %5332 = vdwg.mxu0
    %5333 = vmatprep.subr.bf16.mxu0 0
    %5334 = vmatpush1.bf16.msra.mxu0 %v4615
    %5335 = vmatprep.subr.bf16.mxu0 0
    %5336 = vmatpush1.bf16.msra.mxu0 %v4618
    %5337 = vmatprep.subr.bf16.mxu0 0
    %5338 = vmatpush1.bf16.msra.mxu0 %v4621
    %5339 = vmatprep.subr.bf16.mxu0 0
    %5340 = vmatpush1.bf16.msra.mxu0 %v4624
    %5341 = vmatprep.subr.bf16.mxu0 0
    %5342 = vmatpush1.bf16.msra.mxu0 %v4627
    %5343 = vmatprep.subr.bf16.mxu0 0
    %5344 = vmatpush1.bf16.msra.mxu0 %v4630
    %5345 = vmatprep.subr.bf16.mxu0 0
    %5346 = vmatpush1.bf16.msra.mxu0 %v4633
    %5347 = vmatprep.subr.bf16.mxu0 0
    %5348 = vmatpush1.bf16.msra.mxu0 %v4636
    %5349 = vmatprep.subr.bf16.mxu0 0
    %5350 = vmatpush1.bf16.msra.mxu0 0
    %5351 = vmatprep.subr.bf16.mxu0 0
    %5352 = vmatpush1.bf16.msra.mxu0 0
    %5353 = vmatprep.subr.bf16.mxu0 0
    %5354 = vmatpush1.bf16.msra.mxu0 0
    %5355 = vmatprep.subr.bf16.mxu0 0
    %5356 = vmatpush1.bf16.msra.mxu0 0
    %5357 = vmatprep.subr.bf16.mxu0 0
    %5358 = vmatpush1.bf16.msra.mxu0 0
    %5359 = vmatprep.subr.bf16.mxu0 0
    %5360 = vmatpush1.bf16.msra.mxu0 0
    %5361 = vmatprep.subr.bf16.mxu0 0
    %5362 = vmatpush1.bf16.msra.mxu0 0
    %5363 = vmatprep.subr.bf16.mxu0 0
    %5364 = vmatpush1.bf16.msra.mxu0 0
    %5365 = vmatprep.mubr.bf16.mxu0 0
    %5366 = vmatmul.mubr.bf16.gmra.mrb[0].mxu0 %v5206
    %v5367 = vpop.f32.mrb[0].mxu0
    %v5368 = vadd.f32 %v5328, %v5367
    %v5369 = vpop.f32.mrb[0].mxu0
    %v5370 = vpop.f32.mrb[0].mxu0
    %v5371 = vpop.f32.mrb[0].mxu0
    %5372 = vdwg.mxu0
    %v5376 = vrot.slane %v5287, 6
    %v5377 = vrot.slane %v5289, 6
    %v5378 = vrot.slane %v5368, 6
    %v5382 = vadd.f32 %v4830, %v5376
    %v5383 = vadd.f32 %v4831, %v5377
    %v5384 = vadd.f32 %v4832, %v5378
    %v5385 = vtanh.pop %v5382
    %v5386 = vtanh.pop %v5383
    %v5387 = vtanh.pop %v5384
    %v5388 = vpack.c.bf16 %v5385, %v5385
    %v5389 = vpack.c.bf16 %v5386, %v5386
    %v5390 = vpack.c.bf16 %v5387, %v5387
    %v5394 = vrot.slane %v5388, 1
    %v5395 = vrot.slane %v5389, 1
    %v5396 = vrot.slane %v5390, 1
    %5400 = vmatprep.subr.bf16.mxu0 %v4566
    %5401 = vmatpush1.bf16.msra.mxu0 %v4565
    %5402 = vmatprep.subr.bf16.mxu0 %v4569
    %5403 = vmatpush1.bf16.msra.mxu0 %v4568
    %5404 = vmatprep.subr.bf16.mxu0 %v4572
    %5405 = vmatpush1.bf16.msra.mxu0 %v4571
    %5406 = vmatprep.subr.bf16.mxu0 %v4575
    %5407 = vmatpush1.bf16.msra.mxu0 %v4574
    %5408 = vmatprep.subr.bf16.mxu0 %v4578
    %5409 = vmatpush1.bf16.msra.mxu0 %v4577
    %5410 = vmatprep.subr.bf16.mxu0 %v4581
    %5411 = vmatpush1.bf16.msra.mxu0 %v4580
    %5412 = vmatprep.subr.bf16.mxu0 %v4584
    %5413 = vmatpush1.bf16.msra.mxu0 %v4583
    %5414 = vmatprep.subr.bf16.mxu0 %v4587
    %5415 = vmatpush1.bf16.msra.mxu0 %v4586
    %5416 = vmatprep.subr.bf16.mxu0 %v4590
    %5417 = vmatpush1.bf16.msra.mxu0 %v4589
    %5418 = vmatprep.subr.bf16.mxu0 %v4593
    %5419 = vmatpush1.bf16.msra.mxu0 %v4592
    %5420 = vmatprep.subr.bf16.mxu0 %v4596
    %5421 = vmatpush1.bf16.msra.mxu0 %v4595
    %5422 = vmatprep.subr.bf16.mxu0 %v4599
    %5423 = vmatpush1.bf16.msra.mxu0 %v4598
    %5424 = vmatprep.subr.bf16.mxu0 %v4602
    %5425 = vmatpush1.bf16.msra.mxu0 %v4601
    %5426 = vmatprep.subr.bf16.mxu0 %v4605
    %5427 = vmatpush1.bf16.msra.mxu0 %v4604
    %5428 = vmatprep.subr.bf16.mxu0 %v4608
    %5429 = vmatpush1.bf16.msra.mxu0 %v4607
    %5430 = vmatprep.subr.bf16.mxu0 %v4611
    %5431 = vmatpush1.bf16.msra.mxu0 %v4610
    %5432 = vmatprep.mubr.bf16.mxu0 %v5395
    %5433 = vmatmul.mubr.bf16.gmra.mrb[0].mxu0 %v5394
    %v5434 = vpop.f32.mrb[0].mxu0
    %v5435 = vadd.f32 0.0, %v5434
    %v5436 = vpop.f32.mrb[0].mxu0
    %v5437 = vadd.f32 0.0, %v5436
    %v5438 = vpop.f32.mrb[0].mxu0
    %v5439 = vpop.f32.mrb[0].mxu0
    %5440 = vdwg.mxu0
    %5441 = vmatprep.subr.bf16.mxu0 %v4614
    %5442 = vmatpush1.bf16.msra.mxu0 %v4613
    %5443 = vmatprep.subr.bf16.mxu0 %v4617
    %5444 = vmatpush1.bf16.msra.mxu0 %v4616
    %5445 = vmatprep.subr.bf16.mxu0 %v4620
    %5446 = vmatpush1.bf16.msra.mxu0 %v4619
    %5447 = vmatprep.subr.bf16.mxu0 %v4623
    %5448 = vmatpush1.bf16.msra.mxu0 %v4622
    %5449 = vmatprep.subr.bf16.mxu0 %v4626
    %5450 = vmatpush1.bf16.msra.mxu0 %v4625
    %5451 = vmatprep.subr.bf16.mxu0 %v4629
    %5452 = vmatpush1.bf16.msra.mxu0 %v4628
    %5453 = vmatprep.subr.bf16.mxu0 %v4632
    %5454 = vmatpush1.bf16.msra.mxu0 %v4631
    %5455 = vmatprep.subr.bf16.mxu0 %v4635
    %5456 = vmatpush1.bf16.msra.mxu0 %v4634
    %5457 = vmatprep.subr.bf16.mxu0 0
    %5458 = vmatpush1.bf16.msra.mxu0 0
    %5459 = vmatprep.subr.bf16.mxu0 0
    %5460 = vmatpush1.bf16.msra.mxu0 0
    %5461 = vmatprep.subr.bf16.mxu0 0
    %5462 = vmatpush1.bf16.msra.mxu0 0
    %5463 = vmatprep.subr.bf16.mxu0 0
    %5464 = vmatpush1.bf16.msra.mxu0 0
    %5465 = vmatprep.subr.bf16.mxu0 0
    %5466 = vmatpush1.bf16.msra.mxu0 0
    %5467 = vmatprep.subr.bf16.mxu0 0
    %5468 = vmatpush1.bf16.msra.mxu0 0
    %5469 = vmatprep.subr.bf16.mxu0 0
    %5470 = vmatpush1.bf16.msra.mxu0 0
    %5471 = vmatprep.subr.bf16.mxu0 0
    %5472 = vmatpush1.bf16.msra.mxu0 0
    %5473 = vmatprep.mubr.bf16.mxu0 0
    %5474 = vmatmul.mubr.bf16.gmra.mrb[0].mxu0 %v5396
    %v5475 = vpop.f32.mrb[0].mxu0
    %v5476 = vadd.f32 %v5435, %v5475
    %v5477 = vpop.f32.mrb[0].mxu0
    %v5478 = vadd.f32 %v5437, %v5477
    %v5479 = vpop.f32.mrb[0].mxu0
    %v5480 = vpop.f32.mrb[0].mxu0
    %5481 = vdwg.mxu0
    %5482 = vmatprep.subr.bf16.mxu0 0
    %5483 = vmatpush1.bf16.msra.mxu0 %v4567
    %5484 = vmatprep.subr.bf16.mxu0 0
    %5485 = vmatpush1.bf16.msra.mxu0 %v4570
    %5486 = vmatprep.subr.bf16.mxu0 0
    %5487 = vmatpush1.bf16.msra.mxu0 %v4573
    %5488 = vmatprep.subr.bf16.mxu0 0
    %5489 = vmatpush1.bf16.msra.mxu0 %v4576
    %5490 = vmatprep.subr.bf16.mxu0 0
    %5491 = vmatpush1.bf16.msra.mxu0 %v4579
    %5492 = vmatprep.subr.bf16.mxu0 0
    %5493 = vmatpush1.bf16.msra.mxu0 %v4582
    %5494 = vmatprep.subr.bf16.mxu0 0
    %5495 = vmatpush1.bf16.msra.mxu0 %v4585
    %5496 = vmatprep.subr.bf16.mxu0 0
    %5497 = vmatpush1.bf16.msra.mxu0 %v4588
    %5498 = vmatprep.subr.bf16.mxu0 0
    %5499 = vmatpush1.bf16.msra.mxu0 %v4591
    %5500 = vmatprep.subr.bf16.mxu0 0
    %5501 = vmatpush1.bf16.msra.mxu0 %v4594
    %5502 = vmatprep.subr.bf16.mxu0 0
    %5503 = vmatpush1.bf16.msra.mxu0 %v4597
    %5504 = vmatprep.subr.bf16.mxu0 0
    %5505 = vmatpush1.bf16.msra.mxu0 %v4600
    %5506 = vmatprep.subr.bf16.mxu0 0
    %5507 = vmatpush1.bf16.msra.mxu0 %v4603
    %5508 = vmatprep.subr.bf16.mxu0 0
    %5509 = vmatpush1.bf16.msra.mxu0 %v4606
    %5510 = vmatprep.subr.bf16.mxu0 0
    %5511 = vmatpush1.bf16.msra.mxu0 %v4609
    %5512 = vmatprep.subr.bf16.mxu0 0
    %5513 = vmatpush1.bf16.msra.mxu0 %v4612
    %5514 = vmatprep.mubr.bf16.mxu0 %v5395
    %5515 = vmatmul.mubr.bf16.gmra.mrb[0].mxu0 %v5394
    %v5516 = vpop.f32.mrb[0].mxu0
    %v5517 = vadd.f32 0.0, %v5516
    %v5518 = vpop.f32.mrb[0].mxu0
    %v5519 = vpop.f32.mrb[0].mxu0
    %v5520 = vpop.f32.mrb[0].mxu0
    %5521 = vdwg.mxu0
    %5522 = vmatprep.subr.bf16.mxu0 0
    %5523 = vmatpush1.bf16.msra.mxu0 %v4615
    %5524 = vmatprep.subr.bf16.mxu0 0
    %5525 = vmatpush1.bf16.msra.mxu0 %v4618
    %5526 = vmatprep.subr.bf16.mxu0 0
    %5527 = vmatpush1.bf16.msra.mxu0 %v4621
    %5528 = vmatprep.subr.bf16.mxu0 0
    %5529 = vmatpush1.bf16.msra.mxu0 %v4624
    %5530 = vmatprep.subr.bf16.mxu0 0
    %5531 = vmatpush1.bf16.msra.mxu0 %v4627
    %5532 = vmatprep.subr.bf16.mxu0 0
    %5533 = vmatpush1.bf16.msra.mxu0 %v4630
    %5534 = vmatprep.subr.bf16.mxu0 0
    %5535 = vmatpush1.bf16.msra.mxu0 %v4633
    %5536 = vmatprep.subr.bf16.mxu0 0
    %5537 = vmatpush1.bf16.msra.mxu0 %v4636
    %5538 = vmatprep.subr.bf16.mxu0 0
    %5539 = vmatpush1.bf16.msra.mxu0 0
    %5540 = vmatprep.subr.bf16.mxu0 0
    %5541 = vmatpush1.bf16.msra.mxu0 0
    %5542 = vmatprep.subr.bf16.mxu0 0
    %5543 = vmatpush1.bf16.msra.mxu0 0
    %5544 = vmatprep.subr.bf16.mxu0 0
    %5545 = vmatpush1.bf16.msra.mxu0 0
    %5546 = vmatprep.subr.bf16.mxu0 0
    %5547 = vmatpush1.bf16.msra.mxu0 0
    %5548 = vmatprep.subr.bf16.mxu0 0
    %5549 = vmatpush1.bf16.msra.mxu0 0
    %5550 = vmatprep.subr.bf16.mxu0 0
    %5551 = vmatpush1.bf16.msra.mxu0 0
    %5552 = vmatprep.subr.bf16.mxu0 0
    %5553 = vmatpush1.bf16.msra.mxu0 0
    %5554 = vmatprep.mubr.bf16.mxu0 0
    %5555 = vmatmul.mubr.bf16.gmra.mrb[0].mxu0 %v5396
    %v5556 = vpop.f32.mrb[0].mxu0
    %v5557 = vadd.f32 %v5517, %v5556
    %v5558 = vpop.f32.mrb[0].mxu0
    %v5559 = vpop.f32.mrb[0].mxu0
    %v5560 = vpop.f32.mrb[0].mxu0
    %5561 = vdwg.mxu0
    %v5565 = vrot.slane %v5476, 5
    %v5566 = vrot.slane %v5478, 5
    %v5567 = vrot.slane %v5557, 5
    %v5571 = vadd.f32 %v4830, %v5565
    %v5572 = vadd.f32 %v4831, %v5566
    %v5573 = vadd.f32 %v4832, %v5567
    %v5574 = vtanh.pop %v5571
    %v5575 = vtanh.pop %v5572
    %v5576 = vtanh.pop %v5573
    %v5577 = vpack.c.bf16 %v5574, %v5574
    %v5578 = vpack.c.bf16 %v5575, %v5575
    %v5579 = vpack.c.bf16 %v5576, %v5576
    %v5581 = vshrl.u32 %v5577, 16
    %v5583 = vrot.slane %v5581, 1
    %v5585 = vshrl.u32 %v5578, 16
    %v5587 = vrot.slane %v5585, 1
    %v5589 = vshrl.u32 %v5579, 16
    %v5591 = vrot.slane %v5589, 1
    %5595 = vmatprep.subr.bf16.mxu0 %v4566
    %5596 = vmatpush1.bf16.msra.mxu0 %v4565
    %5597 = vmatprep.subr.bf16.mxu0 %v4569
    %5598 = vmatpush1.bf16.msra.mxu0 %v4568
    %5599 = vmatprep.subr.bf16.mxu0 %v4572
    %5600 = vmatpush1.bf16.msra.mxu0 %v4571
    %5601 = vmatprep.subr.bf16.mxu0 %v4575
    %5602 = vmatpush1.bf16.msra.mxu0 %v4574
    %5603 = vmatprep.subr.bf16.mxu0 %v4578
    %5604 = vmatpush1.bf16.msra.mxu0 %v4577
    %5605 = vmatprep.subr.bf16.mxu0 %v4581
    %5606 = vmatpush1.bf16.msra.mxu0 %v4580
    %5607 = vmatprep.subr.bf16.mxu0 %v4584
    %5608 = vmatpush1.bf16.msra.mxu0 %v4583
    %5609 = vmatprep.subr.bf16.mxu0 %v4587
    %5610 = vmatpush1.bf16.msra.mxu0 %v4586
    %5611 = vmatprep.subr.bf16.mxu0 %v4590
    %5612 = vmatpush1.bf16.msra.mxu0 %v4589
    %5613 = vmatprep.subr.bf16.mxu0 %v4593
    %5614 = vmatpush1.bf16.msra.mxu0 %v4592
    %5615 = vmatprep.subr.bf16.mxu0 %v4596
    %5616 = vmatpush1.bf16.msra.mxu0 %v4595
    %5617 = vmatprep.subr.bf16.mxu0 %v4599
    %5618 = vmatpush1.bf16.msra.mxu0 %v4598
    %5619 = vmatprep.subr.bf16.mxu0 %v4602
    %5620 = vmatpush1.bf16.msra.mxu0 %v4601
    %5621 = vmatprep.subr.bf16.mxu0 %v4605
    %5622 = vmatpush1.bf16.msra.mxu0 %v4604
    %5623 = vmatprep.subr.bf16.mxu0 %v4608
    %5624 = vmatpush1.bf16.msra.mxu0 %v4607
    %5625 = vmatprep.subr.bf16.mxu0 %v4611
    %5626 = vmatpush1.bf16.msra.mxu0 %v4610
    %5627 = vmatprep.mubr.bf16.mxu0 %v5587
    %5628 = vmatmul.mubr.bf16.gmra.mrb[0].mxu0 %v5583
    %v5629 = vpop.f32.mrb[0].mxu0
    %v5630 = vadd.f32 0.0, %v5629
    %v5631 = vpop.f32.mrb[0].mxu0
    %v5632 = vadd.f32 0.0, %v5631
    %v5633 = vpop.f32.mrb[0].mxu0
    %v5634 = vpop.f32.mrb[0].mxu0
    %5635 = vdwg.mxu0
    %5636 = vmatprep.subr.bf16.mxu0 %v4614
    %5637 = vmatpush1.bf16.msra.mxu0 %v4613
    %5638 = vmatprep.subr.bf16.mxu0 %v4617
    %5639 = vmatpush1.bf16.msra.mxu0 %v4616
    %5640 = vmatprep.subr.bf16.mxu0 %v4620
    %5641 = vmatpush1.bf16.msra.mxu0 %v4619
    %5642 = vmatprep.subr.bf16.mxu0 %v4623
    %5643 = vmatpush1.bf16.msra.mxu0 %v4622
    %5644 = vmatprep.subr.bf16.mxu0 %v4626
    %5645 = vmatpush1.bf16.msra.mxu0 %v4625
    %5646 = vmatprep.subr.bf16.mxu0 %v4629
    %5647 = vmatpush1.bf16.msra.mxu0 %v4628
    %5648 = vmatprep.subr.bf16.mxu0 %v4632
    %5649 = vmatpush1.bf16.msra.mxu0 %v4631
    %5650 = vmatprep.subr.bf16.mxu0 %v4635
    %5651 = vmatpush1.bf16.msra.mxu0 %v4634
    %5652 = vmatprep.subr.bf16.mxu0 0
    %5653 = vmatpush1.bf16.msra.mxu0 0
    %5654 = vmatprep.subr.bf16.mxu0 0
    %5655 = vmatpush1.bf16.msra.mxu0 0
    %5656 = vmatprep.subr.bf16.mxu0 0
    %5657 = vmatpush1.bf16.msra.mxu0 0
    %5658 = vmatprep.subr.bf16.mxu0 0
    %5659 = vmatpush1.bf16.msra.mxu0 0
    %5660 = vmatprep.subr.bf16.mxu0 0
    %5661 = vmatpush1.bf16.msra.mxu0 0
    %5662 = vmatprep.subr.bf16.mxu0 0
    %5663 = vmatpush1.bf16.msra.mxu0 0
    %5664 = vmatprep.subr.bf16.mxu0 0
    %5665 = vmatpush1.bf16.msra.mxu0 0
    %5666 = vmatprep.subr.bf16.mxu0 0
    %5667 = vmatpush1.bf16.msra.mxu0 0
    %5668 = vmatprep.mubr.bf16.mxu0 0
    %5669 = vmatmul.mubr.bf16.gmra.mrb[0].mxu0 %v5591
    %v5670 = vpop.f32.mrb[0].mxu0
    %v5671 = vadd.f32 %v5630, %v5670
    %v5672 = vpop.f32.mrb[0].mxu0
    %v5673 = vadd.f32 %v5632, %v5672
    %v5674 = vpop.f32.mrb[0].mxu0
    %v5675 = vpop.f32.mrb[0].mxu0
    %5676 = vdwg.mxu0
    %5677 = vmatprep.subr.bf16.mxu0 0
    %5678 = vmatpush1.bf16.msra.mxu0 %v4567
    %5679 = vmatprep.subr.bf16.mxu0 0
    %5680 = vmatpush1.bf16.msra.mxu0 %v4570
    %5681 = vmatprep.subr.bf16.mxu0 0
    %5682 = vmatpush1.bf16.msra.mxu0 %v4573
    %5683 = vmatprep.subr.bf16.mxu0 0
    %5684 = vmatpush1.bf16.msra.mxu0 %v4576
    %5685 = vmatprep.subr.bf16.mxu0 0
    %5686 = vmatpush1.bf16.msra.mxu0 %v4579
    %5687 = vmatprep.subr.bf16.mxu0 0
    %5688 = vmatpush1.bf16.msra.mxu0 %v4582
    %5689 = vmatprep.subr.bf16.mxu0 0
    %5690 = vmatpush1.bf16.msra.mxu0 %v4585
    %5691 = vmatprep.subr.bf16.mxu0 0
    %5692 = vmatpush1.bf16.msra.mxu0 %v4588
    %5693 = vmatprep.subr.bf16.mxu0 0
    %5694 = vmatpush1.bf16.msra.mxu0 %v4591
    %5695 = vmatprep.subr.bf16.mxu0 0
    %5696 = vmatpush1.bf16.msra.mxu0 %v4594
    %5697 = vmatprep.subr.bf16.mxu0 0
    %5698 = vmatpush1.bf16.msra.mxu0 %v4597
    %5699 = vmatprep.subr.bf16.mxu0 0
    %5700 = vmatpush1.bf16.msra.mxu0 %v4600
    %5701 = vmatprep.subr.bf16.mxu0 0
    %5702 = vmatpush1.bf16.msra.mxu0 %v4603
    %5703 = vmatprep.subr.bf16.mxu0 0
    %5704 = vmatpush1.bf16.msra.mxu0 %v4606
    %5705 = vmatprep.subr.bf16.mxu0 0
    %5706 = vmatpush1.bf16.msra.mxu0 %v4609
    %5707 = vmatprep.subr.bf16.mxu0 0
    %5708 = vmatpush1.bf16.msra.mxu0 %v4612
    %5709 = vmatprep.mubr.bf16.mxu0 %v5587
    %5710 = vmatmul.mubr.bf16.gmra.mrb[0].mxu0 %v5583
    %v5711 = vpop.f32.mrb[0].mxu0
    %v5712 = vadd.f32 0.0, %v5711
    %v5713 = vpop.f32.mrb[0].mxu0
    %v5714 = vpop.f32.mrb[0].mxu0
    %v5715 = vpop.f32.mrb[0].mxu0
    %5716 = vdwg.mxu0
    %5717 = vmatprep.subr.bf16.mxu0 0
    %5718 = vmatpush1.bf16.msra.mxu0 %v4615
    %5719 = vmatprep.subr.bf16.mxu0 0
    %5720 = vmatpush1.bf16.msra.mxu0 %v4618
    %5721 = vmatprep.subr.bf16.mxu0 0
    %5722 = vmatpush1.bf16.msra.mxu0 %v4621
    %5723 = vmatprep.subr.bf16.mxu0 0
    %5724 = vmatpush1.bf16.msra.mxu0 %v4624
    %5725 = vmatprep.subr.bf16.mxu0 0
    %5726 = vmatpush1.bf16.msra.mxu0 %v4627
    %5727 = vmatprep.subr.bf16.mxu0 0
    %5728 = vmatpush1.bf16.msra.mxu0 %v4630
    %5729 = vmatprep.subr.bf16.mxu0 0
    %5730 = vmatpush1.bf16.msra.mxu0 %v4633
    %5731 = vmatprep.subr.bf16.mxu0 0
    %5732 = vmatpush1.bf16.msra.mxu0 %v4636
    %5733 = vmatprep.subr.bf16.mxu0 0
    %5734 = vmatpush1.bf16.msra.mxu0 0
    %5735 = vmatprep.subr.bf16.mxu0 0
    %5736 = vmatpush1.bf16.msra.mxu0 0
    %5737 = vmatprep.subr.bf16.mxu0 0
    %5738 = vmatpush1.bf16.msra.mxu0 0
    %5739 = vmatprep.subr.bf16.mxu0 0
    %5740 = vmatpush1.bf16.msra.mxu0 0
    %5741 = vmatprep.subr.bf16.mxu0 0
    %5742 = vmatpush1.bf16.msra.mxu0 0
    %5743 = vmatprep.subr.bf16.mxu0 0
    %5744 = vmatpush1.bf16.msra.mxu0 0
    %5745 = vmatprep.subr.bf16.mxu0 0
    %5746 = vmatpush1.bf16.msra.mxu0 0
    %5747 = vmatprep.subr.bf16.mxu0 0
    %5748 = vmatpush1.bf16.msra.mxu0 0
    %5749 = vmatprep.mubr.bf16.mxu0 0
    %5750 = vmatmul.mubr.bf16.gmra.mrb[0].mxu0 %v5591
    %v5751 = vpop.f32.mrb[0].mxu0
    %v5752 = vadd.f32 %v5712, %v5751
    %v5753 = vpop.f32.mrb[0].mxu0
    %v5754 = vpop.f32.mrb[0].mxu0
    %v5755 = vpop.f32.mrb[0].mxu0
    %5756 = vdwg.mxu0
    %v5760 = vrot.slane %v5671, 4
    %v5761 = vrot.slane %v5673, 4
    %v5762 = vrot.slane %v5752, 4
    %v5766 = vadd.f32 %v4830, %v5760
    %v5767 = vadd.f32 %v4831, %v5761
    %v5768 = vadd.f32 %v4832, %v5762
    %v5769 = vtanh.pop %v5766
    %v5770 = vtanh.pop %v5767
    %v5771 = vtanh.pop %v5768
    %v5772 = vpack.c.bf16 %v5769, %v5769
    %v5773 = vpack.c.bf16 %v5770, %v5770
    %v5774 = vpack.c.bf16 %v5771, %v5771
    %v5778 = vrot.slane %v5772, 2
    %v5779 = vrot.slane %v5773, 2
    %v5780 = vrot.slane %v5774, 2
    %5784 = vmatprep.subr.bf16.mxu0 %v4566
    %5785 = vmatpush1.bf16.msra.mxu0 %v4565
    %5786 = vmatprep.subr.bf16.mxu0 %v4569
    %5787 = vmatpush1.bf16.msra.mxu0 %v4568
    %5788 = vmatprep.subr.bf16.mxu0 %v4572
    %5789 = vmatpush1.bf16.msra.mxu0 %v4571
    %5790 = vmatprep.subr.bf16.mxu0 %v4575
    %5791 = vmatpush1.bf16.msra.mxu0 %v4574
    %5792 = vmatprep.subr.bf16.mxu0 %v4578
    %5793 = vmatpush1.bf16.msra.mxu0 %v4577
    %5794 = vmatprep.subr.bf16.mxu0 %v4581
    %5795 = vmatpush1.bf16.msra.mxu0 %v4580
    %5796 = vmatprep.subr.bf16.mxu0 %v4584
    %5797 = vmatpush1.bf16.msra.mxu0 %v4583
    %5798 = vmatprep.subr.bf16.mxu0 %v4587
    %5799 = vmatpush1.bf16.msra.mxu0 %v4586
    %5800 = vmatprep.subr.bf16.mxu0 %v4590
    %5801 = vmatpush1.bf16.msra.mxu0 %v4589
    %5802 = vmatprep.subr.bf16.mxu0 %v4593
    %5803 = vmatpush1.bf16.msra.mxu0 %v4592
    %5804 = vmatprep.subr.bf16.mxu0 %v4596
    %5805 = vmatpush1.bf16.msra.mxu0 %v4595
    %5806 = vmatprep.subr.bf16.mxu0 %v4599
    %5807 = vmatpush1.bf16.msra.mxu0 %v4598
    %5808 = vmatprep.subr.bf16.mxu0 %v4602
    %5809 = vmatpush1.bf16.msra.mxu0 %v4601
    %5810 = vmatprep.subr.bf16.mxu0 %v4605
    %5811 = vmatpush1.bf16.msra.mxu0 %v4604
    %5812 = vmatprep.subr.bf16.mxu0 %v4608
    %5813 = vmatpush1.bf16.msra.mxu0 %v4607
    %5814 = vmatprep.subr.bf16.mxu0 %v4611
    %5815 = vmatpush1.bf16.msra.mxu0 %v4610
    %5816 = vmatprep.mubr.bf16.mxu0 %v5779
    %5817 = vmatmul.mubr.bf16.gmra.mrb[0].mxu0 %v5778
    %v5818 = vpop.f32.mrb[0].mxu0
    %v5819 = vadd.f32 0.0, %v5818
    %v5820 = vpop.f32.mrb[0].mxu0
    %v5821 = vadd.f32 0.0, %v5820
    %v5822 = vpop.f32.mrb[0].mxu0
    %v5823 = vpop.f32.mrb[0].mxu0
    %5824 = vdwg.mxu0
    %5825 = vmatprep.subr.bf16.mxu0 %v4614
    %5826 = vmatpush1.bf16.msra.mxu0 %v4613
    %5827 = vmatprep.subr.bf16.mxu0 %v4617
    %5828 = vmatpush1.bf16.msra.mxu0 %v4616
    %5829 = vmatprep.subr.bf16.mxu0 %v4620
    %5830 = vmatpush1.bf16.msra.mxu0 %v4619
    %5831 = vmatprep.subr.bf16.mxu0 %v4623
    %5832 = vmatpush1.bf16.msra.mxu0 %v4622
    %5833 = vmatprep.subr.bf16.mxu0 %v4626
    %5834 = vmatpush1.bf16.msra.mxu0 %v4625
    %5835 = vmatprep.subr.bf16.mxu0 %v4629
    %5836 = vmatpush1.bf16.msra.mxu0 %v4628
    %5837 = vmatprep.subr.bf16.mxu0 %v4632
    %5838 = vmatpush1.bf16.msra.mxu0 %v4631
    %5839 = vmatprep.subr.bf16.mxu0 %v4635
    %5840 = vmatpush1.bf16.msra.mxu0 %v4634
    %5841 = vmatprep.subr.bf16.mxu0 0
    %5842 = vmatpush1.bf16.msra.mxu0 0
    %5843 = vmatprep.subr.bf16.mxu0 0
    %5844 = vmatpush1.bf16.msra.mxu0 0
    %5845 = vmatprep.subr.bf16.mxu0 0
    %5846 = vmatpush1.bf16.msra.mxu0 0
    %5847 = vmatprep.subr.bf16.mxu0 0
    %5848 = vmatpush1.bf16.msra.mxu0 0
    %5849 = vmatprep.subr.bf16.mxu0 0
    %5850 = vmatpush1.bf16.msra.mxu0 0
    %5851 = vmatprep.subr.bf16.mxu0 0
    %5852 = vmatpush1.bf16.msra.mxu0 0
    %5853 = vmatprep.subr.bf16.mxu0 0
    %5854 = vmatpush1.bf16.msra.mxu0 0
    %5855 = vmatprep.subr.bf16.mxu0 0
    %5856 = vmatpush1.bf16.msra.mxu0 0
    %5857 = vmatprep.mubr.bf16.mxu0 0
    %5858 = vmatmul.mubr.bf16.gmra.mrb[0].mxu0 %v5780
    %v5859 = vpop.f32.mrb[0].mxu0
    %v5860 = vadd.f32 %v5819, %v5859
    %v5861 = vpop.f32.mrb[0].mxu0
    %v5862 = vadd.f32 %v5821, %v5861
    %v5863 = vpop.f32.mrb[0].mxu0
    %v5864 = vpop.f32.mrb[0].mxu0
    %5865 = vdwg.mxu0
    %5866 = vmatprep.subr.bf16.mxu0 0
    %5867 = vmatpush1.bf16.msra.mxu0 %v4567
    %5868 = vmatprep.subr.bf16.mxu0 0
    %5869 = vmatpush1.bf16.msra.mxu0 %v4570
    %5870 = vmatprep.subr.bf16.mxu0 0
    %5871 = vmatpush1.bf16.msra.mxu0 %v4573
    %5872 = vmatprep.subr.bf16.mxu0 0
    %5873 = vmatpush1.bf16.msra.mxu0 %v4576
    %5874 = vmatprep.subr.bf16.mxu0 0
    %5875 = vmatpush1.bf16.msra.mxu0 %v4579
    %5876 = vmatprep.subr.bf16.mxu0 0
    %5877 = vmatpush1.bf16.msra.mxu0 %v4582
    %5878 = vmatprep.subr.bf16.mxu0 0
    %5879 = vmatpush1.bf16.msra.mxu0 %v4585
    %5880 = vmatprep.subr.bf16.mxu0 0
    %5881 = vmatpush1.bf16.msra.mxu0 %v4588
    %5882 = vmatprep.subr.bf16.mxu0 0
    %5883 = vmatpush1.bf16.msra.mxu0 %v4591
    %5884 = vmatprep.subr.bf16.mxu0 0
    %5885 = vmatpush1.bf16.msra.mxu0 %v4594
    %5886 = vmatprep.subr.bf16.mxu0 0
    %5887 = vmatpush1.bf16.msra.mxu0 %v4597
    %5888 = vmatprep.subr.bf16.mxu0 0
    %5889 = vmatpush1.bf16.msra.mxu0 %v4600
    %5890 = vmatprep.subr.bf16.mxu0 0
    %5891 = vmatpush1.bf16.msra.mxu0 %v4603
    %5892 = vmatprep.subr.bf16.mxu0 0
    %5893 = vmatpush1.bf16.msra.mxu0 %v4606
    %5894 = vmatprep.subr.bf16.mxu0 0
    %5895 = vmatpush1.bf16.msra.mxu0 %v4609
    %5896 = vmatprep.subr.bf16.mxu0 0
    %5897 = vmatpush1.bf16.msra.mxu0 %v4612
    %5898 = vmatprep.mubr.bf16.mxu0 %v5779
    %5899 = vmatmul.mubr.bf16.gmra.mrb[0].mxu0 %v5778
    %v5900 = vpop.f32.mrb[0].mxu0
    %v5901 = vadd.f32 0.0, %v5900
    %v5902 = vpop.f32.mrb[0].mxu0
    %v5903 = vpop.f32.mrb[0].mxu0
    %v5904 = vpop.f32.mrb[0].mxu0
    %5905 = vdwg.mxu0
    %5906 = vmatprep.subr.bf16.mxu0 0
    %5907 = vmatpush1.bf16.msra.mxu0 %v4615
    %5908 = vmatprep.subr.bf16.mxu0 0
    %5909 = vmatpush1.bf16.msra.mxu0 %v4618
    %5910 = vmatprep.subr.bf16.mxu0 0
    %5911 = vmatpush1.bf16.msra.mxu0 %v4621
    %5912 = vmatprep.subr.bf16.mxu0 0
    %5913 = vmatpush1.bf16.msra.mxu0 %v4624
    %5914 = vmatprep.subr.bf16.mxu0 0
    %5915 = vmatpush1.bf16.msra.mxu0 %v4627
    %5916 = vmatprep.subr.bf16.mxu0 0
    %5917 = vmatpush1.bf16.msra.mxu0 %v4630
    %5918 = vmatprep.subr.bf16.mxu0 0
    %5919 = vmatpush1.bf16.msra.mxu0 %v4633
    %5920 = vmatprep.subr.bf16.mxu0 0
    %5921 = vmatpush1.bf16.msra.mxu0 %v4636
    %5922 = vmatprep.subr.bf16.mxu0 0
    %5923 = vmatpush1.bf16.msra.mxu0 0
    %5924 = vmatprep.subr.bf16.mxu0 0
    %5925 = vmatpush1.bf16.msra.mxu0 0
    %5926 = vmatprep.subr.bf16.mxu0 0
    %5927 = vmatpush1.bf16.msra.mxu0 0
    %5928 = vmatprep.subr.bf16.mxu0 0
    %5929 = vmatpush1.bf16.msra.mxu0 0
    %5930 = vmatprep.subr.bf16.mxu0 0
    %5931 = vmatpush1.bf16.msra.mxu0 0
    %5932 = vmatprep.subr.bf16.mxu0 0
    %5933 = vmatpush1.bf16.msra.mxu0 0
    %5934 = vmatprep.subr.bf16.mxu0 0
    %5935 = vmatpush1.bf16.msra.mxu0 0
    %5936 = vmatprep.subr.bf16.mxu0 0
    %5937 = vmatpush1.bf16.msra.mxu0 0
    %5938 = vmatprep.mubr.bf16.mxu0 0
    %5939 = vmatmul.mubr.bf16.gmra.mrb[0].mxu0 %v5780
    %v5940 = vpop.f32.mrb[0].mxu0
    %v5941 = vadd.f32 %v5901, %v5940
    %v5942 = vpop.f32.mrb[0].mxu0
    %v5943 = vpop.f32.mrb[0].mxu0
    %v5944 = vpop.f32.mrb[0].mxu0
    %5945 = vdwg.mxu0
    %v5949 = vrot.slane %v5860, 3
    %v5950 = vrot.slane %v5862, 3
    %v5951 = vrot.slane %v5941, 3
    %v5955 = vadd.f32 %v4830, %v5949
    %v5956 = vadd.f32 %v4831, %v5950
    %v5957 = vadd.f32 %v4832, %v5951
    %v5958 = vtanh.pop %v5955
    %v5959 = vtanh.pop %v5956
    %v5960 = vtanh.pop %v5957
    %v5961 = vpack.c.bf16 %v5958, %v5958
    %v5962 = vpack.c.bf16 %v5959, %v5959
    %v5963 = vpack.c.bf16 %v5960, %v5960
    %v5965 = vshrl.u32 %v5961, 16
    %v5967 = vrot.slane %v5965, 2
    %v5969 = vshrl.u32 %v5962, 16
    %v5971 = vrot.slane %v5969, 2
    %v5973 = vshrl.u32 %v5963, 16
    %v5975 = vrot.slane %v5973, 2
    %5979 = vmatprep.subr.bf16.mxu0 %v4566
    %5980 = vmatpush1.bf16.msra.mxu0 %v4565
    %5981 = vmatprep.subr.bf16.mxu0 %v4569
    %5982 = vmatpush1.bf16.msra.mxu0 %v4568
    %5983 = vmatprep.subr.bf16.mxu0 %v4572
    %5984 = vmatpush1.bf16.msra.mxu0 %v4571
    %5985 = vmatprep.subr.bf16.mxu0 %v4575
    %5986 = vmatpush1.bf16.msra.mxu0 %v4574
    %5987 = vmatprep.subr.bf16.mxu0 %v4578
    %5988 = vmatpush1.bf16.msra.mxu0 %v4577
    %5989 = vmatprep.subr.bf16.mxu0 %v4581
    %5990 = vmatpush1.bf16.msra.mxu0 %v4580
    %5991 = vmatprep.subr.bf16.mxu0 %v4584
    %5992 = vmatpush1.bf16.msra.mxu0 %v4583
    %5993 = vmatprep.subr.bf16.mxu0 %v4587
    %5994 = vmatpush1.bf16.msra.mxu0 %v4586
    %5995 = vmatprep.subr.bf16.mxu0 %v4590
    %5996 = vmatpush1.bf16.msra.mxu0 %v4589
    %5997 = vmatprep.subr.bf16.mxu0 %v4593
    %5998 = vmatpush1.bf16.msra.mxu0 %v4592
    %5999 = vmatprep.subr.bf16.mxu0 %v4596
    %6000 = vmatpush1.bf16.msra.mxu0 %v4595
    %6001 = vmatprep.subr.bf16.mxu0 %v4599
    %6002 = vmatpush1.bf16.msra.mxu0 %v4598
    %6003 = vmatprep.subr.bf16.mxu0 %v4602
    %6004 = vmatpush1.bf16.msra.mxu0 %v4601
    %6005 = vmatprep.subr.bf16.mxu0 %v4605
    %6006 = vmatpush1.bf16.msra.mxu0 %v4604
    %6007 = vmatprep.subr.bf16.mxu0 %v4608
    %6008 = vmatpush1.bf16.msra.mxu0 %v4607
    %6009 = vmatprep.subr.bf16.mxu0 %v4611
    %6010 = vmatpush1.bf16.msra.mxu0 %v4610
    %6011 = vmatprep.mubr.bf16.mxu0 %v5971
    %6012 = vmatmul.mubr.bf16.gmra.mrb[0].mxu0 %v5967
    %v6013 = vpop.f32.mrb[0].mxu0
    %v6014 = vadd.f32 0.0, %v6013
    %v6015 = vpop.f32.mrb[0].mxu0
    %v6016 = vadd.f32 0.0, %v6015
    %v6017 = vpop.f32.mrb[0].mxu0
    %v6018 = vpop.f32.mrb[0].mxu0
    %6019 = vdwg.mxu0
    %6020 = vmatprep.subr.bf16.mxu0 %v4614
    %6021 = vmatpush1.bf16.msra.mxu0 %v4613
    %6022 = vmatprep.subr.bf16.mxu0 %v4617
    %6023 = vmatpush1.bf16.msra.mxu0 %v4616
    %6024 = vmatprep.subr.bf16.mxu0 %v4620
    %6025 = vmatpush1.bf16.msra.mxu0 %v4619
    %6026 = vmatprep.subr.bf16.mxu0 %v4623
    %6027 = vmatpush1.bf16.msra.mxu0 %v4622
    %6028 = vmatprep.subr.bf16.mxu0 %v4626
    %6029 = vmatpush1.bf16.msra.mxu0 %v4625
    %6030 = vmatprep.subr.bf16.mxu0 %v4629
    %6031 = vmatpush1.bf16.msra.mxu0 %v4628
    %6032 = vmatprep.subr.bf16.mxu0 %v4632
    %6033 = vmatpush1.bf16.msra.mxu0 %v4631
    %6034 = vmatprep.subr.bf16.mxu0 %v4635
    %6035 = vmatpush1.bf16.msra.mxu0 %v4634
    %6036 = vmatprep.subr.bf16.mxu0 0
    %6037 = vmatpush1.bf16.msra.mxu0 0
    %6038 = vmatprep.subr.bf16.mxu0 0
    %6039 = vmatpush1.bf16.msra.mxu0 0
    %6040 = vmatprep.subr.bf16.mxu0 0
    %6041 = vmatpush1.bf16.msra.mxu0 0
    %6042 = vmatprep.subr.bf16.mxu0 0
    %6043 = vmatpush1.bf16.msra.mxu0 0
    %6044 = vmatprep.subr.bf16.mxu0 0
    %6045 = vmatpush1.bf16.msra.mxu0 0
    %6046 = vmatprep.subr.bf16.mxu0 0
    %6047 = vmatpush1.bf16.msra.mxu0 0
    %6048 = vmatprep.subr.bf16.mxu0 0
    %6049 = vmatpush1.bf16.msra.mxu0 0
    %6050 = vmatprep.subr.bf16.mxu0 0
    %6051 = vmatpush1.bf16.msra.mxu0 0
    %6052 = vmatprep.mubr.bf16.mxu0 0
    %6053 = vmatmul.mubr.bf16.gmra.mrb[0].mxu0 %v5975
    %v6054 = vpop.f32.mrb[0].mxu0
    %v6055 = vadd.f32 %v6014, %v6054
    %v6056 = vpop.f32.mrb[0].mxu0
    %v6057 = vadd.f32 %v6016, %v6056
    %v6058 = vpop.f32.mrb[0].mxu0
    %v6059 = vpop.f32.mrb[0].mxu0
    %6060 = vdwg.mxu0
    %6061 = vmatprep.subr.bf16.mxu0 0
    %6062 = vmatpush1.bf16.msra.mxu0 %v4567
    %6063 = vmatprep.subr.bf16.mxu0 0
    %6064 = vmatpush1.bf16.msra.mxu0 %v4570
    %6065 = vmatprep.subr.bf16.mxu0 0
    %6066 = vmatpush1.bf16.msra.mxu0 %v4573
    %6067 = vmatprep.subr.bf16.mxu0 0
    %6068 = vmatpush1.bf16.msra.mxu0 %v4576
    %6069 = vmatprep.subr.bf16.mxu0 0
    %6070 = vmatpush1.bf16.msra.mxu0 %v4579
    %6071 = vmatprep.subr.bf16.mxu0 0
    %6072 = vmatpush1.bf16.msra.mxu0 %v4582
    %6073 = vmatprep.subr.bf16.mxu0 0
    %6074 = vmatpush1.bf16.msra.mxu0 %v4585
    %6075 = vmatprep.subr.bf16.mxu0 0
    %6076 = vmatpush1.bf16.msra.mxu0 %v4588
    %6077 = vmatprep.subr.bf16.mxu0 0
    %6078 = vmatpush1.bf16.msra.mxu0 %v4591
    %6079 = vmatprep.subr.bf16.mxu0 0
    %6080 = vmatpush1.bf16.msra.mxu0 %v4594
    %6081 = vmatprep.subr.bf16.mxu0 0
    %6082 = vmatpush1.bf16.msra.mxu0 %v4597
    %6083 = vmatprep.subr.bf16.mxu0 0
    %6084 = vmatpush1.bf16.msra.mxu0 %v4600
    %6085 = vmatprep.subr.bf16.mxu0 0
    %6086 = vmatpush1.bf16.msra.mxu0 %v4603
    %6087 = vmatprep.subr.bf16.mxu0 0
    %6088 = vmatpush1.bf16.msra.mxu0 %v4606
    %6089 = vmatprep.subr.bf16.mxu0 0
    %6090 = vmatpush1.bf16.msra.mxu0 %v4609
    %6091 = vmatprep.subr.bf16.mxu0 0
    %6092 = vmatpush1.bf16.msra.mxu0 %v4612
    %6093 = vmatprep.mubr.bf16.mxu0 %v5971
    %6094 = vmatmul.mubr.bf16.gmra.mrb[0].mxu0 %v5967
    %v6095 = vpop.f32.mrb[0].mxu0
    %v6096 = vadd.f32 0.0, %v6095
    %v6097 = vpop.f32.mrb[0].mxu0
    %v6098 = vpop.f32.mrb[0].mxu0
    %v6099 = vpop.f32.mrb[0].mxu0
    %6100 = vdwg.mxu0
    %6101 = vmatprep.subr.bf16.mxu0 0
    %6102 = vmatpush1.bf16.msra.mxu0 %v4615
    %6103 = vmatprep.subr.bf16.mxu0 0
    %6104 = vmatpush1.bf16.msra.mxu0 %v4618
    %6105 = vmatprep.subr.bf16.mxu0 0
    %6106 = vmatpush1.bf16.msra.mxu0 %v4621
    %6107 = vmatprep.subr.bf16.mxu0 0
    %6108 = vmatpush1.bf16.msra.mxu0 %v4624
    %6109 = vmatprep.subr.bf16.mxu0 0
    %6110 = vmatpush1.bf16.msra.mxu0 %v4627
    %6111 = vmatprep.subr.bf16.mxu0 0
    %6112 = vmatpush1.bf16.msra.mxu0 %v4630
    %6113 = vmatprep.subr.bf16.mxu0 0
    %6114 = vmatpush1.bf16.msra.mxu0 %v4633
    %6115 = vmatprep.subr.bf16.mxu0 0
    %6116 = vmatpush1.bf16.msra.mxu0 %v4636
    %6117 = vmatprep.subr.bf16.mxu0 0
    %6118 = vmatpush1.bf16.msra.mxu0 0
    %6119 = vmatprep.subr.bf16.mxu0 0
    %6120 = vmatpush1.bf16.msra.mxu0 0
    %6121 = vmatprep.subr.bf16.mxu0 0
    %6122 = vmatpush1.bf16.msra.mxu0 0
    %6123 = vmatprep.subr.bf16.mxu0 0
    %6124 = vmatpush1.bf16.msra.mxu0 0
    %6125 = vmatprep.subr.bf16.mxu0 0
    %6126 = vmatpush1.bf16.msra.mxu0 0
    %6127 = vmatprep.subr.bf16.mxu0 0
    %6128 = vmatpush1.bf16.msra.mxu0 0
    %6129 = vmatprep.subr.bf16.mxu0 0
    %6130 = vmatpush1.bf16.msra.mxu0 0
    %6131 = vmatprep.subr.bf16.mxu0 0
    %6132 = vmatpush1.bf16.msra.mxu0 0
    %6133 = vmatprep.mubr.bf16.mxu0 0
    %6134 = vmatmul.mubr.bf16.gmra.mrb[0].mxu0 %v5975
    %v6135 = vpop.f32.mrb[0].mxu0
    %v6136 = vadd.f32 %v6096, %v6135
    %v6137 = vpop.f32.mrb[0].mxu0
    %v6138 = vpop.f32.mrb[0].mxu0
    %v6139 = vpop.f32.mrb[0].mxu0
    %6140 = vdwg.mxu0
    %v6144 = vrot.slane %v6055, 2
    %v6145 = vrot.slane %v6057, 2
    %v6146 = vrot.slane %v6136, 2
    %v6150 = vadd.f32 %v4830, %v6144
    %v6151 = vadd.f32 %v4831, %v6145
    %v6152 = vadd.f32 %v4832, %v6146
    %v6153 = vtanh.pop %v6150
    %v6154 = vtanh.pop %v6151
    %v6155 = vtanh.pop %v6152
    %v6156 = vpack.c.bf16 %v6153, %v6153
    %v6157 = vpack.c.bf16 %v6154, %v6154
    %v6158 = vpack.c.bf16 %v6155, %v6155
    %v6162 = vrot.slane %v6156, 3
    %v6163 = vrot.slane %v6157, 3
    %v6164 = vrot.slane %v6158, 3
    %6168 = vmatprep.subr.bf16.mxu0 %v4566
    %6169 = vmatpush1.bf16.msra.mxu0 %v4565
    %6170 = vmatprep.subr.bf16.mxu0 %v4569
    %6171 = vmatpush1.bf16.msra.mxu0 %v4568
    %6172 = vmatprep.subr.bf16.mxu0 %v4572
    %6173 = vmatpush1.bf16.msra.mxu0 %v4571
    %6174 = vmatprep.subr.bf16.mxu0 %v4575
    %6175 = vmatpush1.bf16.msra.mxu0 %v4574
    %6176 = vmatprep.subr.bf16.mxu0 %v4578
    %6177 = vmatpush1.bf16.msra.mxu0 %v4577
    %6178 = vmatprep.subr.bf16.mxu0 %v4581
    %6179 = vmatpush1.bf16.msra.mxu0 %v4580
    %6180 = vmatprep.subr.bf16.mxu0 %v4584
    %6181 = vmatpush1.bf16.msra.mxu0 %v4583
    %6182 = vmatprep.subr.bf16.mxu0 %v4587
    %6183 = vmatpush1.bf16.msra.mxu0 %v4586
    %6184 = vmatprep.subr.bf16.mxu0 %v4590
    %6185 = vmatpush1.bf16.msra.mxu0 %v4589
    %6186 = vmatprep.subr.bf16.mxu0 %v4593
    %6187 = vmatpush1.bf16.msra.mxu0 %v4592
    %6188 = vmatprep.subr.bf16.mxu0 %v4596
    %6189 = vmatpush1.bf16.msra.mxu0 %v4595
    %6190 = vmatprep.subr.bf16.mxu0 %v4599
    %6191 = vmatpush1.bf16.msra.mxu0 %v4598
    %6192 = vmatprep.subr.bf16.mxu0 %v4602
    %6193 = vmatpush1.bf16.msra.mxu0 %v4601
    %6194 = vmatprep.subr.bf16.mxu0 %v4605
    %6195 = vmatpush1.bf16.msra.mxu0 %v4604
    %6196 = vmatprep.subr.bf16.mxu0 %v4608
    %6197 = vmatpush1.bf16.msra.mxu0 %v4607
    %6198 = vmatprep.subr.bf16.mxu0 %v4611
    %6199 = vmatpush1.bf16.msra.mxu0 %v4610
    %6200 = vmatprep.mubr.bf16.mxu0 %v6163
    %6201 = vmatmul.mubr.bf16.gmra.mrb[0].mxu0 %v6162
    %v6202 = vpop.f32.mrb[0].mxu0
    %v6203 = vadd.f32 0.0, %v6202
    %v6204 = vpop.f32.mrb[0].mxu0
    %v6205 = vadd.f32 0.0, %v6204
    %v6206 = vpop.f32.mrb[0].mxu0
    %v6207 = vpop.f32.mrb[0].mxu0
    %6208 = vdwg.mxu0
    %6209 = vmatprep.subr.bf16.mxu0 %v4614
    %6210 = vmatpush1.bf16.msra.mxu0 %v4613
    %6211 = vmatprep.subr.bf16.mxu0 %v4617
    %6212 = vmatpush1.bf16.msra.mxu0 %v4616
    %6213 = vmatprep.subr.bf16.mxu0 %v4620
    %6214 = vmatpush1.bf16.msra.mxu0 %v4619
    %6215 = vmatprep.subr.bf16.mxu0 %v4623
    %6216 = vmatpush1.bf16.msra.mxu0 %v4622
    %6217 = vmatprep.subr.bf16.mxu0 %v4626
    %6218 = vmatpush1.bf16.msra.mxu0 %v4625
    %6219 = vmatprep.subr.bf16.mxu0 %v4629
    %6220 = vmatpush1.bf16.msra.mxu0 %v4628
    %6221 = vmatprep.subr.bf16.mxu0 %v4632
    %6222 = vmatpush1.bf16.msra.mxu0 %v4631
    %6223 = vmatprep.subr.bf16.mxu0 %v4635
    %6224 = vmatpush1.bf16.msra.mxu0 %v4634
    %6225 = vmatprep.subr.bf16.mxu0 0
    %6226 = vmatpush1.bf16.msra.mxu0 0
    %6227 = vmatprep.subr.bf16.mxu0 0
    %6228 = vmatpush1.bf16.msra.mxu0 0
    %6229 = vmatprep.subr.bf16.mxu0 0
    %6230 = vmatpush1.bf16.msra.mxu0 0
    %6231 = vmatprep.subr.bf16.mxu0 0
    %6232 = vmatpush1.bf16.msra.mxu0 0
    %6233 = vmatprep.subr.bf16.mxu0 0
    %6234 = vmatpush1.bf16.msra.mxu0 0
    %6235 = vmatprep.subr.bf16.mxu0 0
    %6236 = vmatpush1.bf16.msra.mxu0 0
    %6237 = vmatprep.subr.bf16.mxu0 0
    %6238 = vmatpush1.bf16.msra.mxu0 0
    %6239 = vmatprep.subr.bf16.mxu0 0
    %6240 = vmatpush1.bf16.msra.mxu0 0
    %6241 = vmatprep.mubr.bf16.mxu0 0
    %6242 = vmatmul.mubr.bf16.gmra.mrb[0].mxu0 %v6164
    %v6243 = vpop.f32.mrb[0].mxu0
    %v6244 = vadd.f32 %v6203, %v6243
    %v6245 = vpop.f32.mrb[0].mxu0
    %v6246 = vadd.f32 %v6205, %v6245
    %v6247 = vpop.f32.mrb[0].mxu0
    %v6248 = vpop.f32.mrb[0].mxu0
    %6249 = vdwg.mxu0
    %6250 = vmatprep.subr.bf16.mxu0 0
    %6251 = vmatpush1.bf16.msra.mxu0 %v4567
    %6252 = vmatprep.subr.bf16.mxu0 0
    %6253 = vmatpush1.bf16.msra.mxu0 %v4570
    %6254 = vmatprep.subr.bf16.mxu0 0
    %6255 = vmatpush1.bf16.msra.mxu0 %v4573
    %6256 = vmatprep.subr.bf16.mxu0 0
    %6257 = vmatpush1.bf16.msra.mxu0 %v4576
    %6258 = vmatprep.subr.bf16.mxu0 0
    %6259 = vmatpush1.bf16.msra.mxu0 %v4579
    %6260 = vmatprep.subr.bf16.mxu0 0
    %6261 = vmatpush1.bf16.msra.mxu0 %v4582
    %6262 = vmatprep.subr.bf16.mxu0 0
    %6263 = vmatpush1.bf16.msra.mxu0 %v4585
    %6264 = vmatprep.subr.bf16.mxu0 0
    %6265 = vmatpush1.bf16.msra.mxu0 %v4588
    %6266 = vmatprep.subr.bf16.mxu0 0
    %6267 = vmatpush1.bf16.msra.mxu0 %v4591
    %6268 = vmatprep.subr.bf16.mxu0 0
    %6269 = vmatpush1.bf16.msra.mxu0 %v4594
    %6270 = vmatprep.subr.bf16.mxu0 0
    %6271 = vmatpush1.bf16.msra.mxu0 %v4597
    %6272 = vmatprep.subr.bf16.mxu0 0
    %6273 = vmatpush1.bf16.msra.mxu0 %v4600
    %6274 = vmatprep.subr.bf16.mxu0 0
    %6275 = vmatpush1.bf16.msra.mxu0 %v4603
    %6276 = vmatprep.subr.bf16.mxu0 0
    %6277 = vmatpush1.bf16.msra.mxu0 %v4606
    %6278 = vmatprep.subr.bf16.mxu0 0
    %6279 = vmatpush1.bf16.msra.mxu0 %v4609
    %6280 = vmatprep.subr.bf16.mxu0 0
    %6281 = vmatpush1.bf16.msra.mxu0 %v4612
    %6282 = vmatprep.mubr.bf16.mxu0 %v6163
    %6283 = vmatmul.mubr.bf16.gmra.mrb[0].mxu0 %v6162
    %v6284 = vpop.f32.mrb[0].mxu0
    %v6285 = vadd.f32 0.0, %v6284
    %v6286 = vpop.f32.mrb[0].mxu0
    %v6287 = vpop.f32.mrb[0].mxu0
    %v6288 = vpop.f32.mrb[0].mxu0
    %6289 = vdwg.mxu0
    %6290 = vmatprep.subr.bf16.mxu0 0
    %6291 = vmatpush1.bf16.msra.mxu0 %v4615
    %6292 = vmatprep.subr.bf16.mxu0 0
    %6293 = vmatpush1.bf16.msra.mxu0 %v4618
    %6294 = vmatprep.subr.bf16.mxu0 0
    %6295 = vmatpush1.bf16.msra.mxu0 %v4621
    %6296 = vmatprep.subr.bf16.mxu0 0
    %6297 = vmatpush1.bf16.msra.mxu0 %v4624
    %6298 = vmatprep.subr.bf16.mxu0 0
    %6299 = vmatpush1.bf16.msra.mxu0 %v4627
    %6300 = vmatprep.subr.bf16.mxu0 0
    %6301 = vmatpush1.bf16.msra.mxu0 %v4630
    %6302 = vmatprep.subr.bf16.mxu0 0
    %6303 = vmatpush1.bf16.msra.mxu0 %v4633
    %6304 = vmatprep.subr.bf16.mxu0 0
    %6305 = vmatpush1.bf16.msra.mxu0 %v4636
    %6306 = vmatprep.subr.bf16.mxu0 0
    %6307 = vmatpush1.bf16.msra.mxu0 0
    %6308 = vmatprep.subr.bf16.mxu0 0
    %6309 = vmatpush1.bf16.msra.mxu0 0
    %6310 = vmatprep.subr.bf16.mxu0 0
    %6311 = vmatpush1.bf16.msra.mxu0 0
    %6312 = vmatprep.subr.bf16.mxu0 0
    %6313 = vmatpush1.bf16.msra.mxu0 0
    %6314 = vmatprep.subr.bf16.mxu0 0
    %6315 = vmatpush1.bf16.msra.mxu0 0
    %6316 = vmatprep.subr.bf16.mxu0 0
    %6317 = vmatpush1.bf16.msra.mxu0 0
    %6318 = vmatprep.subr.bf16.mxu0 0
    %6319 = vmatpush1.bf16.msra.mxu0 0
    %6320 = vmatprep.subr.bf16.mxu0 0
    %6321 = vmatpush1.bf16.msra.mxu0 0
    %6322 = vmatprep.mubr.bf16.mxu0 0
    %6323 = vmatmul.mubr.bf16.gmra.mrb[0].mxu0 %v6164
    %v6324 = vpop.f32.mrb[0].mxu0
    %v6325 = vadd.f32 %v6285, %v6324
    %v6326 = vpop.f32.mrb[0].mxu0
    %v6327 = vpop.f32.mrb[0].mxu0
    %v6328 = vpop.f32.mrb[0].mxu0
    %6329 = vdwg.mxu0
    %v6333 = vrot.slane %v6244, 1
    %v6334 = vrot.slane %v6246, 1
    %v6335 = vrot.slane %v6325, 1
    %v6339 = vadd.f32 %v4830, %v6333
    %v6340 = vadd.f32 %v4831, %v6334
    %v6341 = vadd.f32 %v4832, %v6335
    %v6342 = vtanh.pop %v6339
    %v6343 = vtanh.pop %v6340
    %v6344 = vtanh.pop %v6341
    %v6345 = vpack.c.bf16 %v6342, %v6342
    %v6346 = vpack.c.bf16 %v6343, %v6343
    %v6347 = vpack.c.bf16 %v6344, %v6344
    %v6348 = vsel %vm2487, %v5016, %v5196
    %v6349 = vsel %vm2487, %v5017, %v5197
    %v6350 = vsel %vm2487, %v5018, %v5198
    %v6353 = vsel %vm2491, %v6348, %v5388
    %v6357 = vsel %vm2491, %v6349, %v5389
    %v6361 = vsel %vm2491, %v6350, %v5390
    %v6363 = vsel %vm2506, %v6353, %v5577
    %v6364 = vsel %vm2506, %v6357, %v5578
    %v6365 = vsel %vm2506, %v6361, %v5579
    %v6368 = vsel %vm2510, %v6363, %v5772
    %v6372 = vsel %vm2510, %v6364, %v5773
    %v6376 = vsel %vm2510, %v6365, %v5774
    %v6378 = vsel %vm2525, %v6368, %v5961
    %v6379 = vsel %vm2525, %v6372, %v5962
    %v6380 = vsel %vm2525, %v6376, %v5963
    %v6383 = vsel %vm2529, %v6378, %v6156
    %v6387 = vsel %vm2529, %v6379, %v6157
    %v6391 = vsel %vm2529, %v6380, %v6158
    %v6393 = vsel %vm2544, %v6383, %v6345
    %v6394 = vsel %vm2544, %v6387, %v6346
    %v6395 = vsel %vm2544, %v6391, %v6347
    %v6399 = vunpack.c.l.b16 %v6393
    %v6400 = vunpack.c.l.b16 %v6394
    %v6401 = vunpack.c.l.b16 %v6395
    %v6402 = vpack.c.b16 %v6400, %v6399
    %v6403 = vpack.c.b16 %v6401, %v6401
    %6406 = vst [vmem:[#allocation3] sm:$0xff] %v6402
    %6407 = vst [vmem:[#allocation3 + $0x8] sm:$0xf] %v6403
    %s6408 = smul.u32 %s2560, 1
    %s6409 = sshll.u32 %s6408, 4
    %6410 = dma.done %s216, %s6409
    %s6411 = smul.u32 4, 16
    %s6412 = smul.u32 %s6411, 1
    %s6413 = sshll.u32 %s6412, 4
    %6414 = dma.done %s228, %s6413
    %v6415 = vld [vmem:[#allocation3] sm:$0xff]
    %v6416 = vld [vmem:[#allocation3 + $0x8] sm:$0xf]
    %v6417 = vmax.bf16 %v6415, 0
    %v6418 = vmax.bf16 %v6416, 0
    %v6419 = vld [vmem:[#allocation9] sm:$0xff]
    %v6420 = vld [vmem:[#allocation9 + $0x8] sm:$0xff]
    %v6421 = vld [vmem:[#allocation9 + $0x10] sm:$0xff]
    %v6422 = vld [vmem:[#allocation9 + $0x18] sm:$0xff]
    %v6423 = vld [vmem:[#allocation9 + $0x20] sm:$0xff]
    %v6424 = vld [vmem:[#allocation9 + $0x28] sm:$0xff]
    %v6425 = vld [vmem:[#allocation9 + $0x30] sm:$0xff]
    %v6426 = vld [vmem:[#allocation9 + $0x38] sm:$0xff]
    %v6427 = vld [vmem:[#allocation9 + $0x40] sm:$0xff]
    %v6428 = vld [vmem:[#allocation9 + $0x48] sm:$0xff]
    %v6429 = vld [vmem:[#allocation9 + $0x50] sm:$0xff]
    %v6430 = vld [vmem:[#allocation9 + $0x58] sm:$0xff]
    %v6431 = vld [vmem:[#allocation9 + $0x60] sm:$0xff]
    %v6432 = vld [vmem:[#allocation9 + $0x68] sm:$0xff]
    %v6433 = vld [vmem:[#allocation9 + $0x70] sm:$0xff]
    %v6434 = vld [vmem:[#allocation9 + $0x78] sm:$0xff]
    %v6435 = vld [vmem:[#allocation9 + $0x80] sm:$0xff]
    %v6436 = vld [vmem:[#allocation9 + $0x88] sm:$0xff]
    %v6437 = vld [vmem:[#allocation9 + $0x90] sm:$0xff]
    %v6438 = vld [vmem:[#allocation9 + $0x98] sm:$0xff]
    %v6439 = vld [vmem:[#allocation9 + $0xa0] sm:$0xff]
    %v6440 = vld [vmem:[#allocation9 + $0xa8] sm:$0xff]
    %v6441 = vld [vmem:[#allocation9 + $0xb0] sm:$0xff]
    %v6442 = vld [vmem:[#allocation9 + $0xb8] sm:$0xff]
    %v6443 = vld [vmem:[%s11] sm:$0x1]
    %v6445 = vlaneseq
    %v6446 = vshrl.u32 %v6445, 7
    %v6447 = vsub.s32 0, %v6446
    %v6448 = vrot.slane %v6443, %v6447
    %v6452 = vunpack.c.l.b16 %v6417
    %v6453 = vunpack.c.h.b16 %v6417
    %v6454 = vunpack.c.l.b16 %v6418
    %v6455 = vpack.c.b16 %v6452, %v6452
    %v6456 = vpack.c.b16 %v6453, %v6453
    %v6457 = vpack.c.b16 %v6454, %v6454
    %6461 = vmatprep.subr.bf16.mxu0 0
    %6462 = vmatpush1.bf16.msra.mxu0 %v6419
    %6463 = vmatprep.subr.bf16.mxu0 0
    %6464 = vmatpush1.bf16.msra.mxu0 %v6420
    %6465 = vmatprep.subr.bf16.mxu0 0
    %6466 = vmatpush1.bf16.msra.mxu0 %v6421
    %6467 = vmatprep.subr.bf16.mxu0 0
    %6468 = vmatpush1.bf16.msra.mxu0 %v6422
    %6469 = vmatprep.subr.bf16.mxu0 0
    %6470 = vmatpush1.bf16.msra.mxu0 %v6423
    %6471 = vmatprep.subr.bf16.mxu0 0
    %6472 = vmatpush1.bf16.msra.mxu0 %v6424
    %6473 = vmatprep.subr.bf16.mxu0 0
    %6474 = vmatpush1.bf16.msra.mxu0 %v6425
    %6475 = vmatprep.subr.bf16.mxu0 0
    %6476 = vmatpush1.bf16.msra.mxu0 %v6426
    %6477 = vmatprep.subr.bf16.mxu0 0
    %6478 = vmatpush1.bf16.msra.mxu0 %v6427
    %6479 = vmatprep.subr.bf16.mxu0 0
    %6480 = vmatpush1.bf16.msra.mxu0 %v6428
    %6481 = vmatprep.subr.bf16.mxu0 0
    %6482 = vmatpush1.bf16.msra.mxu0 %v6429
    %6483 = vmatprep.subr.bf16.mxu0 0
    %6484 = vmatpush1.bf16.msra.mxu0 %v6430
    %6485 = vmatprep.subr.bf16.mxu0 0
    %6486 = vmatpush1.bf16.msra.mxu0 %v6431
    %6487 = vmatprep.subr.bf16.mxu0 0
    %6488 = vmatpush1.bf16.msra.mxu0 %v6432
    %6489 = vmatprep.subr.bf16.mxu0 0
    %6490 = vmatpush1.bf16.msra.mxu0 %v6433
    %6491 = vmatprep.subr.bf16.mxu0 0
    %6492 = vmatpush1.bf16.msra.mxu0 %v6434
    %6493 = vmatprep.mubr.bf16.mxu0 %v6456
    %6494 = vmatmul.mubr.bf16.gmra.mrb[0].mxu0 %v6455
    %v6495 = vpop.f32.mrb[0].mxu0
    %v6496 = vadd.f32 %v6448, %v6495
    %v6497 = vpop.f32.mrb[0].mxu0
    %v6498 = vpop.f32.mrb[0].mxu0
    %v6499 = vpop.f32.mrb[0].mxu0
    %6500 = vdwg.mxu0
    %6501 = vmatprep.subr.bf16.mxu0 0
    %6502 = vmatpush1.bf16.msra.mxu0 %v6435
    %6503 = vmatprep.subr.bf16.mxu0 0
    %6504 = vmatpush1.bf16.msra.mxu0 %v6436
    %6505 = vmatprep.subr.bf16.mxu0 0
    %6506 = vmatpush1.bf16.msra.mxu0 %v6437
    %6507 = vmatprep.subr.bf16.mxu0 0
    %6508 = vmatpush1.bf16.msra.mxu0 %v6438
    %6509 = vmatprep.subr.bf16.mxu0 0
    %6510 = vmatpush1.bf16.msra.mxu0 %v6439
    %6511 = vmatprep.subr.bf16.mxu0 0
    %6512 = vmatpush1.bf16.msra.mxu0 %v6440
    %6513 = vmatprep.subr.bf16.mxu0 0
    %6514 = vmatpush1.bf16.msra.mxu0 %v6441
    %6515 = vmatprep.subr.bf16.mxu0 0
    %6516 = vmatpush1.bf16.msra.mxu0 %v6442
    %6517 = vmatprep.subr.bf16.mxu0 0
    %6518 = vmatpush1.bf16.msra.mxu0 0
    %6519 = vmatprep.subr.bf16.mxu0 0
    %6520 = vmatpush1.bf16.msra.mxu0 0
    %6521 = vmatprep.subr.bf16.mxu0 0
    %6522 = vmatpush1.bf16.msra.mxu0 0
    %6523 = vmatprep.subr.bf16.mxu0 0
    %6524 = vmatpush1.bf16.msra.mxu0 0
    %6525 = vmatprep.subr.bf16.mxu0 0
    %6526 = vmatpush1.bf16.msra.mxu0 0
    %6527 = vmatprep.subr.bf16.mxu0 0
    %6528 = vmatpush1.bf16.msra.mxu0 0
    %6529 = vmatprep.subr.bf16.mxu0 0
    %6530 = vmatpush1.bf16.msra.mxu0 0
    %6531 = vmatprep.subr.bf16.mxu0 0
    %6532 = vmatpush1.bf16.msra.mxu0 0
    %6533 = vmatprep.mubr.bf16.mxu0 0
    %6534 = vmatmul.mubr.bf16.gmra.mrb[0].mxu0 %v6457
    %v6535 = vpop.f32.mrb[0].mxu0
    %v6536 = vadd.f32 %v6496, %v6535
    %v6537 = vpop.f32.mrb[0].mxu0
    %v6538 = vpop.f32.mrb[0].mxu0
    %v6539 = vpop.f32.mrb[0].mxu0
    %6540 = vdwg.mxu0
    %v6541 = vmax.f32 %v6536, 0.0
    %v6542 = vpack.c.bf16 %v6541, %v6541
    %v6543 = vld [vmem:[#allocation10] sm:$0xff]
    %v6544 = vld [vmem:[#allocation10 + $0x8] sm:$0xff]
    %v6545 = vld [vmem:[#allocation10 + $0x10] sm:$0xff]
    %v6546 = vld [vmem:[#allocation10 + $0x18] sm:$0xff]
    %v6547 = vld [vmem:[#allocation10 + $0x20] sm:$0xff]
    %v6548 = vld [vmem:[#allocation10 + $0x28] sm:$0xff]
    %v6549 = vld [vmem:[#allocation10 + $0x30] sm:$0xff]
    %v6550 = vld [vmem:[#allocation10 + $0x38] sm:$0xff]
    %v6551 = vld [vmem:[%s13] sm:$0x1]
    %v6553 = vlaneseq
    %v6554 = vshrl.u32 %v6553, 7
    %v6555 = vsub.s32 0, %v6554
    %v6556 = vrot.slane %v6551, %v6555
    %6558 = vmatprep.subr.bf16.mxu0 0
    %6559 = vmatpush1.bf16.msra.mxu0 %v6543
    %6560 = vmatprep.subr.bf16.mxu0 0
    %6561 = vmatpush1.bf16.msra.mxu0 %v6544
    %6562 = vmatprep.subr.bf16.mxu0 0
    %6563 = vmatpush1.bf16.msra.mxu0 %v6545
    %6564 = vmatprep.subr.bf16.mxu0 0
    %6565 = vmatpush1.bf16.msra.mxu0 %v6546
    %6566 = vmatprep.subr.bf16.mxu0 0
    %6567 = vmatpush1.bf16.msra.mxu0 %v6547
    %6568 = vmatprep.subr.bf16.mxu0 0
    %6569 = vmatpush1.bf16.msra.mxu0 %v6548
    %6570 = vmatprep.subr.bf16.mxu0 0
    %6571 = vmatpush1.bf16.msra.mxu0 %v6549
    %6572 = vmatprep.subr.bf16.mxu0 0
    %6573 = vmatpush1.bf16.msra.mxu0 %v6550
    %6574 = vmatprep.subr.bf16.mxu0 0
    %6575 = vmatpush1.bf16.msra.mxu0 0
    %6576 = vmatprep.subr.bf16.mxu0 0
    %6577 = vmatpush1.bf16.msra.mxu0 0
    %6578 = vmatprep.subr.bf16.mxu0 0
    %6579 = vmatpush1.bf16.msra.mxu0 0
    %6580 = vmatprep.subr.bf16.mxu0 0
    %6581 = vmatpush1.bf16.msra.mxu0 0
    %6582 = vmatprep.subr.bf16.mxu0 0
    %6583 = vmatpush1.bf16.msra.mxu0 0
    %6584 = vmatprep.subr.bf16.mxu0 0
    %6585 = vmatpush1.bf16.msra.mxu0 0
    %6586 = vmatprep.subr.bf16.mxu0 0
    %6587 = vmatpush1.bf16.msra.mxu0 0
    %6588 = vmatprep.subr.bf16.mxu0 0
    %6589 = vmatpush1.bf16.msra.mxu0 0
    %6590 = vmatprep.mubr.bf16.mxu0 0
    %6591 = vmatmul.mubr.bf16.gmra.mrb[0].mxu0 %v6542
    %v6592 = vpop.f32.mrb[0].mxu0
    %v6593 = vadd.f32 %v6556, %v6592
    %v6594 = vpop.f32.mrb[0].mxu0
    %v6595 = vpop.f32.mrb[0].mxu0
    %v6596 = vpop.f32.mrb[0].mxu0
    %6597 = vdwg.mxu0
    %6598 = vst [vmem:[#allocation18] sm:$0xff] %v6593
    // Predicated region
    $region54: #{tpu_custom_call.1} parent=1 // pred_check
      _
    $region55: #{tpu_custom_call.1} parent=1 // pred_check_branch
      %6600 = sbr.rel (0) target = $region57
    $region56: #{tpu_custom_call.1} parent=1 // pred_region
      %s6602 = ssub.s32 128, 128
      %6603 = vsyncadd [#allocation14], %s6602
      %s6605 = sshll.u32 [#allocation18], 4
      %s6606 = int_to_ptr.vmem [resolvable:$true] %s6605
      %6608 = dma.vmem_to_hbm [thread:$0]  %s6606, 128, %s14, [#allocation14]
    $region57: #{tpu_custom_call.1} parent=1 // pred_fallthru
      _
    // Predicated region
    $region58: #{tpu_custom_call.1} parent=1 // pred_check
      _
    $region59: #{tpu_custom_call.1} parent=1 // pred_check_branch
      %6610 = sbr.rel (0) target = $region61
    $region60: #{tpu_custom_call.1} parent=1 // pred_region
      %6611 = dma.done [#allocation14], 128
    $region61: #{tpu_custom_call.1} parent=1 // pred_fallthru
      _
    %6612 = vsyncpa [#allocation13], 1
    %6613 = vsyncpa [#allocation16], 1
    %6614 = vsyncpa [#allocation14], 1
  %6615 = vsyncmov [#allocation11]
  %s6616 = vpop.sfrf %6615
  %p6617 = scmp.eq.s32.totalorder %s6616, 0
  %p6618 = pneg %p6617
  %6620 = shalt.err (%p6618)
  %s6621 = scalar_lea.sflag [#allocation11], 1
  %6622 = vsyncmov %s6621
  %s6623 = vpop.sfrf %6622
  %p6624 = scmp.eq.s32.totalorder %s6623, 0
  %p6625 = pneg %p6624
  %6627 = shalt.err (%p6625)
  %s6628 = scalar_lea.sflag [#allocation11], 2
  %6629 = vsyncmov %s6628
  %s6630 = vpop.sfrf %6629
  %p6631 = scmp.eq.s32.totalorder %s6630, 0
  %p6632 = pneg %p6631
  %6634 = shalt.err (%p6632)
  %s6635 = scalar_lea.sflag [#allocation11], 3
  %6636 = vsyncmov %s6635
  %s6637 = vpop.sfrf %6636
  %p6638 = scmp.eq.s32.totalorder %s6637, 0
  %p6639 = pneg %p6638
  %6641 = shalt.err (%p6639)
  %s6642 = scalar_lea.sflag [#allocation11], 4
  %6643 = vsyncmov %s6642
  %s6644 = vpop.sfrf %6643
  %p6645 = scmp.eq.s32.totalorder %s6644, 0
  %p6646 = pneg %p6645
  %6648 = shalt.err (%p6646)
  %s6649 = scalar_lea.sflag [#allocation11], 5
  %6650 = vsyncmov %s6649
  %s6651 = vpop.sfrf %6650
  %p6652 = scmp.eq.s32.totalorder %s6651, 0
  %p6653 = pneg %p6652
  %6655 = shalt.err (%p6653)

</llo_original>
